<compile_context>
chip_gen: v7x
topology: tpu7x:2x2x1
jax: 0.10.0
libtpu: 0.0.40
codegen_flags: <defaults>
</compile_context>

<pallas_src>
import jax
import jax.numpy as jnp
from jax import lax
from jax.experimental import pallas as pl
from jax.experimental.pallas import tpu as pltpu

RNN_INPUT_SIZE = 200  # default of CNN128.__init__ (fc1 = Linear(144, 200))


# ----------------------------------------------------------------------------
# Fused kernel: conv1(1->2,k4)+ReLU+pool4 -> conv2(2->4,k5)+ReLU+pool4 -> fc+ReLU
# ----------------------------------------------------------------------------
def _make_kernel(B):
    def kernel(x_ref, qdown_ref, rsel1_ref, w1_ref, b1_ref,
               w2rows_ref, b2_ref, wfc_ref, bfc_ref, o_ref, pscr):

        @pl.loop(0, B)
        def _per_image(b):
            # ---------------- stage 1: conv1 (1->2, k=4) + ReLU + maxpool(4,4) -------------
            # oc-outermost: only one (128,128) accumulator live at a time (no vreg spills);
            # the image is cheaply re-read from VMEM and rolls recomputed on the XLU.
            p1 = []
            for oc in range(2):
                xr = x_ref[b]                                   # (128,128)
                acc = None
                for kh in range(4):
                    xs = xr
                    for kw in range(4):
                        t = w1_ref[oc * 16 + kh * 4 + kw] * xs  # scalar (SMEM) broadcast
                        acc = t if acc is None else acc + t
                        if kw < 3:
                            xs = pltpu.roll(xs, shift=127, axis=1)   # xs[:,c] <- xs[:,c+1]
                    if kh < 3:
                        xr = pltpu.roll(xr, shift=127, axis=0)       # xr[r,:] <- xr[r+1,:]

                # rows: 4-window max via sublane rolls, then compact every 4th row on the MXU
                t1 = jnp.maximum(acc, pltpu.roll(acc, shift=127, axis=0))
                t2 = jnp.maximum(t1, pltpu.roll(t1, shift=126, axis=0))
                rmax = jnp.dot(rsel1_ref[...], t2,
                               preferred_element_type=jnp.float32)   # (32,128)
                # cols: 4-window max via lane rolls; deferred bias+ReLU (before qdown!)
                c1 = jnp.maximum(rmax, pltpu.roll(rmax, shift=127, axis=1))
                c2 = jnp.maximum(c1, pltpu.roll(c1, shift=126, axis=1))
                act = jnp.maximum(c2 + b1_ref[oc], 0.0)
                p1.append(jnp.dot(act, qdown_ref[...],
                                  preferred_element_type=jnp.float32))  # (32,128), lanes>=31 = 0

            # ---------------- stage 2: conv2 (2->4, k=5), ic packed into lanes ------------
            # packed: ic0 at lanes 0..30, ic1 at lanes 32..62, zeros elsewhere.
            packed = p1[0] + pltpu.roll(p1[1], shift=32, axis=1)
            acc2 = [None, None, None, None]
            xr = packed
            for kh in range(5):
                xs = xr
                for kw in range(5):
                    tap = kh * 5 + kw
                    for oc in range(4):
                        row = oc * 32 + tap
                        wrow = w2rows_ref[row:row + 1, :]        # (1,128) lane-wise weights
                        t = wrow * xs                            # one mul+add covers both ic
                        acc2[oc] = t if acc2[oc] is None else acc2[oc] + t
                    if kw < 4:
                        xs = pltpu.roll(xs, shift=127, axis=1)
                if kh < 4:
                    xr = pltpu.roll(xr, shift=31, axis=0)        # xr[r,:] <- xr[r+1,:] (32 rows)

            # -------- stage-2 ReLU + maxpool(4,4); channel oc placed at lanes 32*oc+w ------
            P = None
            for oc in range(4):
                a = acc2[oc]
                a = a + pltpu.roll(a, shift=96, axis=1)          # fold ic=1 half onto lanes 0..30
                t1 = jnp.maximum(a, pltpu.roll(a, shift=31, axis=0))
                t2 = jnp.maximum(t1, pltpu.roll(t1, shift=30, axis=0))   # row 4h = pool row h
                c1 = jnp.maximum(t2, pltpu.roll(t2, shift=127, axis=1))
                c2 = jnp.maximum(c1, pltpu.roll(c1, shift=126, axis=1))
                act = jnp.maximum(c2 + b2_ref[oc], 0.0)          # deferred bias+ReLU, pre-qdown
                pooled = jnp.dot(act, qdown_ref[...],
                                 preferred_element_type=jnp.float32)     # (32,128)
                if oc > 0:
                    pooled = pltpu.roll(pooled, shift=oc * 32, axis=1)
                P = pooled if P is None else P + pooled
            # stash this image's pooled tile; row compaction is folded into the fc gather
            pscr[pl.ds(pl.multiple_of(b * 32, 32), 32), :] = P

        # ---------------- fc1 (144 -> n_out, zero-padded to 256 lanes), batched over B -----
        fc = None
        for h in range(6):
            lhs = pscr[pl.ds(4 * h, B, stride=32), :]            # (B,128): row 4h of each image
            t = jnp.dot(lhs, wfc_ref[h], preferred_element_type=jnp.float32)
            fc = t if fc is None else fc + t
        o_ref[0] = jnp.maximum(fc + bfc_ref[...], 0.0)           # (B, out_pad), lane dense

    return kernel


# ----------------------------------------------------------------------------
# Host-side constant preparation (done ONCE, outside the jit path)
# ----------------------------------------------------------------------------
def prepare_params(params):
    """Flatten conv weights, build select matrices and pad the fc weights to kernel layout."""
    w1, b1, w2, b2, wfc, bfc = params
    n_out = wfc.shape[0]
    out_pad = max(128, ((n_out + 127) // 128) * 128)             # 200 -> 256 (lane dense)

    # stride-4 column down-select: qdown[4j, j] = 1 for j < 31
    r = lax.broadcasted_iota(jnp.int32, (128, 128), 0)
    c = lax.broadcasted_iota(jnp.int32, (128, 128), 1)
    qdown = ((r == 4 * c) & (c < 31)).astype(jnp.float32)

    # stride-4 row down-select (128 -> 32 rows): rsel1[i, 4i] = 1 for i < 31
    r = lax.broadcasted_iota(jnp.int32, (32, 128), 0)
    c = lax.broadcasted_iota(jnp.int32, (32, 128), 1)
    rsel1 = ((c == 4 * r) & (r < 31)).astype(jnp.float32)

    # conv2 per-tap lane weights: row oc*32 + (kh*5+kw) carries w2[oc,0,kh,kw] in lanes 0..31
    # and w2[oc,1,kh,kw] in lanes 32..63 (matching the ic-packed p1 tile); rest zero.
    w2f = jnp.asarray(w2, jnp.float32)                           # (4,2,5,5)
    taps = jnp.transpose(w2f, (0, 2, 3, 1)).reshape(4, 25, 2)    # [oc, tap, ic]
    lanes = jnp.zeros((4, 25, 4, 32), jnp.float32)
    lanes = lanes.at[:, :, 0, :].set(taps[:, :, 0:1])
    lanes = lanes.at[:, :, 1, :].set(taps[:, :, 1:2])
    w2rows = jnp.zeros((4, 32, 128), jnp.float32).at[:, :25, :].set(
        lanes.reshape(4, 25, 128)).reshape(128, 128)

    # fc weights: wfc_pad[h, 32*oc + w, o] = wfc[o, 36*oc + 6*h + w]   (torch C,H,W flatten)
    wt = jnp.asarray(wfc, jnp.float32).T.reshape(4, 6, 6, n_out)  # (oc, h, w, O)
    wt = jnp.transpose(wt, (1, 0, 2, 3))                          # (h, oc, w, O)
    blk = jnp.zeros((6, 4, 32, n_out), jnp.float32).at[:, :, :6, :].set(wt)
    wfc_pad = jnp.zeros((6, 128, out_pad), jnp.float32).at[:, :, :n_out].set(
        blk.reshape(6, 128, n_out))
    bfc_pad = jnp.zeros((1, out_pad), jnp.float32).at[0, :n_out].set(
        jnp.asarray(bfc, jnp.float32))

    return dict(
        qdown=qdown,
        rsel1=rsel1,
        w1=jnp.asarray(w1, jnp.float32).reshape(-1),   # (32,)  flat (oc, ic, kh, kw)
        b1=jnp.asarray(b1, jnp.float32),               # (2,)
        w2rows=w2rows,                                 # (128,128) per-tap lane weights
        b2=jnp.asarray(b2, jnp.float32),               # (4,)
        wfc_pad=wfc_pad,                               # (6, 128, 256)
        bfc_pad=bfc_pad,                               # (1, 256)
    )


def _pick_batch_block(n, max_b=8):
    """Largest B in {8,4,2,1} dividing n that keeps the grid >= 2 steps (v7x dual-TC)."""
    for cand in (8, 4, 2, 1):
        if cand <= max_b and n % cand == 0 and n // cand >= 2:
            return cand
    for cand in (8, 4, 2, 1):
        if cand <= max_b and n % cand == 0:
            return cand
    return 1


# ----------------------------------------------------------------------------
# Forward pass
# ----------------------------------------------------------------------------
def cnn128_forward(x, prep, n_out=RNN_INPUT_SIZE):
    n = x.shape[0]
    out_pad = prep["wfc_pad"].shape[-1]
    B = _pick_batch_block(n)
    x2 = x.reshape(n, 128, 128)                       # drop the singleton channel dim

    out = pl.pallas_call(
        _make_kernel(B),
        out_shape=jax.ShapeDtypeStruct((n // B, B, out_pad), jnp.float32),
        grid=(n // B,),
        in_specs=[
            pl.BlockSpec((B, 128, 128), lambda i: (i, 0, 0)),        # B images per step
            # constants: index_map always block 0 -> stay VMEM resident across the grid
            pl.BlockSpec((128, 128), lambda i: (0, 0)),              # qdown
            pl.BlockSpec((32, 128), lambda i: (0, 0)),               # rsel1
            pl.BlockSpec(memory_space=pltpu.MemorySpace.SMEM),       # w1 (scalars)
            pl.BlockSpec(memory_space=pltpu.MemorySpace.SMEM),       # b1
            pl.BlockSpec((128, 128), lambda i: (0, 0)),              # w2rows
            pl.BlockSpec(memory_space=pltpu.MemorySpace.SMEM),       # b2
            pl.BlockSpec((6, 128, out_pad), lambda i: (0, 0, 0)),    # padded fc weight
            pl.BlockSpec((1, out_pad), lambda i: (0, 0)),            # padded fc bias
        ],
        out_specs=pl.BlockSpec((1, B, out_pad), lambda i: (i, 0, 0)),
        scratch_shapes=[pltpu.VMEM((B * 32, 128), jnp.float32)],     # pooled features, B images
        compiler_params=pltpu.CompilerParams(
            dimension_semantics=("parallel",),        # lets v7x shard the batch over 2 TCs
            vmem_limit_bytes=8 * 1024 * 1024,         # actual footprint ~3 MiB
        ),
    )(x2, prep["qdown"], prep["rsel1"], prep["w1"], prep["b1"],
      prep["w2rows"], prep["b2"], prep["wfc_pad"], prep["bfc_pad"])

    return out.reshape(n, out_pad)[:, :n_out]


# ----------------------------------------------------------------------------
# Pure-JAX reference (for self-check)
# ----------------------------------------------------------------------------
def cnn128_reference(x, params):
    w1, b1, w2, b2, wfc, bfc = params

    def conv_relu(v, w, b):
        y = lax.conv_general_dilated(v, w, window_strides=(1, 1), padding="VALID",
                                     dimension_numbers=("NCHW", "OIHW", "NCHW"),
                                     precision=lax.Precision.HIGHEST)
        return jax.nn.relu(y + b[None, :, None, None])

    def pool(v):
        return lax.reduce_window(v, -jnp.inf, lax.max,
                                 (1, 1, 4, 4), (1, 1, 4, 4), "VALID")

    y = pool(conv_relu(x, w1, b1))
    y = pool(conv_relu(y, w2, b2))
    flat = y.reshape(y.shape[0], -1)
    return jax.nn.relu(jnp.dot(flat, wfc.T, precision=lax.Precision.HIGHEST) + bfc)


if __name__ == "__main__":
    key = jax.random.PRNGKey(0)
    ks = jax.random.split(key, 7)
    # deterministic synthetic parameters (shapes from CNN128.__init__)
    w1 = 0.1 * jax.random.normal(ks[0], (2, 1, 4, 4), jnp.float32)        # Conv2d(1, 2, 4)
    b1 = 0.1 * jax.random.normal(ks[1], (2,), jnp.float32)
    w2 = 0.1 * jax.random.normal(ks[2], (4, 2, 5, 5), jnp.float32)        # Conv2d(2, 4, 5)
    b2 = 0.1 * jax.random.normal(ks[3], (4,), jnp.float32)
    wfc = 0.05 * jax.random.normal(ks[4], (RNN_INPUT_SIZE, 144), jnp.float32)  # Linear(144, 200)
    bfc = 0.05 * jax.random.normal(ks[5], (RNN_INPUT_SIZE,), jnp.float32)

    # 128x128 single-channel input is forced by fc1(in_features=144 = 4*6*6);
    # batch=8 -> 4 images per grid step, 2 grid steps (exercises batched fc + dual-TC grid).
    x = jax.random.normal(ks[6], (8, 1, 128, 128), jnp.float32)

    params = (w1, b1, w2, b2, wfc, bfc)
    prep = prepare_params(params)                 # constants built once, outside jit

    fwd = jax.jit(cnn128_forward)
    out = jax.block_until_ready(fwd(x, prep))

    assert out.shape == (8, RNN_INPUT_SIZE) and out.dtype == jnp.float32
    assert bool(jnp.all(jnp.isfinite(out))) and bool(jnp.all(out >= 0.0))

    ref = cnn128_reference(x, params)
    max_err = float(jnp.max(jnp.abs(out - ref)))
    assert max_err < 5e-2, f"mismatch vs reference: max abs err = {max_err}"
    print("KERNEL_OK")
</pallas_src>

<mosaic_0001>
module attributes {stable_mosaic.version = 11 : i64} {
  func.func @kernel(%arg0: i32, %arg1: memref<4x128x128xf32, #tpu.memory_space<vmem>>, %arg2: memref<128x128xf32, #tpu.memory_space<vmem>>, %arg3: memref<32x128xf32, #tpu.memory_space<vmem>>, %arg4: memref<32xf32, #tpu.memory_space<smem>>, %arg5: memref<2xf32, #tpu.memory_space<smem>>, %arg6: memref<128x128xf32, #tpu.memory_space<vmem>>, %arg7: memref<4xf32, #tpu.memory_space<smem>>, %arg8: memref<6x128x256xf32, #tpu.memory_space<vmem>>, %arg9: memref<1x256xf32, #tpu.memory_space<vmem>>, %arg10: memref<1x4x256xf32, #tpu.memory_space<vmem>>, %arg11: memref<128x128xf32, #tpu.memory_space<vmem>>) attributes {dimension_semantics = [#tpu.dimension_semantics<parallel>], iteration_bounds = array<i64: 2>, scalar_prefetch = 0 : i64, scratch_operands = 1 : i64, tpu.core_type = #tpu.core_type<tc>, window_params = [{transform_indices = @transform_0, window_bounds = array<i64: 4, 128, 128>}, {pipeline_mode = #tpu.pipeline_mode<synchronous>, transform_indices = @transform_1, window_bounds = array<i64: 128, 128>}, {pipeline_mode = #tpu.pipeline_mode<synchronous>, transform_indices = @transform_2, window_bounds = array<i64: 32, 128>}, {transform_indices = @transform_3, window_bounds = array<i64: 32>}, {transform_indices = @transform_4, window_bounds = array<i64: 2>}, {pipeline_mode = #tpu.pipeline_mode<synchronous>, transform_indices = @transform_5, window_bounds = array<i64: 128, 128>}, {transform_indices = @transform_6, window_bounds = array<i64: 4>}, {pipeline_mode = #tpu.pipeline_mode<synchronous>, transform_indices = @transform_7, window_bounds = array<i64: 6, 128, 256>}, {pipeline_mode = #tpu.pipeline_mode<synchronous>, transform_indices = @transform_8, window_bounds = array<i64: 1, 256>}, {transform_indices = @transform_9, window_bounds = array<i64: 1, 4, 256>}]} {
    %c0_i32 = arith.constant 0 : i32
    %c4_i32 = arith.constant 4 : i32
    %0 = arith.addi %c0_i32, %c4_i32 : i32
    %c1_i32 = arith.constant 1 : i32
    scf.for %arg12 = %c0_i32 to %0 step %c1_i32  : i32 {
      %c1_i32_32 = arith.constant 1 : i32
      %38 = arith.muli %arg12, %c1_i32_32 : i32
      %c0_i32_33 = arith.constant 0 : i32
      %39 = arith.addi %c0_i32_33, %38 : i32
      %40 = arith.index_cast %39 : i32 to index
      %c0_34 = arith.constant 0 : index
      %c0_35 = arith.constant 0 : index
      %41 = vector.load %arg1[%40, %c0_34, %c0_35] : memref<4x128x128xf32, #tpu.memory_space<vmem>>, vector<1x128x128xf32>
      %42 = vector.shape_cast %41 : vector<1x128x128xf32> to vector<128x128xf32>
      %c0_36 = arith.constant 0 : index
      %43 = memref.load %arg4[%c0_36] : memref<32xf32, #tpu.memory_space<smem>>
      %44 = vector.broadcast %43 : f32 to vector<128x128xf32>
      %45 = arith.mulf %44, %42 : vector<128x128xf32>
      %c127_i32 = arith.constant 127 : i32
      %46 = tpu.dynamic_rotate %42 by %c127_i32 dim 1 : vector<128x128xf32>, i32 -> vector<128x128xf32>
      %c1_37 = arith.constant 1 : index
      %47 = memref.load %arg4[%c1_37] : memref<32xf32, #tpu.memory_space<smem>>
      %48 = vector.broadcast %47 : f32 to vector<128x128xf32>
      %49 = arith.mulf %48, %46 : vector<128x128xf32>
      %50 = arith.addf %45, %49 : vector<128x128xf32>
      %c127_i32_38 = arith.constant 127 : i32
      %51 = tpu.dynamic_rotate %46 by %c127_i32_38 dim 1 : vector<128x128xf32>, i32 -> vector<128x128xf32>
      %c2_39 = arith.constant 2 : index
      %52 = memref.load %arg4[%c2_39] : memref<32xf32, #tpu.memory_space<smem>>
      %53 = vector.broadcast %52 : f32 to vector<128x128xf32>
      %54 = arith.mulf %53, %51 : vector<128x128xf32>
      %55 = arith.addf %50, %54 : vector<128x128xf32>
      %c127_i32_40 = arith.constant 127 : i32
      %56 = tpu.dynamic_rotate %51 by %c127_i32_40 dim 1 : vector<128x128xf32>, i32 -> vector<128x128xf32>
      %c3_41 = arith.constant 3 : index
      %57 = memref.load %arg4[%c3_41] : memref<32xf32, #tpu.memory_space<smem>>
      %58 = vector.broadcast %57 : f32 to vector<128x128xf32>
      %59 = arith.mulf %58, %56 : vector<128x128xf32>
      %60 = arith.addf %55, %59 : vector<128x128xf32>
      %c127_i32_42 = arith.constant 127 : i32
      %61 = tpu.dynamic_rotate %42 by %c127_i32_42 dim 0 : vector<128x128xf32>, i32 -> vector<128x128xf32>
      %c4_43 = arith.constant 4 : index
      %62 = memref.load %arg4[%c4_43] : memref<32xf32, #tpu.memory_space<smem>>
      %63 = vector.broadcast %62 : f32 to vector<128x128xf32>
      %64 = arith.mulf %63, %61 : vector<128x128xf32>
      %65 = arith.addf %60, %64 : vector<128x128xf32>
      %c127_i32_44 = arith.constant 127 : i32
      %66 = tpu.dynamic_rotate %61 by %c127_i32_44 dim 1 : vector<128x128xf32>, i32 -> vector<128x128xf32>
      %c5_45 = arith.constant 5 : index
      %67 = memref.load %arg4[%c5_45] : memref<32xf32, #tpu.memory_space<smem>>
      %68 = vector.broadcast %67 : f32 to vector<128x128xf32>
      %69 = arith.mulf %68, %66 : vector<128x128xf32>
      %70 = arith.addf %65, %69 : vector<128x128xf32>
      %c127_i32_46 = arith.constant 127 : i32
      %71 = tpu.dynamic_rotate %66 by %c127_i32_46 dim 1 : vector<128x128xf32>, i32 -> vector<128x128xf32>
      %c6 = arith.constant 6 : index
      %72 = memref.load %arg4[%c6] : memref<32xf32, #tpu.memory_space<smem>>
      %73 = vector.broadcast %72 : f32 to vector<128x128xf32>
      %74 = arith.mulf %73, %71 : vector<128x128xf32>
      %75 = arith.addf %70, %74 : vector<128x128xf32>
      %c127_i32_47 = arith.constant 127 : i32
      %76 = tpu.dynamic_rotate %71 by %c127_i32_47 dim 1 : vector<128x128xf32>, i32 -> vector<128x128xf32>
      %c7 = arith.constant 7 : index
      %77 = memref.load %arg4[%c7] : memref<32xf32, #tpu.memory_space<smem>>
      %78 = vector.broadcast %77 : f32 to vector<128x128xf32>
      %79 = arith.mulf %78, %76 : vector<128x128xf32>
      %80 = arith.addf %75, %79 : vector<128x128xf32>
      %c127_i32_48 = arith.constant 127 : i32
      %81 = tpu.dynamic_rotate %61 by %c127_i32_48 dim 0 : vector<128x128xf32>, i32 -> vector<128x128xf32>
      %c8_49 = arith.constant 8 : index
      %82 = memref.load %arg4[%c8_49] : memref<32xf32, #tpu.memory_space<smem>>
      %83 = vector.broadcast %82 : f32 to vector<128x128xf32>
      %84 = arith.mulf %83, %81 : vector<128x128xf32>
      %85 = arith.addf %80, %84 : vector<128x128xf32>
      %c127_i32_50 = arith.constant 127 : i32
      %86 = tpu.dynamic_rotate %81 by %c127_i32_50 dim 1 : vector<128x128xf32>, i32 -> vector<128x128xf32>
      %c9 = arith.constant 9 : index
      %87 = memref.load %arg4[%c9] : memref<32xf32, #tpu.memory_space<smem>>
      %88 = vector.broadcast %87 : f32 to vector<128x128xf32>
      %89 = arith.mulf %88, %86 : vector<128x128xf32>
      %90 = arith.addf %85, %89 : vector<128x128xf32>
      %c127_i32_51 = arith.constant 127 : i32
      %91 = tpu.dynamic_rotate %86 by %c127_i32_51 dim 1 : vector<128x128xf32>, i32 -> vector<128x128xf32>
      %c10 = arith.constant 10 : index
      %92 = memref.load %arg4[%c10] : memref<32xf32, #tpu.memory_space<smem>>
      %93 = vector.broadcast %92 : f32 to vector<128x128xf32>
      %94 = arith.mulf %93, %91 : vector<128x128xf32>
      %95 = arith.addf %90, %94 : vector<128x128xf32>
      %c127_i32_52 = arith.constant 127 : i32
      %96 = tpu.dynamic_rotate %91 by %c127_i32_52 dim 1 : vector<128x128xf32>, i32 -> vector<128x128xf32>
      %c11 = arith.constant 11 : index
      %97 = memref.load %arg4[%c11] : memref<32xf32, #tpu.memory_space<smem>>
      %98 = vector.broadcast %97 : f32 to vector<128x128xf32>
      %99 = arith.mulf %98, %96 : vector<128x128xf32>
      %100 = arith.addf %95, %99 : vector<128x128xf32>
      %c127_i32_53 = arith.constant 127 : i32
      %101 = tpu.dynamic_rotate %81 by %c127_i32_53 dim 0 : vector<128x128xf32>, i32 -> vector<128x128xf32>
      %c12_54 = arith.constant 12 : index
      %102 = memref.load %arg4[%c12_54] : memref<32xf32, #tpu.memory_space<smem>>
      %103 = vector.broadcast %102 : f32 to vector<128x128xf32>
      %104 = arith.mulf %103, %101 : vector<128x128xf32>
      %105 = arith.addf %100, %104 : vector<128x128xf32>
      %c127_i32_55 = arith.constant 127 : i32
      %106 = tpu.dynamic_rotate %101 by %c127_i32_55 dim 1 : vector<128x128xf32>, i32 -> vector<128x128xf32>
      %c13 = arith.constant 13 : index
      %107 = memref.load %arg4[%c13] : memref<32xf32, #tpu.memory_space<smem>>
      %108 = vector.broadcast %107 : f32 to vector<128x128xf32>
      %109 = arith.mulf %108, %106 : vector<128x128xf32>
      %110 = arith.addf %105, %109 : vector<128x128xf32>
      %c127_i32_56 = arith.constant 127 : i32
      %111 = tpu.dynamic_rotate %106 by %c127_i32_56 dim 1 : vector<128x128xf32>, i32 -> vector<128x128xf32>
      %c14 = arith.constant 14 : index
      %112 = memref.load %arg4[%c14] : memref<32xf32, #tpu.memory_space<smem>>
      %113 = vector.broadcast %112 : f32 to vector<128x128xf32>
      %114 = arith.mulf %113, %111 : vector<128x128xf32>
      %115 = arith.addf %110, %114 : vector<128x128xf32>
      %c127_i32_57 = arith.constant 127 : i32
      %116 = tpu.dynamic_rotate %111 by %c127_i32_57 dim 1 : vector<128x128xf32>, i32 -> vector<128x128xf32>
      %c15 = arith.constant 15 : index
      %117 = memref.load %arg4[%c15] : memref<32xf32, #tpu.memory_space<smem>>
      %118 = vector.broadcast %117 : f32 to vector<128x128xf32>
      %119 = arith.mulf %118, %116 : vector<128x128xf32>
      %120 = arith.addf %115, %119 : vector<128x128xf32>
      %c127_i32_58 = arith.constant 127 : i32
      %121 = tpu.dynamic_rotate %120 by %c127_i32_58 dim 0 : vector<128x128xf32>, i32 -> vector<128x128xf32>
      %122 = arith.maximumf %120, %121 : vector<128x128xf32>
      %c126_i32 = arith.constant 126 : i32
      %123 = tpu.dynamic_rotate %122 by %c126_i32 dim 0 : vector<128x128xf32>, i32 -> vector<128x128xf32>
      %124 = arith.maximumf %122, %123 : vector<128x128xf32>
      %c0_59 = arith.constant 0 : index
      %c0_60 = arith.constant 0 : index
      %125 = vector.load %arg3[%c0_59, %c0_60] : memref<32x128xf32, #tpu.memory_space<vmem>>, vector<32x128xf32>
      %cst_61 = arith.constant dense<0.000000e+00> : vector<32x128xf32>
      %126 = tpu.matmul %125, %124, %cst_61 {dimension_numbers = #tpu.dot_dimension_numbers<[1], [0], [0], [1], [0, 0, 1, 1], [], []>} : vector<32x128xf32>, vector<128x128xf32>, vector<32x128xf32> -> vector<32x128xf32>
      %c127_i32_62 = arith.constant 127 : i32
      %127 = tpu.dynamic_rotate %126 by %c127_i32_62 dim 1 : vector<32x128xf32>, i32 -> vector<32x128xf32>
      %128 = arith.maximumf %126, %127 : vector<32x128xf32>
      %c126_i32_63 = arith.constant 126 : i32
      %129 = tpu.dynamic_rotate %128 by %c126_i32_63 dim 1 : vector<32x128xf32>, i32 -> vector<32x128xf32>
      %130 = arith.maximumf %128, %129 : vector<32x128xf32>
      %c0_64 = arith.constant 0 : index
      %131 = memref.load %arg5[%c0_64] : memref<2xf32, #tpu.memory_space<smem>>
      %132 = vector.broadcast %131 : f32 to vector<32x128xf32>
      %133 = arith.addf %130, %132 : vector<32x128xf32>
      %cst_65 = arith.constant 0.000000e+00 : f32
      %134 = vector.broadcast %cst_65 : f32 to vector<32x128xf32>
      %135 = arith.maximumf %133, %134 : vector<32x128xf32>
      %c0_66 = arith.constant 0 : index
      %c0_67 = arith.constant 0 : index
      %136 = vector.load %arg2[%c0_66, %c0_67] : memref<128x128xf32, #tpu.memory_space<vmem>>, vector<128x128xf32>
      %cst_68 = arith.constant dense<0.000000e+00> : vector<32x128xf32>
      %137 = tpu.matmul %135, %136, %cst_68 {dimension_numbers = #tpu.dot_dimension_numbers<[1], [0], [0], [1], [0, 0, 1, 1], [], []>} : vector<32x128xf32>, vector<128x128xf32>, vector<32x128xf32> -> vector<32x128xf32>
      %138 = arith.index_cast %39 : i32 to index
      %c0_69 = arith.constant 0 : index
      %c0_70 = arith.constant 0 : index
      %139 = vector.load %arg1[%138, %c0_69, %c0_70] : memref<4x128x128xf32, #tpu.memory_space<vmem>>, vector<1x128x128xf32>
      %140 = vector.shape_cast %139 : vector<1x128x128xf32> to vector<128x128xf32>
      %c16_71 = arith.constant 16 : index
      %141 = memref.load %arg4[%c16_71] : memref<32xf32, #tpu.memory_space<smem>>
      %142 = vector.broadcast %141 : f32 to vector<128x128xf32>
      %143 = arith.mulf %142, %140 : vector<128x128xf32>
      %c127_i32_72 = arith.constant 127 : i32
      %144 = tpu.dynamic_rotate %140 by %c127_i32_72 dim 1 : vector<128x128xf32>, i32 -> vector<128x128xf32>
      %c17 = arith.constant 17 : index
      %145 = memref.load %arg4[%c17] : memref<32xf32, #tpu.memory_space<smem>>
      %146 = vector.broadcast %145 : f32 to vector<128x128xf32>
      %147 = arith.mulf %146, %144 : vector<128x128xf32>
      %148 = arith.addf %143, %147 : vector<128x128xf32>
      %c127_i32_73 = arith.constant 127 : i32
      %149 = tpu.dynamic_rotate %144 by %c127_i32_73 dim 1 : vector<128x128xf32>, i32 -> vector<128x128xf32>
      %c18 = arith.constant 18 : index
      %150 = memref.load %arg4[%c18] : memref<32xf32, #tpu.memory_space<smem>>
      %151 = vector.broadcast %150 : f32 to vector<128x128xf32>
      %152 = arith.mulf %151, %149 : vector<128x128xf32>
      %153 = arith.addf %148, %152 : vector<128x128xf32>
      %c127_i32_74 = arith.constant 127 : i32
      %154 = tpu.dynamic_rotate %149 by %c127_i32_74 dim 1 : vector<128x128xf32>, i32 -> vector<128x128xf32>
      %c19 = arith.constant 19 : index
      %155 = memref.load %arg4[%c19] : memref<32xf32, #tpu.memory_space<smem>>
      %156 = vector.broadcast %155 : f32 to vector<128x128xf32>
      %157 = arith.mulf %156, %154 : vector<128x128xf32>
      %158 = arith.addf %153, %157 : vector<128x128xf32>
      %c127_i32_75 = arith.constant 127 : i32
      %159 = tpu.dynamic_rotate %140 by %c127_i32_75 dim 0 : vector<128x128xf32>, i32 -> vector<128x128xf32>
      %c20_76 = arith.constant 20 : index
      %160 = memref.load %arg4[%c20_76] : memref<32xf32, #tpu.memory_space<smem>>
      %161 = vector.broadcast %160 : f32 to vector<128x128xf32>
      %162 = arith.mulf %161, %159 : vector<128x128xf32>
      %163 = arith.addf %158, %162 : vector<128x128xf32>
      %c127_i32_77 = arith.constant 127 : i32
      %164 = tpu.dynamic_rotate %159 by %c127_i32_77 dim 1 : vector<128x128xf32>, i32 -> vector<128x128xf32>
      %c21 = arith.constant 21 : index
      %165 = memref.load %arg4[%c21] : memref<32xf32, #tpu.memory_space<smem>>
      %166 = vector.broadcast %165 : f32 to vector<128x128xf32>
      %167 = arith.mulf %166, %164 : vector<128x128xf32>
      %168 = arith.addf %163, %167 : vector<128x128xf32>
      %c127_i32_78 = arith.constant 127 : i32
      %169 = tpu.dynamic_rotate %164 by %c127_i32_78 dim 1 : vector<128x128xf32>, i32 -> vector<128x128xf32>
      %c22 = arith.constant 22 : index
      %170 = memref.load %arg4[%c22] : memref<32xf32, #tpu.memory_space<smem>>
      %171 = vector.broadcast %170 : f32 to vector<128x128xf32>
      %172 = arith.mulf %171, %169 : vector<128x128xf32>
      %173 = arith.addf %168, %172 : vector<128x128xf32>
      %c127_i32_79 = arith.constant 127 : i32
      %174 = tpu.dynamic_rotate %169 by %c127_i32_79 dim 1 : vector<128x128xf32>, i32 -> vector<128x128xf32>
      %c23 = arith.constant 23 : index
      %175 = memref.load %arg4[%c23] : memref<32xf32, #tpu.memory_space<smem>>
      %176 = vector.broadcast %175 : f32 to vector<128x128xf32>
      %177 = arith.mulf %176, %174 : vector<128x128xf32>
      %178 = arith.addf %173, %177 : vector<128x128xf32>
      %c127_i32_80 = arith.constant 127 : i32
      %179 = tpu.dynamic_rotate %159 by %c127_i32_80 dim 0 : vector<128x128xf32>, i32 -> vector<128x128xf32>
      %c24 = arith.constant 24 : index
      %180 = memref.load %arg4[%c24] : memref<32xf32, #tpu.memory_space<smem>>
      %181 = vector.broadcast %180 : f32 to vector<128x128xf32>
      %182 = arith.mulf %181, %179 : vector<128x128xf32>
      %183 = arith.addf %178, %182 : vector<128x128xf32>
      %c127_i32_81 = arith.constant 127 : i32
      %184 = tpu.dynamic_rotate %179 by %c127_i32_81 dim 1 : vector<128x128xf32>, i32 -> vector<128x128xf32>
      %c25 = arith.constant 25 : index
      %185 = memref.load %arg4[%c25] : memref<32xf32, #tpu.memory_space<smem>>
      %186 = vector.broadcast %185 : f32 to vector<128x128xf32>
      %187 = arith.mulf %186, %184 : vector<128x128xf32>
      %188 = arith.addf %183, %187 : vector<128x128xf32>
      %c127_i32_82 = arith.constant 127 : i32
      %189 = tpu.dynamic_rotate %184 by %c127_i32_82 dim 1 : vector<128x128xf32>, i32 -> vector<128x128xf32>
      %c26 = arith.constant 26 : index
      %190 = memref.load %arg4[%c26] : memref<32xf32, #tpu.memory_space<smem>>
      %191 = vector.broadcast %190 : f32 to vector<128x128xf32>
      %192 = arith.mulf %191, %189 : vector<128x128xf32>
      %193 = arith.addf %188, %192 : vector<128x128xf32>
      %c127_i32_83 = arith.constant 127 : i32
      %194 = tpu.dynamic_rotate %189 by %c127_i32_83 dim 1 : vector<128x128xf32>, i32 -> vector<128x128xf32>
      %c27 = arith.constant 27 : index
      %195 = memref.load %arg4[%c27] : memref<32xf32, #tpu.memory_space<smem>>
      %196 = vector.broadcast %195 : f32 to vector<128x128xf32>
      %197 = arith.mulf %196, %194 : vector<128x128xf32>
      %198 = arith.addf %193, %197 : vector<128x128xf32>
      %c127_i32_84 = arith.constant 127 : i32
      %199 = tpu.dynamic_rotate %179 by %c127_i32_84 dim 0 : vector<128x128xf32>, i32 -> vector<128x128xf32>
      %c28 = arith.constant 28 : index
      %200 = memref.load %arg4[%c28] : memref<32xf32, #tpu.memory_space<smem>>
      %201 = vector.broadcast %200 : f32 to vector<128x128xf32>
      %202 = arith.mulf %201, %199 : vector<128x128xf32>
      %203 = arith.addf %198, %202 : vector<128x128xf32>
      %c127_i32_85 = arith.constant 127 : i32
      %204 = tpu.dynamic_rotate %199 by %c127_i32_85 dim 1 : vector<128x128xf32>, i32 -> vector<128x128xf32>
      %c29 = arith.constant 29 : index
      %205 = memref.load %arg4[%c29] : memref<32xf32, #tpu.memory_space<smem>>
      %206 = vector.broadcast %205 : f32 to vector<128x128xf32>
      %207 = arith.mulf %206, %204 : vector<128x128xf32>
      %208 = arith.addf %203, %207 : vector<128x128xf32>
      %c127_i32_86 = arith.constant 127 : i32
      %209 = tpu.dynamic_rotate %204 by %c127_i32_86 dim 1 : vector<128x128xf32>, i32 -> vector<128x128xf32>
      %c30 = arith.constant 30 : index
      %210 = memref.load %arg4[%c30] : memref<32xf32, #tpu.memory_space<smem>>
      %211 = vector.broadcast %210 : f32 to vector<128x128xf32>
      %212 = arith.mulf %211, %209 : vector<128x128xf32>
      %213 = arith.addf %208, %212 : vector<128x128xf32>
      %c127_i32_87 = arith.constant 127 : i32
      %214 = tpu.dynamic_rotate %209 by %c127_i32_87 dim 1 : vector<128x128xf32>, i32 -> vector<128x128xf32>
      %c31 = arith.constant 31 : index
      %215 = memref.load %arg4[%c31] : memref<32xf32, #tpu.memory_space<smem>>
      %216 = vector.broadcast %215 : f32 to vector<128x128xf32>
      %217 = arith.mulf %216, %214 : vector<128x128xf32>
      %218 = arith.addf %213, %217 : vector<128x128xf32>
      %c127_i32_88 = arith.constant 127 : i32
      %219 = tpu.dynamic_rotate %218 by %c127_i32_88 dim 0 : vector<128x128xf32>, i32 -> vector<128x128xf32>
      %220 = arith.maximumf %218, %219 : vector<128x128xf32>
      %c126_i32_89 = arith.constant 126 : i32
      %221 = tpu.dynamic_rotate %220 by %c126_i32_89 dim 0 : vector<128x128xf32>, i32 -> vector<128x128xf32>
      %222 = arith.maximumf %220, %221 : vector<128x128xf32>
      %c0_90 = arith.constant 0 : index
      %c0_91 = arith.constant 0 : index
      %223 = vector.load %arg3[%c0_90, %c0_91] : memref<32x128xf32, #tpu.memory_space<vmem>>, vector<32x128xf32>
      %cst_92 = arith.constant dense<0.000000e+00> : vector<32x128xf32>
      %224 = tpu.matmul %223, %222, %cst_92 {dimension_numbers = #tpu.dot_dimension_numbers<[1], [0], [0], [1], [0, 0, 1, 1], [], []>} : vector<32x128xf32>, vector<128x128xf32>, vector<32x128xf32> -> vector<32x128xf32>
      %c127_i32_93 = arith.constant 127 : i32
      %225 = tpu.dynamic_rotate %224 by %c127_i32_93 dim 1 : vector<32x128xf32>, i32 -> vector<32x128xf32>
      %226 = arith.maximumf %224, %225 : vector<32x128xf32>
      %c126_i32_94 = arith.constant 126 : i32
      %227 = tpu.dynamic_rotate %226 by %c126_i32_94 dim 1 : vector<32x128xf32>, i32 -> vector<32x128xf32>
      %228 = arith.maximumf %226, %227 : vector<32x128xf32>
      %c1_95 = arith.constant 1 : index
      %229 = memref.load %arg5[%c1_95] : memref<2xf32, #tpu.memory_space<smem>>
      %230 = vector.broadcast %229 : f32 to vector<32x128xf32>
      %231 = arith.addf %228, %230 : vector<32x128xf32>
      %cst_96 = arith.constant 0.000000e+00 : f32
      %232 = vector.broadcast %cst_96 : f32 to vector<32x128xf32>
      %233 = arith.maximumf %231, %232 : vector<32x128xf32>
      %c0_97 = arith.constant 0 : index
      %c0_98 = arith.constant 0 : index
      %234 = vector.load %arg2[%c0_97, %c0_98] : memref<128x128xf32, #tpu.memory_space<vmem>>, vector<128x128xf32>
      %cst_99 = arith.constant dense<0.000000e+00> : vector<32x128xf32>
      %235 = tpu.matmul %233, %234, %cst_99 {dimension_numbers = #tpu.dot_dimension_numbers<[1], [0], [0], [1], [0, 0, 1, 1], [], []>} : vector<32x128xf32>, vector<128x128xf32>, vector<32x128xf32> -> vector<32x128xf32>
      %c32_i32 = arith.constant 32 : i32
      %236 = tpu.dynamic_rotate %235 by %c32_i32 dim 1 : vector<32x128xf32>, i32 -> vector<32x128xf32>
      %237 = arith.addf %137, %236 : vector<32x128xf32>
      %c0_100 = arith.constant 0 : index
      %c0_101 = arith.constant 0 : index
      %238 = vector.load %arg6[%c0_100, %c0_101] : memref<128x128xf32, #tpu.memory_space<vmem>>, vector<1x128xf32>
      %239 = vector.broadcast %238 : vector<1x128xf32> to vector<32x128xf32>
      %240 = arith.mulf %239, %237 : vector<32x128xf32>
      %c32 = arith.constant 32 : index
      %c0_102 = arith.constant 0 : index
      %241 = vector.load %arg6[%c32, %c0_102] : memref<128x128xf32, #tpu.memory_space<vmem>>, vector<1x128xf32>
      %242 = vector.broadcast %241 : vector<1x128xf32> to vector<32x128xf32>
      %243 = arith.mulf %242, %237 : vector<32x128xf32>
      %c64 = arith.constant 64 : index
      %c0_103 = arith.constant 0 : index
      %244 = vector.load %arg6[%c64, %c0_103] : memref<128x128xf32, #tpu.memory_space<vmem>>, vector<1x128xf32>
      %245 = vector.broadcast %244 : vector<1x128xf32> to vector<32x128xf32>
      %246 = arith.mulf %245, %237 : vector<32x128xf32>
      %c96 = arith.constant 96 : index
      %c0_104 = arith.constant 0 : index
      %247 = vector.load %arg6[%c96, %c0_104] : memref<128x128xf32, #tpu.memory_space<vmem>>, vector<1x128xf32>
      %248 = vector.broadcast %247 : vector<1x128xf32> to vector<32x128xf32>
      %249 = arith.mulf %248, %237 : vector<32x128xf32>
      %c127_i32_105 = arith.constant 127 : i32
      %250 = tpu.dynamic_rotate %237 by %c127_i32_105 dim 1 : vector<32x128xf32>, i32 -> vector<32x128xf32>
      %c1_106 = arith.constant 1 : index
      %c0_107 = arith.constant 0 : index
      %251 = vector.load %arg6[%c1_106, %c0_107] : memref<128x128xf32, #tpu.memory_space<vmem>>, vector<1x128xf32>
      %252 = vector.broadcast %251 : vector<1x128xf32> to vector<32x128xf32>
      %253 = arith.mulf %252, %250 : vector<32x128xf32>
      %254 = arith.addf %240, %253 : vector<32x128xf32>
      %c33 = arith.constant 33 : index
      %c0_108 = arith.constant 0 : index
      %255 = vector.load %arg6[%c33, %c0_108] : memref<128x128xf32, #tpu.memory_space<vmem>>, vector<1x128xf32>
      %256 = vector.broadcast %255 : vector<1x128xf32> to vector<32x128xf32>
      %257 = arith.mulf %256, %250 : vector<32x128xf32>
      %258 = arith.addf %243, %257 : vector<32x128xf32>
      %c65 = arith.constant 65 : index
      %c0_109 = arith.constant 0 : index
      %259 = vector.load %arg6[%c65, %c0_109] : memref<128x128xf32, #tpu.memory_space<vmem>>, vector<1x128xf32>
      %260 = vector.broadcast %259 : vector<1x128xf32> to vector<32x128xf32>
      %261 = arith.mulf %260, %250 : vector<32x128xf32>
      %262 = arith.addf %246, %261 : vector<32x128xf32>
      %c97 = arith.constant 97 : index
      %c0_110 = arith.constant 0 : index
      %263 = vector.load %arg6[%c97, %c0_110] : memref<128x128xf32, #tpu.memory_space<vmem>>, vector<1x128xf32>
      %264 = vector.broadcast %263 : vector<1x128xf32> to vector<32x128xf32>
      %265 = arith.mulf %264, %250 : vector<32x128xf32>
      %266 = arith.addf %249, %265 : vector<32x128xf32>
      %c127_i32_111 = arith.constant 127 : i32
      %267 = tpu.dynamic_rotate %250 by %c127_i32_111 dim 1 : vector<32x128xf32>, i32 -> vector<32x128xf32>
      %c2_112 = arith.constant 2 : index
      %c0_113 = arith.constant 0 : index
      %268 = vector.load %arg6[%c2_112, %c0_113] : memref<128x128xf32, #tpu.memory_space<vmem>>, vector<1x128xf32>
      %269 = vector.broadcast %268 : vector<1x128xf32> to vector<32x128xf32>
      %270 = arith.mulf %269, %267 : vector<32x128xf32>
      %271 = arith.addf %254, %270 : vector<32x128xf32>
      %c34 = arith.constant 34 : index
      %c0_114 = arith.constant 0 : index
      %272 = vector.load %arg6[%c34, %c0_114] : memref<128x128xf32, #tpu.memory_space<vmem>>, vector<1x128xf32>
      %273 = vector.broadcast %272 : vector<1x128xf32> to vector<32x128xf32>
      %274 = arith.mulf %273, %267 : vector<32x128xf32>
      %275 = arith.addf %258, %274 : vector<32x128xf32>
      %c66 = arith.constant 66 : index
      %c0_115 = arith.constant 0 : index
      %276 = vector.load %arg6[%c66, %c0_115] : memref<128x128xf32, #tpu.memory_space<vmem>>, vector<1x128xf32>
      %277 = vector.broadcast %276 : vector<1x128xf32> to vector<32x128xf32>
      %278 = arith.mulf %277, %267 : vector<32x128xf32>
      %279 = arith.addf %262, %278 : vector<32x128xf32>
      %c98 = arith.constant 98 : index
      %c0_116 = arith.constant 0 : index
      %280 = vector.load %arg6[%c98, %c0_116] : memref<128x128xf32, #tpu.memory_space<vmem>>, vector<1x128xf32>
      %281 = vector.broadcast %280 : vector<1x128xf32> to vector<32x128xf32>
      %282 = arith.mulf %281, %267 : vector<32x128xf32>
      %283 = arith.addf %266, %282 : vector<32x128xf32>
      %c127_i32_117 = arith.constant 127 : i32
      %284 = tpu.dynamic_rotate %267 by %c127_i32_117 dim 1 : vector<32x128xf32>, i32 -> vector<32x128xf32>
      %c3_118 = arith.constant 3 : index
      %c0_119 = arith.constant 0 : index
      %285 = vector.load %arg6[%c3_118, %c0_119] : memref<128x128xf32, #tpu.memory_space<vmem>>, vector<1x128xf32>
      %286 = vector.broadcast %285 : vector<1x128xf32> to vector<32x128xf32>
      %287 = arith.mulf %286, %284 : vector<32x128xf32>
      %288 = arith.addf %271, %287 : vector<32x128xf32>
      %c35 = arith.constant 35 : index
      %c0_120 = arith.constant 0 : index
      %289 = vector.load %arg6[%c35, %c0_120] : memref<128x128xf32, #tpu.memory_space<vmem>>, vector<1x128xf32>
      %290 = vector.broadcast %289 : vector<1x128xf32> to vector<32x128xf32>
      %291 = arith.mulf %290, %284 : vector<32x128xf32>
      %292 = arith.addf %275, %291 : vector<32x128xf32>
      %c67 = arith.constant 67 : index
      %c0_121 = arith.constant 0 : index
      %293 = vector.load %arg6[%c67, %c0_121] : memref<128x128xf32, #tpu.memory_space<vmem>>, vector<1x128xf32>
      %294 = vector.broadcast %293 : vector<1x128xf32> to vector<32x128xf32>
      %295 = arith.mulf %294, %284 : vector<32x128xf32>
      %296 = arith.addf %279, %295 : vector<32x128xf32>
      %c99 = arith.constant 99 : index
      %c0_122 = arith.constant 0 : index
      %297 = vector.load %arg6[%c99, %c0_122] : memref<128x128xf32, #tpu.memory_space<vmem>>, vector<1x128xf32>
      %298 = vector.broadcast %297 : vector<1x128xf32> to vector<32x128xf32>
      %299 = arith.mulf %298, %284 : vector<32x128xf32>
      %300 = arith.addf %283, %299 : vector<32x128xf32>
      %c127_i32_123 = arith.constant 127 : i32
      %301 = tpu.dynamic_rotate %284 by %c127_i32_123 dim 1 : vector<32x128xf32>, i32 -> vector<32x128xf32>
      %c4_124 = arith.constant 4 : index
      %c0_125 = arith.constant 0 : index
      %302 = vector.load %arg6[%c4_124, %c0_125] : memref<128x128xf32, #tpu.memory_space<vmem>>, vector<1x128xf32>
      %303 = vector.broadcast %302 : vector<1x128xf32> to vector<32x128xf32>
      %304 = arith.mulf %303, %301 : vector<32x128xf32>
      %305 = arith.addf %288, %304 : vector<32x128xf32>
      %c36 = arith.constant 36 : index
      %c0_126 = arith.constant 0 : index
      %306 = vector.load %arg6[%c36, %c0_126] : memref<128x128xf32, #tpu.memory_space<vmem>>, vector<1x128xf32>
      %307 = vector.broadcast %306 : vector<1x128xf32> to vector<32x128xf32>
      %308 = arith.mulf %307, %301 : vector<32x128xf32>
      %309 = arith.addf %292, %308 : vector<32x128xf32>
      %c68 = arith.constant 68 : index
      %c0_127 = arith.constant 0 : index
      %310 = vector.load %arg6[%c68, %c0_127] : memref<128x128xf32, #tpu.memory_space<vmem>>, vector<1x128xf32>
      %311 = vector.broadcast %310 : vector<1x128xf32> to vector<32x128xf32>
      %312 = arith.mulf %311, %301 : vector<32x128xf32>
      %313 = arith.addf %296, %312 : vector<32x128xf32>
      %c100 = arith.constant 100 : index
      %c0_128 = arith.constant 0 : index
      %314 = vector.load %arg6[%c100, %c0_128] : memref<128x128xf32, #tpu.memory_space<vmem>>, vector<1x128xf32>
      %315 = vector.broadcast %314 : vector<1x128xf32> to vector<32x128xf32>
      %316 = arith.mulf %315, %301 : vector<32x128xf32>
      %317 = arith.addf %300, %316 : vector<32x128xf32>
      %c31_i32 = arith.constant 31 : i32
      %318 = tpu.dynamic_rotate %237 by %c31_i32 dim 0 : vector<32x128xf32>, i32 -> vector<32x128xf32>
      %c5_129 = arith.constant 5 : index
      %c0_130 = arith.constant 0 : index
      %319 = vector.load %arg6[%c5_129, %c0_130] : memref<128x128xf32, #tpu.memory_space<vmem>>, vector<1x128xf32>
      %320 = vector.broadcast %319 : vector<1x128xf32> to vector<32x128xf32>
      %321 = arith.mulf %320, %318 : vector<32x128xf32>
      %322 = arith.addf %305, %321 : vector<32x128xf32>
      %c37 = arith.constant 37 : index
      %c0_131 = arith.constant 0 : index
      %323 = vector.load %arg6[%c37, %c0_131] : memref<128x128xf32, #tpu.memory_space<vmem>>, vector<1x128xf32>
      %324 = vector.broadcast %323 : vector<1x128xf32> to vector<32x128xf32>
      %325 = arith.mulf %324, %318 : vector<32x128xf32>
      %326 = arith.addf %309, %325 : vector<32x128xf32>
      %c69 = arith.constant 69 : index
      %c0_132 = arith.constant 0 : index
      %327 = vector.load %arg6[%c69, %c0_132] : memref<128x128xf32, #tpu.memory_space<vmem>>, vector<1x128xf32>
      %328 = vector.broadcast %327 : vector<1x128xf32> to vector<32x128xf32>
      %329 = arith.mulf %328, %318 : vector<32x128xf32>
      %330 = arith.addf %313, %329 : vector<32x128xf32>
      %c101 = arith.constant 101 : index
      %c0_133 = arith.constant 0 : index
      %331 = vector.load %arg6[%c101, %c0_133] : memref<128x128xf32, #tpu.memory_space<vmem>>, vector<1x128xf32>
      %332 = vector.broadcast %331 : vector<1x128xf32> to vector<32x128xf32>
      %333 = arith.mulf %332, %318 : vector<32x128xf32>
      %334 = arith.addf %317, %333 : vector<32x128xf32>
      %c127_i32_134 = arith.constant 127 : i32
      %335 = tpu.dynamic_rotate %318 by %c127_i32_134 dim 1 : vector<32x128xf32>, i32 -> vector<32x128xf32>
      %c6_135 = arith.constant 6 : index
      %c0_136 = arith.constant 0 : index
      %336 = vector.load %arg6[%c6_135, %c0_136] : memref<128x128xf32, #tpu.memory_space<vmem>>, vector<1x128xf32>
      %337 = vector.broadcast %336 : vector<1x128xf32> to vector<32x128xf32>
      %338 = arith.mulf %337, %335 : vector<32x128xf32>
      %339 = arith.addf %322, %338 : vector<32x128xf32>
      %c38 = arith.constant 38 : index
      %c0_137 = arith.constant 0 : index
      %340 = vector.load %arg6[%c38, %c0_137] : memref<128x128xf32, #tpu.memory_space<vmem>>, vector<1x128xf32>
      %341 = vector.broadcast %340 : vector<1x128xf32> to vector<32x128xf32>
      %342 = arith.mulf %341, %335 : vector<32x128xf32>
      %343 = arith.addf %326, %342 : vector<32x128xf32>
      %c70 = arith.constant 70 : index
      %c0_138 = arith.constant 0 : index
      %344 = vector.load %arg6[%c70, %c0_138] : memref<128x128xf32, #tpu.memory_space<vmem>>, vector<1x128xf32>
      %345 = vector.broadcast %344 : vector<1x128xf32> to vector<32x128xf32>
      %346 = arith.mulf %345, %335 : vector<32x128xf32>
      %347 = arith.addf %330, %346 : vector<32x128xf32>
      %c102 = arith.constant 102 : index
      %c0_139 = arith.constant 0 : index
      %348 = vector.load %arg6[%c102, %c0_139] : memref<128x128xf32, #tpu.memory_space<vmem>>, vector<1x128xf32>
      %349 = vector.broadcast %348 : vector<1x128xf32> to vector<32x128xf32>
      %350 = arith.mulf %349, %335 : vector<32x128xf32>
      %351 = arith.addf %334, %350 : vector<32x128xf32>
      %c127_i32_140 = arith.constant 127 : i32
      %352 = tpu.dynamic_rotate %335 by %c127_i32_140 dim 1 : vector<32x128xf32>, i32 -> vector<32x128xf32>
      %c7_141 = arith.constant 7 : index
      %c0_142 = arith.constant 0 : index
      %353 = vector.load %arg6[%c7_141, %c0_142] : memref<128x128xf32, #tpu.memory_space<vmem>>, vector<1x128xf32>
      %354 = vector.broadcast %353 : vector<1x128xf32> to vector<32x128xf32>
      %355 = arith.mulf %354, %352 : vector<32x128xf32>
      %356 = arith.addf %339, %355 : vector<32x128xf32>
      %c39 = arith.constant 39 : index
      %c0_143 = arith.constant 0 : index
      %357 = vector.load %arg6[%c39, %c0_143] : memref<128x128xf32, #tpu.memory_space<vmem>>, vector<1x128xf32>
      %358 = vector.broadcast %357 : vector<1x128xf32> to vector<32x128xf32>
      %359 = arith.mulf %358, %352 : vector<32x128xf32>
      %360 = arith.addf %343, %359 : vector<32x128xf32>
      %c71 = arith.constant 71 : index
      %c0_144 = arith.constant 0 : index
      %361 = vector.load %arg6[%c71, %c0_144] : memref<128x128xf32, #tpu.memory_space<vmem>>, vector<1x128xf32>
      %362 = vector.broadcast %361 : vector<1x128xf32> to vector<32x128xf32>
      %363 = arith.mulf %362, %352 : vector<32x128xf32>
      %364 = arith.addf %347, %363 : vector<32x128xf32>
      %c103 = arith.constant 103 : index
      %c0_145 = arith.constant 0 : index
      %365 = vector.load %arg6[%c103, %c0_145] : memref<128x128xf32, #tpu.memory_space<vmem>>, vector<1x128xf32>
      %366 = vector.broadcast %365 : vector<1x128xf32> to vector<32x128xf32>
      %367 = arith.mulf %366, %352 : vector<32x128xf32>
      %368 = arith.addf %351, %367 : vector<32x128xf32>
      %c127_i32_146 = arith.constant 127 : i32
      %369 = tpu.dynamic_rotate %352 by %c127_i32_146 dim 1 : vector<32x128xf32>, i32 -> vector<32x128xf32>
      %c8_147 = arith.constant 8 : index
      %c0_148 = arith.constant 0 : index
      %370 = vector.load %arg6[%c8_147, %c0_148] : memref<128x128xf32, #tpu.memory_space<vmem>>, vector<1x128xf32>
      %371 = vector.broadcast %370 : vector<1x128xf32> to vector<32x128xf32>
      %372 = arith.mulf %371, %369 : vector<32x128xf32>
      %373 = arith.addf %356, %372 : vector<32x128xf32>
      %c40 = arith.constant 40 : index
      %c0_149 = arith.constant 0 : index
      %374 = vector.load %arg6[%c40, %c0_149] : memref<128x128xf32, #tpu.memory_space<vmem>>, vector<1x128xf32>
      %375 = vector.broadcast %374 : vector<1x128xf32> to vector<32x128xf32>
      %376 = arith.mulf %375, %369 : vector<32x128xf32>
      %377 = arith.addf %360, %376 : vector<32x128xf32>
      %c72 = arith.constant 72 : index
      %c0_150 = arith.constant 0 : index
      %378 = vector.load %arg6[%c72, %c0_150] : memref<128x128xf32, #tpu.memory_space<vmem>>, vector<1x128xf32>
      %379 = vector.broadcast %378 : vector<1x128xf32> to vector<32x128xf32>
      %380 = arith.mulf %379, %369 : vector<32x128xf32>
      %381 = arith.addf %364, %380 : vector<32x128xf32>
      %c104 = arith.constant 104 : index
      %c0_151 = arith.constant 0 : index
      %382 = vector.load %arg6[%c104, %c0_151] : memref<128x128xf32, #tpu.memory_space<vmem>>, vector<1x128xf32>
      %383 = vector.broadcast %382 : vector<1x128xf32> to vector<32x128xf32>
      %384 = arith.mulf %383, %369 : vector<32x128xf32>
      %385 = arith.addf %368, %384 : vector<32x128xf32>
      %c127_i32_152 = arith.constant 127 : i32
      %386 = tpu.dynamic_rotate %369 by %c127_i32_152 dim 1 : vector<32x128xf32>, i32 -> vector<32x128xf32>
      %c9_153 = arith.constant 9 : index
      %c0_154 = arith.constant 0 : index
      %387 = vector.load %arg6[%c9_153, %c0_154] : memref<128x128xf32, #tpu.memory_space<vmem>>, vector<1x128xf32>
      %388 = vector.broadcast %387 : vector<1x128xf32> to vector<32x128xf32>
      %389 = arith.mulf %388, %386 : vector<32x128xf32>
      %390 = arith.addf %373, %389 : vector<32x128xf32>
      %c41 = arith.constant 41 : index
      %c0_155 = arith.constant 0 : index
      %391 = vector.load %arg6[%c41, %c0_155] : memref<128x128xf32, #tpu.memory_space<vmem>>, vector<1x128xf32>
      %392 = vector.broadcast %391 : vector<1x128xf32> to vector<32x128xf32>
      %393 = arith.mulf %392, %386 : vector<32x128xf32>
      %394 = arith.addf %377, %393 : vector<32x128xf32>
      %c73 = arith.constant 73 : index
      %c0_156 = arith.constant 0 : index
      %395 = vector.load %arg6[%c73, %c0_156] : memref<128x128xf32, #tpu.memory_space<vmem>>, vector<1x128xf32>
      %396 = vector.broadcast %395 : vector<1x128xf32> to vector<32x128xf32>
      %397 = arith.mulf %396, %386 : vector<32x128xf32>
      %398 = arith.addf %381, %397 : vector<32x128xf32>
      %c105 = arith.constant 105 : index
      %c0_157 = arith.constant 0 : index
      %399 = vector.load %arg6[%c105, %c0_157] : memref<128x128xf32, #tpu.memory_space<vmem>>, vector<1x128xf32>
      %400 = vector.broadcast %399 : vector<1x128xf32> to vector<32x128xf32>
      %401 = arith.mulf %400, %386 : vector<32x128xf32>
      %402 = arith.addf %385, %401 : vector<32x128xf32>
      %c31_i32_158 = arith.constant 31 : i32
      %403 = tpu.dynamic_rotate %318 by %c31_i32_158 dim 0 : vector<32x128xf32>, i32 -> vector<32x128xf32>
      %c10_159 = arith.constant 10 : index
      %c0_160 = arith.constant 0 : index
      %404 = vector.load %arg6[%c10_159, %c0_160] : memref<128x128xf32, #tpu.memory_space<vmem>>, vector<1x128xf32>
      %405 = vector.broadcast %404 : vector<1x128xf32> to vector<32x128xf32>
      %406 = arith.mulf %405, %403 : vector<32x128xf32>
      %407 = arith.addf %390, %406 : vector<32x128xf32>
      %c42 = arith.constant 42 : index
      %c0_161 = arith.constant 0 : index
      %408 = vector.load %arg6[%c42, %c0_161] : memref<128x128xf32, #tpu.memory_space<vmem>>, vector<1x128xf32>
      %409 = vector.broadcast %408 : vector<1x128xf32> to vector<32x128xf32>
      %410 = arith.mulf %409, %403 : vector<32x128xf32>
      %411 = arith.addf %394, %410 : vector<32x128xf32>
      %c74 = arith.constant 74 : index
      %c0_162 = arith.constant 0 : index
      %412 = vector.load %arg6[%c74, %c0_162] : memref<128x128xf32, #tpu.memory_space<vmem>>, vector<1x128xf32>
      %413 = vector.broadcast %412 : vector<1x128xf32> to vector<32x128xf32>
      %414 = arith.mulf %413, %403 : vector<32x128xf32>
      %415 = arith.addf %398, %414 : vector<32x128xf32>
      %c106 = arith.constant 106 : index
      %c0_163 = arith.constant 0 : index
      %416 = vector.load %arg6[%c106, %c0_163] : memref<128x128xf32, #tpu.memory_space<vmem>>, vector<1x128xf32>
      %417 = vector.broadcast %416 : vector<1x128xf32> to vector<32x128xf32>
      %418 = arith.mulf %417, %403 : vector<32x128xf32>
      %419 = arith.addf %402, %418 : vector<32x128xf32>
      %c127_i32_164 = arith.constant 127 : i32
      %420 = tpu.dynamic_rotate %403 by %c127_i32_164 dim 1 : vector<32x128xf32>, i32 -> vector<32x128xf32>
      %c11_165 = arith.constant 11 : index
      %c0_166 = arith.constant 0 : index
      %421 = vector.load %arg6[%c11_165, %c0_166] : memref<128x128xf32, #tpu.memory_space<vmem>>, vector<1x128xf32>
      %422 = vector.broadcast %421 : vector<1x128xf32> to vector<32x128xf32>
      %423 = arith.mulf %422, %420 : vector<32x128xf32>
      %424 = arith.addf %407, %423 : vector<32x128xf32>
      %c43 = arith.constant 43 : index
      %c0_167 = arith.constant 0 : index
      %425 = vector.load %arg6[%c43, %c0_167] : memref<128x128xf32, #tpu.memory_space<vmem>>, vector<1x128xf32>
      %426 = vector.broadcast %425 : vector<1x128xf32> to vector<32x128xf32>
      %427 = arith.mulf %426, %420 : vector<32x128xf32>
      %428 = arith.addf %411, %427 : vector<32x128xf32>
      %c75 = arith.constant 75 : index
      %c0_168 = arith.constant 0 : index
      %429 = vector.load %arg6[%c75, %c0_168] : memref<128x128xf32, #tpu.memory_space<vmem>>, vector<1x128xf32>
      %430 = vector.broadcast %429 : vector<1x128xf32> to vector<32x128xf32>
      %431 = arith.mulf %430, %420 : vector<32x128xf32>
      %432 = arith.addf %415, %431 : vector<32x128xf32>
      %c107 = arith.constant 107 : index
      %c0_169 = arith.constant 0 : index
      %433 = vector.load %arg6[%c107, %c0_169] : memref<128x128xf32, #tpu.memory_space<vmem>>, vector<1x128xf32>
      %434 = vector.broadcast %433 : vector<1x128xf32> to vector<32x128xf32>
      %435 = arith.mulf %434, %420 : vector<32x128xf32>
      %436 = arith.addf %419, %435 : vector<32x128xf32>
      %c127_i32_170 = arith.constant 127 : i32
      %437 = tpu.dynamic_rotate %420 by %c127_i32_170 dim 1 : vector<32x128xf32>, i32 -> vector<32x128xf32>
      %c12_171 = arith.constant 12 : index
      %c0_172 = arith.constant 0 : index
      %438 = vector.load %arg6[%c12_171, %c0_172] : memref<128x128xf32, #tpu.memory_space<vmem>>, vector<1x128xf32>
      %439 = vector.broadcast %438 : vector<1x128xf32> to vector<32x128xf32>
      %440 = arith.mulf %439, %437 : vector<32x128xf32>
      %441 = arith.addf %424, %440 : vector<32x128xf32>
      %c44 = arith.constant 44 : index
      %c0_173 = arith.constant 0 : index
      %442 = vector.load %arg6[%c44, %c0_173] : memref<128x128xf32, #tpu.memory_space<vmem>>, vector<1x128xf32>
      %443 = vector.broadcast %442 : vector<1x128xf32> to vector<32x128xf32>
      %444 = arith.mulf %443, %437 : vector<32x128xf32>
      %445 = arith.addf %428, %444 : vector<32x128xf32>
      %c76 = arith.constant 76 : index
      %c0_174 = arith.constant 0 : index
      %446 = vector.load %arg6[%c76, %c0_174] : memref<128x128xf32, #tpu.memory_space<vmem>>, vector<1x128xf32>
      %447 = vector.broadcast %446 : vector<1x128xf32> to vector<32x128xf32>
      %448 = arith.mulf %447, %437 : vector<32x128xf32>
      %449 = arith.addf %432, %448 : vector<32x128xf32>
      %c108 = arith.constant 108 : index
      %c0_175 = arith.constant 0 : index
      %450 = vector.load %arg6[%c108, %c0_175] : memref<128x128xf32, #tpu.memory_space<vmem>>, vector<1x128xf32>
      %451 = vector.broadcast %450 : vector<1x128xf32> to vector<32x128xf32>
      %452 = arith.mulf %451, %437 : vector<32x128xf32>
      %453 = arith.addf %436, %452 : vector<32x128xf32>
      %c127_i32_176 = arith.constant 127 : i32
      %454 = tpu.dynamic_rotate %437 by %c127_i32_176 dim 1 : vector<32x128xf32>, i32 -> vector<32x128xf32>
      %c13_177 = arith.constant 13 : index
      %c0_178 = arith.constant 0 : index
      %455 = vector.load %arg6[%c13_177, %c0_178] : memref<128x128xf32, #tpu.memory_space<vmem>>, vector<1x128xf32>
      %456 = vector.broadcast %455 : vector<1x128xf32> to vector<32x128xf32>
      %457 = arith.mulf %456, %454 : vector<32x128xf32>
      %458 = arith.addf %441, %457 : vector<32x128xf32>
      %c45 = arith.constant 45 : index
      %c0_179 = arith.constant 0 : index
      %459 = vector.load %arg6[%c45, %c0_179] : memref<128x128xf32, #tpu.memory_space<vmem>>, vector<1x128xf32>
      %460 = vector.broadcast %459 : vector<1x128xf32> to vector<32x128xf32>
      %461 = arith.mulf %460, %454 : vector<32x128xf32>
      %462 = arith.addf %445, %461 : vector<32x128xf32>
      %c77 = arith.constant 77 : index
      %c0_180 = arith.constant 0 : index
      %463 = vector.load %arg6[%c77, %c0_180] : memref<128x128xf32, #tpu.memory_space<vmem>>, vector<1x128xf32>
      %464 = vector.broadcast %463 : vector<1x128xf32> to vector<32x128xf32>
      %465 = arith.mulf %464, %454 : vector<32x128xf32>
      %466 = arith.addf %449, %465 : vector<32x128xf32>
      %c109 = arith.constant 109 : index
      %c0_181 = arith.constant 0 : index
      %467 = vector.load %arg6[%c109, %c0_181] : memref<128x128xf32, #tpu.memory_space<vmem>>, vector<1x128xf32>
      %468 = vector.broadcast %467 : vector<1x128xf32> to vector<32x128xf32>
      %469 = arith.mulf %468, %454 : vector<32x128xf32>
      %470 = arith.addf %453, %469 : vector<32x128xf32>
      %c127_i32_182 = arith.constant 127 : i32
      %471 = tpu.dynamic_rotate %454 by %c127_i32_182 dim 1 : vector<32x128xf32>, i32 -> vector<32x128xf32>
      %c14_183 = arith.constant 14 : index
      %c0_184 = arith.constant 0 : index
      %472 = vector.load %arg6[%c14_183, %c0_184] : memref<128x128xf32, #tpu.memory_space<vmem>>, vector<1x128xf32>
      %473 = vector.broadcast %472 : vector<1x128xf32> to vector<32x128xf32>
      %474 = arith.mulf %473, %471 : vector<32x128xf32>
      %475 = arith.addf %458, %474 : vector<32x128xf32>
      %c46 = arith.constant 46 : index
      %c0_185 = arith.constant 0 : index
      %476 = vector.load %arg6[%c46, %c0_185] : memref<128x128xf32, #tpu.memory_space<vmem>>, vector<1x128xf32>
      %477 = vector.broadcast %476 : vector<1x128xf32> to vector<32x128xf32>
      %478 = arith.mulf %477, %471 : vector<32x128xf32>
      %479 = arith.addf %462, %478 : vector<32x128xf32>
      %c78 = arith.constant 78 : index
      %c0_186 = arith.constant 0 : index
      %480 = vector.load %arg6[%c78, %c0_186] : memref<128x128xf32, #tpu.memory_space<vmem>>, vector<1x128xf32>
      %481 = vector.broadcast %480 : vector<1x128xf32> to vector<32x128xf32>
      %482 = arith.mulf %481, %471 : vector<32x128xf32>
      %483 = arith.addf %466, %482 : vector<32x128xf32>
      %c110 = arith.constant 110 : index
      %c0_187 = arith.constant 0 : index
      %484 = vector.load %arg6[%c110, %c0_187] : memref<128x128xf32, #tpu.memory_space<vmem>>, vector<1x128xf32>
      %485 = vector.broadcast %484 : vector<1x128xf32> to vector<32x128xf32>
      %486 = arith.mulf %485, %471 : vector<32x128xf32>
      %487 = arith.addf %470, %486 : vector<32x128xf32>
      %c31_i32_188 = arith.constant 31 : i32
      %488 = tpu.dynamic_rotate %403 by %c31_i32_188 dim 0 : vector<32x128xf32>, i32 -> vector<32x128xf32>
      %c15_189 = arith.constant 15 : index
      %c0_190 = arith.constant 0 : index
      %489 = vector.load %arg6[%c15_189, %c0_190] : memref<128x128xf32, #tpu.memory_space<vmem>>, vector<1x128xf32>
      %490 = vector.broadcast %489 : vector<1x128xf32> to vector<32x128xf32>
      %491 = arith.mulf %490, %488 : vector<32x128xf32>
      %492 = arith.addf %475, %491 : vector<32x128xf32>
      %c47 = arith.constant 47 : index
      %c0_191 = arith.constant 0 : index
      %493 = vector.load %arg6[%c47, %c0_191] : memref<128x128xf32, #tpu.memory_space<vmem>>, vector<1x128xf32>
      %494 = vector.broadcast %493 : vector<1x128xf32> to vector<32x128xf32>
      %495 = arith.mulf %494, %488 : vector<32x128xf32>
      %496 = arith.addf %479, %495 : vector<32x128xf32>
      %c79 = arith.constant 79 : index
      %c0_192 = arith.constant 0 : index
      %497 = vector.load %arg6[%c79, %c0_192] : memref<128x128xf32, #tpu.memory_space<vmem>>, vector<1x128xf32>
      %498 = vector.broadcast %497 : vector<1x128xf32> to vector<32x128xf32>
      %499 = arith.mulf %498, %488 : vector<32x128xf32>
      %500 = arith.addf %483, %499 : vector<32x128xf32>
      %c111 = arith.constant 111 : index
      %c0_193 = arith.constant 0 : index
      %501 = vector.load %arg6[%c111, %c0_193] : memref<128x128xf32, #tpu.memory_space<vmem>>, vector<1x128xf32>
      %502 = vector.broadcast %501 : vector<1x128xf32> to vector<32x128xf32>
      %503 = arith.mulf %502, %488 : vector<32x128xf32>
      %504 = arith.addf %487, %503 : vector<32x128xf32>
      %c127_i32_194 = arith.constant 127 : i32
      %505 = tpu.dynamic_rotate %488 by %c127_i32_194 dim 1 : vector<32x128xf32>, i32 -> vector<32x128xf32>
      %c16_195 = arith.constant 16 : index
      %c0_196 = arith.constant 0 : index
      %506 = vector.load %arg6[%c16_195, %c0_196] : memref<128x128xf32, #tpu.memory_space<vmem>>, vector<1x128xf32>
      %507 = vector.broadcast %506 : vector<1x128xf32> to vector<32x128xf32>
      %508 = arith.mulf %507, %505 : vector<32x128xf32>
      %509 = arith.addf %492, %508 : vector<32x128xf32>
      %c48 = arith.constant 48 : index
      %c0_197 = arith.constant 0 : index
      %510 = vector.load %arg6[%c48, %c0_197] : memref<128x128xf32, #tpu.memory_space<vmem>>, vector<1x128xf32>
      %511 = vector.broadcast %510 : vector<1x128xf32> to vector<32x128xf32>
      %512 = arith.mulf %511, %505 : vector<32x128xf32>
      %513 = arith.addf %496, %512 : vector<32x128xf32>
      %c80 = arith.constant 80 : index
      %c0_198 = arith.constant 0 : index
      %514 = vector.load %arg6[%c80, %c0_198] : memref<128x128xf32, #tpu.memory_space<vmem>>, vector<1x128xf32>
      %515 = vector.broadcast %514 : vector<1x128xf32> to vector<32x128xf32>
      %516 = arith.mulf %515, %505 : vector<32x128xf32>
      %517 = arith.addf %500, %516 : vector<32x128xf32>
      %c112 = arith.constant 112 : index
      %c0_199 = arith.constant 0 : index
      %518 = vector.load %arg6[%c112, %c0_199] : memref<128x128xf32, #tpu.memory_space<vmem>>, vector<1x128xf32>
      %519 = vector.broadcast %518 : vector<1x128xf32> to vector<32x128xf32>
      %520 = arith.mulf %519, %505 : vector<32x128xf32>
      %521 = arith.addf %504, %520 : vector<32x128xf32>
      %c127_i32_200 = arith.constant 127 : i32
      %522 = tpu.dynamic_rotate %505 by %c127_i32_200 dim 1 : vector<32x128xf32>, i32 -> vector<32x128xf32>
      %c17_201 = arith.constant 17 : index
      %c0_202 = arith.constant 0 : index
      %523 = vector.load %arg6[%c17_201, %c0_202] : memref<128x128xf32, #tpu.memory_space<vmem>>, vector<1x128xf32>
      %524 = vector.broadcast %523 : vector<1x128xf32> to vector<32x128xf32>
      %525 = arith.mulf %524, %522 : vector<32x128xf32>
      %526 = arith.addf %509, %525 : vector<32x128xf32>
      %c49 = arith.constant 49 : index
      %c0_203 = arith.constant 0 : index
      %527 = vector.load %arg6[%c49, %c0_203] : memref<128x128xf32, #tpu.memory_space<vmem>>, vector<1x128xf32>
      %528 = vector.broadcast %527 : vector<1x128xf32> to vector<32x128xf32>
      %529 = arith.mulf %528, %522 : vector<32x128xf32>
      %530 = arith.addf %513, %529 : vector<32x128xf32>
      %c81 = arith.constant 81 : index
      %c0_204 = arith.constant 0 : index
      %531 = vector.load %arg6[%c81, %c0_204] : memref<128x128xf32, #tpu.memory_space<vmem>>, vector<1x128xf32>
      %532 = vector.broadcast %531 : vector<1x128xf32> to vector<32x128xf32>
      %533 = arith.mulf %532, %522 : vector<32x128xf32>
      %534 = arith.addf %517, %533 : vector<32x128xf32>
      %c113 = arith.constant 113 : index
      %c0_205 = arith.constant 0 : index
      %535 = vector.load %arg6[%c113, %c0_205] : memref<128x128xf32, #tpu.memory_space<vmem>>, vector<1x128xf32>
      %536 = vector.broadcast %535 : vector<1x128xf32> to vector<32x128xf32>
      %537 = arith.mulf %536, %522 : vector<32x128xf32>
      %538 = arith.addf %521, %537 : vector<32x128xf32>
      %c127_i32_206 = arith.constant 127 : i32
      %539 = tpu.dynamic_rotate %522 by %c127_i32_206 dim 1 : vector<32x128xf32>, i32 -> vector<32x128xf32>
      %c18_207 = arith.constant 18 : index
      %c0_208 = arith.constant 0 : index
      %540 = vector.load %arg6[%c18_207, %c0_208] : memref<128x128xf32, #tpu.memory_space<vmem>>, vector<1x128xf32>
      %541 = vector.broadcast %540 : vector<1x128xf32> to vector<32x128xf32>
      %542 = arith.mulf %541, %539 : vector<32x128xf32>
      %543 = arith.addf %526, %542 : vector<32x128xf32>
      %c50 = arith.constant 50 : index
      %c0_209 = arith.constant 0 : index
      %544 = vector.load %arg6[%c50, %c0_209] : memref<128x128xf32, #tpu.memory_space<vmem>>, vector<1x128xf32>
      %545 = vector.broadcast %544 : vector<1x128xf32> to vector<32x128xf32>
      %546 = arith.mulf %545, %539 : vector<32x128xf32>
      %547 = arith.addf %530, %546 : vector<32x128xf32>
      %c82 = arith.constant 82 : index
      %c0_210 = arith.constant 0 : index
      %548 = vector.load %arg6[%c82, %c0_210] : memref<128x128xf32, #tpu.memory_space<vmem>>, vector<1x128xf32>
      %549 = vector.broadcast %548 : vector<1x128xf32> to vector<32x128xf32>
      %550 = arith.mulf %549, %539 : vector<32x128xf32>
      %551 = arith.addf %534, %550 : vector<32x128xf32>
      %c114 = arith.constant 114 : index
      %c0_211 = arith.constant 0 : index
      %552 = vector.load %arg6[%c114, %c0_211] : memref<128x128xf32, #tpu.memory_space<vmem>>, vector<1x128xf32>
      %553 = vector.broadcast %552 : vector<1x128xf32> to vector<32x128xf32>
      %554 = arith.mulf %553, %539 : vector<32x128xf32>
      %555 = arith.addf %538, %554 : vector<32x128xf32>
      %c127_i32_212 = arith.constant 127 : i32
      %556 = tpu.dynamic_rotate %539 by %c127_i32_212 dim 1 : vector<32x128xf32>, i32 -> vector<32x128xf32>
      %c19_213 = arith.constant 19 : index
      %c0_214 = arith.constant 0 : index
      %557 = vector.load %arg6[%c19_213, %c0_214] : memref<128x128xf32, #tpu.memory_space<vmem>>, vector<1x128xf32>
      %558 = vector.broadcast %557 : vector<1x128xf32> to vector<32x128xf32>
      %559 = arith.mulf %558, %556 : vector<32x128xf32>
      %560 = arith.addf %543, %559 : vector<32x128xf32>
      %c51 = arith.constant 51 : index
      %c0_215 = arith.constant 0 : index
      %561 = vector.load %arg6[%c51, %c0_215] : memref<128x128xf32, #tpu.memory_space<vmem>>, vector<1x128xf32>
      %562 = vector.broadcast %561 : vector<1x128xf32> to vector<32x128xf32>
      %563 = arith.mulf %562, %556 : vector<32x128xf32>
      %564 = arith.addf %547, %563 : vector<32x128xf32>
      %c83 = arith.constant 83 : index
      %c0_216 = arith.constant 0 : index
      %565 = vector.load %arg6[%c83, %c0_216] : memref<128x128xf32, #tpu.memory_space<vmem>>, vector<1x128xf32>
      %566 = vector.broadcast %565 : vector<1x128xf32> to vector<32x128xf32>
      %567 = arith.mulf %566, %556 : vector<32x128xf32>
      %568 = arith.addf %551, %567 : vector<32x128xf32>
      %c115 = arith.constant 115 : index
      %c0_217 = arith.constant 0 : index
      %569 = vector.load %arg6[%c115, %c0_217] : memref<128x128xf32, #tpu.memory_space<vmem>>, vector<1x128xf32>
      %570 = vector.broadcast %569 : vector<1x128xf32> to vector<32x128xf32>
      %571 = arith.mulf %570, %556 : vector<32x128xf32>
      %572 = arith.addf %555, %571 : vector<32x128xf32>
      %c31_i32_218 = arith.constant 31 : i32
      %573 = tpu.dynamic_rotate %488 by %c31_i32_218 dim 0 : vector<32x128xf32>, i32 -> vector<32x128xf32>
      %c20_219 = arith.constant 20 : index
      %c0_220 = arith.constant 0 : index
      %574 = vector.load %arg6[%c20_219, %c0_220] : memref<128x128xf32, #tpu.memory_space<vmem>>, vector<1x128xf32>
      %575 = vector.broadcast %574 : vector<1x128xf32> to vector<32x128xf32>
      %576 = arith.mulf %575, %573 : vector<32x128xf32>
      %577 = arith.addf %560, %576 : vector<32x128xf32>
      %c52 = arith.constant 52 : index
      %c0_221 = arith.constant 0 : index
      %578 = vector.load %arg6[%c52, %c0_221] : memref<128x128xf32, #tpu.memory_space<vmem>>, vector<1x128xf32>
      %579 = vector.broadcast %578 : vector<1x128xf32> to vector<32x128xf32>
      %580 = arith.mulf %579, %573 : vector<32x128xf32>
      %581 = arith.addf %564, %580 : vector<32x128xf32>
      %c84 = arith.constant 84 : index
      %c0_222 = arith.constant 0 : index
      %582 = vector.load %arg6[%c84, %c0_222] : memref<128x128xf32, #tpu.memory_space<vmem>>, vector<1x128xf32>
      %583 = vector.broadcast %582 : vector<1x128xf32> to vector<32x128xf32>
      %584 = arith.mulf %583, %573 : vector<32x128xf32>
      %585 = arith.addf %568, %584 : vector<32x128xf32>
      %c116 = arith.constant 116 : index
      %c0_223 = arith.constant 0 : index
      %586 = vector.load %arg6[%c116, %c0_223] : memref<128x128xf32, #tpu.memory_space<vmem>>, vector<1x128xf32>
      %587 = vector.broadcast %586 : vector<1x128xf32> to vector<32x128xf32>
      %588 = arith.mulf %587, %573 : vector<32x128xf32>
      %589 = arith.addf %572, %588 : vector<32x128xf32>
      %c127_i32_224 = arith.constant 127 : i32
      %590 = tpu.dynamic_rotate %573 by %c127_i32_224 dim 1 : vector<32x128xf32>, i32 -> vector<32x128xf32>
      %c21_225 = arith.constant 21 : index
      %c0_226 = arith.constant 0 : index
      %591 = vector.load %arg6[%c21_225, %c0_226] : memref<128x128xf32, #tpu.memory_space<vmem>>, vector<1x128xf32>
      %592 = vector.broadcast %591 : vector<1x128xf32> to vector<32x128xf32>
      %593 = arith.mulf %592, %590 : vector<32x128xf32>
      %594 = arith.addf %577, %593 : vector<32x128xf32>
      %c53 = arith.constant 53 : index
      %c0_227 = arith.constant 0 : index
      %595 = vector.load %arg6[%c53, %c0_227] : memref<128x128xf32, #tpu.memory_space<vmem>>, vector<1x128xf32>
      %596 = vector.broadcast %595 : vector<1x128xf32> to vector<32x128xf32>
      %597 = arith.mulf %596, %590 : vector<32x128xf32>
      %598 = arith.addf %581, %597 : vector<32x128xf32>
      %c85 = arith.constant 85 : index
      %c0_228 = arith.constant 0 : index
      %599 = vector.load %arg6[%c85, %c0_228] : memref<128x128xf32, #tpu.memory_space<vmem>>, vector<1x128xf32>
      %600 = vector.broadcast %599 : vector<1x128xf32> to vector<32x128xf32>
      %601 = arith.mulf %600, %590 : vector<32x128xf32>
      %602 = arith.addf %585, %601 : vector<32x128xf32>
      %c117 = arith.constant 117 : index
      %c0_229 = arith.constant 0 : index
      %603 = vector.load %arg6[%c117, %c0_229] : memref<128x128xf32, #tpu.memory_space<vmem>>, vector<1x128xf32>
      %604 = vector.broadcast %603 : vector<1x128xf32> to vector<32x128xf32>
      %605 = arith.mulf %604, %590 : vector<32x128xf32>
      %606 = arith.addf %589, %605 : vector<32x128xf32>
      %c127_i32_230 = arith.constant 127 : i32
      %607 = tpu.dynamic_rotate %590 by %c127_i32_230 dim 1 : vector<32x128xf32>, i32 -> vector<32x128xf32>
      %c22_231 = arith.constant 22 : index
      %c0_232 = arith.constant 0 : index
      %608 = vector.load %arg6[%c22_231, %c0_232] : memref<128x128xf32, #tpu.memory_space<vmem>>, vector<1x128xf32>
      %609 = vector.broadcast %608 : vector<1x128xf32> to vector<32x128xf32>
      %610 = arith.mulf %609, %607 : vector<32x128xf32>
      %611 = arith.addf %594, %610 : vector<32x128xf32>
      %c54 = arith.constant 54 : index
      %c0_233 = arith.constant 0 : index
      %612 = vector.load %arg6[%c54, %c0_233] : memref<128x128xf32, #tpu.memory_space<vmem>>, vector<1x128xf32>
      %613 = vector.broadcast %612 : vector<1x128xf32> to vector<32x128xf32>
      %614 = arith.mulf %613, %607 : vector<32x128xf32>
      %615 = arith.addf %598, %614 : vector<32x128xf32>
      %c86 = arith.constant 86 : index
      %c0_234 = arith.constant 0 : index
      %616 = vector.load %arg6[%c86, %c0_234] : memref<128x128xf32, #tpu.memory_space<vmem>>, vector<1x128xf32>
      %617 = vector.broadcast %616 : vector<1x128xf32> to vector<32x128xf32>
      %618 = arith.mulf %617, %607 : vector<32x128xf32>
      %619 = arith.addf %602, %618 : vector<32x128xf32>
      %c118 = arith.constant 118 : index
      %c0_235 = arith.constant 0 : index
      %620 = vector.load %arg6[%c118, %c0_235] : memref<128x128xf32, #tpu.memory_space<vmem>>, vector<1x128xf32>
      %621 = vector.broadcast %620 : vector<1x128xf32> to vector<32x128xf32>
      %622 = arith.mulf %621, %607 : vector<32x128xf32>
      %623 = arith.addf %606, %622 : vector<32x128xf32>
      %c127_i32_236 = arith.constant 127 : i32
      %624 = tpu.dynamic_rotate %607 by %c127_i32_236 dim 1 : vector<32x128xf32>, i32 -> vector<32x128xf32>
      %c23_237 = arith.constant 23 : index
      %c0_238 = arith.constant 0 : index
      %625 = vector.load %arg6[%c23_237, %c0_238] : memref<128x128xf32, #tpu.memory_space<vmem>>, vector<1x128xf32>
      %626 = vector.broadcast %625 : vector<1x128xf32> to vector<32x128xf32>
      %627 = arith.mulf %626, %624 : vector<32x128xf32>
      %628 = arith.addf %611, %627 : vector<32x128xf32>
      %c55 = arith.constant 55 : index
      %c0_239 = arith.constant 0 : index
      %629 = vector.load %arg6[%c55, %c0_239] : memref<128x128xf32, #tpu.memory_space<vmem>>, vector<1x128xf32>
      %630 = vector.broadcast %629 : vector<1x128xf32> to vector<32x128xf32>
      %631 = arith.mulf %630, %624 : vector<32x128xf32>
      %632 = arith.addf %615, %631 : vector<32x128xf32>
      %c87 = arith.constant 87 : index
      %c0_240 = arith.constant 0 : index
      %633 = vector.load %arg6[%c87, %c0_240] : memref<128x128xf32, #tpu.memory_space<vmem>>, vector<1x128xf32>
      %634 = vector.broadcast %633 : vector<1x128xf32> to vector<32x128xf32>
      %635 = arith.mulf %634, %624 : vector<32x128xf32>
      %636 = arith.addf %619, %635 : vector<32x128xf32>
      %c119 = arith.constant 119 : index
      %c0_241 = arith.constant 0 : index
      %637 = vector.load %arg6[%c119, %c0_241] : memref<128x128xf32, #tpu.memory_space<vmem>>, vector<1x128xf32>
      %638 = vector.broadcast %637 : vector<1x128xf32> to vector<32x128xf32>
      %639 = arith.mulf %638, %624 : vector<32x128xf32>
      %640 = arith.addf %623, %639 : vector<32x128xf32>
      %c127_i32_242 = arith.constant 127 : i32
      %641 = tpu.dynamic_rotate %624 by %c127_i32_242 dim 1 : vector<32x128xf32>, i32 -> vector<32x128xf32>
      %c24_243 = arith.constant 24 : index
      %c0_244 = arith.constant 0 : index
      %642 = vector.load %arg6[%c24_243, %c0_244] : memref<128x128xf32, #tpu.memory_space<vmem>>, vector<1x128xf32>
      %643 = vector.broadcast %642 : vector<1x128xf32> to vector<32x128xf32>
      %644 = arith.mulf %643, %641 : vector<32x128xf32>
      %645 = arith.addf %628, %644 : vector<32x128xf32>
      %c56 = arith.constant 56 : index
      %c0_245 = arith.constant 0 : index
      %646 = vector.load %arg6[%c56, %c0_245] : memref<128x128xf32, #tpu.memory_space<vmem>>, vector<1x128xf32>
      %647 = vector.broadcast %646 : vector<1x128xf32> to vector<32x128xf32>
      %648 = arith.mulf %647, %641 : vector<32x128xf32>
      %649 = arith.addf %632, %648 : vector<32x128xf32>
      %c88 = arith.constant 88 : index
      %c0_246 = arith.constant 0 : index
      %650 = vector.load %arg6[%c88, %c0_246] : memref<128x128xf32, #tpu.memory_space<vmem>>, vector<1x128xf32>
      %651 = vector.broadcast %650 : vector<1x128xf32> to vector<32x128xf32>
      %652 = arith.mulf %651, %641 : vector<32x128xf32>
      %653 = arith.addf %636, %652 : vector<32x128xf32>
      %c120 = arith.constant 120 : index
      %c0_247 = arith.constant 0 : index
      %654 = vector.load %arg6[%c120, %c0_247] : memref<128x128xf32, #tpu.memory_space<vmem>>, vector<1x128xf32>
      %655 = vector.broadcast %654 : vector<1x128xf32> to vector<32x128xf32>
      %656 = arith.mulf %655, %641 : vector<32x128xf32>
      %657 = arith.addf %640, %656 : vector<32x128xf32>
      %c96_i32 = arith.constant 96 : i32
      %658 = tpu.dynamic_rotate %645 by %c96_i32 dim 1 : vector<32x128xf32>, i32 -> vector<32x128xf32>
      %659 = arith.addf %645, %658 : vector<32x128xf32>
      %c31_i32_248 = arith.constant 31 : i32
      %660 = tpu.dynamic_rotate %659 by %c31_i32_248 dim 0 : vector<32x128xf32>, i32 -> vector<32x128xf32>
      %661 = arith.maximumf %659, %660 : vector<32x128xf32>
      %c30_i32 = arith.constant 30 : i32
      %662 = tpu.dynamic_rotate %661 by %c30_i32 dim 0 : vector<32x128xf32>, i32 -> vector<32x128xf32>
      %663 = arith.maximumf %661, %662 : vector<32x128xf32>
      %c127_i32_249 = arith.constant 127 : i32
      %664 = tpu.dynamic_rotate %663 by %c127_i32_249 dim 1 : vector<32x128xf32>, i32 -> vector<32x128xf32>
      %665 = arith.maximumf %663, %664 : vector<32x128xf32>
      %c126_i32_250 = arith.constant 126 : i32
      %666 = tpu.dynamic_rotate %665 by %c126_i32_250 dim 1 : vector<32x128xf32>, i32 -> vector<32x128xf32>
      %667 = arith.maximumf %665, %666 : vector<32x128xf32>
      %c0_251 = arith.constant 0 : index
      %668 = memref.load %arg7[%c0_251] : memref<4xf32, #tpu.memory_space<smem>>
      %669 = vector.broadcast %668 : f32 to vector<32x128xf32>
      %670 = arith.addf %667, %669 : vector<32x128xf32>
      %cst_252 = arith.constant 0.000000e+00 : f32
      %671 = vector.broadcast %cst_252 : f32 to vector<32x128xf32>
      %672 = arith.maximumf %670, %671 : vector<32x128xf32>
      %c0_253 = arith.constant 0 : index
      %c0_254 = arith.constant 0 : index
      %673 = vector.load %arg2[%c0_253, %c0_254] : memref<128x128xf32, #tpu.memory_space<vmem>>, vector<128x128xf32>
      %cst_255 = arith.constant dense<0.000000e+00> : vector<32x128xf32>
      %674 = tpu.matmul %672, %673, %cst_255 {dimension_numbers = #tpu.dot_dimension_numbers<[1], [0], [0], [1], [0, 0, 1, 1], [], []>} : vector<32x128xf32>, vector<128x128xf32>, vector<32x128xf32> -> vector<32x128xf32>
      %c96_i32_256 = arith.constant 96 : i32
      %675 = tpu.dynamic_rotate %649 by %c96_i32_256 dim 1 : vector<32x128xf32>, i32 -> vector<32x128xf32>
      %676 = arith.addf %649, %675 : vector<32x128xf32>
      %c31_i32_257 = arith.constant 31 : i32
      %677 = tpu.dynamic_rotate %676 by %c31_i32_257 dim 0 : vector<32x128xf32>, i32 -> vector<32x128xf32>
      %678 = arith.maximumf %676, %677 : vector<32x128xf32>
      %c30_i32_258 = arith.constant 30 : i32
      %679 = tpu.dynamic_rotate %678 by %c30_i32_258 dim 0 : vector<32x128xf32>, i32 -> vector<32x128xf32>
      %680 = arith.maximumf %678, %679 : vector<32x128xf32>
      %c127_i32_259 = arith.constant 127 : i32
      %681 = tpu.dynamic_rotate %680 by %c127_i32_259 dim 1 : vector<32x128xf32>, i32 -> vector<32x128xf32>
      %682 = arith.maximumf %680, %681 : vector<32x128xf32>
      %c126_i32_260 = arith.constant 126 : i32
      %683 = tpu.dynamic_rotate %682 by %c126_i32_260 dim 1 : vector<32x128xf32>, i32 -> vector<32x128xf32>
      %684 = arith.maximumf %682, %683 : vector<32x128xf32>
      %c1_261 = arith.constant 1 : index
      %685 = memref.load %arg7[%c1_261] : memref<4xf32, #tpu.memory_space<smem>>
      %686 = vector.broadcast %685 : f32 to vector<32x128xf32>
      %687 = arith.addf %684, %686 : vector<32x128xf32>
      %cst_262 = arith.constant 0.000000e+00 : f32
      %688 = vector.broadcast %cst_262 : f32 to vector<32x128xf32>
      %689 = arith.maximumf %687, %688 : vector<32x128xf32>
      %c0_263 = arith.constant 0 : index
      %c0_264 = arith.constant 0 : index
      %690 = vector.load %arg2[%c0_263, %c0_264] : memref<128x128xf32, #tpu.memory_space<vmem>>, vector<128x128xf32>
      %cst_265 = arith.constant dense<0.000000e+00> : vector<32x128xf32>
      %691 = tpu.matmul %689, %690, %cst_265 {dimension_numbers = #tpu.dot_dimension_numbers<[1], [0], [0], [1], [0, 0, 1, 1], [], []>} : vector<32x128xf32>, vector<128x128xf32>, vector<32x128xf32> -> vector<32x128xf32>
      %c32_i32_266 = arith.constant 32 : i32
      %692 = tpu.dynamic_rotate %691 by %c32_i32_266 dim 1 : vector<32x128xf32>, i32 -> vector<32x128xf32>
      %693 = arith.addf %674, %692 : vector<32x128xf32>
      %c96_i32_267 = arith.constant 96 : i32
      %694 = tpu.dynamic_rotate %653 by %c96_i32_267 dim 1 : vector<32x128xf32>, i32 -> vector<32x128xf32>
      %695 = arith.addf %653, %694 : vector<32x128xf32>
      %c31_i32_268 = arith.constant 31 : i32
      %696 = tpu.dynamic_rotate %695 by %c31_i32_268 dim 0 : vector<32x128xf32>, i32 -> vector<32x128xf32>
      %697 = arith.maximumf %695, %696 : vector<32x128xf32>
      %c30_i32_269 = arith.constant 30 : i32
      %698 = tpu.dynamic_rotate %697 by %c30_i32_269 dim 0 : vector<32x128xf32>, i32 -> vector<32x128xf32>
      %699 = arith.maximumf %697, %698 : vector<32x128xf32>
      %c127_i32_270 = arith.constant 127 : i32
      %700 = tpu.dynamic_rotate %699 by %c127_i32_270 dim 1 : vector<32x128xf32>, i32 -> vector<32x128xf32>
      %701 = arith.maximumf %699, %700 : vector<32x128xf32>
      %c126_i32_271 = arith.constant 126 : i32
      %702 = tpu.dynamic_rotate %701 by %c126_i32_271 dim 1 : vector<32x128xf32>, i32 -> vector<32x128xf32>
      %703 = arith.maximumf %701, %702 : vector<32x128xf32>
      %c2_272 = arith.constant 2 : index
      %704 = memref.load %arg7[%c2_272] : memref<4xf32, #tpu.memory_space<smem>>
      %705 = vector.broadcast %704 : f32 to vector<32x128xf32>
      %706 = arith.addf %703, %705 : vector<32x128xf32>
      %cst_273 = arith.constant 0.000000e+00 : f32
      %707 = vector.broadcast %cst_273 : f32 to vector<32x128xf32>
      %708 = arith.maximumf %706, %707 : vector<32x128xf32>
      %c0_274 = arith.constant 0 : index
      %c0_275 = arith.constant 0 : index
      %709 = vector.load %arg2[%c0_274, %c0_275] : memref<128x128xf32, #tpu.memory_space<vmem>>, vector<128x128xf32>
      %cst_276 = arith.constant dense<0.000000e+00> : vector<32x128xf32>
      %710 = tpu.matmul %708, %709, %cst_276 {dimension_numbers = #tpu.dot_dimension_numbers<[1], [0], [0], [1], [0, 0, 1, 1], [], []>} : vector<32x128xf32>, vector<128x128xf32>, vector<32x128xf32> -> vector<32x128xf32>
      %c64_i32 = arith.constant 64 : i32
      %711 = tpu.dynamic_rotate %710 by %c64_i32 dim 1 : vector<32x128xf32>, i32 -> vector<32x128xf32>
      %712 = arith.addf %693, %711 : vector<32x128xf32>
      %c96_i32_277 = arith.constant 96 : i32
      %713 = tpu.dynamic_rotate %657 by %c96_i32_277 dim 1 : vector<32x128xf32>, i32 -> vector<32x128xf32>
      %714 = arith.addf %657, %713 : vector<32x128xf32>
      %c31_i32_278 = arith.constant 31 : i32
      %715 = tpu.dynamic_rotate %714 by %c31_i32_278 dim 0 : vector<32x128xf32>, i32 -> vector<32x128xf32>
      %716 = arith.maximumf %714, %715 : vector<32x128xf32>
      %c30_i32_279 = arith.constant 30 : i32
      %717 = tpu.dynamic_rotate %716 by %c30_i32_279 dim 0 : vector<32x128xf32>, i32 -> vector<32x128xf32>
      %718 = arith.maximumf %716, %717 : vector<32x128xf32>
      %c127_i32_280 = arith.constant 127 : i32
      %719 = tpu.dynamic_rotate %718 by %c127_i32_280 dim 1 : vector<32x128xf32>, i32 -> vector<32x128xf32>
      %720 = arith.maximumf %718, %719 : vector<32x128xf32>
      %c126_i32_281 = arith.constant 126 : i32
      %721 = tpu.dynamic_rotate %720 by %c126_i32_281 dim 1 : vector<32x128xf32>, i32 -> vector<32x128xf32>
      %722 = arith.maximumf %720, %721 : vector<32x128xf32>
      %c3_282 = arith.constant 3 : index
      %723 = memref.load %arg7[%c3_282] : memref<4xf32, #tpu.memory_space<smem>>
      %724 = vector.broadcast %723 : f32 to vector<32x128xf32>
      %725 = arith.addf %722, %724 : vector<32x128xf32>
      %cst_283 = arith.constant 0.000000e+00 : f32
      %726 = vector.broadcast %cst_283 : f32 to vector<32x128xf32>
      %727 = arith.maximumf %725, %726 : vector<32x128xf32>
      %c0_284 = arith.constant 0 : index
      %c0_285 = arith.constant 0 : index
      %728 = vector.load %arg2[%c0_284, %c0_285] : memref<128x128xf32, #tpu.memory_space<vmem>>, vector<128x128xf32>
      %cst_286 = arith.constant dense<0.000000e+00> : vector<32x128xf32>
      %729 = tpu.matmul %727, %728, %cst_286 {dimension_numbers = #tpu.dot_dimension_numbers<[1], [0], [0], [1], [0, 0, 1, 1], [], []>} : vector<32x128xf32>, vector<128x128xf32>, vector<32x128xf32> -> vector<32x128xf32>
      %c96_i32_287 = arith.constant 96 : i32
      %730 = tpu.dynamic_rotate %729 by %c96_i32_287 dim 1 : vector<32x128xf32>, i32 -> vector<32x128xf32>
      %731 = arith.addf %712, %730 : vector<32x128xf32>
      %c32_i32_288 = arith.constant 32 : i32
      %732 = arith.muli %39, %c32_i32_288 : i32
      %733 = tpu.assume_multiple %732, 32 : i32
      %734 = arith.index_cast %733 : i32 to index
      %c0_289 = arith.constant 0 : index
      %735 = vector.load %arg11[%734, %c0_289] : memref<128x128xf32, #tpu.memory_space<vmem>>, vector<32x128xf32>
      tpu.vector_store %arg11[%734, %c0_289], %731 {strides = array<i32>} : memref<128x128xf32, #tpu.memory_space<vmem>>, vector<32x128xf32>,
    }
    %c4_i32_0 = arith.constant 4 : i32
    %c0 = arith.constant 0 : index
    %c0_1 = arith.constant 0 : index
    %1 = tpu.strided_load %arg11[%c0, %c0_1] {strides = array<i32: 32, 1>} : memref<128x128xf32, #tpu.memory_space<vmem>>, vector<4x128xf32>
    %c0_2 = arith.constant 0 : index
    %c0_3 = arith.constant 0 : index
    %c0_4 = arith.constant 0 : index
    %2 = vector.load %arg8[%c0_2, %c0_3, %c0_4] : memref<6x128x256xf32, #tpu.memory_space<vmem>>, vector<1x128x256xf32>
    %3 = vector.shape_cast %2 : vector<1x128x256xf32> to vector<128x256xf32>
    %cst = arith.constant dense<0.000000e+00> : vector<4x256xf32>
    %4 = tpu.matmul %1, %3, %cst {dimension_numbers = #tpu.dot_dimension_numbers<[1], [0], [0], [1], [0, 0, 1, 1], [], []>} : vector<4x128xf32>, vector<128x256xf32>, vector<4x256xf32> -> vector<4x256xf32>
    %c4 = arith.constant 4 : index
    %c0_5 = arith.constant 0 : index
    %5 = tpu.strided_load %arg11[%c4, %c0_5] {strides = array<i32: 32, 1>} : memref<128x128xf32, #tpu.memory_space<vmem>>, vector<4x128xf32>
    %c1 = arith.constant 1 : index
    %c0_6 = arith.constant 0 : index
    %c0_7 = arith.constant 0 : index
    %6 = vector.load %arg8[%c1, %c0_6, %c0_7] : memref<6x128x256xf32, #tpu.memory_space<vmem>>, vector<1x128x256xf32>
    %7 = vector.shape_cast %6 : vector<1x128x256xf32> to vector<128x256xf32>
    %cst_8 = arith.constant dense<0.000000e+00> : vector<4x256xf32>
    %8 = tpu.matmul %5, %7, %cst_8 {dimension_numbers = #tpu.dot_dimension_numbers<[1], [0], [0], [1], [0, 0, 1, 1], [], []>} : vector<4x128xf32>, vector<128x256xf32>, vector<4x256xf32> -> vector<4x256xf32>
    %9 = arith.addf %4, %8 : vector<4x256xf32>
    %c8 = arith.constant 8 : index
    %c0_9 = arith.constant 0 : index
    %10 = tpu.strided_load %arg11[%c8, %c0_9] {strides = array<i32: 32, 1>} : memref<128x128xf32, #tpu.memory_space<vmem>>, vector<4x128xf32>
    %c2 = arith.constant 2 : index
    %c0_10 = arith.constant 0 : index
    %c0_11 = arith.constant 0 : index
    %11 = vector.load %arg8[%c2, %c0_10, %c0_11] : memref<6x128x256xf32, #tpu.memory_space<vmem>>, vector<1x128x256xf32>
    %12 = vector.shape_cast %11 : vector<1x128x256xf32> to vector<128x256xf32>
    %cst_12 = arith.constant dense<0.000000e+00> : vector<4x256xf32>
    %13 = tpu.matmul %10, %12, %cst_12 {dimension_numbers = #tpu.dot_dimension_numbers<[1], [0], [0], [1], [0, 0, 1, 1], [], []>} : vector<4x128xf32>, vector<128x256xf32>, vector<4x256xf32> -> vector<4x256xf32>
    %14 = arith.addf %9, %13 : vector<4x256xf32>
    %c12 = arith.constant 12 : index
    %c0_13 = arith.constant 0 : index
    %15 = tpu.strided_load %arg11[%c12, %c0_13] {strides = array<i32: 32, 1>} : memref<128x128xf32, #tpu.memory_space<vmem>>, vector<4x128xf32>
    %c3 = arith.constant 3 : index
    %c0_14 = arith.constant 0 : index
    %c0_15 = arith.constant 0 : index
    %16 = vector.load %arg8[%c3, %c0_14, %c0_15] : memref<6x128x256xf32, #tpu.memory_space<vmem>>, vector<1x128x256xf32>
    %17 = vector.shape_cast %16 : vector<1x128x256xf32> to vector<128x256xf32>
    %cst_16 = arith.constant dense<0.000000e+00> : vector<4x256xf32>
    %18 = tpu.matmul %15, %17, %cst_16 {dimension_numbers = #tpu.dot_dimension_numbers<[1], [0], [0], [1], [0, 0, 1, 1], [], []>} : vector<4x128xf32>, vector<128x256xf32>, vector<4x256xf32> -> vector<4x256xf32>
    %19 = arith.addf %14, %18 : vector<4x256xf32>
    %c16 = arith.constant 16 : index
    %c0_17 = arith.constant 0 : index
    %20 = tpu.strided_load %arg11[%c16, %c0_17] {strides = array<i32: 32, 1>} : memref<128x128xf32, #tpu.memory_space<vmem>>, vector<4x128xf32>
    %c4_18 = arith.constant 4 : index
    %c0_19 = arith.constant 0 : index
    %c0_20 = arith.constant 0 : index
    %21 = vector.load %arg8[%c4_18, %c0_19, %c0_20] : memref<6x128x256xf32, #tpu.memory_space<vmem>>, vector<1x128x256xf32>
    %22 = vector.shape_cast %21 : vector<1x128x256xf32> to vector<128x256xf32>
    %cst_21 = arith.constant dense<0.000000e+00> : vector<4x256xf32>
    %23 = tpu.matmul %20, %22, %cst_21 {dimension_numbers = #tpu.dot_dimension_numbers<[1], [0], [0], [1], [0, 0, 1, 1], [], []>} : vector<4x128xf32>, vector<128x256xf32>, vector<4x256xf32> -> vector<4x256xf32>
    %24 = arith.addf %19, %23 : vector<4x256xf32>
    %c20 = arith.constant 20 : index
    %c0_22 = arith.constant 0 : index
    %25 = tpu.strided_load %arg11[%c20, %c0_22] {strides = array<i32: 32, 1>} : memref<128x128xf32, #tpu.memory_space<vmem>>, vector<4x128xf32>
    %c5 = arith.constant 5 : index
    %c0_23 = arith.constant 0 : index
    %c0_24 = arith.constant 0 : index
    %26 = vector.load %arg8[%c5, %c0_23, %c0_24] : memref<6x128x256xf32, #tpu.memory_space<vmem>>, vector<1x128x256xf32>
    %27 = vector.shape_cast %26 : vector<1x128x256xf32> to vector<128x256xf32>
    %cst_25 = arith.constant dense<0.000000e+00> : vector<4x256xf32>
    %28 = tpu.matmul %25, %27, %cst_25 {dimension_numbers = #tpu.dot_dimension_numbers<[1], [0], [0], [1], [0, 0, 1, 1], [], []>} : vector<4x128xf32>, vector<128x256xf32>, vector<4x256xf32> -> vector<4x256xf32>
    %29 = arith.addf %24, %28 : vector<4x256xf32>
    %c0_26 = arith.constant 0 : index
    %c0_27 = arith.constant 0 : index
    %30 = vector.load %arg9[%c0_26, %c0_27] : memref<1x256xf32, #tpu.memory_space<vmem>>, vector<1x256xf32>
    %31 = vector.broadcast %30 : vector<1x256xf32> to vector<4x256xf32>
    %32 = arith.addf %29, %31 : vector<4x256xf32>
    %cst_28 = arith.constant 0.000000e+00 : f32
    %33 = vector.broadcast %cst_28 : f32 to vector<4x256xf32>
    %34 = arith.maximumf %32, %33 : vector<4x256xf32>
    %c0_29 = arith.constant 0 : index
    %c0_30 = arith.constant 0 : index
    %c0_31 = arith.constant 0 : index
    %35 = vector.load %arg10[%c0_29, %c0_30, %c0_31] : memref<1x4x256xf32, #tpu.memory_space<vmem>>, vector<1x4x256xf32>
    %36 = vector.shape_cast %35 : vector<1x4x256xf32> to vector<4x256xf32>
    %37 = vector.shape_cast %34 : vector<4x256xf32> to vector<1x4x256xf32>
    tpu.vector_store %arg10[%c0_29, %c0_30, %c0_31], %37 {strides = array<i32>} : memref<1x4x256xf32, #tpu.memory_space<vmem>>, vector<1x4x256xf32>,
    return
  }
  func.func @transform_0(%arg0: i32) -> (i32, i32, i32) {
    %c0_i32 = arith.constant 0 : i32
    %c0_i32_0 = arith.constant 0 : i32
    %c0_i32_1 = arith.constant 0 : i32
    return %arg0, %c0_i32, %c0_i32_0 : i32, i32, i32
  }
  func.func @transform_1(%arg0: i32) -> (i32, i32) {
    %c0_i32 = arith.constant 0 : i32
    %c0_i32_0 = arith.constant 0 : i32
    %c0_i32_1 = arith.constant 0 : i32
    return %c0_i32, %c0_i32_0 : i32, i32
  }
  func.func @transform_2(%arg0: i32) -> (i32, i32) {
    %c0_i32 = arith.constant 0 : i32
    %c0_i32_0 = arith.constant 0 : i32
    %c0_i32_1 = arith.constant 0 : i32
    return %c0_i32, %c0_i32_0 : i32, i32
  }
  func.func @transform_3(%arg0: i32) -> i32 {
    %c0_i32 = arith.constant 0 : i32
    %c0_i32_0 = arith.constant 0 : i32
    return %c0_i32 : i32
  }
  func.func @transform_4(%arg0: i32) -> i32 {
    %c0_i32 = arith.constant 0 : i32
    %c0_i32_0 = arith.constant 0 : i32
    return %c0_i32 : i32
  }
  func.func @transform_5(%arg0: i32) -> (i32, i32) {
    %c0_i32 = arith.constant 0 : i32
    %c0_i32_0 = arith.constant 0 : i32
    %c0_i32_1 = arith.constant 0 : i32
    return %c0_i32, %c0_i32_0 : i32, i32
  }
  func.func @transform_6(%arg0: i32) -> i32 {
    %c0_i32 = arith.constant 0 : i32
    %c0_i32_0 = arith.constant 0 : i32
    return %c0_i32 : i32
  }
  func.func @transform_7(%arg0: i32) -> (i32, i32, i32) {
    %c0_i32 = arith.constant 0 : i32
    %c0_i32_0 = arith.constant 0 : i32
    %c0_i32_1 = arith.constant 0 : i32
    %c0_i32_2 = arith.constant 0 : i32
    return %c0_i32, %c0_i32_0, %c0_i32_1 : i32, i32, i32
  }
  func.func @transform_8(%arg0: i32) -> (i32, i32) {
    %c0_i32 = arith.constant 0 : i32
    %c0_i32_0 = arith.constant 0 : i32
    %c0_i32_1 = arith.constant 0 : i32
    return %c0_i32, %c0_i32_0 : i32, i32
  }
  func.func @transform_9(%arg0: i32) -> (i32, i32, i32) {
    %c0_i32 = arith.constant 0 : i32
    %c0_i32_0 = arith.constant 0 : i32
    %c0_i32_1 = arith.constant 0 : i32
    return %arg0, %c0_i32, %c0_i32_0 : i32, i32, i32
  }
}

</mosaic_0001>

<llo_original>
// kernel: cnn128_forward.1
$region0: #{cnn128_forward.1}
  #allocation0 [shape = 'u32[]', space=smem, size = 0x4, offset = 0x4, fixed_abs, tag = 'smem constant byte address 0x4 - core index']
  #allocation1 [shape = 'u32[144,128]{1,0:T(1,128)}', space=vmem, size = 0x12000, scoped, tag = 'internal scratch']
  #allocation2 [shape = 'f32[128,128]{1,0:T(8,128)}', space=vmem, size = 0x10000, scoped, tag = 'scratch operand']
  %s0 = inlined_call_operand.hbm [shape: f32[8,128,128], index: 0, kind: input, shape index: {}]
  %s1 = inlined_call_operand.hbm [shape: f32[128,128], index: 1, kind: input, shape index: {}]
  %s2 = inlined_call_operand.hbm [shape: f32[32,128], index: 2, kind: input, shape index: {}]
  %s3 = inlined_call_operand.vmem [shape: f32[32], index: 3, kind: input, shape index: {}]
  %s4 = inlined_call_operand.vmem [shape: f32[2], index: 4, kind: input, shape index: {}]
  %s5 = inlined_call_operand.hbm [shape: f32[128,128], index: 5, kind: input, shape index: {}]
  %s6 = inlined_call_operand.vmem [shape: f32[4], index: 6, kind: input, shape index: {}]
  %s7 = inlined_call_operand.hbm [shape: f32[6,128,256], index: 7, kind: input, shape index: {}]
  %s8 = inlined_call_operand.vmem [shape: f32[1,256], index: 8, kind: input, shape index: {}]
  %s9 = inlined_call_operand.vmem [shape: f32[2,4,256], index: 9, kind: output, shape index: {}]
  %s10 = sld [smem:[#allocation0]]
  $region108: #{cnn128_forward.1} parent=0
    _
  %s12 = ssub.s32 1, %s10
  %s13 = scalar_select 0, %s12, %s10
  $region1: #{cnn128_forward.1} parent=0
    #allocation3 [shape = 'u8[524288]{0}', space=vmem, size = 0x80000, scoped, tag = 'input window, operand 0']
    #allocation4 [shape = 's32[2]{0}', space=sflag, size = 0x8, scoped, tag = 'scoped memory for cnn128_forward.1']
    #allocation5 [shape = 's32[2]{0}', space=sflag, size = 0x8, scoped, tag = 'scoped memory for cnn128_forward.1']
    #allocation6 [shape = 'u8[65536]{0}', space=vmem, size = 0x10000, scoped, tag = 'input window, operand 1, single buffered']
    #allocation7 [shape = 's32[1]{0}', space=sflag, size = 0x4, scoped, tag = 'scoped memory for cnn128_forward.1']
    #allocation8 [shape = 'u8[16384]{0}', space=vmem, size = 0x4000, scoped, tag = 'input window, operand 2, single buffered']
    #allocation9 [shape = 'u8[512]{0}', space=smem, size = 0x200, scoped, tag = 'input window, operand 3, single buffered']
    #allocation10 [shape = 'u8[512]{0}', space=smem, size = 0x200, scoped, tag = 'input window, operand 4, single buffered']
    #allocation11 [shape = 's32[1]{0}', space=sflag, size = 0x4, scoped, tag = 'scoped memory for cnn128_forward.1']
    #allocation12 [shape = 'u8[65536]{0}', space=vmem, size = 0x10000, scoped, tag = 'input window, operand 5, single buffered']
    #allocation13 [shape = 's32[1]{0}', space=sflag, size = 0x4, scoped, tag = 'scoped memory for cnn128_forward.1']
    #allocation14 [shape = 'u8[512]{0}', space=smem, size = 0x200, scoped, tag = 'input window, operand 6, single buffered']
    #allocation15 [shape = 'u8[786432]{0}', space=vmem, size = 0xc0000, scoped, tag = 'input window, operand 7, single buffered']
    %14 = vsyncpa [#allocation4], 0
    %s15 = scalar_lea.sflag [#allocation4], 1
    %16 = vsyncpa %s15, 0
    %17 = vsyncpa [#allocation7], 0
    %18 = vsyncpa [#allocation5], 0
    %19 = vsyncpa [#allocation11], 0
    %20 = vsyncpa [#allocation13], 0
    loop: start=0, step=1, limit=4
    $region2: #{cnn128_forward.1} parent=1 // loop_pre_header
      _
    $region3: #{cnn128_forward.1} parent=1 // loop_header
      %s22 = sphi 0, %s26
      %p23 = scmp.ge.s32.totalorder %s22, 4
      %s32 = sphi 0, %s34
      %s35 = sphi 0, %s32
      %s36 = sphi 0, %s35
      %s52 = sphi 0, %s36
      %s56 = sphi 0, %s56
      %s58 = sphi 0, %s56
      %s59 = sphi 0, %s58
      %s73 = sphi 0, %s59
      %s77 = sphi 0, %s77
      %s79 = sphi 0, %s77
      %s80 = sphi 0, %s79
      %s94 = sphi 0, %s80
      %s98 = sphi 0, %s98
      %s100 = sphi 0, %s98
      %s101 = sphi 0, %s100
      %s115 = sphi 0, %s101
      %s119 = sphi 0, %s119
      %s121 = sphi 0, %s119
      %s122 = sphi 0, %s121
      %s136 = sphi 0, %s122
      %s140 = sphi 0, %s140
      %s142 = sphi 0, %s140
      %s143 = sphi 0, %s142
      %s157 = sphi 0, %s143
      %s161 = sphi 0, %s161
      %s163 = sphi 0, %s161
      %s164 = sphi 0, %s163
      %s178 = sphi 0, %s164
      %s182 = sphi 0, %s182
      %s184 = sphi 0, %s182
      %s185 = sphi 0, %s184
      %s199 = sphi 0, %s185
      %s203 = sphi 0, %s203
      %s205 = sphi 0, %s203
      %s206 = sphi 0, %s205
      %s220 = sphi 0, %s206
      %s226 = sphi 0, %s228
      %s229 = sphi 0, %s226
      %s230 = sphi 0, %s229
      %s246 = sphi 0, %s230
    $region4: #{cnn128_forward.1} parent=1 // loop_header_branch
      %25 = sbr.rel (%p23) target = $region8
    $region5: #{cnn128_forward.1} parent=1 // loop_body
      %s27 = ssub.s32 %s22, 1
      %s28 = ssub.s32 %s22, 2
      %s29 = sadd.s32 %s22, 1
      %s30 = ssub.s32 %s22, %s29
      %p31 = scmp.eq.s32.totalorder %s30, 0
      %s33 = sadd.s32 %s32, 1
      %s34 = scalar_select %p31, %s32, %s33
      %p37 = pneg %p31
      %p38 = scmp.eq.s32.totalorder %s22, 1
      %p39 = por %p37, %p38
      %p40 = scmp.ne.s32.totalorder %s32, %s35
      %p41 = scmp.eq.s32.totalorder %s22, 0
      %p42 = por %p40, %p41
      %p43 = scmp.ne.s32.totalorder %s32, %s35
      %p44 = scmp.eq.s32.totalorder %s27, 1
      %p45 = por %p43, %p44
      %p46 = scmp.ne.s32.totalorder %s35, %s36
      %p47 = scmp.eq.s32.totalorder %s27, 0
      %p48 = por %p46, %p47
      %p49 = scmp.ne.s32.totalorder %s35, %s36
      %p50 = scmp.eq.s32.totalorder %s28, 1
      %p51 = por %p49, %p50
      %p53 = scmp.ne.s32.totalorder %s36, %s52
      %p54 = scmp.eq.s32.totalorder %s28, 0
      %p55 = por %p53, %p54
      %s57 = sadd.s32 %s56, 1
      %p60 = scmp.eq.s32.totalorder %s22, 1
      %p61 = scmp.ne.s32.totalorder %s56, %s58
      %p62 = scmp.eq.s32.totalorder %s22, 0
      %p63 = por %p61, %p62
      %p64 = scmp.ne.s32.totalorder %s56, %s58
      %p65 = scmp.eq.s32.totalorder %s27, 1
      %p66 = por %p64, %p65
      %p67 = scmp.ne.s32.totalorder %s58, %s59
      %p68 = scmp.eq.s32.totalorder %s27, 0
      %p69 = por %p67, %p68
      %p70 = scmp.ne.s32.totalorder %s58, %s59
      %p71 = scmp.eq.s32.totalorder %s28, 1
      %p72 = por %p70, %p71
      %p74 = scmp.ne.s32.totalorder %s59, %s73
      %p75 = scmp.eq.s32.totalorder %s28, 0
      %p76 = por %p74, %p75
      %s78 = sadd.s32 %s77, 1
      %p81 = scmp.eq.s32.totalorder %s22, 1
      %p82 = scmp.ne.s32.totalorder %s77, %s79
      %p83 = scmp.eq.s32.totalorder %s22, 0
      %p84 = por %p82, %p83
      %p85 = scmp.ne.s32.totalorder %s77, %s79
      %p86 = scmp.eq.s32.totalorder %s27, 1
      %p87 = por %p85, %p86
      %p88 = scmp.ne.s32.totalorder %s79, %s80
      %p89 = scmp.eq.s32.totalorder %s27, 0
      %p90 = por %p88, %p89
      %p91 = scmp.ne.s32.totalorder %s79, %s80
      %p92 = scmp.eq.s32.totalorder %s28, 1
      %p93 = por %p91, %p92
      %p95 = scmp.ne.s32.totalorder %s80, %s94
      %p96 = scmp.eq.s32.totalorder %s28, 0
      %p97 = por %p95, %p96
      %s99 = sadd.s32 %s98, 1
      %p102 = scmp.eq.s32.totalorder %s22, 1
      %p103 = scmp.ne.s32.totalorder %s98, %s100
      %p104 = scmp.eq.s32.totalorder %s22, 0
      %p105 = por %p103, %p104
      %p106 = scmp.ne.s32.totalorder %s98, %s100
      %p107 = scmp.eq.s32.totalorder %s27, 1
      %p108 = por %p106, %p107
      %p109 = scmp.ne.s32.totalorder %s100, %s101
      %p110 = scmp.eq.s32.totalorder %s27, 0
      %p111 = por %p109, %p110
      %p112 = scmp.ne.s32.totalorder %s100, %s101
      %p113 = scmp.eq.s32.totalorder %s28, 1
      %p114 = por %p112, %p113
      %p116 = scmp.ne.s32.totalorder %s101, %s115
      %p117 = scmp.eq.s32.totalorder %s28, 0
      %p118 = por %p116, %p117
      %s120 = sadd.s32 %s119, 1
      %p123 = scmp.eq.s32.totalorder %s22, 1
      %p124 = scmp.ne.s32.totalorder %s119, %s121
      %p125 = scmp.eq.s32.totalorder %s22, 0
      %p126 = por %p124, %p125
      %p127 = scmp.ne.s32.totalorder %s119, %s121
      %p128 = scmp.eq.s32.totalorder %s27, 1
      %p129 = por %p127, %p128
      %p130 = scmp.ne.s32.totalorder %s121, %s122
      %p131 = scmp.eq.s32.totalorder %s27, 0
      %p132 = por %p130, %p131
      %p133 = scmp.ne.s32.totalorder %s121, %s122
      %p134 = scmp.eq.s32.totalorder %s28, 1
      %p135 = por %p133, %p134
      %p137 = scmp.ne.s32.totalorder %s122, %s136
      %p138 = scmp.eq.s32.totalorder %s28, 0
      %p139 = por %p137, %p138
      %s141 = sadd.s32 %s140, 1
      %p144 = scmp.eq.s32.totalorder %s22, 1
      %p145 = scmp.ne.s32.totalorder %s140, %s142
      %p146 = scmp.eq.s32.totalorder %s22, 0
      %p147 = por %p145, %p146
      %p148 = scmp.ne.s32.totalorder %s140, %s142
      %p149 = scmp.eq.s32.totalorder %s27, 1
      %p150 = por %p148, %p149
      %p151 = scmp.ne.s32.totalorder %s142, %s143
      %p152 = scmp.eq.s32.totalorder %s27, 0
      %p153 = por %p151, %p152
      %p154 = scmp.ne.s32.totalorder %s142, %s143
      %p155 = scmp.eq.s32.totalorder %s28, 1
      %p156 = por %p154, %p155
      %p158 = scmp.ne.s32.totalorder %s143, %s157
      %p159 = scmp.eq.s32.totalorder %s28, 0
      %p160 = por %p158, %p159
      %s162 = sadd.s32 %s161, 1
      %p165 = scmp.eq.s32.totalorder %s22, 1
      %p166 = scmp.ne.s32.totalorder %s161, %s163
      %p167 = scmp.eq.s32.totalorder %s22, 0
      %p168 = por %p166, %p167
      %p169 = scmp.ne.s32.totalorder %s161, %s163
      %p170 = scmp.eq.s32.totalorder %s27, 1
      %p171 = por %p169, %p170
      %p172 = scmp.ne.s32.totalorder %s163, %s164
      %p173 = scmp.eq.s32.totalorder %s27, 0
      %p174 = por %p172, %p173
      %p175 = scmp.ne.s32.totalorder %s163, %s164
      %p176 = scmp.eq.s32.totalorder %s28, 1
      %p177 = por %p175, %p176
      %p179 = scmp.ne.s32.totalorder %s164, %s178
      %p180 = scmp.eq.s32.totalorder %s28, 0
      %p181 = por %p179, %p180
      %s183 = sadd.s32 %s182, 1
      %p186 = scmp.eq.s32.totalorder %s22, 1
      %p187 = scmp.ne.s32.totalorder %s182, %s184
      %p188 = scmp.eq.s32.totalorder %s22, 0
      %p189 = por %p187, %p188
      %p190 = scmp.ne.s32.totalorder %s182, %s184
      %p191 = scmp.eq.s32.totalorder %s27, 1
      %p192 = por %p190, %p191
      %p193 = scmp.ne.s32.totalorder %s184, %s185
      %p194 = scmp.eq.s32.totalorder %s27, 0
      %p195 = por %p193, %p194
      %p196 = scmp.ne.s32.totalorder %s184, %s185
      %p197 = scmp.eq.s32.totalorder %s28, 1
      %p198 = por %p196, %p197
      %p200 = scmp.ne.s32.totalorder %s185, %s199
      %p201 = scmp.eq.s32.totalorder %s28, 0
      %p202 = por %p200, %p201
      %s204 = sadd.s32 %s203, 1
      %p207 = scmp.eq.s32.totalorder %s22, 1
      %p208 = scmp.ne.s32.totalorder %s203, %s205
      %p209 = scmp.eq.s32.totalorder %s22, 0
      %p210 = por %p208, %p209
      %p211 = scmp.ne.s32.totalorder %s203, %s205
      %p212 = scmp.eq.s32.totalorder %s27, 1
      %p213 = por %p211, %p212
      %p214 = scmp.ne.s32.totalorder %s205, %s206
      %p215 = scmp.eq.s32.totalorder %s27, 0
      %p216 = por %p214, %p215
      %p217 = scmp.ne.s32.totalorder %s205, %s206
      %p218 = scmp.eq.s32.totalorder %s28, 1
      %p219 = por %p217, %p218
      %p221 = scmp.ne.s32.totalorder %s206, %s220
      %p222 = scmp.eq.s32.totalorder %s28, 0
      %p223 = por %p221, %p222
      %s224 = ssub.s32 %s22, %s29
      %p225 = scmp.eq.s32.totalorder %s224, 0
      %s227 = sadd.s32 %s226, 1
      %s228 = scalar_select %p225, %s226, %s227
      %p231 = pneg %p225
      %p232 = scmp.eq.s32.totalorder %s22, 1
      %p233 = por %p231, %p232
      %p234 = scmp.ne.s32.totalorder %s226, %s229
      %p235 = scmp.eq.s32.totalorder %s22, 0
      %p236 = por %p234, %p235
      %p237 = scmp.ne.s32.totalorder %s226, %s229
      %p238 = scmp.eq.s32.totalorder %s27, 1
      %p239 = por %p237, %p238
      %p240 = scmp.ne.s32.totalorder %s229, %s230
      %p241 = scmp.eq.s32.totalorder %s27, 0
      %p242 = por %p240, %p241
      %p243 = scmp.ne.s32.totalorder %s229, %s230
      %p244 = scmp.eq.s32.totalorder %s28, 1
      %p245 = por %p243, %p244
      %p247 = scmp.ne.s32.totalorder %s230, %s246
      %p248 = scmp.eq.s32.totalorder %s28, 0
      %p249 = por %p247, %p248
      %p250 = scmp.le.s32.totalorder 1, %s22
      %p251 = scmp.lt.s32.totalorder %s22, 3
      %p252 = pnand %p250, %p251
      %p253 = pneg %p252
      // Predicated region
      $region9: #{cnn128_forward.1} parent=5 // pred_check
        _
      $region10: #{cnn128_forward.1} parent=5 // pred_check_branch
        %255 = sbr.rel (%p252) target = $region12
      $region11: #{cnn128_forward.1} parent=5 // pred_region
        %s256 = ssub.s32 %s22, 1
        // Predicated region
        $region13: #{cnn128_forward.1} parent=11 // pred_check
          %p257 = pneg %p69
        $region14: #{cnn128_forward.1} parent=11 // pred_check_branch
          %259 = sbr.rel (%p257) target = $region16
        $region15: #{cnn128_forward.1} parent=11 // pred_region
          %s261 = ssub.s32 2048, 2048
          %262 = vsyncadd [#allocation7], %s261
          %s263 = sshll.u32 [#allocation6], 4
          %s264 = int_to_ptr.vmem [resolvable:$true] %s263
          %269 = dma.hbm_to_vmem [thread:$0]  %s1, 2048, %s264, [#allocation7], 128, 128, 8
        $region16: #{cnn128_forward.1} parent=11 // pred_fallthru
          _
        // Predicated region
        $region17: #{cnn128_forward.1} parent=11 // pred_check
          %p270 = pneg %p90
        $region18: #{cnn128_forward.1} parent=11 // pred_check_branch
          %272 = sbr.rel (%p270) target = $region20
        $region19: #{cnn128_forward.1} parent=11 // pred_region
          %s274 = ssub.s32 512, 512
          %275 = vsyncadd [#allocation7], %s274
          %s276 = sshll.u32 [#allocation8], 4
          %s277 = int_to_ptr.vmem [resolvable:$true] %s276
          %282 = dma.hbm_to_vmem [thread:$0]  %s2, 512, %s277, [#allocation7], 128, 128, 8
        $region20: #{cnn128_forward.1} parent=11 // pred_fallthru
          _
        // Predicated region
        $region21: #{cnn128_forward.1} parent=11 // pred_check
          %p283 = pneg %p111
        $region22: #{cnn128_forward.1} parent=11 // pred_check_branch
          %285 = sbr.rel (%p283) target = $region24
        $region23: #{cnn128_forward.1} parent=11 // pred_region
          %s287 = ssub.s32 16, 16
          %288 = vsyncadd [#allocation5], %s287
          %s290 = sshll.u32 %s3, 4
          %s291 = int_to_ptr.vmem [resolvable:$true] %s290
          %293 = dma.vmem_to_smem %s291, 16, [#allocation9], [#allocation5]
        $region24: #{cnn128_forward.1} parent=11 // pred_fallthru
          _
        // Predicated region
        $region25: #{cnn128_forward.1} parent=11 // pred_check
          %p294 = pneg %p132
        $region26: #{cnn128_forward.1} parent=11 // pred_check_branch
          %296 = sbr.rel (%p294) target = $region28
        $region27: #{cnn128_forward.1} parent=11 // pred_region
          %s298 = ssub.s32 16, 16
          %299 = vsyncadd [#allocation11], %s298
          %s301 = sshll.u32 %s4, 4
          %s302 = int_to_ptr.vmem [resolvable:$true] %s301
          %304 = dma.vmem_to_smem %s302, 16, [#allocation10], [#allocation11]
        $region28: #{cnn128_forward.1} parent=11 // pred_fallthru
          _
        // Predicated region
        $region29: #{cnn128_forward.1} parent=11 // pred_check
          %p305 = pneg %p153
        $region30: #{cnn128_forward.1} parent=11 // pred_check_branch
          %307 = sbr.rel (%p305) target = $region32
        $region31: #{cnn128_forward.1} parent=11 // pred_region
          %s309 = ssub.s32 2048, 2048
          %310 = vsyncadd [#allocation13], %s309
          %s311 = sshll.u32 [#allocation12], 4
          %s312 = int_to_ptr.vmem [resolvable:$true] %s311
          %317 = dma.hbm_to_vmem [thread:$0]  %s5, 2048, %s312, [#allocation13], 128, 128, 8
        $region32: #{cnn128_forward.1} parent=11 // pred_fallthru
          _
        // Predicated region
        $region33: #{cnn128_forward.1} parent=11 // pred_check
          %p318 = pneg %p174
        $region34: #{cnn128_forward.1} parent=11 // pred_check_branch
          %320 = sbr.rel (%p318) target = $region36
        $region35: #{cnn128_forward.1} parent=11 // pred_region
          %s322 = ssub.s32 16, 16
          %323 = vsyncadd [#allocation11], %s322
          %s325 = sshll.u32 %s6, 4
          %s326 = int_to_ptr.vmem [resolvable:$true] %s325
          %328 = dma.vmem_to_smem %s326, 16, [#allocation14], [#allocation11]
        $region36: #{cnn128_forward.1} parent=11 // pred_fallthru
          _
        // Predicated region
        $region37: #{cnn128_forward.1} parent=11 // pred_check
          %p329 = pneg %p195
        $region38: #{cnn128_forward.1} parent=11 // pred_check_branch
          %331 = sbr.rel (%p329) target = $region40
        $region39: #{cnn128_forward.1} parent=11 // pred_region
          %s333 = ssub.s32 24576, 24576
          %334 = vsyncadd [#allocation13], %s333
          %s335 = sshll.u32 [#allocation15], 4
          %s336 = int_to_ptr.vmem [resolvable:$true] %s335
          %341 = dma.hbm_to_vmem [thread:$0]  %s7, 24576, %s336, [#allocation13], 256, 256, 16
        $region40: #{cnn128_forward.1} parent=11 // pred_fallthru
          _
        // Predicated region
        $region41: #{cnn128_forward.1} parent=11 // pred_check
          %p342 = pneg %p216
        $region42: #{cnn128_forward.1} parent=11 // pred_check_branch
          %344 = sbr.rel (%p342) target = $region44
        $region43: #{cnn128_forward.1} parent=11 // pred_region
          _
        $region44: #{cnn128_forward.1} parent=11 // pred_fallthru
          _
      $region12: #{cnn128_forward.1} parent=5 // pred_fallthru
        _
      %p345 = scmp.lt.s32.totalorder %s22, 2
      // Predicated region
      $region45: #{cnn128_forward.1} parent=5 // pred_check
        %p346 = pneg %p345
      $region46: #{cnn128_forward.1} parent=5 // pred_check_branch
        %348 = sbr.rel (%p346) target = $region48
      $region47: #{cnn128_forward.1} parent=5 // pred_region
        // Predicated region
        $region49: #{cnn128_forward.1} parent=47 // pred_check
          %p349 = pneg %p42
        $region50: #{cnn128_forward.1} parent=47 // pred_check_branch
          %351 = sbr.rel (%p349) target = $region52
        $region51: #{cnn128_forward.1} parent=47 // pred_region
          %s352 = sand.u32 %s32, 1
          %s353 = scalar_lea.sflag [#allocation4], %s352
          %s354 = sand.u32 %s32, 1
          %s355 = smul.addr %s354, 512
          %s356 = scalar_lea.vmem [#allocation3], %s355
          %s357 = smul.u32 4, %s22
          %s359 = ssub.s32 8192, 8192
          %360 = vsyncadd %s353, %s359
          %s361 = smul.addr %s357, 16
          %s362 = smul.addr %s361, 128
          %s363 = scalar_lea.hbm %s0, %s362
          %s364 = sshll.u32 %s356, 4
          %s365 = int_to_ptr.vmem [resolvable:$true] %s364
          %370 = dma.hbm_to_vmem [thread:$0]  %s363, 8192, %s365, %s353, 128, 128, 8
        $region52: #{cnn128_forward.1} parent=47 // pred_fallthru
          _
      $region48: #{cnn128_forward.1} parent=5 // pred_fallthru
        _
      %p371 = scmp.le.s32.totalorder 1, %s22
      %p372 = scmp.lt.s32.totalorder %s22, 3
      %p373 = pnand %p371, %p372
      %p374 = pneg %p373
      // Predicated region
      $region53: #{cnn128_forward.1} parent=5 // pred_check
        _
      $region54: #{cnn128_forward.1} parent=5 // pred_check_branch
        %376 = sbr.rel (%p373) target = $region56
      $region55: #{cnn128_forward.1} parent=5 // pred_region
        %s377 = ssub.s32 %s22, 1
        %s378 = sand.u32 %s35, 1
        %s379 = scalar_lea.sflag [#allocation4], %s378
        %s380 = sand.u32 %s35, 1
        %s381 = smul.addr %s380, 512
        %s382 = scalar_lea.vmem [#allocation3], %s381
        // Predicated region
        $region57: #{cnn128_forward.1} parent=55 // pred_check
          %p383 = pneg %p48
        $region58: #{cnn128_forward.1} parent=55 // pred_check_branch
          %385 = sbr.rel (%p383) target = $region60
        $region59: #{cnn128_forward.1} parent=55 // pred_region
          %386 = dma.done %s379, 8192
        $region60: #{cnn128_forward.1} parent=55 // pred_fallthru
          _
        // Predicated region
        $region61: #{cnn128_forward.1} parent=55 // pred_check
          %p387 = pneg %p69
        $region62: #{cnn128_forward.1} parent=55 // pred_check_branch
          %389 = sbr.rel (%p387) target = $region64
        $region63: #{cnn128_forward.1} parent=55 // pred_region
          %390 = dma.done [#allocation7], 2048
        $region64: #{cnn128_forward.1} parent=55 // pred_fallthru
          _
        // Predicated region
        $region65: #{cnn128_forward.1} parent=55 // pred_check
          %p391 = pneg %p90
        $region66: #{cnn128_forward.1} parent=55 // pred_check_branch
          %393 = sbr.rel (%p391) target = $region68
        $region67: #{cnn128_forward.1} parent=55 // pred_region
          %394 = dma.done [#allocation7], 512
        $region68: #{cnn128_forward.1} parent=55 // pred_fallthru
          _
        // Predicated region
        $region69: #{cnn128_forward.1} parent=55 // pred_check
          %p395 = pneg %p111
        $region70: #{cnn128_forward.1} parent=55 // pred_check_branch
          %397 = sbr.rel (%p395) target = $region72
        $region71: #{cnn128_forward.1} parent=55 // pred_region
          %398 = dma.done [#allocation5], 16
        $region72: #{cnn128_forward.1} parent=55 // pred_fallthru
          _
        // Predicated region
        $region73: #{cnn128_forward.1} parent=55 // pred_check
          %p399 = pneg %p132
        $region74: #{cnn128_forward.1} parent=55 // pred_check_branch
          %401 = sbr.rel (%p399) target = $region76
        $region75: #{cnn128_forward.1} parent=55 // pred_region
          %402 = dma.done [#allocation11], 16
        $region76: #{cnn128_forward.1} parent=55 // pred_fallthru
          _
        // Predicated region
        $region77: #{cnn128_forward.1} parent=55 // pred_check
          %p403 = pneg %p153
        $region78: #{cnn128_forward.1} parent=55 // pred_check_branch
          %405 = sbr.rel (%p403) target = $region80
        $region79: #{cnn128_forward.1} parent=55 // pred_region
          %406 = dma.done [#allocation13], 2048
        $region80: #{cnn128_forward.1} parent=55 // pred_fallthru
          _
        // Predicated region
        $region81: #{cnn128_forward.1} parent=55 // pred_check
          %p407 = pneg %p174
        $region82: #{cnn128_forward.1} parent=55 // pred_check_branch
          %409 = sbr.rel (%p407) target = $region84
        $region83: #{cnn128_forward.1} parent=55 // pred_region
          %410 = dma.done [#allocation11], 16
        $region84: #{cnn128_forward.1} parent=55 // pred_fallthru
          _
        // Predicated region
        $region85: #{cnn128_forward.1} parent=55 // pred_check
          %p411 = pneg %p195
        $region86: #{cnn128_forward.1} parent=55 // pred_check_branch
          %413 = sbr.rel (%p411) target = $region88
        $region87: #{cnn128_forward.1} parent=55 // pred_region
          %414 = dma.done [#allocation13], 24576
        $region88: #{cnn128_forward.1} parent=55 // pred_fallthru
          _
        %415 = sfence
        %s416 = sand.u32 %s35, 1
        %s417 = scalar_lea.sflag [#allocation4], %s416
        %s418 = sand.u32 %s35, 1
        %s419 = smul.addr %s418, 512
        %s420 = scalar_lea.vmem [#allocation3], %s419
        %p421 = pneg %p48
        %p422 = pneg %p45
        %p423 = pneg %p69
        %p424 = pneg %p66
        %p425 = pneg %p90
        %p426 = pneg %p87
        %p427 = pneg %p111
        %p428 = pneg %p108
        %p429 = pneg %p132
        %p430 = pneg %p129
        %p431 = pneg %p153
        %p432 = pneg %p150
        %p433 = pneg %p174
        %p434 = pneg %p171
        %p435 = pneg %p195
        %p436 = pneg %p192
        %p437 = pneg %p216
        %p438 = pneg %p213
        %p439 = pneg %p242
        %p440 = pneg %p239
        %p441 = scmp.lt.s32.totalorder %s27, 1
        %s442 = scalar_select %p441, %s27, 1
        %s443 = smul.addr %s442, 2
        %s444 = smul.addr %s443, 4
        %s445 = scalar_lea.vmem %s9, %s444
        %s446 = smul.u32 4, %s27
        %p447 = scmp.lt.s32.totalorder %s27, 1
        %s448 = scalar_select %p447, %s27, 1
        %s449 = smul.addr %s448, 2
        %s450 = smul.addr %s449, 4
        %s451 = scalar_lea.vmem %s9, %s450
        loop: start=0, step=1, limit=4
        $region89: #{cnn128_forward.1} parent=55 // loop_pre_header
          _
        $region90: #{cnn128_forward.1} parent=55 // loop_header
          %s453 = sphi 0, %s457
          %p454 = scmp.ge.s32.totalorder %s453, 4
        $region91: #{cnn128_forward.1} parent=55 // loop_header_branch
          %456 = sbr.rel (%p454) target = $region95
        $region92: #{cnn128_forward.1} parent=55 // loop_body
          %s458 = smul.u32 %s453, 128
          %s459 = scalar_lea.vmem %s382, %s458 [#allocation3]
          %v460 = vld [vmem:[%s459] sm:$0xff]
          %v461 = vld [vmem:[%s459 + $0x8] sm:$0xff]
          %v462 = vld [vmem:[%s459 + $0x10] sm:$0xff]
          %v463 = vld [vmem:[%s459 + $0x18] sm:$0xff]
          %v464 = vld [vmem:[%s459 + $0x20] sm:$0xff]
          %v465 = vld [vmem:[%s459 + $0x28] sm:$0xff]
          %v466 = vld [vmem:[%s459 + $0x30] sm:$0xff]
          %v467 = vld [vmem:[%s459 + $0x38] sm:$0xff]
          %v468 = vld [vmem:[%s459 + $0x40] sm:$0xff]
          %v469 = vld [vmem:[%s459 + $0x48] sm:$0xff]
          %v470 = vld [vmem:[%s459 + $0x50] sm:$0xff]
          %v471 = vld [vmem:[%s459 + $0x58] sm:$0xff]
          %v472 = vld [vmem:[%s459 + $0x60] sm:$0xff]
          %v473 = vld [vmem:[%s459 + $0x68] sm:$0xff]
          %v474 = vld [vmem:[%s459 + $0x70] sm:$0xff]
          %v475 = vld [vmem:[%s459 + $0x78] sm:$0xff]
          %s476 = sld [smem:[#allocation9]]
          %v477 = vstv %s476
          %v478 = vmul.f32 %v477, %v460
          %v479 = vmul.f32 %v477, %v461
          %v480 = vmul.f32 %v477, %v462
          %v481 = vmul.f32 %v477, %v463
          %v482 = vmul.f32 %v477, %v464
          %v483 = vmul.f32 %v477, %v465
          %v484 = vmul.f32 %v477, %v466
          %v485 = vmul.f32 %v477, %v467
          %v486 = vmul.f32 %v477, %v468
          %v487 = vmul.f32 %v477, %v469
          %v488 = vmul.f32 %v477, %v470
          %v489 = vmul.f32 %v477, %v471
          %v490 = vmul.f32 %v477, %v472
          %v491 = vmul.f32 %v477, %v473
          %v492 = vmul.f32 %v477, %v474
          %v493 = vmul.f32 %v477, %v475
          %494 = vrot.lane.b32.xlu0 %v460, 127
          %v495 = vpop.permute.xlu0 %494
          %496 = vrot.lane.b32.xlu0 %v461, 127
          %v497 = vpop.permute.xlu0 %496
          %498 = vrot.lane.b32.xlu0 %v462, 127
          %v499 = vpop.permute.xlu0 %498
          %500 = vrot.lane.b32.xlu0 %v463, 127
          %v501 = vpop.permute.xlu0 %500
          %502 = vrot.lane.b32.xlu0 %v464, 127
          %v503 = vpop.permute.xlu0 %502
          %504 = vrot.lane.b32.xlu0 %v465, 127
          %v505 = vpop.permute.xlu0 %504
          %506 = vrot.lane.b32.xlu0 %v466, 127
          %v507 = vpop.permute.xlu0 %506
          %508 = vrot.lane.b32.xlu0 %v467, 127
          %v509 = vpop.permute.xlu0 %508
          %510 = vrot.lane.b32.xlu0 %v468, 127
          %v511 = vpop.permute.xlu0 %510
          %512 = vrot.lane.b32.xlu0 %v469, 127
          %v513 = vpop.permute.xlu0 %512
          %514 = vrot.lane.b32.xlu0 %v470, 127
          %v515 = vpop.permute.xlu0 %514
          %516 = vrot.lane.b32.xlu0 %v471, 127
          %v517 = vpop.permute.xlu0 %516
          %518 = vrot.lane.b32.xlu0 %v472, 127
          %v519 = vpop.permute.xlu0 %518
          %520 = vrot.lane.b32.xlu0 %v473, 127
          %v521 = vpop.permute.xlu0 %520
          %522 = vrot.lane.b32.xlu0 %v474, 127
          %v523 = vpop.permute.xlu0 %522
          %524 = vrot.lane.b32.xlu0 %v475, 127
          %v525 = vpop.permute.xlu0 %524
          %s526 = sld [smem:[#allocation9 + $0x1]]
          %v527 = vstv %s526
          %v528 = vmul.f32 %v527, %v495
          %v529 = vmul.f32 %v527, %v497
          %v530 = vmul.f32 %v527, %v499
          %v531 = vmul.f32 %v527, %v501
          %v532 = vmul.f32 %v527, %v503
          %v533 = vmul.f32 %v527, %v505
          %v534 = vmul.f32 %v527, %v507
          %v535 = vmul.f32 %v527, %v509
          %v536 = vmul.f32 %v527, %v511
          %v537 = vmul.f32 %v527, %v513
          %v538 = vmul.f32 %v527, %v515
          %v539 = vmul.f32 %v527, %v517
          %v540 = vmul.f32 %v527, %v519
          %v541 = vmul.f32 %v527, %v521
          %v542 = vmul.f32 %v527, %v523
          %v543 = vmul.f32 %v527, %v525
          %v544 = vadd.f32 %v478, %v528
          %v545 = vadd.f32 %v479, %v529
          %v546 = vadd.f32 %v480, %v530
          %v547 = vadd.f32 %v481, %v531
          %v548 = vadd.f32 %v482, %v532
          %v549 = vadd.f32 %v483, %v533
          %v550 = vadd.f32 %v484, %v534
          %v551 = vadd.f32 %v485, %v535
          %v552 = vadd.f32 %v486, %v536
          %v553 = vadd.f32 %v487, %v537
          %v554 = vadd.f32 %v488, %v538
          %v555 = vadd.f32 %v489, %v539
          %v556 = vadd.f32 %v490, %v540
          %v557 = vadd.f32 %v491, %v541
          %v558 = vadd.f32 %v492, %v542
          %v559 = vadd.f32 %v493, %v543
          %560 = vrot.lane.b32.xlu0 %v495, 127
          %v561 = vpop.permute.xlu0 %560
          %562 = vrot.lane.b32.xlu0 %v497, 127
          %v563 = vpop.permute.xlu0 %562
          %564 = vrot.lane.b32.xlu0 %v499, 127
          %v565 = vpop.permute.xlu0 %564
          %566 = vrot.lane.b32.xlu0 %v501, 127
          %v567 = vpop.permute.xlu0 %566
          %568 = vrot.lane.b32.xlu0 %v503, 127
          %v569 = vpop.permute.xlu0 %568
          %570 = vrot.lane.b32.xlu0 %v505, 127
          %v571 = vpop.permute.xlu0 %570
          %572 = vrot.lane.b32.xlu0 %v507, 127
          %v573 = vpop.permute.xlu0 %572
          %574 = vrot.lane.b32.xlu0 %v509, 127
          %v575 = vpop.permute.xlu0 %574
          %576 = vrot.lane.b32.xlu0 %v511, 127
          %v577 = vpop.permute.xlu0 %576
          %578 = vrot.lane.b32.xlu0 %v513, 127
          %v579 = vpop.permute.xlu0 %578
          %580 = vrot.lane.b32.xlu0 %v515, 127
          %v581 = vpop.permute.xlu0 %580
          %582 = vrot.lane.b32.xlu0 %v517, 127
          %v583 = vpop.permute.xlu0 %582
          %584 = vrot.lane.b32.xlu0 %v519, 127
          %v585 = vpop.permute.xlu0 %584
          %586 = vrot.lane.b32.xlu0 %v521, 127
          %v587 = vpop.permute.xlu0 %586
          %588 = vrot.lane.b32.xlu0 %v523, 127
          %v589 = vpop.permute.xlu0 %588
          %590 = vrot.lane.b32.xlu0 %v525, 127
          %v591 = vpop.permute.xlu0 %590
          %s592 = sld [smem:[#allocation9 + $0x2]]
          %v593 = vstv %s592
          %v594 = vmul.f32 %v593, %v561
          %v595 = vmul.f32 %v593, %v563
          %v596 = vmul.f32 %v593, %v565
          %v597 = vmul.f32 %v593, %v567
          %v598 = vmul.f32 %v593, %v569
          %v599 = vmul.f32 %v593, %v571
          %v600 = vmul.f32 %v593, %v573
          %v601 = vmul.f32 %v593, %v575
          %v602 = vmul.f32 %v593, %v577
          %v603 = vmul.f32 %v593, %v579
          %v604 = vmul.f32 %v593, %v581
          %v605 = vmul.f32 %v593, %v583
          %v606 = vmul.f32 %v593, %v585
          %v607 = vmul.f32 %v593, %v587
          %v608 = vmul.f32 %v593, %v589
          %v609 = vmul.f32 %v593, %v591
          %v610 = vadd.f32 %v544, %v594
          %v611 = vadd.f32 %v545, %v595
          %v612 = vadd.f32 %v546, %v596
          %v613 = vadd.f32 %v547, %v597
          %v614 = vadd.f32 %v548, %v598
          %v615 = vadd.f32 %v549, %v599
          %v616 = vadd.f32 %v550, %v600
          %v617 = vadd.f32 %v551, %v601
          %v618 = vadd.f32 %v552, %v602
          %v619 = vadd.f32 %v553, %v603
          %v620 = vadd.f32 %v554, %v604
          %v621 = vadd.f32 %v555, %v605
          %v622 = vadd.f32 %v556, %v606
          %v623 = vadd.f32 %v557, %v607
          %v624 = vadd.f32 %v558, %v608
          %v625 = vadd.f32 %v559, %v609
          %626 = vrot.lane.b32.xlu0 %v561, 127
          %v627 = vpop.permute.xlu0 %626
          %628 = vrot.lane.b32.xlu0 %v563, 127
          %v629 = vpop.permute.xlu0 %628
          %630 = vrot.lane.b32.xlu0 %v565, 127
          %v631 = vpop.permute.xlu0 %630
          %632 = vrot.lane.b32.xlu0 %v567, 127
          %v633 = vpop.permute.xlu0 %632
          %634 = vrot.lane.b32.xlu0 %v569, 127
          %v635 = vpop.permute.xlu0 %634
          %636 = vrot.lane.b32.xlu0 %v571, 127
          %v637 = vpop.permute.xlu0 %636
          %638 = vrot.lane.b32.xlu0 %v573, 127
          %v639 = vpop.permute.xlu0 %638
          %640 = vrot.lane.b32.xlu0 %v575, 127
          %v641 = vpop.permute.xlu0 %640
          %642 = vrot.lane.b32.xlu0 %v577, 127
          %v643 = vpop.permute.xlu0 %642
          %644 = vrot.lane.b32.xlu0 %v579, 127
          %v645 = vpop.permute.xlu0 %644
          %646 = vrot.lane.b32.xlu0 %v581, 127
          %v647 = vpop.permute.xlu0 %646
          %648 = vrot.lane.b32.xlu0 %v583, 127
          %v649 = vpop.permute.xlu0 %648
          %650 = vrot.lane.b32.xlu0 %v585, 127
          %v651 = vpop.permute.xlu0 %650
          %652 = vrot.lane.b32.xlu0 %v587, 127
          %v653 = vpop.permute.xlu0 %652
          %654 = vrot.lane.b32.xlu0 %v589, 127
          %v655 = vpop.permute.xlu0 %654
          %656 = vrot.lane.b32.xlu0 %v591, 127
          %v657 = vpop.permute.xlu0 %656
          %s658 = sld [smem:[#allocation9 + $0x3]]
          %v659 = vstv %s658
          %v660 = vmul.f32 %v659, %v627
          %v661 = vmul.f32 %v659, %v629
          %v662 = vmul.f32 %v659, %v631
          %v663 = vmul.f32 %v659, %v633
          %v664 = vmul.f32 %v659, %v635
          %v665 = vmul.f32 %v659, %v637
          %v666 = vmul.f32 %v659, %v639
          %v667 = vmul.f32 %v659, %v641
          %v668 = vmul.f32 %v659, %v643
          %v669 = vmul.f32 %v659, %v645
          %v670 = vmul.f32 %v659, %v647
          %v671 = vmul.f32 %v659, %v649
          %v672 = vmul.f32 %v659, %v651
          %v673 = vmul.f32 %v659, %v653
          %v674 = vmul.f32 %v659, %v655
          %v675 = vmul.f32 %v659, %v657
          %v676 = vadd.f32 %v610, %v660
          %v677 = vadd.f32 %v611, %v661
          %v678 = vadd.f32 %v612, %v662
          %v679 = vadd.f32 %v613, %v663
          %v680 = vadd.f32 %v614, %v664
          %v681 = vadd.f32 %v615, %v665
          %v682 = vadd.f32 %v616, %v666
          %v683 = vadd.f32 %v617, %v667
          %v684 = vadd.f32 %v618, %v668
          %v685 = vadd.f32 %v619, %v669
          %v686 = vadd.f32 %v620, %v670
          %v687 = vadd.f32 %v621, %v671
          %v688 = vadd.f32 %v622, %v672
          %v689 = vadd.f32 %v623, %v673
          %v690 = vadd.f32 %v624, %v674
          %v691 = vadd.f32 %v625, %v675
          %v692 = vrot.slane %v460, 1
          %v693 = vrot.slane %v461, 1
          %v694 = vrot.slane %v462, 1
          %v695 = vrot.slane %v463, 1
          %v696 = vrot.slane %v464, 1
          %v697 = vrot.slane %v465, 1
          %v698 = vrot.slane %v466, 1
          %v699 = vrot.slane %v467, 1
          %v700 = vrot.slane %v468, 1
          %v701 = vrot.slane %v469, 1
          %v702 = vrot.slane %v470, 1
          %v703 = vrot.slane %v471, 1
          %v704 = vrot.slane %v472, 1
          %v705 = vrot.slane %v473, 1
          %v706 = vrot.slane %v474, 1
          %v707 = vrot.slane %v475, 1
          %v708 = vlaneseq
          %v709 = vshrl.u32 %v708, 7
          %vm710 = vcmp.lt.s32.totalorder %v709, 7
          %v711 = vsel %vm710, %v706, %v707
          %v712 = vsel %vm710, %v705, %v706
          %v713 = vsel %vm710, %v704, %v705
          %v714 = vsel %vm710, %v703, %v704
          %v715 = vsel %vm710, %v702, %v703
          %v716 = vsel %vm710, %v701, %v702
          %v717 = vsel %vm710, %v700, %v701
          %v718 = vsel %vm710, %v699, %v700
          %v719 = vsel %vm710, %v698, %v699
          %v720 = vsel %vm710, %v697, %v698
          %v721 = vsel %vm710, %v696, %v697
          %v722 = vsel %vm710, %v695, %v696
          %v723 = vsel %vm710, %v694, %v695
          %v724 = vsel %vm710, %v693, %v694
          %v725 = vsel %vm710, %v692, %v693
          %v726 = vsel %vm710, %v707, %v692
          %s727 = sld [smem:[#allocation9 + $0x4]]
          %v728 = vstv %s727
          %v729 = vmul.f32 %v728, %v725
          %v730 = vmul.f32 %v728, %v724
          %v731 = vmul.f32 %v728, %v723
          %v732 = vmul.f32 %v728, %v722
          %v733 = vmul.f32 %v728, %v721
          %v734 = vmul.f32 %v728, %v720
          %v735 = vmul.f32 %v728, %v719
          %v736 = vmul.f32 %v728, %v718
          %v737 = vmul.f32 %v728, %v717
          %v738 = vmul.f32 %v728, %v716
          %v739 = vmul.f32 %v728, %v715
          %v740 = vmul.f32 %v728, %v714
          %v741 = vmul.f32 %v728, %v713
          %v742 = vmul.f32 %v728, %v712
          %v743 = vmul.f32 %v728, %v711
          %v744 = vmul.f32 %v728, %v726
          %v745 = vadd.f32 %v676, %v729
          %v746 = vadd.f32 %v677, %v730
          %v747 = vadd.f32 %v678, %v731
          %v748 = vadd.f32 %v679, %v732
          %v749 = vadd.f32 %v680, %v733
          %v750 = vadd.f32 %v681, %v734
          %v751 = vadd.f32 %v682, %v735
          %v752 = vadd.f32 %v683, %v736
          %v753 = vadd.f32 %v684, %v737
          %v754 = vadd.f32 %v685, %v738
          %v755 = vadd.f32 %v686, %v739
          %v756 = vadd.f32 %v687, %v740
          %v757 = vadd.f32 %v688, %v741
          %v758 = vadd.f32 %v689, %v742
          %v759 = vadd.f32 %v690, %v743
          %v760 = vadd.f32 %v691, %v744
          %761 = vrot.lane.b32.xlu0 %v725, 127
          %v762 = vpop.permute.xlu0 %761
          %763 = vrot.lane.b32.xlu0 %v724, 127
          %v764 = vpop.permute.xlu0 %763
          %765 = vrot.lane.b32.xlu0 %v723, 127
          %v766 = vpop.permute.xlu0 %765
          %767 = vrot.lane.b32.xlu0 %v722, 127
          %v768 = vpop.permute.xlu0 %767
          %769 = vrot.lane.b32.xlu0 %v721, 127
          %v770 = vpop.permute.xlu0 %769
          %771 = vrot.lane.b32.xlu0 %v720, 127
          %v772 = vpop.permute.xlu0 %771
          %773 = vrot.lane.b32.xlu0 %v719, 127
          %v774 = vpop.permute.xlu0 %773
          %775 = vrot.lane.b32.xlu0 %v718, 127
          %v776 = vpop.permute.xlu0 %775
          %777 = vrot.lane.b32.xlu0 %v717, 127
          %v778 = vpop.permute.xlu0 %777
          %779 = vrot.lane.b32.xlu0 %v716, 127
          %v780 = vpop.permute.xlu0 %779
          %781 = vrot.lane.b32.xlu0 %v715, 127
          %v782 = vpop.permute.xlu0 %781
          %783 = vrot.lane.b32.xlu0 %v714, 127
          %v784 = vpop.permute.xlu0 %783
          %785 = vrot.lane.b32.xlu0 %v713, 127
          %v786 = vpop.permute.xlu0 %785
          %787 = vrot.lane.b32.xlu0 %v712, 127
          %v788 = vpop.permute.xlu0 %787
          %789 = vrot.lane.b32.xlu0 %v711, 127
          %v790 = vpop.permute.xlu0 %789
          %791 = vrot.lane.b32.xlu0 %v726, 127
          %v792 = vpop.permute.xlu0 %791
          %s793 = sld [smem:[#allocation9 + $0x5]]
          %v794 = vstv %s793
          %v795 = vmul.f32 %v794, %v762
          %v796 = vmul.f32 %v794, %v764
          %v797 = vmul.f32 %v794, %v766
          %v798 = vmul.f32 %v794, %v768
          %v799 = vmul.f32 %v794, %v770
          %v800 = vmul.f32 %v794, %v772
          %v801 = vmul.f32 %v794, %v774
          %v802 = vmul.f32 %v794, %v776
          %v803 = vmul.f32 %v794, %v778
          %v804 = vmul.f32 %v794, %v780
          %v805 = vmul.f32 %v794, %v782
          %v806 = vmul.f32 %v794, %v784
          %v807 = vmul.f32 %v794, %v786
          %v808 = vmul.f32 %v794, %v788
          %v809 = vmul.f32 %v794, %v790
          %v810 = vmul.f32 %v794, %v792
          %v811 = vadd.f32 %v745, %v795
          %v812 = vadd.f32 %v746, %v796
          %v813 = vadd.f32 %v747, %v797
          %v814 = vadd.f32 %v748, %v798
          %v815 = vadd.f32 %v749, %v799
          %v816 = vadd.f32 %v750, %v800
          %v817 = vadd.f32 %v751, %v801
          %v818 = vadd.f32 %v752, %v802
          %v819 = vadd.f32 %v753, %v803
          %v820 = vadd.f32 %v754, %v804
          %v821 = vadd.f32 %v755, %v805
          %v822 = vadd.f32 %v756, %v806
          %v823 = vadd.f32 %v757, %v807
          %v824 = vadd.f32 %v758, %v808
          %v825 = vadd.f32 %v759, %v809
          %v826 = vadd.f32 %v760, %v810
          %827 = vrot.lane.b32.xlu0 %v762, 127
          %v828 = vpop.permute.xlu0 %827
          %829 = vrot.lane.b32.xlu0 %v764, 127
          %v830 = vpop.permute.xlu0 %829
          %831 = vrot.lane.b32.xlu0 %v766, 127
          %v832 = vpop.permute.xlu0 %831
          %833 = vrot.lane.b32.xlu0 %v768, 127
          %v834 = vpop.permute.xlu0 %833
          %835 = vrot.lane.b32.xlu0 %v770, 127
          %v836 = vpop.permute.xlu0 %835
          %837 = vrot.lane.b32.xlu0 %v772, 127
          %v838 = vpop.permute.xlu0 %837
          %839 = vrot.lane.b32.xlu0 %v774, 127
          %v840 = vpop.permute.xlu0 %839
          %841 = vrot.lane.b32.xlu0 %v776, 127
          %v842 = vpop.permute.xlu0 %841
          %843 = vrot.lane.b32.xlu0 %v778, 127
          %v844 = vpop.permute.xlu0 %843
          %845 = vrot.lane.b32.xlu0 %v780, 127
          %v846 = vpop.permute.xlu0 %845
          %847 = vrot.lane.b32.xlu0 %v782, 127
          %v848 = vpop.permute.xlu0 %847
          %849 = vrot.lane.b32.xlu0 %v784, 127
          %v850 = vpop.permute.xlu0 %849
          %851 = vrot.lane.b32.xlu0 %v786, 127
          %v852 = vpop.permute.xlu0 %851
          %853 = vrot.lane.b32.xlu0 %v788, 127
          %v854 = vpop.permute.xlu0 %853
          %855 = vrot.lane.b32.xlu0 %v790, 127
          %v856 = vpop.permute.xlu0 %855
          %857 = vrot.lane.b32.xlu0 %v792, 127
          %v858 = vpop.permute.xlu0 %857
          %s859 = sld [smem:[#allocation9 + $0x6]]
          %v860 = vstv %s859
          %v861 = vmul.f32 %v860, %v828
          %v862 = vmul.f32 %v860, %v830
          %v863 = vmul.f32 %v860, %v832
          %v864 = vmul.f32 %v860, %v834
          %v865 = vmul.f32 %v860, %v836
          %v866 = vmul.f32 %v860, %v838
          %v867 = vmul.f32 %v860, %v840
          %v868 = vmul.f32 %v860, %v842
          %v869 = vmul.f32 %v860, %v844
          %v870 = vmul.f32 %v860, %v846
          %v871 = vmul.f32 %v860, %v848
          %v872 = vmul.f32 %v860, %v850
          %v873 = vmul.f32 %v860, %v852
          %v874 = vmul.f32 %v860, %v854
          %v875 = vmul.f32 %v860, %v856
          %v876 = vmul.f32 %v860, %v858
          %v877 = vadd.f32 %v811, %v861
          %v878 = vadd.f32 %v812, %v862
          %v879 = vadd.f32 %v813, %v863
          %v880 = vadd.f32 %v814, %v864
          %v881 = vadd.f32 %v815, %v865
          %v882 = vadd.f32 %v816, %v866
          %v883 = vadd.f32 %v817, %v867
          %v884 = vadd.f32 %v818, %v868
          %v885 = vadd.f32 %v819, %v869
          %v886 = vadd.f32 %v820, %v870
          %v887 = vadd.f32 %v821, %v871
          %v888 = vadd.f32 %v822, %v872
          %v889 = vadd.f32 %v823, %v873
          %v890 = vadd.f32 %v824, %v874
          %v891 = vadd.f32 %v825, %v875
          %v892 = vadd.f32 %v826, %v876
          %893 = vrot.lane.b32.xlu0 %v828, 127
          %v894 = vpop.permute.xlu0 %893
          %895 = vrot.lane.b32.xlu0 %v830, 127
          %v896 = vpop.permute.xlu0 %895
          %897 = vrot.lane.b32.xlu0 %v832, 127
          %v898 = vpop.permute.xlu0 %897
          %899 = vrot.lane.b32.xlu0 %v834, 127
          %v900 = vpop.permute.xlu0 %899
          %901 = vrot.lane.b32.xlu0 %v836, 127
          %v902 = vpop.permute.xlu0 %901
          %903 = vrot.lane.b32.xlu0 %v838, 127
          %v904 = vpop.permute.xlu0 %903
          %905 = vrot.lane.b32.xlu0 %v840, 127
          %v906 = vpop.permute.xlu0 %905
          %907 = vrot.lane.b32.xlu0 %v842, 127
          %v908 = vpop.permute.xlu0 %907
          %909 = vrot.lane.b32.xlu0 %v844, 127
          %v910 = vpop.permute.xlu0 %909
          %911 = vrot.lane.b32.xlu0 %v846, 127
          %v912 = vpop.permute.xlu0 %911
          %913 = vrot.lane.b32.xlu0 %v848, 127
          %v914 = vpop.permute.xlu0 %913
          %915 = vrot.lane.b32.xlu0 %v850, 127
          %v916 = vpop.permute.xlu0 %915
          %917 = vrot.lane.b32.xlu0 %v852, 127
          %v918 = vpop.permute.xlu0 %917
          %919 = vrot.lane.b32.xlu0 %v854, 127
          %v920 = vpop.permute.xlu0 %919
          %921 = vrot.lane.b32.xlu0 %v856, 127
          %v922 = vpop.permute.xlu0 %921
          %923 = vrot.lane.b32.xlu0 %v858, 127
          %v924 = vpop.permute.xlu0 %923
          %s925 = sld [smem:[#allocation9 + $0x7]]
          %v926 = vstv %s925
          %v927 = vmul.f32 %v926, %v894
          %v928 = vmul.f32 %v926, %v896
          %v929 = vmul.f32 %v926, %v898
          %v930 = vmul.f32 %v926, %v900
          %v931 = vmul.f32 %v926, %v902
          %v932 = vmul.f32 %v926, %v904
          %v933 = vmul.f32 %v926, %v906
          %v934 = vmul.f32 %v926, %v908
          %v935 = vmul.f32 %v926, %v910
          %v936 = vmul.f32 %v926, %v912
          %v937 = vmul.f32 %v926, %v914
          %v938 = vmul.f32 %v926, %v916
          %v939 = vmul.f32 %v926, %v918
          %v940 = vmul.f32 %v926, %v920
          %v941 = vmul.f32 %v926, %v922
          %v942 = vmul.f32 %v926, %v924
          %v943 = vadd.f32 %v877, %v927
          %v944 = vadd.f32 %v878, %v928
          %v945 = vadd.f32 %v879, %v929
          %v946 = vadd.f32 %v880, %v930
          %v947 = vadd.f32 %v881, %v931
          %v948 = vadd.f32 %v882, %v932
          %v949 = vadd.f32 %v883, %v933
          %v950 = vadd.f32 %v884, %v934
          %v951 = vadd.f32 %v885, %v935
          %v952 = vadd.f32 %v886, %v936
          %v953 = vadd.f32 %v887, %v937
          %v954 = vadd.f32 %v888, %v938
          %v955 = vadd.f32 %v889, %v939
          %v956 = vadd.f32 %v890, %v940
          %v957 = vadd.f32 %v891, %v941
          %v958 = vadd.f32 %v892, %v942
          %v959 = vrot.slane %v725, 1
          %v960 = vrot.slane %v724, 1
          %v961 = vrot.slane %v723, 1
          %v962 = vrot.slane %v722, 1
          %v963 = vrot.slane %v721, 1
          %v964 = vrot.slane %v720, 1
          %v965 = vrot.slane %v719, 1
          %v966 = vrot.slane %v718, 1
          %v967 = vrot.slane %v717, 1
          %v968 = vrot.slane %v716, 1
          %v969 = vrot.slane %v715, 1
          %v970 = vrot.slane %v714, 1
          %v971 = vrot.slane %v713, 1
          %v972 = vrot.slane %v712, 1
          %v973 = vrot.slane %v711, 1
          %v974 = vrot.slane %v726, 1
          %v975 = vsel %vm710, %v973, %v974
          %v976 = vsel %vm710, %v972, %v973
          %v977 = vsel %vm710, %v971, %v972
          %v978 = vsel %vm710, %v970, %v971
          %v979 = vsel %vm710, %v969, %v970
          %v980 = vsel %vm710, %v968, %v969
          %v981 = vsel %vm710, %v967, %v968
          %v982 = vsel %vm710, %v966, %v967
          %v983 = vsel %vm710, %v965, %v966
          %v984 = vsel %vm710, %v964, %v965
          %v985 = vsel %vm710, %v963, %v964
          %v986 = vsel %vm710, %v962, %v963
          %v987 = vsel %vm710, %v961, %v962
          %v988 = vsel %vm710, %v960, %v961
          %v989 = vsel %vm710, %v959, %v960
          %v990 = vsel %vm710, %v974, %v959
          %s991 = sld [smem:[#allocation9 + $0x8]]
          %v992 = vstv %s991
          %v993 = vmul.f32 %v992, %v989
          %v994 = vmul.f32 %v992, %v988
          %v995 = vmul.f32 %v992, %v987
          %v996 = vmul.f32 %v992, %v986
          %v997 = vmul.f32 %v992, %v985
          %v998 = vmul.f32 %v992, %v984
          %v999 = vmul.f32 %v992, %v983
          %v1000 = vmul.f32 %v992, %v982
          %v1001 = vmul.f32 %v992, %v981
          %v1002 = vmul.f32 %v992, %v980
          %v1003 = vmul.f32 %v992, %v979
          %v1004 = vmul.f32 %v992, %v978
          %v1005 = vmul.f32 %v992, %v977
          %v1006 = vmul.f32 %v992, %v976
          %v1007 = vmul.f32 %v992, %v975
          %v1008 = vmul.f32 %v992, %v990
          %v1009 = vadd.f32 %v943, %v993
          %v1010 = vadd.f32 %v944, %v994
          %v1011 = vadd.f32 %v945, %v995
          %v1012 = vadd.f32 %v946, %v996
          %v1013 = vadd.f32 %v947, %v997
          %v1014 = vadd.f32 %v948, %v998
          %v1015 = vadd.f32 %v949, %v999
          %v1016 = vadd.f32 %v950, %v1000
          %v1017 = vadd.f32 %v951, %v1001
          %v1018 = vadd.f32 %v952, %v1002
          %v1019 = vadd.f32 %v953, %v1003
          %v1020 = vadd.f32 %v954, %v1004
          %v1021 = vadd.f32 %v955, %v1005
          %v1022 = vadd.f32 %v956, %v1006
          %v1023 = vadd.f32 %v957, %v1007
          %v1024 = vadd.f32 %v958, %v1008
          %1025 = vrot.lane.b32.xlu0 %v989, 127
          %v1026 = vpop.permute.xlu0 %1025
          %1027 = vrot.lane.b32.xlu0 %v988, 127
          %v1028 = vpop.permute.xlu0 %1027
          %1029 = vrot.lane.b32.xlu0 %v987, 127
          %v1030 = vpop.permute.xlu0 %1029
          %1031 = vrot.lane.b32.xlu0 %v986, 127
          %v1032 = vpop.permute.xlu0 %1031
          %1033 = vrot.lane.b32.xlu0 %v985, 127
          %v1034 = vpop.permute.xlu0 %1033
          %1035 = vrot.lane.b32.xlu0 %v984, 127
          %v1036 = vpop.permute.xlu0 %1035
          %1037 = vrot.lane.b32.xlu0 %v983, 127
          %v1038 = vpop.permute.xlu0 %1037
          %1039 = vrot.lane.b32.xlu0 %v982, 127
          %v1040 = vpop.permute.xlu0 %1039
          %1041 = vrot.lane.b32.xlu0 %v981, 127
          %v1042 = vpop.permute.xlu0 %1041
          %1043 = vrot.lane.b32.xlu0 %v980, 127
          %v1044 = vpop.permute.xlu0 %1043
          %1045 = vrot.lane.b32.xlu0 %v979, 127
          %v1046 = vpop.permute.xlu0 %1045
          %1047 = vrot.lane.b32.xlu0 %v978, 127
          %v1048 = vpop.permute.xlu0 %1047
          %1049 = vrot.lane.b32.xlu0 %v977, 127
          %v1050 = vpop.permute.xlu0 %1049
          %1051 = vrot.lane.b32.xlu0 %v976, 127
          %v1052 = vpop.permute.xlu0 %1051
          %1053 = vrot.lane.b32.xlu0 %v975, 127
          %v1054 = vpop.permute.xlu0 %1053
          %1055 = vrot.lane.b32.xlu0 %v990, 127
          %v1056 = vpop.permute.xlu0 %1055
          %s1057 = sld [smem:[#allocation9 + $0x9]]
          %v1058 = vstv %s1057
          %v1059 = vmul.f32 %v1058, %v1026
          %v1060 = vmul.f32 %v1058, %v1028
          %v1061 = vmul.f32 %v1058, %v1030
          %v1062 = vmul.f32 %v1058, %v1032
          %v1063 = vmul.f32 %v1058, %v1034
          %v1064 = vmul.f32 %v1058, %v1036
          %v1065 = vmul.f32 %v1058, %v1038
          %v1066 = vmul.f32 %v1058, %v1040
          %v1067 = vmul.f32 %v1058, %v1042
          %v1068 = vmul.f32 %v1058, %v1044
          %v1069 = vmul.f32 %v1058, %v1046
          %v1070 = vmul.f32 %v1058, %v1048
          %v1071 = vmul.f32 %v1058, %v1050
          %v1072 = vmul.f32 %v1058, %v1052
          %v1073 = vmul.f32 %v1058, %v1054
          %v1074 = vmul.f32 %v1058, %v1056
          %v1075 = vadd.f32 %v1009, %v1059
          %v1076 = vadd.f32 %v1010, %v1060
          %v1077 = vadd.f32 %v1011, %v1061
          %v1078 = vadd.f32 %v1012, %v1062
          %v1079 = vadd.f32 %v1013, %v1063
          %v1080 = vadd.f32 %v1014, %v1064
          %v1081 = vadd.f32 %v1015, %v1065
          %v1082 = vadd.f32 %v1016, %v1066
          %v1083 = vadd.f32 %v1017, %v1067
          %v1084 = vadd.f32 %v1018, %v1068
          %v1085 = vadd.f32 %v1019, %v1069
          %v1086 = vadd.f32 %v1020, %v1070
          %v1087 = vadd.f32 %v1021, %v1071
          %v1088 = vadd.f32 %v1022, %v1072
          %v1089 = vadd.f32 %v1023, %v1073
          %v1090 = vadd.f32 %v1024, %v1074
          %1091 = vrot.lane.b32.xlu0 %v1026, 127
          %v1092 = vpop.permute.xlu0 %1091
          %1093 = vrot.lane.b32.xlu0 %v1028, 127
          %v1094 = vpop.permute.xlu0 %1093
          %1095 = vrot.lane.b32.xlu0 %v1030, 127
          %v1096 = vpop.permute.xlu0 %1095
          %1097 = vrot.lane.b32.xlu0 %v1032, 127
          %v1098 = vpop.permute.xlu0 %1097
          %1099 = vrot.lane.b32.xlu0 %v1034, 127
          %v1100 = vpop.permute.xlu0 %1099
          %1101 = vrot.lane.b32.xlu0 %v1036, 127
          %v1102 = vpop.permute.xlu0 %1101
          %1103 = vrot.lane.b32.xlu0 %v1038, 127
          %v1104 = vpop.permute.xlu0 %1103
          %1105 = vrot.lane.b32.xlu0 %v1040, 127
          %v1106 = vpop.permute.xlu0 %1105
          %1107 = vrot.lane.b32.xlu0 %v1042, 127
          %v1108 = vpop.permute.xlu0 %1107
          %1109 = vrot.lane.b32.xlu0 %v1044, 127
          %v1110 = vpop.permute.xlu0 %1109
          %1111 = vrot.lane.b32.xlu0 %v1046, 127
          %v1112 = vpop.permute.xlu0 %1111
          %1113 = vrot.lane.b32.xlu0 %v1048, 127
          %v1114 = vpop.permute.xlu0 %1113
          %1115 = vrot.lane.b32.xlu0 %v1050, 127
          %v1116 = vpop.permute.xlu0 %1115
          %1117 = vrot.lane.b32.xlu0 %v1052, 127
          %v1118 = vpop.permute.xlu0 %1117
          %1119 = vrot.lane.b32.xlu0 %v1054, 127
          %v1120 = vpop.permute.xlu0 %1119
          %1121 = vrot.lane.b32.xlu0 %v1056, 127
          %v1122 = vpop.permute.xlu0 %1121
          %s1123 = sld [smem:[#allocation9 + $0xa]]
          %v1124 = vstv %s1123
          %v1125 = vmul.f32 %v1124, %v1092
          %v1126 = vmul.f32 %v1124, %v1094
          %v1127 = vmul.f32 %v1124, %v1096
          %v1128 = vmul.f32 %v1124, %v1098
          %v1129 = vmul.f32 %v1124, %v1100
          %v1130 = vmul.f32 %v1124, %v1102
          %v1131 = vmul.f32 %v1124, %v1104
          %v1132 = vmul.f32 %v1124, %v1106
          %v1133 = vmul.f32 %v1124, %v1108
          %v1134 = vmul.f32 %v1124, %v1110
          %v1135 = vmul.f32 %v1124, %v1112
          %v1136 = vmul.f32 %v1124, %v1114
          %v1137 = vmul.f32 %v1124, %v1116
          %v1138 = vmul.f32 %v1124, %v1118
          %v1139 = vmul.f32 %v1124, %v1120
          %v1140 = vmul.f32 %v1124, %v1122
          %v1141 = vadd.f32 %v1075, %v1125
          %v1142 = vadd.f32 %v1076, %v1126
          %v1143 = vadd.f32 %v1077, %v1127
          %v1144 = vadd.f32 %v1078, %v1128
          %v1145 = vadd.f32 %v1079, %v1129
          %v1146 = vadd.f32 %v1080, %v1130
          %v1147 = vadd.f32 %v1081, %v1131
          %v1148 = vadd.f32 %v1082, %v1132
          %v1149 = vadd.f32 %v1083, %v1133
          %v1150 = vadd.f32 %v1084, %v1134
          %v1151 = vadd.f32 %v1085, %v1135
          %v1152 = vadd.f32 %v1086, %v1136
          %v1153 = vadd.f32 %v1087, %v1137
          %v1154 = vadd.f32 %v1088, %v1138
          %v1155 = vadd.f32 %v1089, %v1139
          %v1156 = vadd.f32 %v1090, %v1140
          %1157 = vrot.lane.b32.xlu0 %v1092, 127
          %v1158 = vpop.permute.xlu0 %1157
          %1159 = vrot.lane.b32.xlu0 %v1094, 127
          %v1160 = vpop.permute.xlu0 %1159
          %1161 = vrot.lane.b32.xlu0 %v1096, 127
          %v1162 = vpop.permute.xlu0 %1161
          %1163 = vrot.lane.b32.xlu0 %v1098, 127
          %v1164 = vpop.permute.xlu0 %1163
          %1165 = vrot.lane.b32.xlu0 %v1100, 127
          %v1166 = vpop.permute.xlu0 %1165
          %1167 = vrot.lane.b32.xlu0 %v1102, 127
          %v1168 = vpop.permute.xlu0 %1167
          %1169 = vrot.lane.b32.xlu0 %v1104, 127
          %v1170 = vpop.permute.xlu0 %1169
          %1171 = vrot.lane.b32.xlu0 %v1106, 127
          %v1172 = vpop.permute.xlu0 %1171
          %1173 = vrot.lane.b32.xlu0 %v1108, 127
          %v1174 = vpop.permute.xlu0 %1173
          %1175 = vrot.lane.b32.xlu0 %v1110, 127
          %v1176 = vpop.permute.xlu0 %1175
          %1177 = vrot.lane.b32.xlu0 %v1112, 127
          %v1178 = vpop.permute.xlu0 %1177
          %1179 = vrot.lane.b32.xlu0 %v1114, 127
          %v1180 = vpop.permute.xlu0 %1179
          %1181 = vrot.lane.b32.xlu0 %v1116, 127
          %v1182 = vpop.permute.xlu0 %1181
          %1183 = vrot.lane.b32.xlu0 %v1118, 127
          %v1184 = vpop.permute.xlu0 %1183
          %1185 = vrot.lane.b32.xlu0 %v1120, 127
          %v1186 = vpop.permute.xlu0 %1185
          %1187 = vrot.lane.b32.xlu0 %v1122, 127
          %v1188 = vpop.permute.xlu0 %1187
          %s1189 = sld [smem:[#allocation9 + $0xb]]
          %v1190 = vstv %s1189
          %v1191 = vmul.f32 %v1190, %v1158
          %v1192 = vmul.f32 %v1190, %v1160
          %v1193 = vmul.f32 %v1190, %v1162
          %v1194 = vmul.f32 %v1190, %v1164
          %v1195 = vmul.f32 %v1190, %v1166
          %v1196 = vmul.f32 %v1190, %v1168
          %v1197 = vmul.f32 %v1190, %v1170
          %v1198 = vmul.f32 %v1190, %v1172
          %v1199 = vmul.f32 %v1190, %v1174
          %v1200 = vmul.f32 %v1190, %v1176
          %v1201 = vmul.f32 %v1190, %v1178
          %v1202 = vmul.f32 %v1190, %v1180
          %v1203 = vmul.f32 %v1190, %v1182
          %v1204 = vmul.f32 %v1190, %v1184
          %v1205 = vmul.f32 %v1190, %v1186
          %v1206 = vmul.f32 %v1190, %v1188
          %v1207 = vadd.f32 %v1141, %v1191
          %v1208 = vadd.f32 %v1142, %v1192
          %v1209 = vadd.f32 %v1143, %v1193
          %v1210 = vadd.f32 %v1144, %v1194
          %v1211 = vadd.f32 %v1145, %v1195
          %v1212 = vadd.f32 %v1146, %v1196
          %v1213 = vadd.f32 %v1147, %v1197
          %v1214 = vadd.f32 %v1148, %v1198
          %v1215 = vadd.f32 %v1149, %v1199
          %v1216 = vadd.f32 %v1150, %v1200
          %v1217 = vadd.f32 %v1151, %v1201
          %v1218 = vadd.f32 %v1152, %v1202
          %v1219 = vadd.f32 %v1153, %v1203
          %v1220 = vadd.f32 %v1154, %v1204
          %v1221 = vadd.f32 %v1155, %v1205
          %v1222 = vadd.f32 %v1156, %v1206
          %v1223 = vrot.slane %v989, 1
          %v1224 = vrot.slane %v988, 1
          %v1225 = vrot.slane %v987, 1
          %v1226 = vrot.slane %v986, 1
          %v1227 = vrot.slane %v985, 1
          %v1228 = vrot.slane %v984, 1
          %v1229 = vrot.slane %v983, 1
          %v1230 = vrot.slane %v982, 1
          %v1231 = vrot.slane %v981, 1
          %v1232 = vrot.slane %v980, 1
          %v1233 = vrot.slane %v979, 1
          %v1234 = vrot.slane %v978, 1
          %v1235 = vrot.slane %v977, 1
          %v1236 = vrot.slane %v976, 1
          %v1237 = vrot.slane %v975, 1
          %v1238 = vrot.slane %v990, 1
          %v1239 = vsel %vm710, %v1237, %v1238
          %v1240 = vsel %vm710, %v1236, %v1237
          %v1241 = vsel %vm710, %v1235, %v1236
          %v1242 = vsel %vm710, %v1234, %v1235
          %v1243 = vsel %vm710, %v1233, %v1234
          %v1244 = vsel %vm710, %v1232, %v1233
          %v1245 = vsel %vm710, %v1231, %v1232
          %v1246 = vsel %vm710, %v1230, %v1231
          %v1247 = vsel %vm710, %v1229, %v1230
          %v1248 = vsel %vm710, %v1228, %v1229
          %v1249 = vsel %vm710, %v1227, %v1228
          %v1250 = vsel %vm710, %v1226, %v1227
          %v1251 = vsel %vm710, %v1225, %v1226
          %v1252 = vsel %vm710, %v1224, %v1225
          %v1253 = vsel %vm710, %v1223, %v1224
          %v1254 = vsel %vm710, %v1238, %v1223
          %s1255 = sld [smem:[#allocation9 + $0xc]]
          %v1256 = vstv %s1255
          %v1257 = vmul.f32 %v1256, %v1253
          %v1258 = vmul.f32 %v1256, %v1252
          %v1259 = vmul.f32 %v1256, %v1251
          %v1260 = vmul.f32 %v1256, %v1250
          %v1261 = vmul.f32 %v1256, %v1249
          %v1262 = vmul.f32 %v1256, %v1248
          %v1263 = vmul.f32 %v1256, %v1247
          %v1264 = vmul.f32 %v1256, %v1246
          %v1265 = vmul.f32 %v1256, %v1245
          %v1266 = vmul.f32 %v1256, %v1244
          %v1267 = vmul.f32 %v1256, %v1243
          %v1268 = vmul.f32 %v1256, %v1242
          %v1269 = vmul.f32 %v1256, %v1241
          %v1270 = vmul.f32 %v1256, %v1240
          %v1271 = vmul.f32 %v1256, %v1239
          %v1272 = vmul.f32 %v1256, %v1254
          %v1273 = vadd.f32 %v1207, %v1257
          %v1274 = vadd.f32 %v1208, %v1258
          %v1275 = vadd.f32 %v1209, %v1259
          %v1276 = vadd.f32 %v1210, %v1260
          %v1277 = vadd.f32 %v1211, %v1261
          %v1278 = vadd.f32 %v1212, %v1262
          %v1279 = vadd.f32 %v1213, %v1263
          %v1280 = vadd.f32 %v1214, %v1264
          %v1281 = vadd.f32 %v1215, %v1265
          %v1282 = vadd.f32 %v1216, %v1266
          %v1283 = vadd.f32 %v1217, %v1267
          %v1284 = vadd.f32 %v1218, %v1268
          %v1285 = vadd.f32 %v1219, %v1269
          %v1286 = vadd.f32 %v1220, %v1270
          %v1287 = vadd.f32 %v1221, %v1271
          %v1288 = vadd.f32 %v1222, %v1272
          %1289 = vrot.lane.b32.xlu0 %v1253, 127
          %v1290 = vpop.permute.xlu0 %1289
          %1291 = vrot.lane.b32.xlu0 %v1252, 127
          %v1292 = vpop.permute.xlu0 %1291
          %1293 = vrot.lane.b32.xlu0 %v1251, 127
          %v1294 = vpop.permute.xlu0 %1293
          %1295 = vrot.lane.b32.xlu0 %v1250, 127
          %v1296 = vpop.permute.xlu0 %1295
          %1297 = vrot.lane.b32.xlu0 %v1249, 127
          %v1298 = vpop.permute.xlu0 %1297
          %1299 = vrot.lane.b32.xlu0 %v1248, 127
          %v1300 = vpop.permute.xlu0 %1299
          %1301 = vrot.lane.b32.xlu0 %v1247, 127
          %v1302 = vpop.permute.xlu0 %1301
          %1303 = vrot.lane.b32.xlu0 %v1246, 127
          %v1304 = vpop.permute.xlu0 %1303
          %1305 = vrot.lane.b32.xlu0 %v1245, 127
          %v1306 = vpop.permute.xlu0 %1305
          %1307 = vrot.lane.b32.xlu0 %v1244, 127
          %v1308 = vpop.permute.xlu0 %1307
          %1309 = vrot.lane.b32.xlu0 %v1243, 127
          %v1310 = vpop.permute.xlu0 %1309
          %1311 = vrot.lane.b32.xlu0 %v1242, 127
          %v1312 = vpop.permute.xlu0 %1311
          %1313 = vrot.lane.b32.xlu0 %v1241, 127
          %v1314 = vpop.permute.xlu0 %1313
          %1315 = vrot.lane.b32.xlu0 %v1240, 127
          %v1316 = vpop.permute.xlu0 %1315
          %1317 = vrot.lane.b32.xlu0 %v1239, 127
          %v1318 = vpop.permute.xlu0 %1317
          %1319 = vrot.lane.b32.xlu0 %v1254, 127
          %v1320 = vpop.permute.xlu0 %1319
          %s1321 = sld [smem:[#allocation9 + $0xd]]
          %v1322 = vstv %s1321
          %v1323 = vmul.f32 %v1322, %v1290
          %v1324 = vmul.f32 %v1322, %v1292
          %v1325 = vmul.f32 %v1322, %v1294
          %v1326 = vmul.f32 %v1322, %v1296
          %v1327 = vmul.f32 %v1322, %v1298
          %v1328 = vmul.f32 %v1322, %v1300
          %v1329 = vmul.f32 %v1322, %v1302
          %v1330 = vmul.f32 %v1322, %v1304
          %v1331 = vmul.f32 %v1322, %v1306
          %v1332 = vmul.f32 %v1322, %v1308
          %v1333 = vmul.f32 %v1322, %v1310
          %v1334 = vmul.f32 %v1322, %v1312
          %v1335 = vmul.f32 %v1322, %v1314
          %v1336 = vmul.f32 %v1322, %v1316
          %v1337 = vmul.f32 %v1322, %v1318
          %v1338 = vmul.f32 %v1322, %v1320
          %v1339 = vadd.f32 %v1273, %v1323
          %v1340 = vadd.f32 %v1274, %v1324
          %v1341 = vadd.f32 %v1275, %v1325
          %v1342 = vadd.f32 %v1276, %v1326
          %v1343 = vadd.f32 %v1277, %v1327
          %v1344 = vadd.f32 %v1278, %v1328
          %v1345 = vadd.f32 %v1279, %v1329
          %v1346 = vadd.f32 %v1280, %v1330
          %v1347 = vadd.f32 %v1281, %v1331
          %v1348 = vadd.f32 %v1282, %v1332
          %v1349 = vadd.f32 %v1283, %v1333
          %v1350 = vadd.f32 %v1284, %v1334
          %v1351 = vadd.f32 %v1285, %v1335
          %v1352 = vadd.f32 %v1286, %v1336
          %v1353 = vadd.f32 %v1287, %v1337
          %v1354 = vadd.f32 %v1288, %v1338
          %1355 = vrot.lane.b32.xlu0 %v1290, 127
          %v1356 = vpop.permute.xlu0 %1355
          %1357 = vrot.lane.b32.xlu0 %v1292, 127
          %v1358 = vpop.permute.xlu0 %1357
          %1359 = vrot.lane.b32.xlu0 %v1294, 127
          %v1360 = vpop.permute.xlu0 %1359
          %1361 = vrot.lane.b32.xlu0 %v1296, 127
          %v1362 = vpop.permute.xlu0 %1361
          %1363 = vrot.lane.b32.xlu0 %v1298, 127
          %v1364 = vpop.permute.xlu0 %1363
          %1365 = vrot.lane.b32.xlu0 %v1300, 127
          %v1366 = vpop.permute.xlu0 %1365
          %1367 = vrot.lane.b32.xlu0 %v1302, 127
          %v1368 = vpop.permute.xlu0 %1367
          %1369 = vrot.lane.b32.xlu0 %v1304, 127
          %v1370 = vpop.permute.xlu0 %1369
          %1371 = vrot.lane.b32.xlu0 %v1306, 127
          %v1372 = vpop.permute.xlu0 %1371
          %1373 = vrot.lane.b32.xlu0 %v1308, 127
          %v1374 = vpop.permute.xlu0 %1373
          %1375 = vrot.lane.b32.xlu0 %v1310, 127
          %v1376 = vpop.permute.xlu0 %1375
          %1377 = vrot.lane.b32.xlu0 %v1312, 127
          %v1378 = vpop.permute.xlu0 %1377
          %1379 = vrot.lane.b32.xlu0 %v1314, 127
          %v1380 = vpop.permute.xlu0 %1379
          %1381 = vrot.lane.b32.xlu0 %v1316, 127
          %v1382 = vpop.permute.xlu0 %1381
          %1383 = vrot.lane.b32.xlu0 %v1318, 127
          %v1384 = vpop.permute.xlu0 %1383
          %1385 = vrot.lane.b32.xlu0 %v1320, 127
          %v1386 = vpop.permute.xlu0 %1385
          %s1387 = sld [smem:[#allocation9 + $0xe]]
          %v1388 = vstv %s1387
          %v1389 = vmul.f32 %v1388, %v1356
          %v1390 = vmul.f32 %v1388, %v1358
          %v1391 = vmul.f32 %v1388, %v1360
          %v1392 = vmul.f32 %v1388, %v1362
          %v1393 = vmul.f32 %v1388, %v1364
          %v1394 = vmul.f32 %v1388, %v1366
          %v1395 = vmul.f32 %v1388, %v1368
          %v1396 = vmul.f32 %v1388, %v1370
          %v1397 = vmul.f32 %v1388, %v1372
          %v1398 = vmul.f32 %v1388, %v1374
          %v1399 = vmul.f32 %v1388, %v1376
          %v1400 = vmul.f32 %v1388, %v1378
          %v1401 = vmul.f32 %v1388, %v1380
          %v1402 = vmul.f32 %v1388, %v1382
          %v1403 = vmul.f32 %v1388, %v1384
          %v1404 = vmul.f32 %v1388, %v1386
          %v1405 = vadd.f32 %v1339, %v1389
          %v1406 = vadd.f32 %v1340, %v1390
          %v1407 = vadd.f32 %v1341, %v1391
          %v1408 = vadd.f32 %v1342, %v1392
          %v1409 = vadd.f32 %v1343, %v1393
          %v1410 = vadd.f32 %v1344, %v1394
          %v1411 = vadd.f32 %v1345, %v1395
          %v1412 = vadd.f32 %v1346, %v1396
          %v1413 = vadd.f32 %v1347, %v1397
          %v1414 = vadd.f32 %v1348, %v1398
          %v1415 = vadd.f32 %v1349, %v1399
          %v1416 = vadd.f32 %v1350, %v1400
          %v1417 = vadd.f32 %v1351, %v1401
          %v1418 = vadd.f32 %v1352, %v1402
          %v1419 = vadd.f32 %v1353, %v1403
          %v1420 = vadd.f32 %v1354, %v1404
          %1421 = vrot.lane.b32.xlu0 %v1356, 127
          %v1422 = vpop.permute.xlu0 %1421
          %1423 = vrot.lane.b32.xlu0 %v1358, 127
          %v1424 = vpop.permute.xlu0 %1423
          %1425 = vrot.lane.b32.xlu0 %v1360, 127
          %v1426 = vpop.permute.xlu0 %1425
          %1427 = vrot.lane.b32.xlu0 %v1362, 127
          %v1428 = vpop.permute.xlu0 %1427
          %1429 = vrot.lane.b32.xlu0 %v1364, 127
          %v1430 = vpop.permute.xlu0 %1429
          %1431 = vrot.lane.b32.xlu0 %v1366, 127
          %v1432 = vpop.permute.xlu0 %1431
          %1433 = vrot.lane.b32.xlu0 %v1368, 127
          %v1434 = vpop.permute.xlu0 %1433
          %1435 = vrot.lane.b32.xlu0 %v1370, 127
          %v1436 = vpop.permute.xlu0 %1435
          %1437 = vrot.lane.b32.xlu0 %v1372, 127
          %v1438 = vpop.permute.xlu0 %1437
          %1439 = vrot.lane.b32.xlu0 %v1374, 127
          %v1440 = vpop.permute.xlu0 %1439
          %1441 = vrot.lane.b32.xlu0 %v1376, 127
          %v1442 = vpop.permute.xlu0 %1441
          %1443 = vrot.lane.b32.xlu0 %v1378, 127
          %v1444 = vpop.permute.xlu0 %1443
          %1445 = vrot.lane.b32.xlu0 %v1380, 127
          %v1446 = vpop.permute.xlu0 %1445
          %1447 = vrot.lane.b32.xlu0 %v1382, 127
          %v1448 = vpop.permute.xlu0 %1447
          %1449 = vrot.lane.b32.xlu0 %v1384, 127
          %v1450 = vpop.permute.xlu0 %1449
          %1451 = vrot.lane.b32.xlu0 %v1386, 127
          %v1452 = vpop.permute.xlu0 %1451
          %s1453 = sld [smem:[#allocation9 + $0xf]]
          %v1454 = vstv %s1453
          %v1455 = vmul.f32 %v1454, %v1422
          %v1456 = vmul.f32 %v1454, %v1424
          %v1457 = vmul.f32 %v1454, %v1426
          %v1458 = vmul.f32 %v1454, %v1428
          %v1459 = vmul.f32 %v1454, %v1430
          %v1460 = vmul.f32 %v1454, %v1432
          %v1461 = vmul.f32 %v1454, %v1434
          %v1462 = vmul.f32 %v1454, %v1436
          %v1463 = vmul.f32 %v1454, %v1438
          %v1464 = vmul.f32 %v1454, %v1440
          %v1465 = vmul.f32 %v1454, %v1442
          %v1466 = vmul.f32 %v1454, %v1444
          %v1467 = vmul.f32 %v1454, %v1446
          %v1468 = vmul.f32 %v1454, %v1448
          %v1469 = vmul.f32 %v1454, %v1450
          %v1470 = vmul.f32 %v1454, %v1452
          %v1471 = vadd.f32 %v1405, %v1455
          %v1472 = vadd.f32 %v1406, %v1456
          %v1473 = vadd.f32 %v1407, %v1457
          %v1474 = vadd.f32 %v1408, %v1458
          %v1475 = vadd.f32 %v1409, %v1459
          %v1476 = vadd.f32 %v1410, %v1460
          %v1477 = vadd.f32 %v1411, %v1461
          %v1478 = vadd.f32 %v1412, %v1462
          %v1479 = vadd.f32 %v1413, %v1463
          %v1480 = vadd.f32 %v1414, %v1464
          %v1481 = vadd.f32 %v1415, %v1465
          %v1482 = vadd.f32 %v1416, %v1466
          %v1483 = vadd.f32 %v1417, %v1467
          %v1484 = vadd.f32 %v1418, %v1468
          %v1485 = vadd.f32 %v1419, %v1469
          %v1486 = vadd.f32 %v1420, %v1470
          %v1487 = vrot.slane %v1471, 1
          %v1488 = vrot.slane %v1472, 1
          %v1489 = vrot.slane %v1473, 1
          %v1490 = vrot.slane %v1474, 1
          %v1491 = vrot.slane %v1475, 1
          %v1492 = vrot.slane %v1476, 1
          %v1493 = vrot.slane %v1477, 1
          %v1494 = vrot.slane %v1478, 1
          %v1495 = vrot.slane %v1479, 1
          %v1496 = vrot.slane %v1480, 1
          %v1497 = vrot.slane %v1481, 1
          %v1498 = vrot.slane %v1482, 1
          %v1499 = vrot.slane %v1483, 1
          %v1500 = vrot.slane %v1484, 1
          %v1501 = vrot.slane %v1485, 1
          %v1502 = vrot.slane %v1486, 1
          %v1503 = vsel %vm710, %v1501, %v1502
          %v1504 = vsel %vm710, %v1500, %v1501
          %v1505 = vsel %vm710, %v1499, %v1500
          %v1506 = vsel %vm710, %v1498, %v1499
          %v1507 = vsel %vm710, %v1497, %v1498
          %v1508 = vsel %vm710, %v1496, %v1497
          %v1509 = vsel %vm710, %v1495, %v1496
          %v1510 = vsel %vm710, %v1494, %v1495
          %v1511 = vsel %vm710, %v1493, %v1494
          %v1512 = vsel %vm710, %v1492, %v1493
          %v1513 = vsel %vm710, %v1491, %v1492
          %v1514 = vsel %vm710, %v1490, %v1491
          %v1515 = vsel %vm710, %v1489, %v1490
          %v1516 = vsel %vm710, %v1488, %v1489
          %v1517 = vsel %vm710, %v1487, %v1488
          %v1518 = vsel %vm710, %v1502, %v1487
          %v1519 = vmax.f32 %v1471, %v1517
          %v1520 = vmax.f32 %v1472, %v1516
          %v1521 = vmax.f32 %v1473, %v1515
          %v1522 = vmax.f32 %v1474, %v1514
          %v1523 = vmax.f32 %v1475, %v1513
          %v1524 = vmax.f32 %v1476, %v1512
          %v1525 = vmax.f32 %v1477, %v1511
          %v1526 = vmax.f32 %v1478, %v1510
          %v1527 = vmax.f32 %v1479, %v1509
          %v1528 = vmax.f32 %v1480, %v1508
          %v1529 = vmax.f32 %v1481, %v1507
          %v1530 = vmax.f32 %v1482, %v1506
          %v1531 = vmax.f32 %v1483, %v1505
          %v1532 = vmax.f32 %v1484, %v1504
          %v1533 = vmax.f32 %v1485, %v1503
          %v1534 = vmax.f32 %v1486, %v1518
          %v1535 = vrot.slane %v1519, 2
          %v1536 = vrot.slane %v1520, 2
          %v1537 = vrot.slane %v1521, 2
          %v1538 = vrot.slane %v1522, 2
          %v1539 = vrot.slane %v1523, 2
          %v1540 = vrot.slane %v1524, 2
          %v1541 = vrot.slane %v1525, 2
          %v1542 = vrot.slane %v1526, 2
          %v1543 = vrot.slane %v1527, 2
          %v1544 = vrot.slane %v1528, 2
          %v1545 = vrot.slane %v1529, 2
          %v1546 = vrot.slane %v1530, 2
          %v1547 = vrot.slane %v1531, 2
          %v1548 = vrot.slane %v1532, 2
          %v1549 = vrot.slane %v1533, 2
          %v1550 = vrot.slane %v1534, 2
          %vm1551 = vcmp.lt.s32.totalorder %v709, 6
          %v1552 = vsel %vm1551, %v1549, %v1550
          %v1553 = vsel %vm1551, %v1548, %v1549
          %v1554 = vsel %vm1551, %v1547, %v1548
          %v1555 = vsel %vm1551, %v1546, %v1547
          %v1556 = vsel %vm1551, %v1545, %v1546
          %v1557 = vsel %vm1551, %v1544, %v1545
          %v1558 = vsel %vm1551, %v1543, %v1544
          %v1559 = vsel %vm1551, %v1542, %v1543
          %v1560 = vsel %vm1551, %v1541, %v1542
          %v1561 = vsel %vm1551, %v1540, %v1541
          %v1562 = vsel %vm1551, %v1539, %v1540
          %v1563 = vsel %vm1551, %v1538, %v1539
          %v1564 = vsel %vm1551, %v1537, %v1538
          %v1565 = vsel %vm1551, %v1536, %v1537
          %v1566 = vsel %vm1551, %v1535, %v1536
          %v1567 = vsel %vm1551, %v1550, %v1535
          %v1568 = vmax.f32 %v1519, %v1566
          %v1569 = vmax.f32 %v1520, %v1565
          %v1570 = vmax.f32 %v1521, %v1564
          %v1571 = vmax.f32 %v1522, %v1563
          %v1572 = vmax.f32 %v1523, %v1562
          %v1573 = vmax.f32 %v1524, %v1561
          %v1574 = vmax.f32 %v1525, %v1560
          %v1575 = vmax.f32 %v1526, %v1559
          %v1576 = vmax.f32 %v1527, %v1558
          %v1577 = vmax.f32 %v1528, %v1557
          %v1578 = vmax.f32 %v1529, %v1556
          %v1579 = vmax.f32 %v1530, %v1555
          %v1580 = vmax.f32 %v1531, %v1554
          %v1581 = vmax.f32 %v1532, %v1553
          %v1582 = vmax.f32 %v1533, %v1552
          %v1583 = vmax.f32 %v1534, %v1567
          %v1584 = vld [vmem:[#allocation8] sm:$0xff]
          %v1585 = vld [vmem:[#allocation8 + $0x8] sm:$0xff]
          %v1586 = vld [vmem:[#allocation8 + $0x10] sm:$0xff]
          %v1587 = vld [vmem:[#allocation8 + $0x18] sm:$0xff]
          %1588 = vmatprep.subr.mxu0 0.0
          %1589 = vmatpush1.msra.mxu0 %v1568
          %1590 = vmatprep.subr.mxu0 0.0
          %1591 = vmatpush1.msra.mxu0 %v1569
          %1592 = vmatprep.subr.mxu0 0.0
          %1593 = vmatpush1.msra.mxu0 %v1570
          %1594 = vmatprep.subr.mxu0 0.0
          %1595 = vmatpush1.msra.mxu0 %v1571
          %1596 = vmatprep.subr.mxu0 0.0
          %1597 = vmatpush1.msra.mxu0 %v1572
          %1598 = vmatprep.subr.mxu0 0.0
          %1599 = vmatpush1.msra.mxu0 %v1573
          %1600 = vmatprep.subr.mxu0 0.0
          %1601 = vmatpush1.msra.mxu0 %v1574
          %1602 = vmatprep.subr.mxu0 0.0
          %1603 = vmatpush1.msra.mxu0 %v1575
          %1604 = vmatprep.subr.mxu0 0.0
          %1605 = vmatpush1.msra.mxu0 %v1576
          %1606 = vmatprep.subr.mxu0 0.0
          %1607 = vmatpush1.msra.mxu0 %v1577
          %1608 = vmatprep.subr.mxu0 0.0
          %1609 = vmatpush1.msra.mxu0 %v1578
          %1610 = vmatprep.subr.mxu0 0.0
          %1611 = vmatpush1.msra.mxu0 %v1579
          %1612 = vmatprep.subr.mxu0 0.0
          %1613 = vmatpush1.msra.mxu0 %v1580
          %1614 = vmatprep.subr.mxu0 0.0
          %1615 = vmatpush1.msra.mxu0 %v1581
          %1616 = vmatprep.subr.mxu0 0.0
          %1617 = vmatpush1.msra.mxu0 %v1582
          %1618 = vmatprep.subr.mxu0 0.0
          %1619 = vmatpush1.msra.mxu0 %v1583
          %1620 = vmatprep.subr.mxu0 0.0
          %1621 = vmatpush1.msra.mxu0 0.0
          %1622 = vmatprep.subr.mxu0 0.0
          %1623 = vmatpush1.msra.mxu0 0.0
          %1624 = vmatprep.subr.mxu0 0.0
          %1625 = vmatpush1.msra.mxu0 0.0
          %1626 = vmatprep.subr.mxu0 0.0
          %1627 = vmatpush1.msra.mxu0 0.0
          %1628 = vmatprep.subr.mxu0 0.0
          %1629 = vmatpush1.msra.mxu0 0.0
          %1630 = vmatprep.subr.mxu0 0.0
          %1631 = vmatpush1.msra.mxu0 0.0
          %1632 = vmatprep.subr.mxu0 0.0
          %1633 = vmatpush1.msra.mxu0 0.0
          %1634 = vmatprep.subr.mxu0 0.0
          %1635 = vmatpush1.msra.mxu0 0.0
          %1636 = vmatprep.subr.mxu0 0.0
          %1637 = vmatpush1.msra.mxu0 0.0
          %1638 = vmatprep.subr.mxu0 0.0
          %1639 = vmatpush1.msra.mxu0 0.0
          %1640 = vmatprep.subr.mxu0 0.0
          %1641 = vmatpush1.msra.mxu0 0.0
          %1642 = vmatprep.subr.mxu0 0.0
          %1643 = vmatpush1.msra.mxu0 0.0
          %1644 = vmatprep.subr.mxu0 0.0
          %1645 = vmatpush1.msra.mxu0 0.0
          %1646 = vmatprep.subr.mxu0 0.0
          %1647 = vmatpush1.msra.mxu0 0.0
          %1648 = vmatprep.subr.mxu0 0.0
          %1649 = vmatpush1.msra.mxu0 0.0
          %1650 = vmatprep.subr.mxu0 0.0
          %1651 = vmatpush1.msra.mxu0 0.0
          %1652 = vmatprep.mubr.f32.mxu0 0.0
          %1653 = vmatmul.mubr.f32.gmra.mrb[0].mxu0 %v1584
          %v1654 = vpop.f32.mrb[0].mxu0
          %v1655 = vadd.f32 0.0, %v1654
          %v1656 = vpop.f32.mrb[0].mxu0
          %1657 = vmatprep.mubr.f32.mxu0 0.0
          %1658 = vmatmul.mubr.f32.gmra.mrb[0].mxu0 %v1585
          %v1659 = vpop.f32.mrb[0].mxu0
          %v1660 = vadd.f32 0.0, %v1659
          %v1661 = vpop.f32.mrb[0].mxu0
          %1662 = vmatprep.mubr.f32.mxu0 0.0
          %1663 = vmatmul.mubr.f32.gmra.mrb[0].mxu0 %v1586
          %v1664 = vpop.f32.mrb[0].mxu0
          %v1665 = vadd.f32 0.0, %v1664
          %v1666 = vpop.f32.mrb[0].mxu0
          %1667 = vmatprep.mubr.f32.mxu0 0.0
          %1668 = vmatmul.mubr.f32.gmra.mrb[0].mxu0 %v1587
          %v1669 = vpop.f32.mrb[0].mxu0
          %v1670 = vadd.f32 0.0, %v1669
          %v1671 = vpop.f32.mrb[0].mxu0
          %1672 = vdwg.mxu0
          %1673 = vrot.lane.b32.xlu0 %v1655, 127
          %v1674 = vpop.permute.xlu0 %1673
          %1675 = vrot.lane.b32.xlu0 %v1660, 127
          %v1676 = vpop.permute.xlu0 %1675
          %1677 = vrot.lane.b32.xlu0 %v1665, 127
          %v1678 = vpop.permute.xlu0 %1677
          %1679 = vrot.lane.b32.xlu0 %v1670, 127
          %v1680 = vpop.permute.xlu0 %1679
          %v1681 = vmax.f32 %v1655, %v1674
          %v1682 = vmax.f32 %v1660, %v1676
          %v1683 = vmax.f32 %v1665, %v1678
          %v1684 = vmax.f32 %v1670, %v1680
          %1685 = vrot.lane.b32.xlu0 %v1681, 126
          %v1686 = vpop.permute.xlu0 %1685
          %1687 = vrot.lane.b32.xlu0 %v1682, 126
          %v1688 = vpop.permute.xlu0 %1687
          %1689 = vrot.lane.b32.xlu0 %v1683, 126
          %v1690 = vpop.permute.xlu0 %1689
          %1691 = vrot.lane.b32.xlu0 %v1684, 126
          %v1692 = vpop.permute.xlu0 %1691
          %v1693 = vmax.f32 %v1681, %v1686
          %v1694 = vmax.f32 %v1682, %v1688
          %v1695 = vmax.f32 %v1683, %v1690
          %v1696 = vmax.f32 %v1684, %v1692
          %s1697 = sld [smem:[#allocation10]]
          %v1698 = vstv %s1697
          %v1699 = vadd.f32 %v1693, %v1698
          %v1700 = vadd.f32 %v1694, %v1698
          %v1701 = vadd.f32 %v1695, %v1698
          %v1702 = vadd.f32 %v1696, %v1698
          %v1703 = vmax.f32 %v1699, 0.0
          %v1704 = vmax.f32 %v1700, 0.0
          %v1705 = vmax.f32 %v1701, 0.0
          %v1706 = vmax.f32 %v1702, 0.0
          %v1707 = vld [vmem:[#allocation6] sm:$0xff]
          %v1708 = vld [vmem:[#allocation6 + $0x8] sm:$0xff]
          %v1709 = vld [vmem:[#allocation6 + $0x10] sm:$0xff]
          %v1710 = vld [vmem:[#allocation6 + $0x18] sm:$0xff]
          %v1711 = vld [vmem:[#allocation6 + $0x20] sm:$0xff]
          %v1712 = vld [vmem:[#allocation6 + $0x28] sm:$0xff]
          %v1713 = vld [vmem:[#allocation6 + $0x30] sm:$0xff]
          %v1714 = vld [vmem:[#allocation6 + $0x38] sm:$0xff]
          %v1715 = vld [vmem:[#allocation6 + $0x40] sm:$0xff]
          %v1716 = vld [vmem:[#allocation6 + $0x48] sm:$0xff]
          %v1717 = vld [vmem:[#allocation6 + $0x50] sm:$0xff]
          %v1718 = vld [vmem:[#allocation6 + $0x58] sm:$0xff]
          %v1719 = vld [vmem:[#allocation6 + $0x60] sm:$0xff]
          %v1720 = vld [vmem:[#allocation6 + $0x68] sm:$0xff]
          %v1721 = vld [vmem:[#allocation6 + $0x70] sm:$0xff]
          %v1722 = vld [vmem:[#allocation6 + $0x78] sm:$0xff]
          %s1723 = sld [smem:[#allocation9 + $0x10]]
          %v1724 = vstv %s1723
          %v1725 = vmul.f32 %v1724, %v460
          %v1726 = vmul.f32 %v1724, %v461
          %v1727 = vmul.f32 %v1724, %v462
          %v1728 = vmul.f32 %v1724, %v463
          %v1729 = vmul.f32 %v1724, %v464
          %v1730 = vmul.f32 %v1724, %v465
          %v1731 = vmul.f32 %v1724, %v466
          %v1732 = vmul.f32 %v1724, %v467
          %v1733 = vmul.f32 %v1724, %v468
          %v1734 = vmul.f32 %v1724, %v469
          %v1735 = vmul.f32 %v1724, %v470
          %v1736 = vmul.f32 %v1724, %v471
          %v1737 = vmul.f32 %v1724, %v472
          %v1738 = vmul.f32 %v1724, %v473
          %v1739 = vmul.f32 %v1724, %v474
          %v1740 = vmul.f32 %v1724, %v475
          %s1741 = sld [smem:[#allocation9 + $0x11]]
          %v1742 = vstv %s1741
          %v1743 = vmul.f32 %v1742, %v495
          %v1744 = vmul.f32 %v1742, %v497
          %v1745 = vmul.f32 %v1742, %v499
          %v1746 = vmul.f32 %v1742, %v501
          %v1747 = vmul.f32 %v1742, %v503
          %v1748 = vmul.f32 %v1742, %v505
          %v1749 = vmul.f32 %v1742, %v507
          %v1750 = vmul.f32 %v1742, %v509
          %v1751 = vmul.f32 %v1742, %v511
          %v1752 = vmul.f32 %v1742, %v513
          %v1753 = vmul.f32 %v1742, %v515
          %v1754 = vmul.f32 %v1742, %v517
          %v1755 = vmul.f32 %v1742, %v519
          %v1756 = vmul.f32 %v1742, %v521
          %v1757 = vmul.f32 %v1742, %v523
          %v1758 = vmul.f32 %v1742, %v525
          %v1759 = vadd.f32 %v1725, %v1743
          %v1760 = vadd.f32 %v1726, %v1744
          %v1761 = vadd.f32 %v1727, %v1745
          %v1762 = vadd.f32 %v1728, %v1746
          %v1763 = vadd.f32 %v1729, %v1747
          %v1764 = vadd.f32 %v1730, %v1748
          %v1765 = vadd.f32 %v1731, %v1749
          %v1766 = vadd.f32 %v1732, %v1750
          %v1767 = vadd.f32 %v1733, %v1751
          %v1768 = vadd.f32 %v1734, %v1752
          %v1769 = vadd.f32 %v1735, %v1753
          %v1770 = vadd.f32 %v1736, %v1754
          %v1771 = vadd.f32 %v1737, %v1755
          %v1772 = vadd.f32 %v1738, %v1756
          %v1773 = vadd.f32 %v1739, %v1757
          %v1774 = vadd.f32 %v1740, %v1758
          %s1775 = sld [smem:[#allocation9 + $0x12]]
          %v1776 = vstv %s1775
          %v1777 = vmul.f32 %v1776, %v561
          %v1778 = vmul.f32 %v1776, %v563
          %v1779 = vmul.f32 %v1776, %v565
          %v1780 = vmul.f32 %v1776, %v567
          %v1781 = vmul.f32 %v1776, %v569
          %v1782 = vmul.f32 %v1776, %v571
          %v1783 = vmul.f32 %v1776, %v573
          %v1784 = vmul.f32 %v1776, %v575
          %v1785 = vmul.f32 %v1776, %v577
          %v1786 = vmul.f32 %v1776, %v579
          %v1787 = vmul.f32 %v1776, %v581
          %v1788 = vmul.f32 %v1776, %v583
          %v1789 = vmul.f32 %v1776, %v585
          %v1790 = vmul.f32 %v1776, %v587
          %v1791 = vmul.f32 %v1776, %v589
          %v1792 = vmul.f32 %v1776, %v591
          %v1793 = vadd.f32 %v1759, %v1777
          %v1794 = vadd.f32 %v1760, %v1778
          %v1795 = vadd.f32 %v1761, %v1779
          %v1796 = vadd.f32 %v1762, %v1780
          %v1797 = vadd.f32 %v1763, %v1781
          %v1798 = vadd.f32 %v1764, %v1782
          %v1799 = vadd.f32 %v1765, %v1783
          %v1800 = vadd.f32 %v1766, %v1784
          %v1801 = vadd.f32 %v1767, %v1785
          %v1802 = vadd.f32 %v1768, %v1786
          %v1803 = vadd.f32 %v1769, %v1787
          %v1804 = vadd.f32 %v1770, %v1788
          %v1805 = vadd.f32 %v1771, %v1789
          %v1806 = vadd.f32 %v1772, %v1790
          %v1807 = vadd.f32 %v1773, %v1791
          %v1808 = vadd.f32 %v1774, %v1792
          %s1809 = sld [smem:[#allocation9 + $0x13]]
          %v1810 = vstv %s1809
          %v1811 = vmul.f32 %v1810, %v627
          %v1812 = vmul.f32 %v1810, %v629
          %v1813 = vmul.f32 %v1810, %v631
          %v1814 = vmul.f32 %v1810, %v633
          %v1815 = vmul.f32 %v1810, %v635
          %v1816 = vmul.f32 %v1810, %v637
          %v1817 = vmul.f32 %v1810, %v639
          %v1818 = vmul.f32 %v1810, %v641
          %v1819 = vmul.f32 %v1810, %v643
          %v1820 = vmul.f32 %v1810, %v645
          %v1821 = vmul.f32 %v1810, %v647
          %v1822 = vmul.f32 %v1810, %v649
          %v1823 = vmul.f32 %v1810, %v651
          %v1824 = vmul.f32 %v1810, %v653
          %v1825 = vmul.f32 %v1810, %v655
          %v1826 = vmul.f32 %v1810, %v657
          %v1827 = vadd.f32 %v1793, %v1811
          %v1828 = vadd.f32 %v1794, %v1812
          %v1829 = vadd.f32 %v1795, %v1813
          %v1830 = vadd.f32 %v1796, %v1814
          %v1831 = vadd.f32 %v1797, %v1815
          %v1832 = vadd.f32 %v1798, %v1816
          %v1833 = vadd.f32 %v1799, %v1817
          %v1834 = vadd.f32 %v1800, %v1818
          %v1835 = vadd.f32 %v1801, %v1819
          %v1836 = vadd.f32 %v1802, %v1820
          %v1837 = vadd.f32 %v1803, %v1821
          %v1838 = vadd.f32 %v1804, %v1822
          %v1839 = vadd.f32 %v1805, %v1823
          %v1840 = vadd.f32 %v1806, %v1824
          %v1841 = vadd.f32 %v1807, %v1825
          %v1842 = vadd.f32 %v1808, %v1826
          %s1843 = sld [smem:[#allocation9 + $0x14]]
          %v1844 = vstv %s1843
          %v1845 = vmul.f32 %v1844, %v725
          %v1846 = vmul.f32 %v1844, %v724
          %v1847 = vmul.f32 %v1844, %v723
          %v1848 = vmul.f32 %v1844, %v722
          %v1849 = vmul.f32 %v1844, %v721
          %v1850 = vmul.f32 %v1844, %v720
          %v1851 = vmul.f32 %v1844, %v719
          %v1852 = vmul.f32 %v1844, %v718
          %v1853 = vmul.f32 %v1844, %v717
          %v1854 = vmul.f32 %v1844, %v716
          %v1855 = vmul.f32 %v1844, %v715
          %v1856 = vmul.f32 %v1844, %v714
          %v1857 = vmul.f32 %v1844, %v713
          %v1858 = vmul.f32 %v1844, %v712
          %v1859 = vmul.f32 %v1844, %v711
          %v1860 = vmul.f32 %v1844, %v726
          %v1861 = vadd.f32 %v1827, %v1845
          %v1862 = vadd.f32 %v1828, %v1846
          %v1863 = vadd.f32 %v1829, %v1847
          %v1864 = vadd.f32 %v1830, %v1848
          %v1865 = vadd.f32 %v1831, %v1849
          %v1866 = vadd.f32 %v1832, %v1850
          %v1867 = vadd.f32 %v1833, %v1851
          %v1868 = vadd.f32 %v1834, %v1852
          %v1869 = vadd.f32 %v1835, %v1853
          %v1870 = vadd.f32 %v1836, %v1854
          %v1871 = vadd.f32 %v1837, %v1855
          %v1872 = vadd.f32 %v1838, %v1856
          %v1873 = vadd.f32 %v1839, %v1857
          %v1874 = vadd.f32 %v1840, %v1858
          %v1875 = vadd.f32 %v1841, %v1859
          %v1876 = vadd.f32 %v1842, %v1860
          %s1877 = sld [smem:[#allocation9 + $0x15]]
          %v1878 = vstv %s1877
          %v1879 = vmul.f32 %v1878, %v762
          %v1880 = vmul.f32 %v1878, %v764
          %v1881 = vmul.f32 %v1878, %v766
          %v1882 = vmul.f32 %v1878, %v768
          %v1883 = vmul.f32 %v1878, %v770
          %v1884 = vmul.f32 %v1878, %v772
          %v1885 = vmul.f32 %v1878, %v774
          %v1886 = vmul.f32 %v1878, %v776
          %v1887 = vmul.f32 %v1878, %v778
          %v1888 = vmul.f32 %v1878, %v780
          %v1889 = vmul.f32 %v1878, %v782
          %v1890 = vmul.f32 %v1878, %v784
          %v1891 = vmul.f32 %v1878, %v786
          %v1892 = vmul.f32 %v1878, %v788
          %v1893 = vmul.f32 %v1878, %v790
          %v1894 = vmul.f32 %v1878, %v792
          %v1895 = vadd.f32 %v1861, %v1879
          %v1896 = vadd.f32 %v1862, %v1880
          %v1897 = vadd.f32 %v1863, %v1881
          %v1898 = vadd.f32 %v1864, %v1882
          %v1899 = vadd.f32 %v1865, %v1883
          %v1900 = vadd.f32 %v1866, %v1884
          %v1901 = vadd.f32 %v1867, %v1885
          %v1902 = vadd.f32 %v1868, %v1886
          %v1903 = vadd.f32 %v1869, %v1887
          %v1904 = vadd.f32 %v1870, %v1888
          %v1905 = vadd.f32 %v1871, %v1889
          %v1906 = vadd.f32 %v1872, %v1890
          %v1907 = vadd.f32 %v1873, %v1891
          %v1908 = vadd.f32 %v1874, %v1892
          %v1909 = vadd.f32 %v1875, %v1893
          %v1910 = vadd.f32 %v1876, %v1894
          %s1911 = sld [smem:[#allocation9 + $0x16]]
          %v1912 = vstv %s1911
          %v1913 = vmul.f32 %v1912, %v828
          %v1914 = vmul.f32 %v1912, %v830
          %v1915 = vmul.f32 %v1912, %v832
          %v1916 = vmul.f32 %v1912, %v834
          %v1917 = vmul.f32 %v1912, %v836
          %v1918 = vmul.f32 %v1912, %v838
          %v1919 = vmul.f32 %v1912, %v840
          %v1920 = vmul.f32 %v1912, %v842
          %v1921 = vmul.f32 %v1912, %v844
          %v1922 = vmul.f32 %v1912, %v846
          %v1923 = vmul.f32 %v1912, %v848
          %v1924 = vmul.f32 %v1912, %v850
          %v1925 = vmul.f32 %v1912, %v852
          %v1926 = vmul.f32 %v1912, %v854
          %v1927 = vmul.f32 %v1912, %v856
          %v1928 = vmul.f32 %v1912, %v858
          %v1929 = vadd.f32 %v1895, %v1913
          %v1930 = vadd.f32 %v1896, %v1914
          %v1931 = vadd.f32 %v1897, %v1915
          %v1932 = vadd.f32 %v1898, %v1916
          %v1933 = vadd.f32 %v1899, %v1917
          %v1934 = vadd.f32 %v1900, %v1918
          %v1935 = vadd.f32 %v1901, %v1919
          %v1936 = vadd.f32 %v1902, %v1920
          %v1937 = vadd.f32 %v1903, %v1921
          %v1938 = vadd.f32 %v1904, %v1922
          %v1939 = vadd.f32 %v1905, %v1923
          %v1940 = vadd.f32 %v1906, %v1924
          %v1941 = vadd.f32 %v1907, %v1925
          %v1942 = vadd.f32 %v1908, %v1926
          %v1943 = vadd.f32 %v1909, %v1927
          %v1944 = vadd.f32 %v1910, %v1928
          %s1945 = sld [smem:[#allocation9 + $0x17]]
          %v1946 = vstv %s1945
          %v1947 = vmul.f32 %v1946, %v894
          %v1948 = vmul.f32 %v1946, %v896
          %v1949 = vmul.f32 %v1946, %v898
          %v1950 = vmul.f32 %v1946, %v900
          %v1951 = vmul.f32 %v1946, %v902
          %v1952 = vmul.f32 %v1946, %v904
          %v1953 = vmul.f32 %v1946, %v906
          %v1954 = vmul.f32 %v1946, %v908
          %v1955 = vmul.f32 %v1946, %v910
          %v1956 = vmul.f32 %v1946, %v912
          %v1957 = vmul.f32 %v1946, %v914
          %v1958 = vmul.f32 %v1946, %v916
          %v1959 = vmul.f32 %v1946, %v918
          %v1960 = vmul.f32 %v1946, %v920
          %v1961 = vmul.f32 %v1946, %v922
          %v1962 = vmul.f32 %v1946, %v924
          %v1963 = vadd.f32 %v1929, %v1947
          %v1964 = vadd.f32 %v1930, %v1948
          %v1965 = vadd.f32 %v1931, %v1949
          %v1966 = vadd.f32 %v1932, %v1950
          %v1967 = vadd.f32 %v1933, %v1951
          %v1968 = vadd.f32 %v1934, %v1952
          %v1969 = vadd.f32 %v1935, %v1953
          %v1970 = vadd.f32 %v1936, %v1954
          %v1971 = vadd.f32 %v1937, %v1955
          %v1972 = vadd.f32 %v1938, %v1956
          %v1973 = vadd.f32 %v1939, %v1957
          %v1974 = vadd.f32 %v1940, %v1958
          %v1975 = vadd.f32 %v1941, %v1959
          %v1976 = vadd.f32 %v1942, %v1960
          %v1977 = vadd.f32 %v1943, %v1961
          %v1978 = vadd.f32 %v1944, %v1962
          %s1979 = sld [smem:[#allocation9 + $0x18]]
          %v1980 = vstv %s1979
          %v1981 = vmul.f32 %v1980, %v989
          %v1982 = vmul.f32 %v1980, %v988
          %v1983 = vmul.f32 %v1980, %v987
          %v1984 = vmul.f32 %v1980, %v986
          %v1985 = vmul.f32 %v1980, %v985
          %v1986 = vmul.f32 %v1980, %v984
          %v1987 = vmul.f32 %v1980, %v983
          %v1988 = vmul.f32 %v1980, %v982
          %v1989 = vmul.f32 %v1980, %v981
          %v1990 = vmul.f32 %v1980, %v980
          %v1991 = vmul.f32 %v1980, %v979
          %v1992 = vmul.f32 %v1980, %v978
          %v1993 = vmul.f32 %v1980, %v977
          %v1994 = vmul.f32 %v1980, %v976
          %v1995 = vmul.f32 %v1980, %v975
          %v1996 = vmul.f32 %v1980, %v990
          %v1997 = vadd.f32 %v1963, %v1981
          %v1998 = vadd.f32 %v1964, %v1982
          %v1999 = vadd.f32 %v1965, %v1983
          %v2000 = vadd.f32 %v1966, %v1984
          %v2001 = vadd.f32 %v1967, %v1985
          %v2002 = vadd.f32 %v1968, %v1986
          %v2003 = vadd.f32 %v1969, %v1987
          %v2004 = vadd.f32 %v1970, %v1988
          %v2005 = vadd.f32 %v1971, %v1989
          %v2006 = vadd.f32 %v1972, %v1990
          %v2007 = vadd.f32 %v1973, %v1991
          %v2008 = vadd.f32 %v1974, %v1992
          %v2009 = vadd.f32 %v1975, %v1993
          %v2010 = vadd.f32 %v1976, %v1994
          %v2011 = vadd.f32 %v1977, %v1995
          %v2012 = vadd.f32 %v1978, %v1996
          %s2013 = sld [smem:[#allocation9 + $0x19]]
          %v2014 = vstv %s2013
          %v2015 = vmul.f32 %v2014, %v1026
          %v2016 = vmul.f32 %v2014, %v1028
          %v2017 = vmul.f32 %v2014, %v1030
          %v2018 = vmul.f32 %v2014, %v1032
          %v2019 = vmul.f32 %v2014, %v1034
          %v2020 = vmul.f32 %v2014, %v1036
          %v2021 = vmul.f32 %v2014, %v1038
          %v2022 = vmul.f32 %v2014, %v1040
          %v2023 = vmul.f32 %v2014, %v1042
          %v2024 = vmul.f32 %v2014, %v1044
          %v2025 = vmul.f32 %v2014, %v1046
          %v2026 = vmul.f32 %v2014, %v1048
          %v2027 = vmul.f32 %v2014, %v1050
          %v2028 = vmul.f32 %v2014, %v1052
          %v2029 = vmul.f32 %v2014, %v1054
          %v2030 = vmul.f32 %v2014, %v1056
          %v2031 = vadd.f32 %v1997, %v2015
          %v2032 = vadd.f32 %v1998, %v2016
          %v2033 = vadd.f32 %v1999, %v2017
          %v2034 = vadd.f32 %v2000, %v2018
          %v2035 = vadd.f32 %v2001, %v2019
          %v2036 = vadd.f32 %v2002, %v2020
          %v2037 = vadd.f32 %v2003, %v2021
          %v2038 = vadd.f32 %v2004, %v2022
          %v2039 = vadd.f32 %v2005, %v2023
          %v2040 = vadd.f32 %v2006, %v2024
          %v2041 = vadd.f32 %v2007, %v2025
          %v2042 = vadd.f32 %v2008, %v2026
          %v2043 = vadd.f32 %v2009, %v2027
          %v2044 = vadd.f32 %v2010, %v2028
          %v2045 = vadd.f32 %v2011, %v2029
          %v2046 = vadd.f32 %v2012, %v2030
          %s2047 = sld [smem:[#allocation9 + $0x1a]]
          %v2048 = vstv %s2047
          %v2049 = vmul.f32 %v2048, %v1092
          %v2050 = vmul.f32 %v2048, %v1094
          %v2051 = vmul.f32 %v2048, %v1096
          %v2052 = vmul.f32 %v2048, %v1098
          %v2053 = vmul.f32 %v2048, %v1100
          %v2054 = vmul.f32 %v2048, %v1102
          %v2055 = vmul.f32 %v2048, %v1104
          %v2056 = vmul.f32 %v2048, %v1106
          %v2057 = vmul.f32 %v2048, %v1108
          %v2058 = vmul.f32 %v2048, %v1110
          %v2059 = vmul.f32 %v2048, %v1112
          %v2060 = vmul.f32 %v2048, %v1114
          %v2061 = vmul.f32 %v2048, %v1116
          %v2062 = vmul.f32 %v2048, %v1118
          %v2063 = vmul.f32 %v2048, %v1120
          %v2064 = vmul.f32 %v2048, %v1122
          %v2065 = vadd.f32 %v2031, %v2049
          %v2066 = vadd.f32 %v2032, %v2050
          %v2067 = vadd.f32 %v2033, %v2051
          %v2068 = vadd.f32 %v2034, %v2052
          %v2069 = vadd.f32 %v2035, %v2053
          %v2070 = vadd.f32 %v2036, %v2054
          %v2071 = vadd.f32 %v2037, %v2055
          %v2072 = vadd.f32 %v2038, %v2056
          %v2073 = vadd.f32 %v2039, %v2057
          %v2074 = vadd.f32 %v2040, %v2058
          %v2075 = vadd.f32 %v2041, %v2059
          %v2076 = vadd.f32 %v2042, %v2060
          %v2077 = vadd.f32 %v2043, %v2061
          %v2078 = vadd.f32 %v2044, %v2062
          %v2079 = vadd.f32 %v2045, %v2063
          %v2080 = vadd.f32 %v2046, %v2064
          %s2081 = sld [smem:[#allocation9 + $0x1b]]
          %v2082 = vstv %s2081
          %v2083 = vmul.f32 %v2082, %v1158
          %v2084 = vmul.f32 %v2082, %v1160
          %v2085 = vmul.f32 %v2082, %v1162
          %v2086 = vmul.f32 %v2082, %v1164
          %v2087 = vmul.f32 %v2082, %v1166
          %v2088 = vmul.f32 %v2082, %v1168
          %v2089 = vmul.f32 %v2082, %v1170
          %v2090 = vmul.f32 %v2082, %v1172
          %v2091 = vmul.f32 %v2082, %v1174
          %v2092 = vmul.f32 %v2082, %v1176
          %v2093 = vmul.f32 %v2082, %v1178
          %v2094 = vmul.f32 %v2082, %v1180
          %v2095 = vmul.f32 %v2082, %v1182
          %v2096 = vmul.f32 %v2082, %v1184
          %v2097 = vmul.f32 %v2082, %v1186
          %v2098 = vmul.f32 %v2082, %v1188
          %v2099 = vadd.f32 %v2065, %v2083
          %v2100 = vadd.f32 %v2066, %v2084
          %v2101 = vadd.f32 %v2067, %v2085
          %v2102 = vadd.f32 %v2068, %v2086
          %v2103 = vadd.f32 %v2069, %v2087
          %v2104 = vadd.f32 %v2070, %v2088
          %v2105 = vadd.f32 %v2071, %v2089
          %v2106 = vadd.f32 %v2072, %v2090
          %v2107 = vadd.f32 %v2073, %v2091
          %v2108 = vadd.f32 %v2074, %v2092
          %v2109 = vadd.f32 %v2075, %v2093
          %v2110 = vadd.f32 %v2076, %v2094
          %v2111 = vadd.f32 %v2077, %v2095
          %v2112 = vadd.f32 %v2078, %v2096
          %v2113 = vadd.f32 %v2079, %v2097
          %v2114 = vadd.f32 %v2080, %v2098
          %s2115 = sld [smem:[#allocation9 + $0x1c]]
          %v2116 = vstv %s2115
          %v2117 = vmul.f32 %v2116, %v1253
          %v2118 = vmul.f32 %v2116, %v1252
          %v2119 = vmul.f32 %v2116, %v1251
          %v2120 = vmul.f32 %v2116, %v1250
          %v2121 = vmul.f32 %v2116, %v1249
          %v2122 = vmul.f32 %v2116, %v1248
          %v2123 = vmul.f32 %v2116, %v1247
          %v2124 = vmul.f32 %v2116, %v1246
          %v2125 = vmul.f32 %v2116, %v1245
          %v2126 = vmul.f32 %v2116, %v1244
          %v2127 = vmul.f32 %v2116, %v1243
          %v2128 = vmul.f32 %v2116, %v1242
          %v2129 = vmul.f32 %v2116, %v1241
          %v2130 = vmul.f32 %v2116, %v1240
          %v2131 = vmul.f32 %v2116, %v1239
          %v2132 = vmul.f32 %v2116, %v1254
          %v2133 = vadd.f32 %v2099, %v2117
          %v2134 = vadd.f32 %v2100, %v2118
          %v2135 = vadd.f32 %v2101, %v2119
          %v2136 = vadd.f32 %v2102, %v2120
          %v2137 = vadd.f32 %v2103, %v2121
          %v2138 = vadd.f32 %v2104, %v2122
          %v2139 = vadd.f32 %v2105, %v2123
          %v2140 = vadd.f32 %v2106, %v2124
          %v2141 = vadd.f32 %v2107, %v2125
          %v2142 = vadd.f32 %v2108, %v2126
          %v2143 = vadd.f32 %v2109, %v2127
          %v2144 = vadd.f32 %v2110, %v2128
          %v2145 = vadd.f32 %v2111, %v2129
          %v2146 = vadd.f32 %v2112, %v2130
          %v2147 = vadd.f32 %v2113, %v2131
          %v2148 = vadd.f32 %v2114, %v2132
          %s2149 = sld [smem:[#allocation9 + $0x1d]]
          %v2150 = vstv %s2149
          %v2151 = vmul.f32 %v2150, %v1290
          %v2152 = vmul.f32 %v2150, %v1292
          %v2153 = vmul.f32 %v2150, %v1294
          %v2154 = vmul.f32 %v2150, %v1296
          %v2155 = vmul.f32 %v2150, %v1298
          %v2156 = vmul.f32 %v2150, %v1300
          %v2157 = vmul.f32 %v2150, %v1302
          %v2158 = vmul.f32 %v2150, %v1304
          %v2159 = vmul.f32 %v2150, %v1306
          %v2160 = vmul.f32 %v2150, %v1308
          %v2161 = vmul.f32 %v2150, %v1310
          %v2162 = vmul.f32 %v2150, %v1312
          %v2163 = vmul.f32 %v2150, %v1314
          %v2164 = vmul.f32 %v2150, %v1316
          %v2165 = vmul.f32 %v2150, %v1318
          %v2166 = vmul.f32 %v2150, %v1320
          %v2167 = vadd.f32 %v2133, %v2151
          %v2168 = vadd.f32 %v2134, %v2152
          %v2169 = vadd.f32 %v2135, %v2153
          %v2170 = vadd.f32 %v2136, %v2154
          %v2171 = vadd.f32 %v2137, %v2155
          %v2172 = vadd.f32 %v2138, %v2156
          %v2173 = vadd.f32 %v2139, %v2157
          %v2174 = vadd.f32 %v2140, %v2158
          %v2175 = vadd.f32 %v2141, %v2159
          %v2176 = vadd.f32 %v2142, %v2160
          %v2177 = vadd.f32 %v2143, %v2161
          %v2178 = vadd.f32 %v2144, %v2162
          %v2179 = vadd.f32 %v2145, %v2163
          %v2180 = vadd.f32 %v2146, %v2164
          %v2181 = vadd.f32 %v2147, %v2165
          %v2182 = vadd.f32 %v2148, %v2166
          %s2183 = sld [smem:[#allocation9 + $0x1e]]
          %v2184 = vstv %s2183
          %v2185 = vmul.f32 %v2184, %v1356
          %v2186 = vmul.f32 %v2184, %v1358
          %v2187 = vmul.f32 %v2184, %v1360
          %v2188 = vmul.f32 %v2184, %v1362
          %v2189 = vmul.f32 %v2184, %v1364
          %v2190 = vmul.f32 %v2184, %v1366
          %v2191 = vmul.f32 %v2184, %v1368
          %v2192 = vmul.f32 %v2184, %v1370
          %v2193 = vmul.f32 %v2184, %v1372
          %v2194 = vmul.f32 %v2184, %v1374
          %v2195 = vmul.f32 %v2184, %v1376
          %v2196 = vmul.f32 %v2184, %v1378
          %v2197 = vmul.f32 %v2184, %v1380
          %v2198 = vmul.f32 %v2184, %v1382
          %v2199 = vmul.f32 %v2184, %v1384
          %v2200 = vmul.f32 %v2184, %v1386
          %v2201 = vadd.f32 %v2167, %v2185
          %v2202 = vadd.f32 %v2168, %v2186
          %v2203 = vadd.f32 %v2169, %v2187
          %v2204 = vadd.f32 %v2170, %v2188
          %v2205 = vadd.f32 %v2171, %v2189
          %v2206 = vadd.f32 %v2172, %v2190
          %v2207 = vadd.f32 %v2173, %v2191
          %v2208 = vadd.f32 %v2174, %v2192
          %v2209 = vadd.f32 %v2175, %v2193
          %v2210 = vadd.f32 %v2176, %v2194
          %v2211 = vadd.f32 %v2177, %v2195
          %v2212 = vadd.f32 %v2178, %v2196
          %v2213 = vadd.f32 %v2179, %v2197
          %v2214 = vadd.f32 %v2180, %v2198
          %v2215 = vadd.f32 %v2181, %v2199
          %v2216 = vadd.f32 %v2182, %v2200
          %s2217 = sld [smem:[#allocation9 + $0x1f]]
          %v2218 = vstv %s2217
          %v2219 = vmul.f32 %v2218, %v1422
          %v2220 = vmul.f32 %v2218, %v1424
          %v2221 = vmul.f32 %v2218, %v1426
          %v2222 = vmul.f32 %v2218, %v1428
          %v2223 = vmul.f32 %v2218, %v1430
          %v2224 = vmul.f32 %v2218, %v1432
          %v2225 = vmul.f32 %v2218, %v1434
          %v2226 = vmul.f32 %v2218, %v1436
          %v2227 = vmul.f32 %v2218, %v1438
          %v2228 = vmul.f32 %v2218, %v1440
          %v2229 = vmul.f32 %v2218, %v1442
          %v2230 = vmul.f32 %v2218, %v1444
          %v2231 = vmul.f32 %v2218, %v1446
          %v2232 = vmul.f32 %v2218, %v1448
          %v2233 = vmul.f32 %v2218, %v1450
          %v2234 = vmul.f32 %v2218, %v1452
          %v2235 = vadd.f32 %v2201, %v2219
          %v2236 = vadd.f32 %v2202, %v2220
          %v2237 = vadd.f32 %v2203, %v2221
          %v2238 = vadd.f32 %v2204, %v2222
          %v2239 = vadd.f32 %v2205, %v2223
          %v2240 = vadd.f32 %v2206, %v2224
          %v2241 = vadd.f32 %v2207, %v2225
          %v2242 = vadd.f32 %v2208, %v2226
          %v2243 = vadd.f32 %v2209, %v2227
          %v2244 = vadd.f32 %v2210, %v2228
          %v2245 = vadd.f32 %v2211, %v2229
          %v2246 = vadd.f32 %v2212, %v2230
          %v2247 = vadd.f32 %v2213, %v2231
          %v2248 = vadd.f32 %v2214, %v2232
          %v2249 = vadd.f32 %v2215, %v2233
          %v2250 = vadd.f32 %v2216, %v2234
          %v2251 = vrot.slane %v2235, 1
          %v2252 = vrot.slane %v2236, 1
          %v2253 = vrot.slane %v2237, 1
          %v2254 = vrot.slane %v2238, 1
          %v2255 = vrot.slane %v2239, 1
          %v2256 = vrot.slane %v2240, 1
          %v2257 = vrot.slane %v2241, 1
          %v2258 = vrot.slane %v2242, 1
          %v2259 = vrot.slane %v2243, 1
          %v2260 = vrot.slane %v2244, 1
          %v2261 = vrot.slane %v2245, 1
          %v2262 = vrot.slane %v2246, 1
          %v2263 = vrot.slane %v2247, 1
          %v2264 = vrot.slane %v2248, 1
          %v2265 = vrot.slane %v2249, 1
          %v2266 = vrot.slane %v2250, 1
          %v2267 = vsel %vm710, %v2265, %v2266
          %v2268 = vsel %vm710, %v2264, %v2265
          %v2269 = vsel %vm710, %v2263, %v2264
          %v2270 = vsel %vm710, %v2262, %v2263
          %v2271 = vsel %vm710, %v2261, %v2262
          %v2272 = vsel %vm710, %v2260, %v2261
          %v2273 = vsel %vm710, %v2259, %v2260
          %v2274 = vsel %vm710, %v2258, %v2259
          %v2275 = vsel %vm710, %v2257, %v2258
          %v2276 = vsel %vm710, %v2256, %v2257
          %v2277 = vsel %vm710, %v2255, %v2256
          %v2278 = vsel %vm710, %v2254, %v2255
          %v2279 = vsel %vm710, %v2253, %v2254
          %v2280 = vsel %vm710, %v2252, %v2253
          %v2281 = vsel %vm710, %v2251, %v2252
          %v2282 = vsel %vm710, %v2266, %v2251
          %v2283 = vmax.f32 %v2235, %v2281
          %v2284 = vmax.f32 %v2236, %v2280
          %v2285 = vmax.f32 %v2237, %v2279
          %v2286 = vmax.f32 %v2238, %v2278
          %v2287 = vmax.f32 %v2239, %v2277
          %v2288 = vmax.f32 %v2240, %v2276
          %v2289 = vmax.f32 %v2241, %v2275
          %v2290 = vmax.f32 %v2242, %v2274
          %v2291 = vmax.f32 %v2243, %v2273
          %v2292 = vmax.f32 %v2244, %v2272
          %v2293 = vmax.f32 %v2245, %v2271
          %v2294 = vmax.f32 %v2246, %v2270
          %v2295 = vmax.f32 %v2247, %v2269
          %v2296 = vmax.f32 %v2248, %v2268
          %v2297 = vmax.f32 %v2249, %v2267
          %v2298 = vmax.f32 %v2250, %v2282
          %v2299 = vrot.slane %v2283, 2
          %v2300 = vrot.slane %v2284, 2
          %v2301 = vrot.slane %v2285, 2
          %v2302 = vrot.slane %v2286, 2
          %v2303 = vrot.slane %v2287, 2
          %v2304 = vrot.slane %v2288, 2
          %v2305 = vrot.slane %v2289, 2
          %v2306 = vrot.slane %v2290, 2
          %v2307 = vrot.slane %v2291, 2
          %v2308 = vrot.slane %v2292, 2
          %v2309 = vrot.slane %v2293, 2
          %v2310 = vrot.slane %v2294, 2
          %v2311 = vrot.slane %v2295, 2
          %v2312 = vrot.slane %v2296, 2
          %v2313 = vrot.slane %v2297, 2
          %v2314 = vrot.slane %v2298, 2
          %v2315 = vsel %vm1551, %v2313, %v2314
          %v2316 = vsel %vm1551, %v2312, %v2313
          %v2317 = vsel %vm1551, %v2311, %v2312
          %v2318 = vsel %vm1551, %v2310, %v2311
          %v2319 = vsel %vm1551, %v2309, %v2310
          %v2320 = vsel %vm1551, %v2308, %v2309
          %v2321 = vsel %vm1551, %v2307, %v2308
          %v2322 = vsel %vm1551, %v2306, %v2307
          %v2323 = vsel %vm1551, %v2305, %v2306
          %v2324 = vsel %vm1551, %v2304, %v2305
          %v2325 = vsel %vm1551, %v2303, %v2304
          %v2326 = vsel %vm1551, %v2302, %v2303
          %v2327 = vsel %vm1551, %v2301, %v2302
          %v2328 = vsel %vm1551, %v2300, %v2301
          %v2329 = vsel %vm1551, %v2299, %v2300
          %v2330 = vsel %vm1551, %v2314, %v2299
          %v2331 = vmax.f32 %v2283, %v2329
          %v2332 = vmax.f32 %v2284, %v2328
          %v2333 = vmax.f32 %v2285, %v2327
          %v2334 = vmax.f32 %v2286, %v2326
          %v2335 = vmax.f32 %v2287, %v2325
          %v2336 = vmax.f32 %v2288, %v2324
          %v2337 = vmax.f32 %v2289, %v2323
          %v2338 = vmax.f32 %v2290, %v2322
          %v2339 = vmax.f32 %v2291, %v2321
          %v2340 = vmax.f32 %v2292, %v2320
          %v2341 = vmax.f32 %v2293, %v2319
          %v2342 = vmax.f32 %v2294, %v2318
          %v2343 = vmax.f32 %v2295, %v2317
          %v2344 = vmax.f32 %v2296, %v2316
          %v2345 = vmax.f32 %v2297, %v2315
          %v2346 = vmax.f32 %v2298, %v2330
          %2347 = vmatprep.subr.mxu0 0.0
          %2348 = vmatpush1.msra.mxu0 %v2331
          %2349 = vmatprep.subr.mxu0 0.0
          %2350 = vmatpush1.msra.mxu0 %v2332
          %2351 = vmatprep.subr.mxu0 0.0
          %2352 = vmatpush1.msra.mxu0 %v2333
          %2353 = vmatprep.subr.mxu0 0.0
          %2354 = vmatpush1.msra.mxu0 %v2334
          %2355 = vmatprep.subr.mxu0 0.0
          %2356 = vmatpush1.msra.mxu0 %v2335
          %2357 = vmatprep.subr.mxu0 0.0
          %2358 = vmatpush1.msra.mxu0 %v2336
          %2359 = vmatprep.subr.mxu0 0.0
          %2360 = vmatpush1.msra.mxu0 %v2337
          %2361 = vmatprep.subr.mxu0 0.0
          %2362 = vmatpush1.msra.mxu0 %v2338
          %2363 = vmatprep.subr.mxu0 0.0
          %2364 = vmatpush1.msra.mxu0 %v2339
          %2365 = vmatprep.subr.mxu0 0.0
          %2366 = vmatpush1.msra.mxu0 %v2340
          %2367 = vmatprep.subr.mxu0 0.0
          %2368 = vmatpush1.msra.mxu0 %v2341
          %2369 = vmatprep.subr.mxu0 0.0
          %2370 = vmatpush1.msra.mxu0 %v2342
          %2371 = vmatprep.subr.mxu0 0.0
          %2372 = vmatpush1.msra.mxu0 %v2343
          %2373 = vmatprep.subr.mxu0 0.0
          %2374 = vmatpush1.msra.mxu0 %v2344
          %2375 = vmatprep.subr.mxu0 0.0
          %2376 = vmatpush1.msra.mxu0 %v2345
          %2377 = vmatprep.subr.mxu0 0.0
          %2378 = vmatpush1.msra.mxu0 %v2346
          %2379 = vmatprep.subr.mxu0 0.0
          %2380 = vmatpush1.msra.mxu0 0.0
          %2381 = vmatprep.subr.mxu0 0.0
          %2382 = vmatpush1.msra.mxu0 0.0
          %2383 = vmatprep.subr.mxu0 0.0
          %2384 = vmatpush1.msra.mxu0 0.0
          %2385 = vmatprep.subr.mxu0 0.0
          %2386 = vmatpush1.msra.mxu0 0.0
          %2387 = vmatprep.subr.mxu0 0.0
          %2388 = vmatpush1.msra.mxu0 0.0
          %2389 = vmatprep.subr.mxu0 0.0
          %2390 = vmatpush1.msra.mxu0 0.0
          %2391 = vmatprep.subr.mxu0 0.0
          %2392 = vmatpush1.msra.mxu0 0.0
          %2393 = vmatprep.subr.mxu0 0.0
          %2394 = vmatpush1.msra.mxu0 0.0
          %2395 = vmatprep.subr.mxu0 0.0
          %2396 = vmatpush1.msra.mxu0 0.0
          %2397 = vmatprep.subr.mxu0 0.0
          %2398 = vmatpush1.msra.mxu0 0.0
          %2399 = vmatprep.subr.mxu0 0.0
          %2400 = vmatpush1.msra.mxu0 0.0
          %2401 = vmatprep.subr.mxu0 0.0
          %2402 = vmatpush1.msra.mxu0 0.0
          %2403 = vmatprep.subr.mxu0 0.0
          %2404 = vmatpush1.msra.mxu0 0.0
          %2405 = vmatprep.subr.mxu0 0.0
          %2406 = vmatpush1.msra.mxu0 0.0
          %2407 = vmatprep.subr.mxu0 0.0
          %2408 = vmatpush1.msra.mxu0 0.0
          %2409 = vmatprep.subr.mxu0 0.0
          %2410 = vmatpush1.msra.mxu0 0.0
          %2411 = vmatprep.mubr.f32.mxu0 0.0
          %2412 = vmatmul.mubr.f32.gmra.mrb[0].mxu0 %v1584
          %v2413 = vpop.f32.mrb[0].mxu0
          %v2414 = vadd.f32 0.0, %v2413
          %v2415 = vpop.f32.mrb[0].mxu0
          %2416 = vmatprep.mubr.f32.mxu0 0.0
          %2417 = vmatmul.mubr.f32.gmra.mrb[0].mxu0 %v1585
          %v2418 = vpop.f32.mrb[0].mxu0
          %v2419 = vadd.f32 0.0, %v2418
          %v2420 = vpop.f32.mrb[0].mxu0
          %2421 = vmatprep.mubr.f32.mxu0 0.0
          %2422 = vmatmul.mubr.f32.gmra.mrb[0].mxu0 %v1586
          %v2423 = vpop.f32.mrb[0].mxu0
          %v2424 = vadd.f32 0.0, %v2423
          %v2425 = vpop.f32.mrb[0].mxu0
          %2426 = vmatprep.mubr.f32.mxu0 0.0
          %2427 = vmatmul.mubr.f32.gmra.mrb[0].mxu0 %v1587
          %v2428 = vpop.f32.mrb[0].mxu0
          %v2429 = vadd.f32 0.0, %v2428
          %v2430 = vpop.f32.mrb[0].mxu0
          %2431 = vdwg.mxu0
          %2432 = vrot.lane.b32.xlu0 %v2414, 127
          %v2433 = vpop.permute.xlu0 %2432
          %2434 = vrot.lane.b32.xlu0 %v2419, 127
          %v2435 = vpop.permute.xlu0 %2434
          %2436 = vrot.lane.b32.xlu0 %v2424, 127
          %v2437 = vpop.permute.xlu0 %2436
          %2438 = vrot.lane.b32.xlu0 %v2429, 127
          %v2439 = vpop.permute.xlu0 %2438
          %v2440 = vmax.f32 %v2414, %v2433
          %v2441 = vmax.f32 %v2419, %v2435
          %v2442 = vmax.f32 %v2424, %v2437
          %v2443 = vmax.f32 %v2429, %v2439
          %2444 = vrot.lane.b32.xlu0 %v2440, 126
          %v2445 = vpop.permute.xlu0 %2444
          %2446 = vrot.lane.b32.xlu0 %v2441, 126
          %v2447 = vpop.permute.xlu0 %2446
          %2448 = vrot.lane.b32.xlu0 %v2442, 126
          %v2449 = vpop.permute.xlu0 %2448
          %2450 = vrot.lane.b32.xlu0 %v2443, 126
          %v2451 = vpop.permute.xlu0 %2450
          %v2452 = vmax.f32 %v2440, %v2445
          %v2453 = vmax.f32 %v2441, %v2447
          %v2454 = vmax.f32 %v2442, %v2449
          %v2455 = vmax.f32 %v2443, %v2451
          %s2456 = sld [smem:[#allocation10 + $0x1]]
          %v2457 = vstv %s2456
          %v2458 = vadd.f32 %v2452, %v2457
          %v2459 = vadd.f32 %v2453, %v2457
          %v2460 = vadd.f32 %v2454, %v2457
          %v2461 = vadd.f32 %v2455, %v2457
          %v2462 = vmax.f32 %v2458, 0.0
          %v2463 = vmax.f32 %v2459, 0.0
          %v2464 = vmax.f32 %v2460, 0.0
          %v2465 = vmax.f32 %v2461, 0.0
          %2466 = vmatprep.subr.mxu0 0.0
          %2467 = vmatpush1.msra.mxu0 %v1707
          %2468 = vmatprep.subr.mxu0 0.0
          %2469 = vmatpush1.msra.mxu0 %v1708
          %2470 = vmatprep.subr.mxu0 0.0
          %2471 = vmatpush1.msra.mxu0 %v1709
          %2472 = vmatprep.subr.mxu0 0.0
          %2473 = vmatpush1.msra.mxu0 %v1710
          %2474 = vmatprep.subr.mxu0 0.0
          %2475 = vmatpush1.msra.mxu0 %v1711
          %2476 = vmatprep.subr.mxu0 0.0
          %2477 = vmatpush1.msra.mxu0 %v1712
          %2478 = vmatprep.subr.mxu0 0.0
          %2479 = vmatpush1.msra.mxu0 %v1713
          %2480 = vmatprep.subr.mxu0 0.0
          %2481 = vmatpush1.msra.mxu0 %v1714
          %2482 = vmatprep.subr.mxu0 0.0
          %2483 = vmatpush1.msra.mxu0 %v1715
          %2484 = vmatprep.subr.mxu0 0.0
          %2485 = vmatpush1.msra.mxu0 %v1716
          %2486 = vmatprep.subr.mxu0 0.0
          %2487 = vmatpush1.msra.mxu0 %v1717
          %2488 = vmatprep.subr.mxu0 0.0
          %2489 = vmatpush1.msra.mxu0 %v1718
          %2490 = vmatprep.subr.mxu0 0.0
          %2491 = vmatpush1.msra.mxu0 %v1719
          %2492 = vmatprep.subr.mxu0 0.0
          %2493 = vmatpush1.msra.mxu0 %v1720
          %2494 = vmatprep.subr.mxu0 0.0
          %2495 = vmatpush1.msra.mxu0 %v1721
          %2496 = vmatprep.subr.mxu0 0.0
          %2497 = vmatpush1.msra.mxu0 %v1722
          %2498 = vmatprep.subr.mxu0 0.0
          %2499 = vmatpush1.msra.mxu0 0.0
          %2500 = vmatprep.subr.mxu0 0.0
          %2501 = vmatpush1.msra.mxu0 0.0
          %2502 = vmatprep.subr.mxu0 0.0
          %2503 = vmatpush1.msra.mxu0 0.0
          %2504 = vmatprep.subr.mxu0 0.0
          %2505 = vmatpush1.msra.mxu0 0.0
          %2506 = vmatprep.subr.mxu0 0.0
          %2507 = vmatpush1.msra.mxu0 0.0
          %2508 = vmatprep.subr.mxu0 0.0
          %2509 = vmatpush1.msra.mxu0 0.0
          %2510 = vmatprep.subr.mxu0 0.0
          %2511 = vmatpush1.msra.mxu0 0.0
          %2512 = vmatprep.subr.mxu0 0.0
          %2513 = vmatpush1.msra.mxu0 0.0
          %2514 = vmatprep.subr.mxu0 0.0
          %2515 = vmatpush1.msra.mxu0 0.0
          %2516 = vmatprep.subr.mxu0 0.0
          %2517 = vmatpush1.msra.mxu0 0.0
          %2518 = vmatprep.subr.mxu0 0.0
          %2519 = vmatpush1.msra.mxu0 0.0
          %2520 = vmatprep.subr.mxu0 0.0
          %2521 = vmatpush1.msra.mxu0 0.0
          %2522 = vmatprep.subr.mxu0 0.0
          %2523 = vmatpush1.msra.mxu0 0.0
          %2524 = vmatprep.subr.mxu0 0.0
          %2525 = vmatpush1.msra.mxu0 0.0
          %2526 = vmatprep.subr.mxu0 0.0
          %2527 = vmatpush1.msra.mxu0 0.0
          %2528 = vmatprep.subr.mxu0 0.0
          %2529 = vmatpush1.msra.mxu0 0.0
          %2530 = vmatprep.mubr.f32.mxu0 0.0
          %2531 = vmatmul.mubr.f32.gmra.mrb[0].mxu0 %v2462
          %v2532 = vpop.f32.mrb[0].mxu0
          %v2533 = vadd.f32 0.0, %v2532
          %v2534 = vpop.f32.mrb[0].mxu0
          %2535 = vmatprep.mubr.f32.mxu0 0.0
          %2536 = vmatmul.mubr.f32.gmra.mrb[0].mxu0 %v2463
          %v2537 = vpop.f32.mrb[0].mxu0
          %v2538 = vadd.f32 0.0, %v2537
          %v2539 = vpop.f32.mrb[0].mxu0
          %2540 = vmatprep.mubr.f32.mxu0 0.0
          %2541 = vmatmul.mubr.f32.gmra.mrb[0].mxu0 %v2464
          %v2542 = vpop.f32.mrb[0].mxu0
          %v2543 = vadd.f32 0.0, %v2542
          %v2544 = vpop.f32.mrb[0].mxu0
          %2545 = vmatprep.mubr.f32.mxu0 0.0
          %2546 = vmatmul.mubr.f32.gmra.mrb[0].mxu0 %v2465
          %v2547 = vpop.f32.mrb[0].mxu0
          %v2548 = vadd.f32 0.0, %v2547
          %v2549 = vpop.f32.mrb[0].mxu0
          %2550 = vdwg.mxu0
          %2551 = vrot.lane.b32.xlu0 %v2533, 32
          %v2552 = vpop.permute.xlu0 %2551
          %2553 = vrot.lane.b32.xlu0 %v2538, 32
          %v2554 = vpop.permute.xlu0 %2553
          %2555 = vrot.lane.b32.xlu0 %v2543, 32
          %v2556 = vpop.permute.xlu0 %2555
          %2557 = vrot.lane.b32.xlu0 %v2548, 32
          %v2558 = vpop.permute.xlu0 %2557
          %2559 = vmatprep.subr.mxu0 0.0
          %2560 = vmatpush1.msra.mxu0 %v1707
          %2561 = vmatprep.subr.mxu0 0.0
          %2562 = vmatpush1.msra.mxu0 %v1708
          %2563 = vmatprep.subr.mxu0 0.0
          %2564 = vmatpush1.msra.mxu0 %v1709
          %2565 = vmatprep.subr.mxu0 0.0
          %2566 = vmatpush1.msra.mxu0 %v1710
          %2567 = vmatprep.subr.mxu0 0.0
          %2568 = vmatpush1.msra.mxu0 %v1711
          %2569 = vmatprep.subr.mxu0 0.0
          %2570 = vmatpush1.msra.mxu0 %v1712
          %2571 = vmatprep.subr.mxu0 0.0
          %2572 = vmatpush1.msra.mxu0 %v1713
          %2573 = vmatprep.subr.mxu0 0.0
          %2574 = vmatpush1.msra.mxu0 %v1714
          %2575 = vmatprep.subr.mxu0 0.0
          %2576 = vmatpush1.msra.mxu0 %v1715
          %2577 = vmatprep.subr.mxu0 0.0
          %2578 = vmatpush1.msra.mxu0 %v1716
          %2579 = vmatprep.subr.mxu0 0.0
          %2580 = vmatpush1.msra.mxu0 %v1717
          %2581 = vmatprep.subr.mxu0 0.0
          %2582 = vmatpush1.msra.mxu0 %v1718
          %2583 = vmatprep.subr.mxu0 0.0
          %2584 = vmatpush1.msra.mxu0 %v1719
          %2585 = vmatprep.subr.mxu0 0.0
          %2586 = vmatpush1.msra.mxu0 %v1720
          %2587 = vmatprep.subr.mxu0 0.0
          %2588 = vmatpush1.msra.mxu0 %v1721
          %2589 = vmatprep.subr.mxu0 0.0
          %2590 = vmatpush1.msra.mxu0 %v1722
          %2591 = vmatprep.subr.mxu0 0.0
          %2592 = vmatpush1.msra.mxu0 0.0
          %2593 = vmatprep.subr.mxu0 0.0
          %2594 = vmatpush1.msra.mxu0 0.0
          %2595 = vmatprep.subr.mxu0 0.0
          %2596 = vmatpush1.msra.mxu0 0.0
          %2597 = vmatprep.subr.mxu0 0.0
          %2598 = vmatpush1.msra.mxu0 0.0
          %2599 = vmatprep.subr.mxu0 0.0
          %2600 = vmatpush1.msra.mxu0 0.0
          %2601 = vmatprep.subr.mxu0 0.0
          %2602 = vmatpush1.msra.mxu0 0.0
          %2603 = vmatprep.subr.mxu0 0.0
          %2604 = vmatpush1.msra.mxu0 0.0
          %2605 = vmatprep.subr.mxu0 0.0
          %2606 = vmatpush1.msra.mxu0 0.0
          %2607 = vmatprep.subr.mxu0 0.0
          %2608 = vmatpush1.msra.mxu0 0.0
          %2609 = vmatprep.subr.mxu0 0.0
          %2610 = vmatpush1.msra.mxu0 0.0
          %2611 = vmatprep.subr.mxu0 0.0
          %2612 = vmatpush1.msra.mxu0 0.0
          %2613 = vmatprep.subr.mxu0 0.0
          %2614 = vmatpush1.msra.mxu0 0.0
          %2615 = vmatprep.subr.mxu0 0.0
          %2616 = vmatpush1.msra.mxu0 0.0
          %2617 = vmatprep.subr.mxu0 0.0
          %2618 = vmatpush1.msra.mxu0 0.0
          %2619 = vmatprep.subr.mxu0 0.0
          %2620 = vmatpush1.msra.mxu0 0.0
          %2621 = vmatprep.subr.mxu0 0.0
          %2622 = vmatpush1.msra.mxu0 0.0
          %2623 = vmatprep.mubr.f32.mxu0 0.0
          %2624 = vmatmul.mubr.f32.gmra.mrb[0].mxu0 %v1703
          %v2625 = vpop.f32.mrb[0].mxu0
          %v2626 = vadd.f32 %v2552, %v2625
          %v2627 = vpop.f32.mrb[0].mxu0
          %2628 = vmatprep.mubr.f32.mxu0 0.0
          %2629 = vmatmul.mubr.f32.gmra.mrb[0].mxu0 %v1704
          %v2630 = vpop.f32.mrb[0].mxu0
          %v2631 = vadd.f32 %v2554, %v2630
          %v2632 = vpop.f32.mrb[0].mxu0
          %2633 = vmatprep.mubr.f32.mxu0 0.0
          %2634 = vmatmul.mubr.f32.gmra.mrb[0].mxu0 %v1705
          %v2635 = vpop.f32.mrb[0].mxu0
          %v2636 = vadd.f32 %v2556, %v2635
          %v2637 = vpop.f32.mrb[0].mxu0
          %2638 = vmatprep.mubr.f32.mxu0 0.0
          %2639 = vmatmul.mubr.f32.gmra.mrb[0].mxu0 %v1706
          %v2640 = vpop.f32.mrb[0].mxu0
          %v2641 = vadd.f32 %v2558, %v2640
          %v2642 = vpop.f32.mrb[0].mxu0
          %2643 = vdwg.mxu0
          %v2644 = vld [vmem:[#allocation12] sm:$0x1]
          %v2645 = vlaneseq
          %v2646 = vshrl.u32 %v2645, 7
          %v2647 = vsub.s32 0, %v2646
          %v2648 = vrot.slane %v2644, %v2647
          %v2649 = vmul.f32 %v2648, %v2626
          %v2650 = vmul.f32 %v2648, %v2631
          %v2651 = vmul.f32 %v2648, %v2636
          %v2652 = vmul.f32 %v2648, %v2641
          %v2653 = vld [vmem:[#allocation12 + $0x20] sm:$0x1]
          %v2654 = vlaneseq
          %v2655 = vshrl.u32 %v2654, 7
          %v2656 = vsub.s32 0, %v2655
          %v2657 = vrot.slane %v2653, %v2656
          %v2658 = vmul.f32 %v2657, %v2626
          %v2659 = vmul.f32 %v2657, %v2631
          %v2660 = vmul.f32 %v2657, %v2636
          %v2661 = vmul.f32 %v2657, %v2641
          %v2662 = vld [vmem:[#allocation12 + $0x40] sm:$0x1]
          %v2663 = vlaneseq
          %v2664 = vshrl.u32 %v2663, 7
          %v2665 = vsub.s32 0, %v2664
          %v2666 = vrot.slane %v2662, %v2665
          %v2667 = vmul.f32 %v2666, %v2626
          %v2668 = vmul.f32 %v2666, %v2631
          %v2669 = vmul.f32 %v2666, %v2636
          %v2670 = vmul.f32 %v2666, %v2641
          %v2671 = vld [vmem:[#allocation12 + $0x60] sm:$0x1]
          %v2672 = vlaneseq
          %v2673 = vshrl.u32 %v2672, 7
          %v2674 = vsub.s32 0, %v2673
          %v2675 = vrot.slane %v2671, %v2674
          %v2676 = vmul.f32 %v2675, %v2626
          %v2677 = vmul.f32 %v2675, %v2631
          %v2678 = vmul.f32 %v2675, %v2636
          %v2679 = vmul.f32 %v2675, %v2641
          %2680 = vrot.lane.b32.xlu0 %v2626, 127
          %v2681 = vpop.permute.xlu0 %2680
          %2682 = vrot.lane.b32.xlu0 %v2631, 127
          %v2683 = vpop.permute.xlu0 %2682
          %2684 = vrot.lane.b32.xlu0 %v2636, 127
          %v2685 = vpop.permute.xlu0 %2684
          %2686 = vrot.lane.b32.xlu0 %v2641, 127
          %v2687 = vpop.permute.xlu0 %2686
          %v2688 = vld [vmem:[#allocation12 + $0x1] sm:$0x1]
          %v2689 = vlaneseq
          %v2690 = vshrl.u32 %v2689, 7
          %v2691 = vsub.s32 0, %v2690
          %v2692 = vrot.slane %v2688, %v2691
          %v2693 = vmul.f32 %v2692, %v2681
          %v2694 = vmul.f32 %v2692, %v2683
          %v2695 = vmul.f32 %v2692, %v2685
          %v2696 = vmul.f32 %v2692, %v2687
          %v2697 = vadd.f32 %v2649, %v2693
          %v2698 = vadd.f32 %v2650, %v2694
          %v2699 = vadd.f32 %v2651, %v2695
          %v2700 = vadd.f32 %v2652, %v2696
          %v2701 = vld [vmem:[#allocation12 + $0x21] sm:$0x1]
          %v2702 = vlaneseq
          %v2703 = vshrl.u32 %v2702, 7
          %v2704 = vsub.s32 0, %v2703
          %v2705 = vrot.slane %v2701, %v2704
          %v2706 = vmul.f32 %v2705, %v2681
          %v2707 = vmul.f32 %v2705, %v2683
          %v2708 = vmul.f32 %v2705, %v2685
          %v2709 = vmul.f32 %v2705, %v2687
          %v2710 = vadd.f32 %v2658, %v2706
          %v2711 = vadd.f32 %v2659, %v2707
          %v2712 = vadd.f32 %v2660, %v2708
          %v2713 = vadd.f32 %v2661, %v2709
          %v2714 = vld [vmem:[#allocation12 + $0x41] sm:$0x1]
          %v2715 = vlaneseq
          %v2716 = vshrl.u32 %v2715, 7
          %v2717 = vsub.s32 0, %v2716
          %v2718 = vrot.slane %v2714, %v2717
          %v2719 = vmul.f32 %v2718, %v2681
          %v2720 = vmul.f32 %v2718, %v2683
          %v2721 = vmul.f32 %v2718, %v2685
          %v2722 = vmul.f32 %v2718, %v2687
          %v2723 = vadd.f32 %v2667, %v2719
          %v2724 = vadd.f32 %v2668, %v2720
          %v2725 = vadd.f32 %v2669, %v2721
          %v2726 = vadd.f32 %v2670, %v2722
          %v2727 = vld [vmem:[#allocation12 + $0x61] sm:$0x1]
          %v2728 = vlaneseq
          %v2729 = vshrl.u32 %v2728, 7
          %v2730 = vsub.s32 0, %v2729
          %v2731 = vrot.slane %v2727, %v2730
          %v2732 = vmul.f32 %v2731, %v2681
          %v2733 = vmul.f32 %v2731, %v2683
          %v2734 = vmul.f32 %v2731, %v2685
          %v2735 = vmul.f32 %v2731, %v2687
          %v2736 = vadd.f32 %v2676, %v2732
          %v2737 = vadd.f32 %v2677, %v2733
          %v2738 = vadd.f32 %v2678, %v2734
          %v2739 = vadd.f32 %v2679, %v2735
          %2740 = vrot.lane.b32.xlu0 %v2681, 127
          %v2741 = vpop.permute.xlu0 %2740
          %2742 = vrot.lane.b32.xlu0 %v2683, 127
          %v2743 = vpop.permute.xlu0 %2742
          %2744 = vrot.lane.b32.xlu0 %v2685, 127
          %v2745 = vpop.permute.xlu0 %2744
          %2746 = vrot.lane.b32.xlu0 %v2687, 127
          %v2747 = vpop.permute.xlu0 %2746
          %v2748 = vld [vmem:[#allocation12 + $0x2] sm:$0x1]
          %v2749 = vlaneseq
          %v2750 = vshrl.u32 %v2749, 7
          %v2751 = vsub.s32 0, %v2750
          %v2752 = vrot.slane %v2748, %v2751
          %v2753 = vmul.f32 %v2752, %v2741
          %v2754 = vmul.f32 %v2752, %v2743
          %v2755 = vmul.f32 %v2752, %v2745
          %v2756 = vmul.f32 %v2752, %v2747
          %v2757 = vadd.f32 %v2697, %v2753
          %v2758 = vadd.f32 %v2698, %v2754
          %v2759 = vadd.f32 %v2699, %v2755
          %v2760 = vadd.f32 %v2700, %v2756
          %v2761 = vld [vmem:[#allocation12 + $0x22] sm:$0x1]
          %v2762 = vlaneseq
          %v2763 = vshrl.u32 %v2762, 7
          %v2764 = vsub.s32 0, %v2763
          %v2765 = vrot.slane %v2761, %v2764
          %v2766 = vmul.f32 %v2765, %v2741
          %v2767 = vmul.f32 %v2765, %v2743
          %v2768 = vmul.f32 %v2765, %v2745
          %v2769 = vmul.f32 %v2765, %v2747
          %v2770 = vadd.f32 %v2710, %v2766
          %v2771 = vadd.f32 %v2711, %v2767
          %v2772 = vadd.f32 %v2712, %v2768
          %v2773 = vadd.f32 %v2713, %v2769
          %v2774 = vld [vmem:[#allocation12 + $0x42] sm:$0x1]
          %v2775 = vlaneseq
          %v2776 = vshrl.u32 %v2775, 7
          %v2777 = vsub.s32 0, %v2776
          %v2778 = vrot.slane %v2774, %v2777
          %v2779 = vmul.f32 %v2778, %v2741
          %v2780 = vmul.f32 %v2778, %v2743
          %v2781 = vmul.f32 %v2778, %v2745
          %v2782 = vmul.f32 %v2778, %v2747
          %v2783 = vadd.f32 %v2723, %v2779
          %v2784 = vadd.f32 %v2724, %v2780
          %v2785 = vadd.f32 %v2725, %v2781
          %v2786 = vadd.f32 %v2726, %v2782
          %v2787 = vld [vmem:[#allocation12 + $0x62] sm:$0x1]
          %v2788 = vlaneseq
          %v2789 = vshrl.u32 %v2788, 7
          %v2790 = vsub.s32 0, %v2789
          %v2791 = vrot.slane %v2787, %v2790
          %v2792 = vmul.f32 %v2791, %v2741
          %v2793 = vmul.f32 %v2791, %v2743
          %v2794 = vmul.f32 %v2791, %v2745
          %v2795 = vmul.f32 %v2791, %v2747
          %v2796 = vadd.f32 %v2736, %v2792
          %v2797 = vadd.f32 %v2737, %v2793
          %v2798 = vadd.f32 %v2738, %v2794
          %v2799 = vadd.f32 %v2739, %v2795
          %2800 = vrot.lane.b32.xlu0 %v2741, 127
          %v2801 = vpop.permute.xlu0 %2800
          %2802 = vrot.lane.b32.xlu0 %v2743, 127
          %v2803 = vpop.permute.xlu0 %2802
          %2804 = vrot.lane.b32.xlu0 %v2745, 127
          %v2805 = vpop.permute.xlu0 %2804
          %2806 = vrot.lane.b32.xlu0 %v2747, 127
          %v2807 = vpop.permute.xlu0 %2806
          %v2808 = vld [vmem:[#allocation12 + $0x3] sm:$0x1]
          %v2809 = vlaneseq
          %v2810 = vshrl.u32 %v2809, 7
          %v2811 = vsub.s32 0, %v2810
          %v2812 = vrot.slane %v2808, %v2811
          %v2813 = vmul.f32 %v2812, %v2801
          %v2814 = vmul.f32 %v2812, %v2803
          %v2815 = vmul.f32 %v2812, %v2805
          %v2816 = vmul.f32 %v2812, %v2807
          %v2817 = vadd.f32 %v2757, %v2813
          %v2818 = vadd.f32 %v2758, %v2814
          %v2819 = vadd.f32 %v2759, %v2815
          %v2820 = vadd.f32 %v2760, %v2816
          %v2821 = vld [vmem:[#allocation12 + $0x23] sm:$0x1]
          %v2822 = vlaneseq
          %v2823 = vshrl.u32 %v2822, 7
          %v2824 = vsub.s32 0, %v2823
          %v2825 = vrot.slane %v2821, %v2824
          %v2826 = vmul.f32 %v2825, %v2801
          %v2827 = vmul.f32 %v2825, %v2803
          %v2828 = vmul.f32 %v2825, %v2805
          %v2829 = vmul.f32 %v2825, %v2807
          %v2830 = vadd.f32 %v2770, %v2826
          %v2831 = vadd.f32 %v2771, %v2827
          %v2832 = vadd.f32 %v2772, %v2828
          %v2833 = vadd.f32 %v2773, %v2829
          %v2834 = vld [vmem:[#allocation12 + $0x43] sm:$0x1]
          %v2835 = vlaneseq
          %v2836 = vshrl.u32 %v2835, 7
          %v2837 = vsub.s32 0, %v2836
          %v2838 = vrot.slane %v2834, %v2837
          %v2839 = vmul.f32 %v2838, %v2801
          %v2840 = vmul.f32 %v2838, %v2803
          %v2841 = vmul.f32 %v2838, %v2805
          %v2842 = vmul.f32 %v2838, %v2807
          %v2843 = vadd.f32 %v2783, %v2839
          %v2844 = vadd.f32 %v2784, %v2840
          %v2845 = vadd.f32 %v2785, %v2841
          %v2846 = vadd.f32 %v2786, %v2842
          %v2847 = vld [vmem:[#allocation12 + $0x63] sm:$0x1]
          %v2848 = vlaneseq
          %v2849 = vshrl.u32 %v2848, 7
          %v2850 = vsub.s32 0, %v2849
          %v2851 = vrot.slane %v2847, %v2850
          %v2852 = vmul.f32 %v2851, %v2801
          %v2853 = vmul.f32 %v2851, %v2803
          %v2854 = vmul.f32 %v2851, %v2805
          %v2855 = vmul.f32 %v2851, %v2807
          %v2856 = vadd.f32 %v2796, %v2852
          %v2857 = vadd.f32 %v2797, %v2853
          %v2858 = vadd.f32 %v2798, %v2854
          %v2859 = vadd.f32 %v2799, %v2855
          %2860 = vrot.lane.b32.xlu0 %v2801, 127
          %v2861 = vpop.permute.xlu0 %2860
          %2862 = vrot.lane.b32.xlu0 %v2803, 127
          %v2863 = vpop.permute.xlu0 %2862
          %2864 = vrot.lane.b32.xlu0 %v2805, 127
          %v2865 = vpop.permute.xlu0 %2864
          %2866 = vrot.lane.b32.xlu0 %v2807, 127
          %v2867 = vpop.permute.xlu0 %2866
          %v2868 = vld [vmem:[#allocation12 + $0x4] sm:$0x1]
          %v2869 = vlaneseq
          %v2870 = vshrl.u32 %v2869, 7
          %v2871 = vsub.s32 0, %v2870
          %v2872 = vrot.slane %v2868, %v2871
          %v2873 = vmul.f32 %v2872, %v2861
          %v2874 = vmul.f32 %v2872, %v2863
          %v2875 = vmul.f32 %v2872, %v2865
          %v2876 = vmul.f32 %v2872, %v2867
          %v2877 = vadd.f32 %v2817, %v2873
          %v2878 = vadd.f32 %v2818, %v2874
          %v2879 = vadd.f32 %v2819, %v2875
          %v2880 = vadd.f32 %v2820, %v2876
          %v2881 = vld [vmem:[#allocation12 + $0x24] sm:$0x1]
          %v2882 = vlaneseq
          %v2883 = vshrl.u32 %v2882, 7
          %v2884 = vsub.s32 0, %v2883
          %v2885 = vrot.slane %v2881, %v2884
          %v2886 = vmul.f32 %v2885, %v2861
          %v2887 = vmul.f32 %v2885, %v2863
          %v2888 = vmul.f32 %v2885, %v2865
          %v2889 = vmul.f32 %v2885, %v2867
          %v2890 = vadd.f32 %v2830, %v2886
          %v2891 = vadd.f32 %v2831, %v2887
          %v2892 = vadd.f32 %v2832, %v2888
          %v2893 = vadd.f32 %v2833, %v2889
          %v2894 = vld [vmem:[#allocation12 + $0x44] sm:$0x1]
          %v2895 = vlaneseq
          %v2896 = vshrl.u32 %v2895, 7
          %v2897 = vsub.s32 0, %v2896
          %v2898 = vrot.slane %v2894, %v2897
          %v2899 = vmul.f32 %v2898, %v2861
          %v2900 = vmul.f32 %v2898, %v2863
          %v2901 = vmul.f32 %v2898, %v2865
          %v2902 = vmul.f32 %v2898, %v2867
          %v2903 = vadd.f32 %v2843, %v2899
          %v2904 = vadd.f32 %v2844, %v2900
          %v2905 = vadd.f32 %v2845, %v2901
          %v2906 = vadd.f32 %v2846, %v2902
          %v2907 = vld [vmem:[#allocation12 + $0x64] sm:$0x1]
          %v2908 = vlaneseq
          %v2909 = vshrl.u32 %v2908, 7
          %v2910 = vsub.s32 0, %v2909
          %v2911 = vrot.slane %v2907, %v2910
          %v2912 = vmul.f32 %v2911, %v2861
          %v2913 = vmul.f32 %v2911, %v2863
          %v2914 = vmul.f32 %v2911, %v2865
          %v2915 = vmul.f32 %v2911, %v2867
          %v2916 = vadd.f32 %v2856, %v2912
          %v2917 = vadd.f32 %v2857, %v2913
          %v2918 = vadd.f32 %v2858, %v2914
          %v2919 = vadd.f32 %v2859, %v2915
          %v2920 = vrot.slane %v2626, 1
          %v2921 = vrot.slane %v2631, 1
          %v2922 = vrot.slane %v2636, 1
          %v2923 = vrot.slane %v2641, 1
          %v2924 = vsel %vm710, %v2922, %v2923
          %v2925 = vsel %vm710, %v2921, %v2922
          %v2926 = vsel %vm710, %v2920, %v2921
          %v2927 = vsel %vm710, %v2923, %v2920
          %v2928 = vld [vmem:[#allocation12 + $0x5] sm:$0x1]
          %v2929 = vlaneseq
          %v2930 = vshrl.u32 %v2929, 7
          %v2931 = vsub.s32 0, %v2930
          %v2932 = vrot.slane %v2928, %v2931
          %v2933 = vmul.f32 %v2932, %v2926
          %v2934 = vmul.f32 %v2932, %v2925
          %v2935 = vmul.f32 %v2932, %v2924
          %v2936 = vmul.f32 %v2932, %v2927
          %v2937 = vadd.f32 %v2877, %v2933
          %v2938 = vadd.f32 %v2878, %v2934
          %v2939 = vadd.f32 %v2879, %v2935
          %v2940 = vadd.f32 %v2880, %v2936
          %v2941 = vld [vmem:[#allocation12 + $0x25] sm:$0x1]
          %v2942 = vlaneseq
          %v2943 = vshrl.u32 %v2942, 7
          %v2944 = vsub.s32 0, %v2943
          %v2945 = vrot.slane %v2941, %v2944
          %v2946 = vmul.f32 %v2945, %v2926
          %v2947 = vmul.f32 %v2945, %v2925
          %v2948 = vmul.f32 %v2945, %v2924
          %v2949 = vmul.f32 %v2945, %v2927
          %v2950 = vadd.f32 %v2890, %v2946
          %v2951 = vadd.f32 %v2891, %v2947
          %v2952 = vadd.f32 %v2892, %v2948
          %v2953 = vadd.f32 %v2893, %v2949
          %v2954 = vld [vmem:[#allocation12 + $0x45] sm:$0x1]
          %v2955 = vlaneseq
          %v2956 = vshrl.u32 %v2955, 7
          %v2957 = vsub.s32 0, %v2956
          %v2958 = vrot.slane %v2954, %v2957
          %v2959 = vmul.f32 %v2958, %v2926
          %v2960 = vmul.f32 %v2958, %v2925
          %v2961 = vmul.f32 %v2958, %v2924
          %v2962 = vmul.f32 %v2958, %v2927
          %v2963 = vadd.f32 %v2903, %v2959
          %v2964 = vadd.f32 %v2904, %v2960
          %v2965 = vadd.f32 %v2905, %v2961
          %v2966 = vadd.f32 %v2906, %v2962
          %v2967 = vld [vmem:[#allocation12 + $0x65] sm:$0x1]
          %v2968 = vlaneseq
          %v2969 = vshrl.u32 %v2968, 7
          %v2970 = vsub.s32 0, %v2969
          %v2971 = vrot.slane %v2967, %v2970
          %v2972 = vmul.f32 %v2971, %v2926
          %v2973 = vmul.f32 %v2971, %v2925
          %v2974 = vmul.f32 %v2971, %v2924
          %v2975 = vmul.f32 %v2971, %v2927
          %v2976 = vadd.f32 %v2916, %v2972
          %v2977 = vadd.f32 %v2917, %v2973
          %v2978 = vadd.f32 %v2918, %v2974
          %v2979 = vadd.f32 %v2919, %v2975
          %2980 = vrot.lane.b32.xlu0 %v2926, 127
          %v2981 = vpop.permute.xlu0 %2980
          %2982 = vrot.lane.b32.xlu0 %v2925, 127
          %v2983 = vpop.permute.xlu0 %2982
          %2984 = vrot.lane.b32.xlu0 %v2924, 127
          %v2985 = vpop.permute.xlu0 %2984
          %2986 = vrot.lane.b32.xlu0 %v2927, 127
          %v2987 = vpop.permute.xlu0 %2986
          %v2988 = vld [vmem:[#allocation12 + $0x6] sm:$0x1]
          %v2989 = vlaneseq
          %v2990 = vshrl.u32 %v2989, 7
          %v2991 = vsub.s32 0, %v2990
          %v2992 = vrot.slane %v2988, %v2991
          %v2993 = vmul.f32 %v2992, %v2981
          %v2994 = vmul.f32 %v2992, %v2983
          %v2995 = vmul.f32 %v2992, %v2985
          %v2996 = vmul.f32 %v2992, %v2987
          %v2997 = vadd.f32 %v2937, %v2993
          %v2998 = vadd.f32 %v2938, %v2994
          %v2999 = vadd.f32 %v2939, %v2995
          %v3000 = vadd.f32 %v2940, %v2996
          %v3001 = vld [vmem:[#allocation12 + $0x26] sm:$0x1]
          %v3002 = vlaneseq
          %v3003 = vshrl.u32 %v3002, 7
          %v3004 = vsub.s32 0, %v3003
          %v3005 = vrot.slane %v3001, %v3004
          %v3006 = vmul.f32 %v3005, %v2981
          %v3007 = vmul.f32 %v3005, %v2983
          %v3008 = vmul.f32 %v3005, %v2985
          %v3009 = vmul.f32 %v3005, %v2987
          %v3010 = vadd.f32 %v2950, %v3006
          %v3011 = vadd.f32 %v2951, %v3007
          %v3012 = vadd.f32 %v2952, %v3008
          %v3013 = vadd.f32 %v2953, %v3009
          %v3014 = vld [vmem:[#allocation12 + $0x46] sm:$0x1]
          %v3015 = vlaneseq
          %v3016 = vshrl.u32 %v3015, 7
          %v3017 = vsub.s32 0, %v3016
          %v3018 = vrot.slane %v3014, %v3017
          %v3019 = vmul.f32 %v3018, %v2981
          %v3020 = vmul.f32 %v3018, %v2983
          %v3021 = vmul.f32 %v3018, %v2985
          %v3022 = vmul.f32 %v3018, %v2987
          %v3023 = vadd.f32 %v2963, %v3019
          %v3024 = vadd.f32 %v2964, %v3020
          %v3025 = vadd.f32 %v2965, %v3021
          %v3026 = vadd.f32 %v2966, %v3022
          %v3027 = vld [vmem:[#allocation12 + $0x66] sm:$0x1]
          %v3028 = vlaneseq
          %v3029 = vshrl.u32 %v3028, 7
          %v3030 = vsub.s32 0, %v3029
          %v3031 = vrot.slane %v3027, %v3030
          %v3032 = vmul.f32 %v3031, %v2981
          %v3033 = vmul.f32 %v3031, %v2983
          %v3034 = vmul.f32 %v3031, %v2985
          %v3035 = vmul.f32 %v3031, %v2987
          %v3036 = vadd.f32 %v2976, %v3032
          %v3037 = vadd.f32 %v2977, %v3033
          %v3038 = vadd.f32 %v2978, %v3034
          %v3039 = vadd.f32 %v2979, %v3035
          %3040 = vrot.lane.b32.xlu0 %v2981, 127
          %v3041 = vpop.permute.xlu0 %3040
          %3042 = vrot.lane.b32.xlu0 %v2983, 127
          %v3043 = vpop.permute.xlu0 %3042
          %3044 = vrot.lane.b32.xlu0 %v2985, 127
          %v3045 = vpop.permute.xlu0 %3044
          %3046 = vrot.lane.b32.xlu0 %v2987, 127
          %v3047 = vpop.permute.xlu0 %3046
          %v3048 = vld [vmem:[#allocation12 + $0x7] sm:$0x1]
          %v3049 = vlaneseq
          %v3050 = vshrl.u32 %v3049, 7
          %v3051 = vsub.s32 0, %v3050
          %v3052 = vrot.slane %v3048, %v3051
          %v3053 = vmul.f32 %v3052, %v3041
          %v3054 = vmul.f32 %v3052, %v3043
          %v3055 = vmul.f32 %v3052, %v3045
          %v3056 = vmul.f32 %v3052, %v3047
          %v3057 = vadd.f32 %v2997, %v3053
          %v3058 = vadd.f32 %v2998, %v3054
          %v3059 = vadd.f32 %v2999, %v3055
          %v3060 = vadd.f32 %v3000, %v3056
          %v3061 = vld [vmem:[#allocation12 + $0x27] sm:$0x1]
          %v3062 = vlaneseq
          %v3063 = vshrl.u32 %v3062, 7
          %v3064 = vsub.s32 0, %v3063
          %v3065 = vrot.slane %v3061, %v3064
          %v3066 = vmul.f32 %v3065, %v3041
          %v3067 = vmul.f32 %v3065, %v3043
          %v3068 = vmul.f32 %v3065, %v3045
          %v3069 = vmul.f32 %v3065, %v3047
          %v3070 = vadd.f32 %v3010, %v3066
          %v3071 = vadd.f32 %v3011, %v3067
          %v3072 = vadd.f32 %v3012, %v3068
          %v3073 = vadd.f32 %v3013, %v3069
          %v3074 = vld [vmem:[#allocation12 + $0x47] sm:$0x1]
          %v3075 = vlaneseq
          %v3076 = vshrl.u32 %v3075, 7
          %v3077 = vsub.s32 0, %v3076
          %v3078 = vrot.slane %v3074, %v3077
          %v3079 = vmul.f32 %v3078, %v3041
          %v3080 = vmul.f32 %v3078, %v3043
          %v3081 = vmul.f32 %v3078, %v3045
          %v3082 = vmul.f32 %v3078, %v3047
          %v3083 = vadd.f32 %v3023, %v3079
          %v3084 = vadd.f32 %v3024, %v3080
          %v3085 = vadd.f32 %v3025, %v3081
          %v3086 = vadd.f32 %v3026, %v3082
          %v3087 = vld [vmem:[#allocation12 + $0x67] sm:$0x1]
          %v3088 = vlaneseq
          %v3089 = vshrl.u32 %v3088, 7
          %v3090 = vsub.s32 0, %v3089
          %v3091 = vrot.slane %v3087, %v3090
          %v3092 = vmul.f32 %v3091, %v3041
          %v3093 = vmul.f32 %v3091, %v3043
          %v3094 = vmul.f32 %v3091, %v3045
          %v3095 = vmul.f32 %v3091, %v3047
          %v3096 = vadd.f32 %v3036, %v3092
          %v3097 = vadd.f32 %v3037, %v3093
          %v3098 = vadd.f32 %v3038, %v3094
          %v3099 = vadd.f32 %v3039, %v3095
          %3100 = vrot.lane.b32.xlu0 %v3041, 127
          %v3101 = vpop.permute.xlu0 %3100
          %3102 = vrot.lane.b32.xlu0 %v3043, 127
          %v3103 = vpop.permute.xlu0 %3102
          %3104 = vrot.lane.b32.xlu0 %v3045, 127
          %v3105 = vpop.permute.xlu0 %3104
          %3106 = vrot.lane.b32.xlu0 %v3047, 127
          %v3107 = vpop.permute.xlu0 %3106
          %v3108 = vld [vmem:[#allocation12 + $0x8] sm:$0x1]
          %v3109 = vlaneseq
          %v3110 = vshrl.u32 %v3109, 7
          %v3111 = vsub.s32 0, %v3110
          %v3112 = vrot.slane %v3108, %v3111
          %v3113 = vmul.f32 %v3112, %v3101
          %v3114 = vmul.f32 %v3112, %v3103
          %v3115 = vmul.f32 %v3112, %v3105
          %v3116 = vmul.f32 %v3112, %v3107
          %v3117 = vadd.f32 %v3057, %v3113
          %v3118 = vadd.f32 %v3058, %v3114
          %v3119 = vadd.f32 %v3059, %v3115
          %v3120 = vadd.f32 %v3060, %v3116
          %v3121 = vld [vmem:[#allocation12 + $0x28] sm:$0x1]
          %v3122 = vlaneseq
          %v3123 = vshrl.u32 %v3122, 7
          %v3124 = vsub.s32 0, %v3123
          %v3125 = vrot.slane %v3121, %v3124
          %v3126 = vmul.f32 %v3125, %v3101
          %v3127 = vmul.f32 %v3125, %v3103
          %v3128 = vmul.f32 %v3125, %v3105
          %v3129 = vmul.f32 %v3125, %v3107
          %v3130 = vadd.f32 %v3070, %v3126
          %v3131 = vadd.f32 %v3071, %v3127
          %v3132 = vadd.f32 %v3072, %v3128
          %v3133 = vadd.f32 %v3073, %v3129
          %v3134 = vld [vmem:[#allocation12 + $0x48] sm:$0x1]
          %v3135 = vlaneseq
          %v3136 = vshrl.u32 %v3135, 7
          %v3137 = vsub.s32 0, %v3136
          %v3138 = vrot.slane %v3134, %v3137
          %v3139 = vmul.f32 %v3138, %v3101
          %v3140 = vmul.f32 %v3138, %v3103
          %v3141 = vmul.f32 %v3138, %v3105
          %v3142 = vmul.f32 %v3138, %v3107
          %v3143 = vadd.f32 %v3083, %v3139
          %v3144 = vadd.f32 %v3084, %v3140
          %v3145 = vadd.f32 %v3085, %v3141
          %v3146 = vadd.f32 %v3086, %v3142
          %v3147 = vld [vmem:[#allocation12 + $0x68] sm:$0x1]
          %v3148 = vlaneseq
          %v3149 = vshrl.u32 %v3148, 7
          %v3150 = vsub.s32 0, %v3149
          %v3151 = vrot.slane %v3147, %v3150
          %v3152 = vmul.f32 %v3151, %v3101
          %v3153 = vmul.f32 %v3151, %v3103
          %v3154 = vmul.f32 %v3151, %v3105
          %v3155 = vmul.f32 %v3151, %v3107
          %v3156 = vadd.f32 %v3096, %v3152
          %v3157 = vadd.f32 %v3097, %v3153
          %v3158 = vadd.f32 %v3098, %v3154
          %v3159 = vadd.f32 %v3099, %v3155
          %3160 = vrot.lane.b32.xlu0 %v3101, 127
          %v3161 = vpop.permute.xlu0 %3160
          %3162 = vrot.lane.b32.xlu0 %v3103, 127
          %v3163 = vpop.permute.xlu0 %3162
          %3164 = vrot.lane.b32.xlu0 %v3105, 127
          %v3165 = vpop.permute.xlu0 %3164
          %3166 = vrot.lane.b32.xlu0 %v3107, 127
          %v3167 = vpop.permute.xlu0 %3166
          %v3168 = vld [vmem:[#allocation12 + $0x9] sm:$0x1]
          %v3169 = vlaneseq
          %v3170 = vshrl.u32 %v3169, 7
          %v3171 = vsub.s32 0, %v3170
          %v3172 = vrot.slane %v3168, %v3171
          %v3173 = vmul.f32 %v3172, %v3161
          %v3174 = vmul.f32 %v3172, %v3163
          %v3175 = vmul.f32 %v3172, %v3165
          %v3176 = vmul.f32 %v3172, %v3167
          %v3177 = vadd.f32 %v3117, %v3173
          %v3178 = vadd.f32 %v3118, %v3174
          %v3179 = vadd.f32 %v3119, %v3175
          %v3180 = vadd.f32 %v3120, %v3176
          %v3181 = vld [vmem:[#allocation12 + $0x29] sm:$0x1]
          %v3182 = vlaneseq
          %v3183 = vshrl.u32 %v3182, 7
          %v3184 = vsub.s32 0, %v3183
          %v3185 = vrot.slane %v3181, %v3184
          %v3186 = vmul.f32 %v3185, %v3161
          %v3187 = vmul.f32 %v3185, %v3163
          %v3188 = vmul.f32 %v3185, %v3165
          %v3189 = vmul.f32 %v3185, %v3167
          %v3190 = vadd.f32 %v3130, %v3186
          %v3191 = vadd.f32 %v3131, %v3187
          %v3192 = vadd.f32 %v3132, %v3188
          %v3193 = vadd.f32 %v3133, %v3189
          %v3194 = vld [vmem:[#allocation12 + $0x49] sm:$0x1]
          %v3195 = vlaneseq
          %v3196 = vshrl.u32 %v3195, 7
          %v3197 = vsub.s32 0, %v3196
          %v3198 = vrot.slane %v3194, %v3197
          %v3199 = vmul.f32 %v3198, %v3161
          %v3200 = vmul.f32 %v3198, %v3163
          %v3201 = vmul.f32 %v3198, %v3165
          %v3202 = vmul.f32 %v3198, %v3167
          %v3203 = vadd.f32 %v3143, %v3199
          %v3204 = vadd.f32 %v3144, %v3200
          %v3205 = vadd.f32 %v3145, %v3201
          %v3206 = vadd.f32 %v3146, %v3202
          %v3207 = vld [vmem:[#allocation12 + $0x69] sm:$0x1]
          %v3208 = vlaneseq
          %v3209 = vshrl.u32 %v3208, 7
          %v3210 = vsub.s32 0, %v3209
          %v3211 = vrot.slane %v3207, %v3210
          %v3212 = vmul.f32 %v3211, %v3161
          %v3213 = vmul.f32 %v3211, %v3163
          %v3214 = vmul.f32 %v3211, %v3165
          %v3215 = vmul.f32 %v3211, %v3167
          %v3216 = vadd.f32 %v3156, %v3212
          %v3217 = vadd.f32 %v3157, %v3213
          %v3218 = vadd.f32 %v3158, %v3214
          %v3219 = vadd.f32 %v3159, %v3215
          %v3220 = vrot.slane %v2926, 1
          %v3221 = vrot.slane %v2925, 1
          %v3222 = vrot.slane %v2924, 1
          %v3223 = vrot.slane %v2927, 1
          %v3224 = vsel %vm710, %v3222, %v3223
          %v3225 = vsel %vm710, %v3221, %v3222
          %v3226 = vsel %vm710, %v3220, %v3221
          %v3227 = vsel %vm710, %v3223, %v3220
          %v3228 = vld [vmem:[#allocation12 + $0xa] sm:$0x1]
          %v3229 = vlaneseq
          %v3230 = vshrl.u32 %v3229, 7
          %v3231 = vsub.s32 0, %v3230
          %v3232 = vrot.slane %v3228, %v3231
          %v3233 = vmul.f32 %v3232, %v3226
          %v3234 = vmul.f32 %v3232, %v3225
          %v3235 = vmul.f32 %v3232, %v3224
          %v3236 = vmul.f32 %v3232, %v3227
          %v3237 = vadd.f32 %v3177, %v3233
          %v3238 = vadd.f32 %v3178, %v3234
          %v3239 = vadd.f32 %v3179, %v3235
          %v3240 = vadd.f32 %v3180, %v3236
          %v3241 = vld [vmem:[#allocation12 + $0x2a] sm:$0x1]
          %v3242 = vlaneseq
          %v3243 = vshrl.u32 %v3242, 7
          %v3244 = vsub.s32 0, %v3243
          %v3245 = vrot.slane %v3241, %v3244
          %v3246 = vmul.f32 %v3245, %v3226
          %v3247 = vmul.f32 %v3245, %v3225
          %v3248 = vmul.f32 %v3245, %v3224
          %v3249 = vmul.f32 %v3245, %v3227
          %v3250 = vadd.f32 %v3190, %v3246
          %v3251 = vadd.f32 %v3191, %v3247
          %v3252 = vadd.f32 %v3192, %v3248
          %v3253 = vadd.f32 %v3193, %v3249
          %v3254 = vld [vmem:[#allocation12 + $0x4a] sm:$0x1]
          %v3255 = vlaneseq
          %v3256 = vshrl.u32 %v3255, 7
          %v3257 = vsub.s32 0, %v3256
          %v3258 = vrot.slane %v3254, %v3257
          %v3259 = vmul.f32 %v3258, %v3226
          %v3260 = vmul.f32 %v3258, %v3225
          %v3261 = vmul.f32 %v3258, %v3224
          %v3262 = vmul.f32 %v3258, %v3227
          %v3263 = vadd.f32 %v3203, %v3259
          %v3264 = vadd.f32 %v3204, %v3260
          %v3265 = vadd.f32 %v3205, %v3261
          %v3266 = vadd.f32 %v3206, %v3262
          %v3267 = vld [vmem:[#allocation12 + $0x6a] sm:$0x1]
          %v3268 = vlaneseq
          %v3269 = vshrl.u32 %v3268, 7
          %v3270 = vsub.s32 0, %v3269
          %v3271 = vrot.slane %v3267, %v3270
          %v3272 = vmul.f32 %v3271, %v3226
          %v3273 = vmul.f32 %v3271, %v3225
          %v3274 = vmul.f32 %v3271, %v3224
          %v3275 = vmul.f32 %v3271, %v3227
          %v3276 = vadd.f32 %v3216, %v3272
          %v3277 = vadd.f32 %v3217, %v3273
          %v3278 = vadd.f32 %v3218, %v3274
          %v3279 = vadd.f32 %v3219, %v3275
          %3280 = vrot.lane.b32.xlu0 %v3226, 127
          %v3281 = vpop.permute.xlu0 %3280
          %3282 = vrot.lane.b32.xlu0 %v3225, 127
          %v3283 = vpop.permute.xlu0 %3282
          %3284 = vrot.lane.b32.xlu0 %v3224, 127
          %v3285 = vpop.permute.xlu0 %3284
          %3286 = vrot.lane.b32.xlu0 %v3227, 127
          %v3287 = vpop.permute.xlu0 %3286
          %v3288 = vld [vmem:[#allocation12 + $0xb] sm:$0x1]
          %v3289 = vlaneseq
          %v3290 = vshrl.u32 %v3289, 7
          %v3291 = vsub.s32 0, %v3290
          %v3292 = vrot.slane %v3288, %v3291
          %v3293 = vmul.f32 %v3292, %v3281
          %v3294 = vmul.f32 %v3292, %v3283
          %v3295 = vmul.f32 %v3292, %v3285
          %v3296 = vmul.f32 %v3292, %v3287
          %v3297 = vadd.f32 %v3237, %v3293
          %v3298 = vadd.f32 %v3238, %v3294
          %v3299 = vadd.f32 %v3239, %v3295
          %v3300 = vadd.f32 %v3240, %v3296
          %v3301 = vld [vmem:[#allocation12 + $0x2b] sm:$0x1]
          %v3302 = vlaneseq
          %v3303 = vshrl.u32 %v3302, 7
          %v3304 = vsub.s32 0, %v3303
          %v3305 = vrot.slane %v3301, %v3304
          %v3306 = vmul.f32 %v3305, %v3281
          %v3307 = vmul.f32 %v3305, %v3283
          %v3308 = vmul.f32 %v3305, %v3285
          %v3309 = vmul.f32 %v3305, %v3287
          %v3310 = vadd.f32 %v3250, %v3306
          %v3311 = vadd.f32 %v3251, %v3307
          %v3312 = vadd.f32 %v3252, %v3308
          %v3313 = vadd.f32 %v3253, %v3309
          %v3314 = vld [vmem:[#allocation12 + $0x4b] sm:$0x1]
          %v3315 = vlaneseq
          %v3316 = vshrl.u32 %v3315, 7
          %v3317 = vsub.s32 0, %v3316
          %v3318 = vrot.slane %v3314, %v3317
          %v3319 = vmul.f32 %v3318, %v3281
          %v3320 = vmul.f32 %v3318, %v3283
          %v3321 = vmul.f32 %v3318, %v3285
          %v3322 = vmul.f32 %v3318, %v3287
          %v3323 = vadd.f32 %v3263, %v3319
          %v3324 = vadd.f32 %v3264, %v3320
          %v3325 = vadd.f32 %v3265, %v3321
          %v3326 = vadd.f32 %v3266, %v3322
          %v3327 = vld [vmem:[#allocation12 + $0x6b] sm:$0x1]
          %v3328 = vlaneseq
          %v3329 = vshrl.u32 %v3328, 7
          %v3330 = vsub.s32 0, %v3329
          %v3331 = vrot.slane %v3327, %v3330
          %v3332 = vmul.f32 %v3331, %v3281
          %v3333 = vmul.f32 %v3331, %v3283
          %v3334 = vmul.f32 %v3331, %v3285
          %v3335 = vmul.f32 %v3331, %v3287
          %v3336 = vadd.f32 %v3276, %v3332
          %v3337 = vadd.f32 %v3277, %v3333
          %v3338 = vadd.f32 %v3278, %v3334
          %v3339 = vadd.f32 %v3279, %v3335
          %3340 = vrot.lane.b32.xlu0 %v3281, 127
          %v3341 = vpop.permute.xlu0 %3340
          %3342 = vrot.lane.b32.xlu0 %v3283, 127
          %v3343 = vpop.permute.xlu0 %3342
          %3344 = vrot.lane.b32.xlu0 %v3285, 127
          %v3345 = vpop.permute.xlu0 %3344
          %3346 = vrot.lane.b32.xlu0 %v3287, 127
          %v3347 = vpop.permute.xlu0 %3346
          %v3348 = vld [vmem:[#allocation12 + $0xc] sm:$0x1]
          %v3349 = vlaneseq
          %v3350 = vshrl.u32 %v3349, 7
          %v3351 = vsub.s32 0, %v3350
          %v3352 = vrot.slane %v3348, %v3351
          %v3353 = vmul.f32 %v3352, %v3341
          %v3354 = vmul.f32 %v3352, %v3343
          %v3355 = vmul.f32 %v3352, %v3345
          %v3356 = vmul.f32 %v3352, %v3347
          %v3357 = vadd.f32 %v3297, %v3353
          %v3358 = vadd.f32 %v3298, %v3354
          %v3359 = vadd.f32 %v3299, %v3355
          %v3360 = vadd.f32 %v3300, %v3356
          %v3361 = vld [vmem:[#allocation12 + $0x2c] sm:$0x1]
          %v3362 = vlaneseq
          %v3363 = vshrl.u32 %v3362, 7
          %v3364 = vsub.s32 0, %v3363
          %v3365 = vrot.slane %v3361, %v3364
          %v3366 = vmul.f32 %v3365, %v3341
          %v3367 = vmul.f32 %v3365, %v3343
          %v3368 = vmul.f32 %v3365, %v3345
          %v3369 = vmul.f32 %v3365, %v3347
          %v3370 = vadd.f32 %v3310, %v3366
          %v3371 = vadd.f32 %v3311, %v3367
          %v3372 = vadd.f32 %v3312, %v3368
          %v3373 = vadd.f32 %v3313, %v3369
          %v3374 = vld [vmem:[#allocation12 + $0x4c] sm:$0x1]
          %v3375 = vlaneseq
          %v3376 = vshrl.u32 %v3375, 7
          %v3377 = vsub.s32 0, %v3376
          %v3378 = vrot.slane %v3374, %v3377
          %v3379 = vmul.f32 %v3378, %v3341
          %v3380 = vmul.f32 %v3378, %v3343
          %v3381 = vmul.f32 %v3378, %v3345
          %v3382 = vmul.f32 %v3378, %v3347
          %v3383 = vadd.f32 %v3323, %v3379
          %v3384 = vadd.f32 %v3324, %v3380
          %v3385 = vadd.f32 %v3325, %v3381
          %v3386 = vadd.f32 %v3326, %v3382
          %v3387 = vld [vmem:[#allocation12 + $0x6c] sm:$0x1]
          %v3388 = vlaneseq
          %v3389 = vshrl.u32 %v3388, 7
          %v3390 = vsub.s32 0, %v3389
          %v3391 = vrot.slane %v3387, %v3390
          %v3392 = vmul.f32 %v3391, %v3341
          %v3393 = vmul.f32 %v3391, %v3343
          %v3394 = vmul.f32 %v3391, %v3345
          %v3395 = vmul.f32 %v3391, %v3347
          %v3396 = vadd.f32 %v3336, %v3392
          %v3397 = vadd.f32 %v3337, %v3393
          %v3398 = vadd.f32 %v3338, %v3394
          %v3399 = vadd.f32 %v3339, %v3395
          %3400 = vrot.lane.b32.xlu0 %v3341, 127
          %v3401 = vpop.permute.xlu0 %3400
          %3402 = vrot.lane.b32.xlu0 %v3343, 127
          %v3403 = vpop.permute.xlu0 %3402
          %3404 = vrot.lane.b32.xlu0 %v3345, 127
          %v3405 = vpop.permute.xlu0 %3404
          %3406 = vrot.lane.b32.xlu0 %v3347, 127
          %v3407 = vpop.permute.xlu0 %3406
          %v3408 = vld [vmem:[#allocation12 + $0xd] sm:$0x1]
          %v3409 = vlaneseq
          %v3410 = vshrl.u32 %v3409, 7
          %v3411 = vsub.s32 0, %v3410
          %v3412 = vrot.slane %v3408, %v3411
          %v3413 = vmul.f32 %v3412, %v3401
          %v3414 = vmul.f32 %v3412, %v3403
          %v3415 = vmul.f32 %v3412, %v3405
          %v3416 = vmul.f32 %v3412, %v3407
          %v3417 = vadd.f32 %v3357, %v3413
          %v3418 = vadd.f32 %v3358, %v3414
          %v3419 = vadd.f32 %v3359, %v3415
          %v3420 = vadd.f32 %v3360, %v3416
          %v3421 = vld [vmem:[#allocation12 + $0x2d] sm:$0x1]
          %v3422 = vlaneseq
          %v3423 = vshrl.u32 %v3422, 7
          %v3424 = vsub.s32 0, %v3423
          %v3425 = vrot.slane %v3421, %v3424
          %v3426 = vmul.f32 %v3425, %v3401
          %v3427 = vmul.f32 %v3425, %v3403
          %v3428 = vmul.f32 %v3425, %v3405
          %v3429 = vmul.f32 %v3425, %v3407
          %v3430 = vadd.f32 %v3370, %v3426
          %v3431 = vadd.f32 %v3371, %v3427
          %v3432 = vadd.f32 %v3372, %v3428
          %v3433 = vadd.f32 %v3373, %v3429
          %v3434 = vld [vmem:[#allocation12 + $0x4d] sm:$0x1]
          %v3435 = vlaneseq
          %v3436 = vshrl.u32 %v3435, 7
          %v3437 = vsub.s32 0, %v3436
          %v3438 = vrot.slane %v3434, %v3437
          %v3439 = vmul.f32 %v3438, %v3401
          %v3440 = vmul.f32 %v3438, %v3403
          %v3441 = vmul.f32 %v3438, %v3405
          %v3442 = vmul.f32 %v3438, %v3407
          %v3443 = vadd.f32 %v3383, %v3439
          %v3444 = vadd.f32 %v3384, %v3440
          %v3445 = vadd.f32 %v3385, %v3441
          %v3446 = vadd.f32 %v3386, %v3442
          %v3447 = vld [vmem:[#allocation12 + $0x6d] sm:$0x1]
          %v3448 = vlaneseq
          %v3449 = vshrl.u32 %v3448, 7
          %v3450 = vsub.s32 0, %v3449
          %v3451 = vrot.slane %v3447, %v3450
          %v3452 = vmul.f32 %v3451, %v3401
          %v3453 = vmul.f32 %v3451, %v3403
          %v3454 = vmul.f32 %v3451, %v3405
          %v3455 = vmul.f32 %v3451, %v3407
          %v3456 = vadd.f32 %v3396, %v3452
          %v3457 = vadd.f32 %v3397, %v3453
          %v3458 = vadd.f32 %v3398, %v3454
          %v3459 = vadd.f32 %v3399, %v3455
          %3460 = vrot.lane.b32.xlu0 %v3401, 127
          %v3461 = vpop.permute.xlu0 %3460
          %3462 = vrot.lane.b32.xlu0 %v3403, 127
          %v3463 = vpop.permute.xlu0 %3462
          %3464 = vrot.lane.b32.xlu0 %v3405, 127
          %v3465 = vpop.permute.xlu0 %3464
          %3466 = vrot.lane.b32.xlu0 %v3407, 127
          %v3467 = vpop.permute.xlu0 %3466
          %v3468 = vld [vmem:[#allocation12 + $0xe] sm:$0x1]
          %v3469 = vlaneseq
          %v3470 = vshrl.u32 %v3469, 7
          %v3471 = vsub.s32 0, %v3470
          %v3472 = vrot.slane %v3468, %v3471
          %v3473 = vmul.f32 %v3472, %v3461
          %v3474 = vmul.f32 %v3472, %v3463
          %v3475 = vmul.f32 %v3472, %v3465
          %v3476 = vmul.f32 %v3472, %v3467
          %v3477 = vadd.f32 %v3417, %v3473
          %v3478 = vadd.f32 %v3418, %v3474
          %v3479 = vadd.f32 %v3419, %v3475
          %v3480 = vadd.f32 %v3420, %v3476
          %v3481 = vld [vmem:[#allocation12 + $0x2e] sm:$0x1]
          %v3482 = vlaneseq
          %v3483 = vshrl.u32 %v3482, 7
          %v3484 = vsub.s32 0, %v3483
          %v3485 = vrot.slane %v3481, %v3484
          %v3486 = vmul.f32 %v3485, %v3461
          %v3487 = vmul.f32 %v3485, %v3463
          %v3488 = vmul.f32 %v3485, %v3465
          %v3489 = vmul.f32 %v3485, %v3467
          %v3490 = vadd.f32 %v3430, %v3486
          %v3491 = vadd.f32 %v3431, %v3487
          %v3492 = vadd.f32 %v3432, %v3488
          %v3493 = vadd.f32 %v3433, %v3489
          %v3494 = vld [vmem:[#allocation12 + $0x4e] sm:$0x1]
          %v3495 = vlaneseq
          %v3496 = vshrl.u32 %v3495, 7
          %v3497 = vsub.s32 0, %v3496
          %v3498 = vrot.slane %v3494, %v3497
          %v3499 = vmul.f32 %v3498, %v3461
          %v3500 = vmul.f32 %v3498, %v3463
          %v3501 = vmul.f32 %v3498, %v3465
          %v3502 = vmul.f32 %v3498, %v3467
          %v3503 = vadd.f32 %v3443, %v3499
          %v3504 = vadd.f32 %v3444, %v3500
          %v3505 = vadd.f32 %v3445, %v3501
          %v3506 = vadd.f32 %v3446, %v3502
          %v3507 = vld [vmem:[#allocation12 + $0x6e] sm:$0x1]
          %v3508 = vlaneseq
          %v3509 = vshrl.u32 %v3508, 7
          %v3510 = vsub.s32 0, %v3509
          %v3511 = vrot.slane %v3507, %v3510
          %v3512 = vmul.f32 %v3511, %v3461
          %v3513 = vmul.f32 %v3511, %v3463
          %v3514 = vmul.f32 %v3511, %v3465
          %v3515 = vmul.f32 %v3511, %v3467
          %v3516 = vadd.f32 %v3456, %v3512
          %v3517 = vadd.f32 %v3457, %v3513
          %v3518 = vadd.f32 %v3458, %v3514
          %v3519 = vadd.f32 %v3459, %v3515
          %v3520 = vrot.slane %v3226, 1
          %v3521 = vrot.slane %v3225, 1
          %v3522 = vrot.slane %v3224, 1
          %v3523 = vrot.slane %v3227, 1
          %v3524 = vsel %vm710, %v3522, %v3523
          %v3525 = vsel %vm710, %v3521, %v3522
          %v3526 = vsel %vm710, %v3520, %v3521
          %v3527 = vsel %vm710, %v3523, %v3520
          %v3528 = vld [vmem:[#allocation12 + $0xf] sm:$0x1]
          %v3529 = vlaneseq
          %v3530 = vshrl.u32 %v3529, 7
          %v3531 = vsub.s32 0, %v3530
          %v3532 = vrot.slane %v3528, %v3531
          %v3533 = vmul.f32 %v3532, %v3526
          %v3534 = vmul.f32 %v3532, %v3525
          %v3535 = vmul.f32 %v3532, %v3524
          %v3536 = vmul.f32 %v3532, %v3527
          %v3537 = vadd.f32 %v3477, %v3533
          %v3538 = vadd.f32 %v3478, %v3534
          %v3539 = vadd.f32 %v3479, %v3535
          %v3540 = vadd.f32 %v3480, %v3536
          %v3541 = vld [vmem:[#allocation12 + $0x2f] sm:$0x1]
          %v3542 = vlaneseq
          %v3543 = vshrl.u32 %v3542, 7
          %v3544 = vsub.s32 0, %v3543
          %v3545 = vrot.slane %v3541, %v3544
          %v3546 = vmul.f32 %v3545, %v3526
          %v3547 = vmul.f32 %v3545, %v3525
          %v3548 = vmul.f32 %v3545, %v3524
          %v3549 = vmul.f32 %v3545, %v3527
          %v3550 = vadd.f32 %v3490, %v3546
          %v3551 = vadd.f32 %v3491, %v3547
          %v3552 = vadd.f32 %v3492, %v3548
          %v3553 = vadd.f32 %v3493, %v3549
          %v3554 = vld [vmem:[#allocation12 + $0x4f] sm:$0x1]
          %v3555 = vlaneseq
          %v3556 = vshrl.u32 %v3555, 7
          %v3557 = vsub.s32 0, %v3556
          %v3558 = vrot.slane %v3554, %v3557
          %v3559 = vmul.f32 %v3558, %v3526
          %v3560 = vmul.f32 %v3558, %v3525
          %v3561 = vmul.f32 %v3558, %v3524
          %v3562 = vmul.f32 %v3558, %v3527
          %v3563 = vadd.f32 %v3503, %v3559
          %v3564 = vadd.f32 %v3504, %v3560
          %v3565 = vadd.f32 %v3505, %v3561
          %v3566 = vadd.f32 %v3506, %v3562
          %v3567 = vld [vmem:[#allocation12 + $0x6f] sm:$0x1]
          %v3568 = vlaneseq
          %v3569 = vshrl.u32 %v3568, 7
          %v3570 = vsub.s32 0, %v3569
          %v3571 = vrot.slane %v3567, %v3570
          %v3572 = vmul.f32 %v3571, %v3526
          %v3573 = vmul.f32 %v3571, %v3525
          %v3574 = vmul.f32 %v3571, %v3524
          %v3575 = vmul.f32 %v3571, %v3527
          %v3576 = vadd.f32 %v3516, %v3572
          %v3577 = vadd.f32 %v3517, %v3573
          %v3578 = vadd.f32 %v3518, %v3574
          %v3579 = vadd.f32 %v3519, %v3575
          %3580 = vrot.lane.b32.xlu0 %v3526, 127
          %v3581 = vpop.permute.xlu0 %3580
          %3582 = vrot.lane.b32.xlu0 %v3525, 127
          %v3583 = vpop.permute.xlu0 %3582
          %3584 = vrot.lane.b32.xlu0 %v3524, 127
          %v3585 = vpop.permute.xlu0 %3584
          %3586 = vrot.lane.b32.xlu0 %v3527, 127
          %v3587 = vpop.permute.xlu0 %3586
          %v3588 = vld [vmem:[#allocation12 + $0x10] sm:$0x1]
          %v3589 = vlaneseq
          %v3590 = vshrl.u32 %v3589, 7
          %v3591 = vsub.s32 0, %v3590
          %v3592 = vrot.slane %v3588, %v3591
          %v3593 = vmul.f32 %v3592, %v3581
          %v3594 = vmul.f32 %v3592, %v3583
          %v3595 = vmul.f32 %v3592, %v3585
          %v3596 = vmul.f32 %v3592, %v3587
          %v3597 = vadd.f32 %v3537, %v3593
          %v3598 = vadd.f32 %v3538, %v3594
          %v3599 = vadd.f32 %v3539, %v3595
          %v3600 = vadd.f32 %v3540, %v3596
          %v3601 = vld [vmem:[#allocation12 + $0x30] sm:$0x1]
          %v3602 = vlaneseq
          %v3603 = vshrl.u32 %v3602, 7
          %v3604 = vsub.s32 0, %v3603
          %v3605 = vrot.slane %v3601, %v3604
          %v3606 = vmul.f32 %v3605, %v3581
          %v3607 = vmul.f32 %v3605, %v3583
          %v3608 = vmul.f32 %v3605, %v3585
          %v3609 = vmul.f32 %v3605, %v3587
          %v3610 = vadd.f32 %v3550, %v3606
          %v3611 = vadd.f32 %v3551, %v3607
          %v3612 = vadd.f32 %v3552, %v3608
          %v3613 = vadd.f32 %v3553, %v3609
          %v3614 = vld [vmem:[#allocation12 + $0x50] sm:$0x1]
          %v3615 = vlaneseq
          %v3616 = vshrl.u32 %v3615, 7
          %v3617 = vsub.s32 0, %v3616
          %v3618 = vrot.slane %v3614, %v3617
          %v3619 = vmul.f32 %v3618, %v3581
          %v3620 = vmul.f32 %v3618, %v3583
          %v3621 = vmul.f32 %v3618, %v3585
          %v3622 = vmul.f32 %v3618, %v3587
          %v3623 = vadd.f32 %v3563, %v3619
          %v3624 = vadd.f32 %v3564, %v3620
          %v3625 = vadd.f32 %v3565, %v3621
          %v3626 = vadd.f32 %v3566, %v3622
          %v3627 = vld [vmem:[#allocation12 + $0x70] sm:$0x1]
          %v3628 = vlaneseq
          %v3629 = vshrl.u32 %v3628, 7
          %v3630 = vsub.s32 0, %v3629
          %v3631 = vrot.slane %v3627, %v3630
          %v3632 = vmul.f32 %v3631, %v3581
          %v3633 = vmul.f32 %v3631, %v3583
          %v3634 = vmul.f32 %v3631, %v3585
          %v3635 = vmul.f32 %v3631, %v3587
          %v3636 = vadd.f32 %v3576, %v3632
          %v3637 = vadd.f32 %v3577, %v3633
          %v3638 = vadd.f32 %v3578, %v3634
          %v3639 = vadd.f32 %v3579, %v3635
          %3640 = vrot.lane.b32.xlu0 %v3581, 127
          %v3641 = vpop.permute.xlu0 %3640
          %3642 = vrot.lane.b32.xlu0 %v3583, 127
          %v3643 = vpop.permute.xlu0 %3642
          %3644 = vrot.lane.b32.xlu0 %v3585, 127
          %v3645 = vpop.permute.xlu0 %3644
          %3646 = vrot.lane.b32.xlu0 %v3587, 127
          %v3647 = vpop.permute.xlu0 %3646
          %v3648 = vld [vmem:[#allocation12 + $0x11] sm:$0x1]
          %v3649 = vlaneseq
          %v3650 = vshrl.u32 %v3649, 7
          %v3651 = vsub.s32 0, %v3650
          %v3652 = vrot.slane %v3648, %v3651
          %v3653 = vmul.f32 %v3652, %v3641
          %v3654 = vmul.f32 %v3652, %v3643
          %v3655 = vmul.f32 %v3652, %v3645
          %v3656 = vmul.f32 %v3652, %v3647
          %v3657 = vadd.f32 %v3597, %v3653
          %v3658 = vadd.f32 %v3598, %v3654
          %v3659 = vadd.f32 %v3599, %v3655
          %v3660 = vadd.f32 %v3600, %v3656
          %v3661 = vld [vmem:[#allocation12 + $0x31] sm:$0x1]
          %v3662 = vlaneseq
          %v3663 = vshrl.u32 %v3662, 7
          %v3664 = vsub.s32 0, %v3663
          %v3665 = vrot.slane %v3661, %v3664
          %v3666 = vmul.f32 %v3665, %v3641
          %v3667 = vmul.f32 %v3665, %v3643
          %v3668 = vmul.f32 %v3665, %v3645
          %v3669 = vmul.f32 %v3665, %v3647
          %v3670 = vadd.f32 %v3610, %v3666
          %v3671 = vadd.f32 %v3611, %v3667
          %v3672 = vadd.f32 %v3612, %v3668
          %v3673 = vadd.f32 %v3613, %v3669
          %v3674 = vld [vmem:[#allocation12 + $0x51] sm:$0x1]
          %v3675 = vlaneseq
          %v3676 = vshrl.u32 %v3675, 7
          %v3677 = vsub.s32 0, %v3676
          %v3678 = vrot.slane %v3674, %v3677
          %v3679 = vmul.f32 %v3678, %v3641
          %v3680 = vmul.f32 %v3678, %v3643
          %v3681 = vmul.f32 %v3678, %v3645
          %v3682 = vmul.f32 %v3678, %v3647
          %v3683 = vadd.f32 %v3623, %v3679
          %v3684 = vadd.f32 %v3624, %v3680
          %v3685 = vadd.f32 %v3625, %v3681
          %v3686 = vadd.f32 %v3626, %v3682
          %v3687 = vld [vmem:[#allocation12 + $0x71] sm:$0x1]
          %v3688 = vlaneseq
          %v3689 = vshrl.u32 %v3688, 7
          %v3690 = vsub.s32 0, %v3689
          %v3691 = vrot.slane %v3687, %v3690
          %v3692 = vmul.f32 %v3691, %v3641
          %v3693 = vmul.f32 %v3691, %v3643
          %v3694 = vmul.f32 %v3691, %v3645
          %v3695 = vmul.f32 %v3691, %v3647
          %v3696 = vadd.f32 %v3636, %v3692
          %v3697 = vadd.f32 %v3637, %v3693
          %v3698 = vadd.f32 %v3638, %v3694
          %v3699 = vadd.f32 %v3639, %v3695
          %3700 = vrot.lane.b32.xlu0 %v3641, 127
          %v3701 = vpop.permute.xlu0 %3700
          %3702 = vrot.lane.b32.xlu0 %v3643, 127
          %v3703 = vpop.permute.xlu0 %3702
          %3704 = vrot.lane.b32.xlu0 %v3645, 127
          %v3705 = vpop.permute.xlu0 %3704
          %3706 = vrot.lane.b32.xlu0 %v3647, 127
          %v3707 = vpop.permute.xlu0 %3706
          %v3708 = vld [vmem:[#allocation12 + $0x12] sm:$0x1]
          %v3709 = vlaneseq
          %v3710 = vshrl.u32 %v3709, 7
          %v3711 = vsub.s32 0, %v3710
          %v3712 = vrot.slane %v3708, %v3711
          %v3713 = vmul.f32 %v3712, %v3701
          %v3714 = vmul.f32 %v3712, %v3703
          %v3715 = vmul.f32 %v3712, %v3705
          %v3716 = vmul.f32 %v3712, %v3707
          %v3717 = vadd.f32 %v3657, %v3713
          %v3718 = vadd.f32 %v3658, %v3714
          %v3719 = vadd.f32 %v3659, %v3715
          %v3720 = vadd.f32 %v3660, %v3716
          %v3721 = vld [vmem:[#allocation12 + $0x32] sm:$0x1]
          %v3722 = vlaneseq
          %v3723 = vshrl.u32 %v3722, 7
          %v3724 = vsub.s32 0, %v3723
          %v3725 = vrot.slane %v3721, %v3724
          %v3726 = vmul.f32 %v3725, %v3701
          %v3727 = vmul.f32 %v3725, %v3703
          %v3728 = vmul.f32 %v3725, %v3705
          %v3729 = vmul.f32 %v3725, %v3707
          %v3730 = vadd.f32 %v3670, %v3726
          %v3731 = vadd.f32 %v3671, %v3727
          %v3732 = vadd.f32 %v3672, %v3728
          %v3733 = vadd.f32 %v3673, %v3729
          %v3734 = vld [vmem:[#allocation12 + $0x52] sm:$0x1]
          %v3735 = vlaneseq
          %v3736 = vshrl.u32 %v3735, 7
          %v3737 = vsub.s32 0, %v3736
          %v3738 = vrot.slane %v3734, %v3737
          %v3739 = vmul.f32 %v3738, %v3701
          %v3740 = vmul.f32 %v3738, %v3703
          %v3741 = vmul.f32 %v3738, %v3705
          %v3742 = vmul.f32 %v3738, %v3707
          %v3743 = vadd.f32 %v3683, %v3739
          %v3744 = vadd.f32 %v3684, %v3740
          %v3745 = vadd.f32 %v3685, %v3741
          %v3746 = vadd.f32 %v3686, %v3742
          %v3747 = vld [vmem:[#allocation12 + $0x72] sm:$0x1]
          %v3748 = vlaneseq
          %v3749 = vshrl.u32 %v3748, 7
          %v3750 = vsub.s32 0, %v3749
          %v3751 = vrot.slane %v3747, %v3750
          %v3752 = vmul.f32 %v3751, %v3701
          %v3753 = vmul.f32 %v3751, %v3703
          %v3754 = vmul.f32 %v3751, %v3705
          %v3755 = vmul.f32 %v3751, %v3707
          %v3756 = vadd.f32 %v3696, %v3752
          %v3757 = vadd.f32 %v3697, %v3753
          %v3758 = vadd.f32 %v3698, %v3754
          %v3759 = vadd.f32 %v3699, %v3755
          %3760 = vrot.lane.b32.xlu0 %v3701, 127
          %v3761 = vpop.permute.xlu0 %3760
          %3762 = vrot.lane.b32.xlu0 %v3703, 127
          %v3763 = vpop.permute.xlu0 %3762
          %3764 = vrot.lane.b32.xlu0 %v3705, 127
          %v3765 = vpop.permute.xlu0 %3764
          %3766 = vrot.lane.b32.xlu0 %v3707, 127
          %v3767 = vpop.permute.xlu0 %3766
          %v3768 = vld [vmem:[#allocation12 + $0x13] sm:$0x1]
          %v3769 = vlaneseq
          %v3770 = vshrl.u32 %v3769, 7
          %v3771 = vsub.s32 0, %v3770
          %v3772 = vrot.slane %v3768, %v3771
          %v3773 = vmul.f32 %v3772, %v3761
          %v3774 = vmul.f32 %v3772, %v3763
          %v3775 = vmul.f32 %v3772, %v3765
          %v3776 = vmul.f32 %v3772, %v3767
          %v3777 = vadd.f32 %v3717, %v3773
          %v3778 = vadd.f32 %v3718, %v3774
          %v3779 = vadd.f32 %v3719, %v3775
          %v3780 = vadd.f32 %v3720, %v3776
          %v3781 = vld [vmem:[#allocation12 + $0x33] sm:$0x1]
          %v3782 = vlaneseq
          %v3783 = vshrl.u32 %v3782, 7
          %v3784 = vsub.s32 0, %v3783
          %v3785 = vrot.slane %v3781, %v3784
          %v3786 = vmul.f32 %v3785, %v3761
          %v3787 = vmul.f32 %v3785, %v3763
          %v3788 = vmul.f32 %v3785, %v3765
          %v3789 = vmul.f32 %v3785, %v3767
          %v3790 = vadd.f32 %v3730, %v3786
          %v3791 = vadd.f32 %v3731, %v3787
          %v3792 = vadd.f32 %v3732, %v3788
          %v3793 = vadd.f32 %v3733, %v3789
          %v3794 = vld [vmem:[#allocation12 + $0x53] sm:$0x1]
          %v3795 = vlaneseq
          %v3796 = vshrl.u32 %v3795, 7
          %v3797 = vsub.s32 0, %v3796
          %v3798 = vrot.slane %v3794, %v3797
          %v3799 = vmul.f32 %v3798, %v3761
          %v3800 = vmul.f32 %v3798, %v3763
          %v3801 = vmul.f32 %v3798, %v3765
          %v3802 = vmul.f32 %v3798, %v3767
          %v3803 = vadd.f32 %v3743, %v3799
          %v3804 = vadd.f32 %v3744, %v3800
          %v3805 = vadd.f32 %v3745, %v3801
          %v3806 = vadd.f32 %v3746, %v3802
          %v3807 = vld [vmem:[#allocation12 + $0x73] sm:$0x1]
          %v3808 = vlaneseq
          %v3809 = vshrl.u32 %v3808, 7
          %v3810 = vsub.s32 0, %v3809
          %v3811 = vrot.slane %v3807, %v3810
          %v3812 = vmul.f32 %v3811, %v3761
          %v3813 = vmul.f32 %v3811, %v3763
          %v3814 = vmul.f32 %v3811, %v3765
          %v3815 = vmul.f32 %v3811, %v3767
          %v3816 = vadd.f32 %v3756, %v3812
          %v3817 = vadd.f32 %v3757, %v3813
          %v3818 = vadd.f32 %v3758, %v3814
          %v3819 = vadd.f32 %v3759, %v3815
          %v3820 = vrot.slane %v3526, 1
          %v3821 = vrot.slane %v3525, 1
          %v3822 = vrot.slane %v3524, 1
          %v3823 = vrot.slane %v3527, 1
          %v3824 = vsel %vm710, %v3822, %v3823
          %v3825 = vsel %vm710, %v3821, %v3822
          %v3826 = vsel %vm710, %v3820, %v3821
          %v3827 = vsel %vm710, %v3823, %v3820
          %v3828 = vld [vmem:[#allocation12 + $0x14] sm:$0x1]
          %v3829 = vlaneseq
          %v3830 = vshrl.u32 %v3829, 7
          %v3831 = vsub.s32 0, %v3830
          %v3832 = vrot.slane %v3828, %v3831
          %v3833 = vmul.f32 %v3832, %v3826
          %v3834 = vmul.f32 %v3832, %v3825
          %v3835 = vmul.f32 %v3832, %v3824
          %v3836 = vmul.f32 %v3832, %v3827
          %v3837 = vadd.f32 %v3777, %v3833
          %v3838 = vadd.f32 %v3778, %v3834
          %v3839 = vadd.f32 %v3779, %v3835
          %v3840 = vadd.f32 %v3780, %v3836
          %v3841 = vld [vmem:[#allocation12 + $0x34] sm:$0x1]
          %v3842 = vlaneseq
          %v3843 = vshrl.u32 %v3842, 7
          %v3844 = vsub.s32 0, %v3843
          %v3845 = vrot.slane %v3841, %v3844
          %v3846 = vmul.f32 %v3845, %v3826
          %v3847 = vmul.f32 %v3845, %v3825
          %v3848 = vmul.f32 %v3845, %v3824
          %v3849 = vmul.f32 %v3845, %v3827
          %v3850 = vadd.f32 %v3790, %v3846
          %v3851 = vadd.f32 %v3791, %v3847
          %v3852 = vadd.f32 %v3792, %v3848
          %v3853 = vadd.f32 %v3793, %v3849
          %v3854 = vld [vmem:[#allocation12 + $0x54] sm:$0x1]
          %v3855 = vlaneseq
          %v3856 = vshrl.u32 %v3855, 7
          %v3857 = vsub.s32 0, %v3856
          %v3858 = vrot.slane %v3854, %v3857
          %v3859 = vmul.f32 %v3858, %v3826
          %v3860 = vmul.f32 %v3858, %v3825
          %v3861 = vmul.f32 %v3858, %v3824
          %v3862 = vmul.f32 %v3858, %v3827
          %v3863 = vadd.f32 %v3803, %v3859
          %v3864 = vadd.f32 %v3804, %v3860
          %v3865 = vadd.f32 %v3805, %v3861
          %v3866 = vadd.f32 %v3806, %v3862
          %v3867 = vld [vmem:[#allocation12 + $0x74] sm:$0x1]
          %v3868 = vlaneseq
          %v3869 = vshrl.u32 %v3868, 7
          %v3870 = vsub.s32 0, %v3869
          %v3871 = vrot.slane %v3867, %v3870
          %v3872 = vmul.f32 %v3871, %v3826
          %v3873 = vmul.f32 %v3871, %v3825
          %v3874 = vmul.f32 %v3871, %v3824
          %v3875 = vmul.f32 %v3871, %v3827
          %v3876 = vadd.f32 %v3816, %v3872
          %v3877 = vadd.f32 %v3817, %v3873
          %v3878 = vadd.f32 %v3818, %v3874
          %v3879 = vadd.f32 %v3819, %v3875
          %3880 = vrot.lane.b32.xlu0 %v3826, 127
          %v3881 = vpop.permute.xlu0 %3880
          %3882 = vrot.lane.b32.xlu0 %v3825, 127
          %v3883 = vpop.permute.xlu0 %3882
          %3884 = vrot.lane.b32.xlu0 %v3824, 127
          %v3885 = vpop.permute.xlu0 %3884
          %3886 = vrot.lane.b32.xlu0 %v3827, 127
          %v3887 = vpop.permute.xlu0 %3886
          %v3888 = vld [vmem:[#allocation12 + $0x15] sm:$0x1]
          %v3889 = vlaneseq
          %v3890 = vshrl.u32 %v3889, 7
          %v3891 = vsub.s32 0, %v3890
          %v3892 = vrot.slane %v3888, %v3891
          %v3893 = vmul.f32 %v3892, %v3881
          %v3894 = vmul.f32 %v3892, %v3883
          %v3895 = vmul.f32 %v3892, %v3885
          %v3896 = vmul.f32 %v3892, %v3887
          %v3897 = vadd.f32 %v3837, %v3893
          %v3898 = vadd.f32 %v3838, %v3894
          %v3899 = vadd.f32 %v3839, %v3895
          %v3900 = vadd.f32 %v3840, %v3896
          %v3901 = vld [vmem:[#allocation12 + $0x35] sm:$0x1]
          %v3902 = vlaneseq
          %v3903 = vshrl.u32 %v3902, 7
          %v3904 = vsub.s32 0, %v3903
          %v3905 = vrot.slane %v3901, %v3904
          %v3906 = vmul.f32 %v3905, %v3881
          %v3907 = vmul.f32 %v3905, %v3883
          %v3908 = vmul.f32 %v3905, %v3885
          %v3909 = vmul.f32 %v3905, %v3887
          %v3910 = vadd.f32 %v3850, %v3906
          %v3911 = vadd.f32 %v3851, %v3907
          %v3912 = vadd.f32 %v3852, %v3908
          %v3913 = vadd.f32 %v3853, %v3909
          %v3914 = vld [vmem:[#allocation12 + $0x55] sm:$0x1]
          %v3915 = vlaneseq
          %v3916 = vshrl.u32 %v3915, 7
          %v3917 = vsub.s32 0, %v3916
          %v3918 = vrot.slane %v3914, %v3917
          %v3919 = vmul.f32 %v3918, %v3881
          %v3920 = vmul.f32 %v3918, %v3883
          %v3921 = vmul.f32 %v3918, %v3885
          %v3922 = vmul.f32 %v3918, %v3887
          %v3923 = vadd.f32 %v3863, %v3919
          %v3924 = vadd.f32 %v3864, %v3920
          %v3925 = vadd.f32 %v3865, %v3921
          %v3926 = vadd.f32 %v3866, %v3922
          %v3927 = vld [vmem:[#allocation12 + $0x75] sm:$0x1]
          %v3928 = vlaneseq
          %v3929 = vshrl.u32 %v3928, 7
          %v3930 = vsub.s32 0, %v3929
          %v3931 = vrot.slane %v3927, %v3930
          %v3932 = vmul.f32 %v3931, %v3881
          %v3933 = vmul.f32 %v3931, %v3883
          %v3934 = vmul.f32 %v3931, %v3885
          %v3935 = vmul.f32 %v3931, %v3887
          %v3936 = vadd.f32 %v3876, %v3932
          %v3937 = vadd.f32 %v3877, %v3933
          %v3938 = vadd.f32 %v3878, %v3934
          %v3939 = vadd.f32 %v3879, %v3935
          %3940 = vrot.lane.b32.xlu0 %v3881, 127
          %v3941 = vpop.permute.xlu0 %3940
          %3942 = vrot.lane.b32.xlu0 %v3883, 127
          %v3943 = vpop.permute.xlu0 %3942
          %3944 = vrot.lane.b32.xlu0 %v3885, 127
          %v3945 = vpop.permute.xlu0 %3944
          %3946 = vrot.lane.b32.xlu0 %v3887, 127
          %v3947 = vpop.permute.xlu0 %3946
          %v3948 = vld [vmem:[#allocation12 + $0x16] sm:$0x1]
          %v3949 = vlaneseq
          %v3950 = vshrl.u32 %v3949, 7
          %v3951 = vsub.s32 0, %v3950
          %v3952 = vrot.slane %v3948, %v3951
          %v3953 = vmul.f32 %v3952, %v3941
          %v3954 = vmul.f32 %v3952, %v3943
          %v3955 = vmul.f32 %v3952, %v3945
          %v3956 = vmul.f32 %v3952, %v3947
          %v3957 = vadd.f32 %v3897, %v3953
          %v3958 = vadd.f32 %v3898, %v3954
          %v3959 = vadd.f32 %v3899, %v3955
          %v3960 = vadd.f32 %v3900, %v3956
          %v3961 = vld [vmem:[#allocation12 + $0x36] sm:$0x1]
          %v3962 = vlaneseq
          %v3963 = vshrl.u32 %v3962, 7
          %v3964 = vsub.s32 0, %v3963
          %v3965 = vrot.slane %v3961, %v3964
          %v3966 = vmul.f32 %v3965, %v3941
          %v3967 = vmul.f32 %v3965, %v3943
          %v3968 = vmul.f32 %v3965, %v3945
          %v3969 = vmul.f32 %v3965, %v3947
          %v3970 = vadd.f32 %v3910, %v3966
          %v3971 = vadd.f32 %v3911, %v3967
          %v3972 = vadd.f32 %v3912, %v3968
          %v3973 = vadd.f32 %v3913, %v3969
          %v3974 = vld [vmem:[#allocation12 + $0x56] sm:$0x1]
          %v3975 = vlaneseq
          %v3976 = vshrl.u32 %v3975, 7
          %v3977 = vsub.s32 0, %v3976
          %v3978 = vrot.slane %v3974, %v3977
          %v3979 = vmul.f32 %v3978, %v3941
          %v3980 = vmul.f32 %v3978, %v3943
          %v3981 = vmul.f32 %v3978, %v3945
          %v3982 = vmul.f32 %v3978, %v3947
          %v3983 = vadd.f32 %v3923, %v3979
          %v3984 = vadd.f32 %v3924, %v3980
          %v3985 = vadd.f32 %v3925, %v3981
          %v3986 = vadd.f32 %v3926, %v3982
          %v3987 = vld [vmem:[#allocation12 + $0x76] sm:$0x1]
          %v3988 = vlaneseq
          %v3989 = vshrl.u32 %v3988, 7
          %v3990 = vsub.s32 0, %v3989
          %v3991 = vrot.slane %v3987, %v3990
          %v3992 = vmul.f32 %v3991, %v3941
          %v3993 = vmul.f32 %v3991, %v3943
          %v3994 = vmul.f32 %v3991, %v3945
          %v3995 = vmul.f32 %v3991, %v3947
          %v3996 = vadd.f32 %v3936, %v3992
          %v3997 = vadd.f32 %v3937, %v3993
          %v3998 = vadd.f32 %v3938, %v3994
          %v3999 = vadd.f32 %v3939, %v3995
          %4000 = vrot.lane.b32.xlu0 %v3941, 127
          %v4001 = vpop.permute.xlu0 %4000
          %4002 = vrot.lane.b32.xlu0 %v3943, 127
          %v4003 = vpop.permute.xlu0 %4002
          %4004 = vrot.lane.b32.xlu0 %v3945, 127
          %v4005 = vpop.permute.xlu0 %4004
          %4006 = vrot.lane.b32.xlu0 %v3947, 127
          %v4007 = vpop.permute.xlu0 %4006
          %v4008 = vld [vmem:[#allocation12 + $0x17] sm:$0x1]
          %v4009 = vlaneseq
          %v4010 = vshrl.u32 %v4009, 7
          %v4011 = vsub.s32 0, %v4010
          %v4012 = vrot.slane %v4008, %v4011
          %v4013 = vmul.f32 %v4012, %v4001
          %v4014 = vmul.f32 %v4012, %v4003
          %v4015 = vmul.f32 %v4012, %v4005
          %v4016 = vmul.f32 %v4012, %v4007
          %v4017 = vadd.f32 %v3957, %v4013
          %v4018 = vadd.f32 %v3958, %v4014
          %v4019 = vadd.f32 %v3959, %v4015
          %v4020 = vadd.f32 %v3960, %v4016
          %v4021 = vld [vmem:[#allocation12 + $0x37] sm:$0x1]
          %v4022 = vlaneseq
          %v4023 = vshrl.u32 %v4022, 7
          %v4024 = vsub.s32 0, %v4023
          %v4025 = vrot.slane %v4021, %v4024
          %v4026 = vmul.f32 %v4025, %v4001
          %v4027 = vmul.f32 %v4025, %v4003
          %v4028 = vmul.f32 %v4025, %v4005
          %v4029 = vmul.f32 %v4025, %v4007
          %v4030 = vadd.f32 %v3970, %v4026
          %v4031 = vadd.f32 %v3971, %v4027
          %v4032 = vadd.f32 %v3972, %v4028
          %v4033 = vadd.f32 %v3973, %v4029
          %v4034 = vld [vmem:[#allocation12 + $0x57] sm:$0x1]
          %v4035 = vlaneseq
          %v4036 = vshrl.u32 %v4035, 7
          %v4037 = vsub.s32 0, %v4036
          %v4038 = vrot.slane %v4034, %v4037
          %v4039 = vmul.f32 %v4038, %v4001
          %v4040 = vmul.f32 %v4038, %v4003
          %v4041 = vmul.f32 %v4038, %v4005
          %v4042 = vmul.f32 %v4038, %v4007
          %v4043 = vadd.f32 %v3983, %v4039
          %v4044 = vadd.f32 %v3984, %v4040
          %v4045 = vadd.f32 %v3985, %v4041
          %v4046 = vadd.f32 %v3986, %v4042
          %v4047 = vld [vmem:[#allocation12 + $0x77] sm:$0x1]
          %v4048 = vlaneseq
          %v4049 = vshrl.u32 %v4048, 7
          %v4050 = vsub.s32 0, %v4049
          %v4051 = vrot.slane %v4047, %v4050
          %v4052 = vmul.f32 %v4051, %v4001
          %v4053 = vmul.f32 %v4051, %v4003
          %v4054 = vmul.f32 %v4051, %v4005
          %v4055 = vmul.f32 %v4051, %v4007
          %v4056 = vadd.f32 %v3996, %v4052
          %v4057 = vadd.f32 %v3997, %v4053
          %v4058 = vadd.f32 %v3998, %v4054
          %v4059 = vadd.f32 %v3999, %v4055
          %4060 = vrot.lane.b32.xlu0 %v4001, 127
          %v4061 = vpop.permute.xlu0 %4060
          %4062 = vrot.lane.b32.xlu0 %v4003, 127
          %v4063 = vpop.permute.xlu0 %4062
          %4064 = vrot.lane.b32.xlu0 %v4005, 127
          %v4065 = vpop.permute.xlu0 %4064
          %4066 = vrot.lane.b32.xlu0 %v4007, 127
          %v4067 = vpop.permute.xlu0 %4066
          %v4068 = vld [vmem:[#allocation12 + $0x18] sm:$0x1]
          %v4069 = vlaneseq
          %v4070 = vshrl.u32 %v4069, 7
          %v4071 = vsub.s32 0, %v4070
          %v4072 = vrot.slane %v4068, %v4071
          %v4073 = vmul.f32 %v4072, %v4061
          %v4074 = vmul.f32 %v4072, %v4063
          %v4075 = vmul.f32 %v4072, %v4065
          %v4076 = vmul.f32 %v4072, %v4067
          %v4077 = vadd.f32 %v4017, %v4073
          %v4078 = vadd.f32 %v4018, %v4074
          %v4079 = vadd.f32 %v4019, %v4075
          %v4080 = vadd.f32 %v4020, %v4076
          %v4081 = vld [vmem:[#allocation12 + $0x38] sm:$0x1]
          %v4082 = vlaneseq
          %v4083 = vshrl.u32 %v4082, 7
          %v4084 = vsub.s32 0, %v4083
          %v4085 = vrot.slane %v4081, %v4084
          %v4086 = vmul.f32 %v4085, %v4061
          %v4087 = vmul.f32 %v4085, %v4063
          %v4088 = vmul.f32 %v4085, %v4065
          %v4089 = vmul.f32 %v4085, %v4067
          %v4090 = vadd.f32 %v4030, %v4086
          %v4091 = vadd.f32 %v4031, %v4087
          %v4092 = vadd.f32 %v4032, %v4088
          %v4093 = vadd.f32 %v4033, %v4089
          %v4094 = vld [vmem:[#allocation12 + $0x58] sm:$0x1]
          %v4095 = vlaneseq
          %v4096 = vshrl.u32 %v4095, 7
          %v4097 = vsub.s32 0, %v4096
          %v4098 = vrot.slane %v4094, %v4097
          %v4099 = vmul.f32 %v4098, %v4061
          %v4100 = vmul.f32 %v4098, %v4063
          %v4101 = vmul.f32 %v4098, %v4065
          %v4102 = vmul.f32 %v4098, %v4067
          %v4103 = vadd.f32 %v4043, %v4099
          %v4104 = vadd.f32 %v4044, %v4100
          %v4105 = vadd.f32 %v4045, %v4101
          %v4106 = vadd.f32 %v4046, %v4102
          %v4107 = vld [vmem:[#allocation12 + $0x78] sm:$0x1]
          %v4108 = vlaneseq
          %v4109 = vshrl.u32 %v4108, 7
          %v4110 = vsub.s32 0, %v4109
          %v4111 = vrot.slane %v4107, %v4110
          %v4112 = vmul.f32 %v4111, %v4061
          %v4113 = vmul.f32 %v4111, %v4063
          %v4114 = vmul.f32 %v4111, %v4065
          %v4115 = vmul.f32 %v4111, %v4067
          %v4116 = vadd.f32 %v4056, %v4112
          %v4117 = vadd.f32 %v4057, %v4113
          %v4118 = vadd.f32 %v4058, %v4114
          %v4119 = vadd.f32 %v4059, %v4115
          %4120 = vrot.lane.b32.xlu0 %v4077, 96
          %v4121 = vpop.permute.xlu0 %4120
          %4122 = vrot.lane.b32.xlu0 %v4078, 96
          %v4123 = vpop.permute.xlu0 %4122
          %4124 = vrot.lane.b32.xlu0 %v4079, 96
          %v4125 = vpop.permute.xlu0 %4124
          %4126 = vrot.lane.b32.xlu0 %v4080, 96
          %v4127 = vpop.permute.xlu0 %4126
          %v4128 = vadd.f32 %v4077, %v4121
          %v4129 = vadd.f32 %v4078, %v4123
          %v4130 = vadd.f32 %v4079, %v4125
          %v4131 = vadd.f32 %v4080, %v4127
          %v4132 = vrot.slane %v4128, 1
          %v4133 = vrot.slane %v4129, 1
          %v4134 = vrot.slane %v4130, 1
          %v4135 = vrot.slane %v4131, 1
          %v4136 = vsel %vm710, %v4134, %v4135
          %v4137 = vsel %vm710, %v4133, %v4134
          %v4138 = vsel %vm710, %v4132, %v4133
          %v4139 = vsel %vm710, %v4135, %v4132
          %v4140 = vmax.f32 %v4128, %v4138
          %v4141 = vmax.f32 %v4129, %v4137
          %v4142 = vmax.f32 %v4130, %v4136
          %v4143 = vmax.f32 %v4131, %v4139
          %v4144 = vrot.slane %v4140, 2
          %v4145 = vrot.slane %v4141, 2
          %v4146 = vrot.slane %v4142, 2
          %v4147 = vrot.slane %v4143, 2
          %v4148 = vsel %vm1551, %v4146, %v4147
          %v4149 = vsel %vm1551, %v4145, %v4146
          %v4150 = vsel %vm1551, %v4144, %v4145
          %v4151 = vsel %vm1551, %v4147, %v4144
          %v4152 = vmax.f32 %v4140, %v4150
          %v4153 = vmax.f32 %v4141, %v4149
          %v4154 = vmax.f32 %v4142, %v4148
          %v4155 = vmax.f32 %v4143, %v4151
          %4156 = vrot.lane.b32.xlu0 %v4152, 127
          %v4157 = vpop.permute.xlu0 %4156
          %4158 = vrot.lane.b32.xlu0 %v4153, 127
          %v4159 = vpop.permute.xlu0 %4158
          %4160 = vrot.lane.b32.xlu0 %v4154, 127
          %v4161 = vpop.permute.xlu0 %4160
          %4162 = vrot.lane.b32.xlu0 %v4155, 127
          %v4163 = vpop.permute.xlu0 %4162
          %v4164 = vmax.f32 %v4152, %v4157
          %v4165 = vmax.f32 %v4153, %v4159
          %v4166 = vmax.f32 %v4154, %v4161
          %v4167 = vmax.f32 %v4155, %v4163
          %4168 = vrot.lane.b32.xlu0 %v4164, 126
          %v4169 = vpop.permute.xlu0 %4168
          %4170 = vrot.lane.b32.xlu0 %v4165, 126
          %v4171 = vpop.permute.xlu0 %4170
          %4172 = vrot.lane.b32.xlu0 %v4166, 126
          %v4173 = vpop.permute.xlu0 %4172
          %4174 = vrot.lane.b32.xlu0 %v4167, 126
          %v4175 = vpop.permute.xlu0 %4174
          %v4176 = vmax.f32 %v4164, %v4169
          %v4177 = vmax.f32 %v4165, %v4171
          %v4178 = vmax.f32 %v4166, %v4173
          %v4179 = vmax.f32 %v4167, %v4175
          %s4180 = sld [smem:[#allocation14]]
          %v4181 = vstv %s4180
          %v4182 = vadd.f32 %v4176, %v4181
          %v4183 = vadd.f32 %v4177, %v4181
          %v4184 = vadd.f32 %v4178, %v4181
          %v4185 = vadd.f32 %v4179, %v4181
          %v4186 = vmax.f32 %v4182, 0.0
          %v4187 = vmax.f32 %v4183, 0.0
          %v4188 = vmax.f32 %v4184, 0.0
          %v4189 = vmax.f32 %v4185, 0.0
          %4190 = vrot.lane.b32.xlu0 %v4090, 96
          %v4191 = vpop.permute.xlu0 %4190
          %4192 = vrot.lane.b32.xlu0 %v4091, 96
          %v4193 = vpop.permute.xlu0 %4192
          %4194 = vrot.lane.b32.xlu0 %v4092, 96
          %v4195 = vpop.permute.xlu0 %4194
          %4196 = vrot.lane.b32.xlu0 %v4093, 96
          %v4197 = vpop.permute.xlu0 %4196
          %v4198 = vadd.f32 %v4090, %v4191
          %v4199 = vadd.f32 %v4091, %v4193
          %v4200 = vadd.f32 %v4092, %v4195
          %v4201 = vadd.f32 %v4093, %v4197
          %v4202 = vrot.slane %v4198, 1
          %v4203 = vrot.slane %v4199, 1
          %v4204 = vrot.slane %v4200, 1
          %v4205 = vrot.slane %v4201, 1
          %v4206 = vsel %vm710, %v4204, %v4205
          %v4207 = vsel %vm710, %v4203, %v4204
          %v4208 = vsel %vm710, %v4202, %v4203
          %v4209 = vsel %vm710, %v4205, %v4202
          %v4210 = vmax.f32 %v4198, %v4208
          %v4211 = vmax.f32 %v4199, %v4207
          %v4212 = vmax.f32 %v4200, %v4206
          %v4213 = vmax.f32 %v4201, %v4209
          %v4214 = vrot.slane %v4210, 2
          %v4215 = vrot.slane %v4211, 2
          %v4216 = vrot.slane %v4212, 2
          %v4217 = vrot.slane %v4213, 2
          %v4218 = vsel %vm1551, %v4216, %v4217
          %v4219 = vsel %vm1551, %v4215, %v4216
          %v4220 = vsel %vm1551, %v4214, %v4215
          %v4221 = vsel %vm1551, %v4217, %v4214
          %v4222 = vmax.f32 %v4210, %v4220
          %v4223 = vmax.f32 %v4211, %v4219
          %v4224 = vmax.f32 %v4212, %v4218
          %v4225 = vmax.f32 %v4213, %v4221
          %4226 = vrot.lane.b32.xlu0 %v4222, 127
          %v4227 = vpop.permute.xlu0 %4226
          %4228 = vrot.lane.b32.xlu0 %v4223, 127
          %v4229 = vpop.permute.xlu0 %4228
          %4230 = vrot.lane.b32.xlu0 %v4224, 127
          %v4231 = vpop.permute.xlu0 %4230
          %4232 = vrot.lane.b32.xlu0 %v4225, 127
          %v4233 = vpop.permute.xlu0 %4232
          %v4234 = vmax.f32 %v4222, %v4227
          %v4235 = vmax.f32 %v4223, %v4229
          %v4236 = vmax.f32 %v4224, %v4231
          %v4237 = vmax.f32 %v4225, %v4233
          %4238 = vrot.lane.b32.xlu0 %v4234, 126
          %v4239 = vpop.permute.xlu0 %4238
          %4240 = vrot.lane.b32.xlu0 %v4235, 126
          %v4241 = vpop.permute.xlu0 %4240
          %4242 = vrot.lane.b32.xlu0 %v4236, 126
          %v4243 = vpop.permute.xlu0 %4242
          %4244 = vrot.lane.b32.xlu0 %v4237, 126
          %v4245 = vpop.permute.xlu0 %4244
          %v4246 = vmax.f32 %v4234, %v4239
          %v4247 = vmax.f32 %v4235, %v4241
          %v4248 = vmax.f32 %v4236, %v4243
          %v4249 = vmax.f32 %v4237, %v4245
          %s4250 = sld [smem:[#allocation14 + $0x1]]
          %v4251 = vstv %s4250
          %v4252 = vadd.f32 %v4246, %v4251
          %v4253 = vadd.f32 %v4247, %v4251
          %v4254 = vadd.f32 %v4248, %v4251
          %v4255 = vadd.f32 %v4249, %v4251
          %v4256 = vmax.f32 %v4252, 0.0
          %v4257 = vmax.f32 %v4253, 0.0
          %v4258 = vmax.f32 %v4254, 0.0
          %v4259 = vmax.f32 %v4255, 0.0
          %4260 = vmatprep.subr.mxu0 0.0
          %4261 = vmatpush1.msra.mxu0 %v1707
          %4262 = vmatprep.subr.mxu0 0.0
          %4263 = vmatpush1.msra.mxu0 %v1708
          %4264 = vmatprep.subr.mxu0 0.0
          %4265 = vmatpush1.msra.mxu0 %v1709
          %4266 = vmatprep.subr.mxu0 0.0
          %4267 = vmatpush1.msra.mxu0 %v1710
          %4268 = vmatprep.subr.mxu0 0.0
          %4269 = vmatpush1.msra.mxu0 %v1711
          %4270 = vmatprep.subr.mxu0 0.0
          %4271 = vmatpush1.msra.mxu0 %v1712
          %4272 = vmatprep.subr.mxu0 0.0
          %4273 = vmatpush1.msra.mxu0 %v1713
          %4274 = vmatprep.subr.mxu0 0.0
          %4275 = vmatpush1.msra.mxu0 %v1714
          %4276 = vmatprep.subr.mxu0 0.0
          %4277 = vmatpush1.msra.mxu0 %v1715
          %4278 = vmatprep.subr.mxu0 0.0
          %4279 = vmatpush1.msra.mxu0 %v1716
          %4280 = vmatprep.subr.mxu0 0.0
          %4281 = vmatpush1.msra.mxu0 %v1717
          %4282 = vmatprep.subr.mxu0 0.0
          %4283 = vmatpush1.msra.mxu0 %v1718
          %4284 = vmatprep.subr.mxu0 0.0
          %4285 = vmatpush1.msra.mxu0 %v1719
          %4286 = vmatprep.subr.mxu0 0.0
          %4287 = vmatpush1.msra.mxu0 %v1720
          %4288 = vmatprep.subr.mxu0 0.0
          %4289 = vmatpush1.msra.mxu0 %v1721
          %4290 = vmatprep.subr.mxu0 0.0
          %4291 = vmatpush1.msra.mxu0 %v1722
          %4292 = vmatprep.subr.mxu0 0.0
          %4293 = vmatpush1.msra.mxu0 0.0
          %4294 = vmatprep.subr.mxu0 0.0
          %4295 = vmatpush1.msra.mxu0 0.0
          %4296 = vmatprep.subr.mxu0 0.0
          %4297 = vmatpush1.msra.mxu0 0.0
          %4298 = vmatprep.subr.mxu0 0.0
          %4299 = vmatpush1.msra.mxu0 0.0
          %4300 = vmatprep.subr.mxu0 0.0
          %4301 = vmatpush1.msra.mxu0 0.0
          %4302 = vmatprep.subr.mxu0 0.0
          %4303 = vmatpush1.msra.mxu0 0.0
          %4304 = vmatprep.subr.mxu0 0.0
          %4305 = vmatpush1.msra.mxu0 0.0
          %4306 = vmatprep.subr.mxu0 0.0
          %4307 = vmatpush1.msra.mxu0 0.0
          %4308 = vmatprep.subr.mxu0 0.0
          %4309 = vmatpush1.msra.mxu0 0.0
          %4310 = vmatprep.subr.mxu0 0.0
          %4311 = vmatpush1.msra.mxu0 0.0
          %4312 = vmatprep.subr.mxu0 0.0
          %4313 = vmatpush1.msra.mxu0 0.0
          %4314 = vmatprep.subr.mxu0 0.0
          %4315 = vmatpush1.msra.mxu0 0.0
          %4316 = vmatprep.subr.mxu0 0.0
          %4317 = vmatpush1.msra.mxu0 0.0
          %4318 = vmatprep.subr.mxu0 0.0
          %4319 = vmatpush1.msra.mxu0 0.0
          %4320 = vmatprep.subr.mxu0 0.0
          %4321 = vmatpush1.msra.mxu0 0.0
          %4322 = vmatprep.subr.mxu0 0.0
          %4323 = vmatpush1.msra.mxu0 0.0
          %4324 = vmatprep.mubr.f32.mxu0 0.0
          %4325 = vmatmul.mubr.f32.gmra.mrb[0].mxu0 %v4256
          %v4326 = vpop.f32.mrb[0].mxu0
          %v4327 = vadd.f32 0.0, %v4326
          %v4328 = vpop.f32.mrb[0].mxu0
          %4329 = vmatprep.mubr.f32.mxu0 0.0
          %4330 = vmatmul.mubr.f32.gmra.mrb[0].mxu0 %v4257
          %v4331 = vpop.f32.mrb[0].mxu0
          %v4332 = vadd.f32 0.0, %v4331
          %v4333 = vpop.f32.mrb[0].mxu0
          %4334 = vmatprep.mubr.f32.mxu0 0.0
          %4335 = vmatmul.mubr.f32.gmra.mrb[0].mxu0 %v4258
          %v4336 = vpop.f32.mrb[0].mxu0
          %v4337 = vadd.f32 0.0, %v4336
          %v4338 = vpop.f32.mrb[0].mxu0
          %4339 = vmatprep.mubr.f32.mxu0 0.0
          %4340 = vmatmul.mubr.f32.gmra.mrb[0].mxu0 %v4259
          %v4341 = vpop.f32.mrb[0].mxu0
          %v4342 = vadd.f32 0.0, %v4341
          %v4343 = vpop.f32.mrb[0].mxu0
          %4344 = vdwg.mxu0
          %4345 = vrot.lane.b32.xlu0 %v4327, 32
          %v4346 = vpop.permute.xlu0 %4345
          %4347 = vrot.lane.b32.xlu0 %v4332, 32
          %v4348 = vpop.permute.xlu0 %4347
          %4349 = vrot.lane.b32.xlu0 %v4337, 32
          %v4350 = vpop.permute.xlu0 %4349
          %4351 = vrot.lane.b32.xlu0 %v4342, 32
          %v4352 = vpop.permute.xlu0 %4351
          %4353 = vmatprep.subr.mxu0 0.0
          %4354 = vmatpush1.msra.mxu0 %v1707
          %4355 = vmatprep.subr.mxu0 0.0
          %4356 = vmatpush1.msra.mxu0 %v1708
          %4357 = vmatprep.subr.mxu0 0.0
          %4358 = vmatpush1.msra.mxu0 %v1709
          %4359 = vmatprep.subr.mxu0 0.0
          %4360 = vmatpush1.msra.mxu0 %v1710
          %4361 = vmatprep.subr.mxu0 0.0
          %4362 = vmatpush1.msra.mxu0 %v1711
          %4363 = vmatprep.subr.mxu0 0.0
          %4364 = vmatpush1.msra.mxu0 %v1712
          %4365 = vmatprep.subr.mxu0 0.0
          %4366 = vmatpush1.msra.mxu0 %v1713
          %4367 = vmatprep.subr.mxu0 0.0
          %4368 = vmatpush1.msra.mxu0 %v1714
          %4369 = vmatprep.subr.mxu0 0.0
          %4370 = vmatpush1.msra.mxu0 %v1715
          %4371 = vmatprep.subr.mxu0 0.0
          %4372 = vmatpush1.msra.mxu0 %v1716
          %4373 = vmatprep.subr.mxu0 0.0
          %4374 = vmatpush1.msra.mxu0 %v1717
          %4375 = vmatprep.subr.mxu0 0.0
          %4376 = vmatpush1.msra.mxu0 %v1718
          %4377 = vmatprep.subr.mxu0 0.0
          %4378 = vmatpush1.msra.mxu0 %v1719
          %4379 = vmatprep.subr.mxu0 0.0
          %4380 = vmatpush1.msra.mxu0 %v1720
          %4381 = vmatprep.subr.mxu0 0.0
          %4382 = vmatpush1.msra.mxu0 %v1721
          %4383 = vmatprep.subr.mxu0 0.0
          %4384 = vmatpush1.msra.mxu0 %v1722
          %4385 = vmatprep.subr.mxu0 0.0
          %4386 = vmatpush1.msra.mxu0 0.0
          %4387 = vmatprep.subr.mxu0 0.0
          %4388 = vmatpush1.msra.mxu0 0.0
          %4389 = vmatprep.subr.mxu0 0.0
          %4390 = vmatpush1.msra.mxu0 0.0
          %4391 = vmatprep.subr.mxu0 0.0
          %4392 = vmatpush1.msra.mxu0 0.0
          %4393 = vmatprep.subr.mxu0 0.0
          %4394 = vmatpush1.msra.mxu0 0.0
          %4395 = vmatprep.subr.mxu0 0.0
          %4396 = vmatpush1.msra.mxu0 0.0
          %4397 = vmatprep.subr.mxu0 0.0
          %4398 = vmatpush1.msra.mxu0 0.0
          %4399 = vmatprep.subr.mxu0 0.0
          %4400 = vmatpush1.msra.mxu0 0.0
          %4401 = vmatprep.subr.mxu0 0.0
          %4402 = vmatpush1.msra.mxu0 0.0
          %4403 = vmatprep.subr.mxu0 0.0
          %4404 = vmatpush1.msra.mxu0 0.0
          %4405 = vmatprep.subr.mxu0 0.0
          %4406 = vmatpush1.msra.mxu0 0.0
          %4407 = vmatprep.subr.mxu0 0.0
          %4408 = vmatpush1.msra.mxu0 0.0
          %4409 = vmatprep.subr.mxu0 0.0
          %4410 = vmatpush1.msra.mxu0 0.0
          %4411 = vmatprep.subr.mxu0 0.0
          %4412 = vmatpush1.msra.mxu0 0.0
          %4413 = vmatprep.subr.mxu0 0.0
          %4414 = vmatpush1.msra.mxu0 0.0
          %4415 = vmatprep.subr.mxu0 0.0
          %4416 = vmatpush1.msra.mxu0 0.0
          %4417 = vmatprep.mubr.f32.mxu0 0.0
          %4418 = vmatmul.mubr.f32.gmra.mrb[0].mxu0 %v4186
          %v4419 = vpop.f32.mrb[0].mxu0
          %v4420 = vadd.f32 %v4346, %v4419
          %v4421 = vpop.f32.mrb[0].mxu0
          %4422 = vmatprep.mubr.f32.mxu0 0.0
          %4423 = vmatmul.mubr.f32.gmra.mrb[0].mxu0 %v4187
          %v4424 = vpop.f32.mrb[0].mxu0
          %v4425 = vadd.f32 %v4348, %v4424
          %v4426 = vpop.f32.mrb[0].mxu0
          %4427 = vmatprep.mubr.f32.mxu0 0.0
          %4428 = vmatmul.mubr.f32.gmra.mrb[0].mxu0 %v4188
          %v4429 = vpop.f32.mrb[0].mxu0
          %v4430 = vadd.f32 %v4350, %v4429
          %v4431 = vpop.f32.mrb[0].mxu0
          %4432 = vmatprep.mubr.f32.mxu0 0.0
          %4433 = vmatmul.mubr.f32.gmra.mrb[0].mxu0 %v4189
          %v4434 = vpop.f32.mrb[0].mxu0
          %v4435 = vadd.f32 %v4352, %v4434
          %v4436 = vpop.f32.mrb[0].mxu0
          %4437 = vdwg.mxu0
          %4438 = vrot.lane.b32.xlu0 %v4103, 96
          %v4439 = vpop.permute.xlu0 %4438
          %4440 = vrot.lane.b32.xlu0 %v4104, 96
          %v4441 = vpop.permute.xlu0 %4440
          %4442 = vrot.lane.b32.xlu0 %v4105, 96
          %v4443 = vpop.permute.xlu0 %4442
          %4444 = vrot.lane.b32.xlu0 %v4106, 96
          %v4445 = vpop.permute.xlu0 %4444
          %v4446 = vadd.f32 %v4103, %v4439
          %v4447 = vadd.f32 %v4104, %v4441
          %v4448 = vadd.f32 %v4105, %v4443
          %v4449 = vadd.f32 %v4106, %v4445
          %v4450 = vrot.slane %v4446, 1
          %v4451 = vrot.slane %v4447, 1
          %v4452 = vrot.slane %v4448, 1
          %v4453 = vrot.slane %v4449, 1
          %v4454 = vsel %vm710, %v4452, %v4453
          %v4455 = vsel %vm710, %v4451, %v4452
          %v4456 = vsel %vm710, %v4450, %v4451
          %v4457 = vsel %vm710, %v4453, %v4450
          %v4458 = vmax.f32 %v4446, %v4456
          %v4459 = vmax.f32 %v4447, %v4455
          %v4460 = vmax.f32 %v4448, %v4454
          %v4461 = vmax.f32 %v4449, %v4457
          %v4462 = vrot.slane %v4458, 2
          %v4463 = vrot.slane %v4459, 2
          %v4464 = vrot.slane %v4460, 2
          %v4465 = vrot.slane %v4461, 2
          %v4466 = vsel %vm1551, %v4464, %v4465
          %v4467 = vsel %vm1551, %v4463, %v4464
          %v4468 = vsel %vm1551, %v4462, %v4463
          %v4469 = vsel %vm1551, %v4465, %v4462
          %v4470 = vmax.f32 %v4458, %v4468
          %v4471 = vmax.f32 %v4459, %v4467
          %v4472 = vmax.f32 %v4460, %v4466
          %v4473 = vmax.f32 %v4461, %v4469
          %4474 = vrot.lane.b32.xlu0 %v4470, 127
          %v4475 = vpop.permute.xlu0 %4474
          %4476 = vrot.lane.b32.xlu0 %v4471, 127
          %v4477 = vpop.permute.xlu0 %4476
          %4478 = vrot.lane.b32.xlu0 %v4472, 127
          %v4479 = vpop.permute.xlu0 %4478
          %4480 = vrot.lane.b32.xlu0 %v4473, 127
          %v4481 = vpop.permute.xlu0 %4480
          %v4482 = vmax.f32 %v4470, %v4475
          %v4483 = vmax.f32 %v4471, %v4477
          %v4484 = vmax.f32 %v4472, %v4479
          %v4485 = vmax.f32 %v4473, %v4481
          %4486 = vrot.lane.b32.xlu0 %v4482, 126
          %v4487 = vpop.permute.xlu0 %4486
          %4488 = vrot.lane.b32.xlu0 %v4483, 126
          %v4489 = vpop.permute.xlu0 %4488
          %4490 = vrot.lane.b32.xlu0 %v4484, 126
          %v4491 = vpop.permute.xlu0 %4490
          %4492 = vrot.lane.b32.xlu0 %v4485, 126
          %v4493 = vpop.permute.xlu0 %4492
          %v4494 = vmax.f32 %v4482, %v4487
          %v4495 = vmax.f32 %v4483, %v4489
          %v4496 = vmax.f32 %v4484, %v4491
          %v4497 = vmax.f32 %v4485, %v4493
          %s4498 = sld [smem:[#allocation14 + $0x2]]
          %v4499 = vstv %s4498
          %v4500 = vadd.f32 %v4494, %v4499
          %v4501 = vadd.f32 %v4495, %v4499
          %v4502 = vadd.f32 %v4496, %v4499
          %v4503 = vadd.f32 %v4497, %v4499
          %v4504 = vmax.f32 %v4500, 0.0
          %v4505 = vmax.f32 %v4501, 0.0
          %v4506 = vmax.f32 %v4502, 0.0
          %v4507 = vmax.f32 %v4503, 0.0
          %4508 = vmatprep.subr.mxu0 0.0
          %4509 = vmatpush1.msra.mxu0 %v1707
          %4510 = vmatprep.subr.mxu0 0.0
          %4511 = vmatpush1.msra.mxu0 %v1708
          %4512 = vmatprep.subr.mxu0 0.0
          %4513 = vmatpush1.msra.mxu0 %v1709
          %4514 = vmatprep.subr.mxu0 0.0
          %4515 = vmatpush1.msra.mxu0 %v1710
          %4516 = vmatprep.subr.mxu0 0.0
          %4517 = vmatpush1.msra.mxu0 %v1711
          %4518 = vmatprep.subr.mxu0 0.0
          %4519 = vmatpush1.msra.mxu0 %v1712
          %4520 = vmatprep.subr.mxu0 0.0
          %4521 = vmatpush1.msra.mxu0 %v1713
          %4522 = vmatprep.subr.mxu0 0.0
          %4523 = vmatpush1.msra.mxu0 %v1714
          %4524 = vmatprep.subr.mxu0 0.0
          %4525 = vmatpush1.msra.mxu0 %v1715
          %4526 = vmatprep.subr.mxu0 0.0
          %4527 = vmatpush1.msra.mxu0 %v1716
          %4528 = vmatprep.subr.mxu0 0.0
          %4529 = vmatpush1.msra.mxu0 %v1717
          %4530 = vmatprep.subr.mxu0 0.0
          %4531 = vmatpush1.msra.mxu0 %v1718
          %4532 = vmatprep.subr.mxu0 0.0
          %4533 = vmatpush1.msra.mxu0 %v1719
          %4534 = vmatprep.subr.mxu0 0.0
          %4535 = vmatpush1.msra.mxu0 %v1720
          %4536 = vmatprep.subr.mxu0 0.0
          %4537 = vmatpush1.msra.mxu0 %v1721
          %4538 = vmatprep.subr.mxu0 0.0
          %4539 = vmatpush1.msra.mxu0 %v1722
          %4540 = vmatprep.subr.mxu0 0.0
          %4541 = vmatpush1.msra.mxu0 0.0
          %4542 = vmatprep.subr.mxu0 0.0
          %4543 = vmatpush1.msra.mxu0 0.0
          %4544 = vmatprep.subr.mxu0 0.0
          %4545 = vmatpush1.msra.mxu0 0.0
          %4546 = vmatprep.subr.mxu0 0.0
          %4547 = vmatpush1.msra.mxu0 0.0
          %4548 = vmatprep.subr.mxu0 0.0
          %4549 = vmatpush1.msra.mxu0 0.0
          %4550 = vmatprep.subr.mxu0 0.0
          %4551 = vmatpush1.msra.mxu0 0.0
          %4552 = vmatprep.subr.mxu0 0.0
          %4553 = vmatpush1.msra.mxu0 0.0
          %4554 = vmatprep.subr.mxu0 0.0
          %4555 = vmatpush1.msra.mxu0 0.0
          %4556 = vmatprep.subr.mxu0 0.0
          %4557 = vmatpush1.msra.mxu0 0.0
          %4558 = vmatprep.subr.mxu0 0.0
          %4559 = vmatpush1.msra.mxu0 0.0
          %4560 = vmatprep.subr.mxu0 0.0
          %4561 = vmatpush1.msra.mxu0 0.0
          %4562 = vmatprep.subr.mxu0 0.0
          %4563 = vmatpush1.msra.mxu0 0.0
          %4564 = vmatprep.subr.mxu0 0.0
          %4565 = vmatpush1.msra.mxu0 0.0
          %4566 = vmatprep.subr.mxu0 0.0
          %4567 = vmatpush1.msra.mxu0 0.0
          %4568 = vmatprep.subr.mxu0 0.0
          %4569 = vmatpush1.msra.mxu0 0.0
          %4570 = vmatprep.subr.mxu0 0.0
          %4571 = vmatpush1.msra.mxu0 0.0
          %4572 = vmatprep.mubr.f32.mxu0 0.0
          %4573 = vmatmul.mubr.f32.gmra.mrb[0].mxu0 %v4504
          %v4574 = vpop.f32.mrb[0].mxu0
          %v4575 = vadd.f32 0.0, %v4574
          %v4576 = vpop.f32.mrb[0].mxu0
          %4577 = vmatprep.mubr.f32.mxu0 0.0
          %4578 = vmatmul.mubr.f32.gmra.mrb[0].mxu0 %v4505
          %v4579 = vpop.f32.mrb[0].mxu0
          %v4580 = vadd.f32 0.0, %v4579
          %v4581 = vpop.f32.mrb[0].mxu0
          %4582 = vmatprep.mubr.f32.mxu0 0.0
          %4583 = vmatmul.mubr.f32.gmra.mrb[0].mxu0 %v4506
          %v4584 = vpop.f32.mrb[0].mxu0
          %v4585 = vadd.f32 0.0, %v4584
          %v4586 = vpop.f32.mrb[0].mxu0
          %4587 = vmatprep.mubr.f32.mxu0 0.0
          %4588 = vmatmul.mubr.f32.gmra.mrb[0].mxu0 %v4507
          %v4589 = vpop.f32.mrb[0].mxu0
          %v4590 = vadd.f32 0.0, %v4589
          %v4591 = vpop.f32.mrb[0].mxu0
          %4592 = vdwg.mxu0
          %4593 = vrot.lane.b32.xlu0 %v4575, 64
          %v4594 = vpop.permute.xlu0 %4593
          %4595 = vrot.lane.b32.xlu0 %v4580, 64
          %v4596 = vpop.permute.xlu0 %4595
          %4597 = vrot.lane.b32.xlu0 %v4585, 64
          %v4598 = vpop.permute.xlu0 %4597
          %4599 = vrot.lane.b32.xlu0 %v4590, 64
          %v4600 = vpop.permute.xlu0 %4599
          %v4601 = vadd.f32 %v4420, %v4594
          %v4602 = vadd.f32 %v4425, %v4596
          %v4603 = vadd.f32 %v4430, %v4598
          %v4604 = vadd.f32 %v4435, %v4600
          %4605 = vrot.lane.b32.xlu0 %v4116, 96
          %v4606 = vpop.permute.xlu0 %4605
          %4607 = vrot.lane.b32.xlu0 %v4117, 96
          %v4608 = vpop.permute.xlu0 %4607
          %4609 = vrot.lane.b32.xlu0 %v4118, 96
          %v4610 = vpop.permute.xlu0 %4609
          %4611 = vrot.lane.b32.xlu0 %v4119, 96
          %v4612 = vpop.permute.xlu0 %4611
          %v4613 = vadd.f32 %v4116, %v4606
          %v4614 = vadd.f32 %v4117, %v4608
          %v4615 = vadd.f32 %v4118, %v4610
          %v4616 = vadd.f32 %v4119, %v4612
          %v4617 = vrot.slane %v4613, 1
          %v4618 = vrot.slane %v4614, 1
          %v4619 = vrot.slane %v4615, 1
          %v4620 = vrot.slane %v4616, 1
          %v4621 = vsel %vm710, %v4619, %v4620
          %v4622 = vsel %vm710, %v4618, %v4619
          %v4623 = vsel %vm710, %v4617, %v4618
          %v4624 = vsel %vm710, %v4620, %v4617
          %v4625 = vmax.f32 %v4613, %v4623
          %v4626 = vmax.f32 %v4614, %v4622
          %v4627 = vmax.f32 %v4615, %v4621
          %v4628 = vmax.f32 %v4616, %v4624
          %v4629 = vrot.slane %v4625, 2
          %v4630 = vrot.slane %v4626, 2
          %v4631 = vrot.slane %v4627, 2
          %v4632 = vrot.slane %v4628, 2
          %v4633 = vsel %vm1551, %v4631, %v4632
          %v4634 = vsel %vm1551, %v4630, %v4631
          %v4635 = vsel %vm1551, %v4629, %v4630
          %v4636 = vsel %vm1551, %v4632, %v4629
          %v4637 = vmax.f32 %v4625, %v4635
          %v4638 = vmax.f32 %v4626, %v4634
          %v4639 = vmax.f32 %v4627, %v4633
          %v4640 = vmax.f32 %v4628, %v4636
          %4641 = vrot.lane.b32.xlu0 %v4637, 127
          %v4642 = vpop.permute.xlu0 %4641
          %4643 = vrot.lane.b32.xlu0 %v4638, 127
          %v4644 = vpop.permute.xlu0 %4643
          %4645 = vrot.lane.b32.xlu0 %v4639, 127
          %v4646 = vpop.permute.xlu0 %4645
          %4647 = vrot.lane.b32.xlu0 %v4640, 127
          %v4648 = vpop.permute.xlu0 %4647
          %v4649 = vmax.f32 %v4637, %v4642
          %v4650 = vmax.f32 %v4638, %v4644
          %v4651 = vmax.f32 %v4639, %v4646
          %v4652 = vmax.f32 %v4640, %v4648
          %4653 = vrot.lane.b32.xlu0 %v4649, 126
          %v4654 = vpop.permute.xlu0 %4653
          %4655 = vrot.lane.b32.xlu0 %v4650, 126
          %v4656 = vpop.permute.xlu0 %4655
          %4657 = vrot.lane.b32.xlu0 %v4651, 126
          %v4658 = vpop.permute.xlu0 %4657
          %4659 = vrot.lane.b32.xlu0 %v4652, 126
          %v4660 = vpop.permute.xlu0 %4659
          %v4661 = vmax.f32 %v4649, %v4654
          %v4662 = vmax.f32 %v4650, %v4656
          %v4663 = vmax.f32 %v4651, %v4658
          %v4664 = vmax.f32 %v4652, %v4660
          %s4665 = sld [smem:[#allocation14 + $0x3]]
          %v4666 = vstv %s4665
          %v4667 = vadd.f32 %v4661, %v4666
          %v4668 = vadd.f32 %v4662, %v4666
          %v4669 = vadd.f32 %v4663, %v4666
          %v4670 = vadd.f32 %v4664, %v4666
          %v4671 = vmax.f32 %v4667, 0.0
          %v4672 = vmax.f32 %v4668, 0.0
          %v4673 = vmax.f32 %v4669, 0.0
          %v4674 = vmax.f32 %v4670, 0.0
          %4675 = vmatprep.subr.mxu0 0.0
          %4676 = vmatpush1.msra.mxu0 %v1707
          %4677 = vmatprep.subr.mxu0 0.0
          %4678 = vmatpush1.msra.mxu0 %v1708
          %4679 = vmatprep.subr.mxu0 0.0
          %4680 = vmatpush1.msra.mxu0 %v1709
          %4681 = vmatprep.subr.mxu0 0.0
          %4682 = vmatpush1.msra.mxu0 %v1710
          %4683 = vmatprep.subr.mxu0 0.0
          %4684 = vmatpush1.msra.mxu0 %v1711
          %4685 = vmatprep.subr.mxu0 0.0
          %4686 = vmatpush1.msra.mxu0 %v1712
          %4687 = vmatprep.subr.mxu0 0.0
          %4688 = vmatpush1.msra.mxu0 %v1713
          %4689 = vmatprep.subr.mxu0 0.0
          %4690 = vmatpush1.msra.mxu0 %v1714
          %4691 = vmatprep.subr.mxu0 0.0
          %4692 = vmatpush1.msra.mxu0 %v1715
          %4693 = vmatprep.subr.mxu0 0.0
          %4694 = vmatpush1.msra.mxu0 %v1716
          %4695 = vmatprep.subr.mxu0 0.0
          %4696 = vmatpush1.msra.mxu0 %v1717
          %4697 = vmatprep.subr.mxu0 0.0
          %4698 = vmatpush1.msra.mxu0 %v1718
          %4699 = vmatprep.subr.mxu0 0.0
          %4700 = vmatpush1.msra.mxu0 %v1719
          %4701 = vmatprep.subr.mxu0 0.0
          %4702 = vmatpush1.msra.mxu0 %v1720
          %4703 = vmatprep.subr.mxu0 0.0
          %4704 = vmatpush1.msra.mxu0 %v1721
          %4705 = vmatprep.subr.mxu0 0.0
          %4706 = vmatpush1.msra.mxu0 %v1722
          %4707 = vmatprep.subr.mxu0 0.0
          %4708 = vmatpush1.msra.mxu0 0.0
          %4709 = vmatprep.subr.mxu0 0.0
          %4710 = vmatpush1.msra.mxu0 0.0
          %4711 = vmatprep.subr.mxu0 0.0
          %4712 = vmatpush1.msra.mxu0 0.0
          %4713 = vmatprep.subr.mxu0 0.0
          %4714 = vmatpush1.msra.mxu0 0.0
          %4715 = vmatprep.subr.mxu0 0.0
          %4716 = vmatpush1.msra.mxu0 0.0
          %4717 = vmatprep.subr.mxu0 0.0
          %4718 = vmatpush1.msra.mxu0 0.0
          %4719 = vmatprep.subr.mxu0 0.0
          %4720 = vmatpush1.msra.mxu0 0.0
          %4721 = vmatprep.subr.mxu0 0.0
          %4722 = vmatpush1.msra.mxu0 0.0
          %4723 = vmatprep.subr.mxu0 0.0
          %4724 = vmatpush1.msra.mxu0 0.0
          %4725 = vmatprep.subr.mxu0 0.0
          %4726 = vmatpush1.msra.mxu0 0.0
          %4727 = vmatprep.subr.mxu0 0.0
          %4728 = vmatpush1.msra.mxu0 0.0
          %4729 = vmatprep.subr.mxu0 0.0
          %4730 = vmatpush1.msra.mxu0 0.0
          %4731 = vmatprep.subr.mxu0 0.0
          %4732 = vmatpush1.msra.mxu0 0.0
          %4733 = vmatprep.subr.mxu0 0.0
          %4734 = vmatpush1.msra.mxu0 0.0
          %4735 = vmatprep.subr.mxu0 0.0
          %4736 = vmatpush1.msra.mxu0 0.0
          %4737 = vmatprep.subr.mxu0 0.0
          %4738 = vmatpush1.msra.mxu0 0.0
          %4739 = vmatprep.mubr.f32.mxu0 0.0
          %4740 = vmatmul.mubr.f32.gmra.mrb[0].mxu0 %v4671
          %v4741 = vpop.f32.mrb[0].mxu0
          %v4742 = vadd.f32 0.0, %v4741
          %v4743 = vpop.f32.mrb[0].mxu0
          %4744 = vmatprep.mubr.f32.mxu0 0.0
          %4745 = vmatmul.mubr.f32.gmra.mrb[0].mxu0 %v4672
          %v4746 = vpop.f32.mrb[0].mxu0
          %v4747 = vadd.f32 0.0, %v4746
          %v4748 = vpop.f32.mrb[0].mxu0
          %4749 = vmatprep.mubr.f32.mxu0 0.0
          %4750 = vmatmul.mubr.f32.gmra.mrb[0].mxu0 %v4673
          %v4751 = vpop.f32.mrb[0].mxu0
          %v4752 = vadd.f32 0.0, %v4751
          %v4753 = vpop.f32.mrb[0].mxu0
          %4754 = vmatprep.mubr.f32.mxu0 0.0
          %4755 = vmatmul.mubr.f32.gmra.mrb[0].mxu0 %v4674
          %v4756 = vpop.f32.mrb[0].mxu0
          %v4757 = vadd.f32 0.0, %v4756
          %v4758 = vpop.f32.mrb[0].mxu0
          %4759 = vdwg.mxu0
          %4760 = vrot.lane.b32.xlu0 %v4742, 96
          %v4761 = vpop.permute.xlu0 %4760
          %4762 = vrot.lane.b32.xlu0 %v4747, 96
          %v4763 = vpop.permute.xlu0 %4762
          %4764 = vrot.lane.b32.xlu0 %v4752, 96
          %v4765 = vpop.permute.xlu0 %4764
          %4766 = vrot.lane.b32.xlu0 %v4757, 96
          %v4767 = vpop.permute.xlu0 %4766
          %v4768 = vadd.f32 %v4601, %v4761
          %v4769 = vadd.f32 %v4602, %v4763
          %v4770 = vadd.f32 %v4603, %v4765
          %v4771 = vadd.f32 %v4604, %v4767
          %s4772 = smul.u32 %s453, 32
          %s4773 = scalar_lea.vmem [#allocation2], %s4772
          %4774 = vst [vmem:[%s4773] sm:$0xff] %v4768
          %4775 = vst [vmem:[%s4773 + $0x8] sm:$0xff] %v4769
          %4776 = vst [vmem:[%s4773 + $0x10] sm:$0xff] %v4770
          %4777 = vst [vmem:[%s4773 + $0x18] sm:$0xff] %v4771
        $region93: #{cnn128_forward.1} parent=55 // loop_footer
          %s457 = sadd.s32 1, %s453
        $region94: #{cnn128_forward.1} parent=55 // loop_footer_branch
          %452 = sbr.rel target = $region90
        $region95: #{cnn128_forward.1} parent=55 // loop_exit
          _
        %v4778 = vld [vmem:[#allocation2] ss:$32 sm:$0x1]
        %v4779 = vld [vmem:[#allocation2] ss:$32 sm:$0x2]
        %v4780 = vor.u32 %v4778, %v4779
        %v4781 = vld [vmem:[#allocation2] ss:$32 sm:$0x4]
        %v4782 = vor.u32 %v4780, %v4781
        %v4783 = vld [vmem:[#allocation2] ss:$32 sm:$0x8]
        %v4784 = vor.u32 %v4782, %v4783
        %v4785 = vld [vmem:[#allocation15] sm:$0xff]
        %v4786 = vld [vmem:[#allocation15 + $0x8] sm:$0xff]
        %v4787 = vld [vmem:[#allocation15 + $0x10] sm:$0xff]
        %v4788 = vld [vmem:[#allocation15 + $0x18] sm:$0xff]
        %v4789 = vld [vmem:[#allocation15 + $0x20] sm:$0xff]
        %v4790 = vld [vmem:[#allocation15 + $0x28] sm:$0xff]
        %v4791 = vld [vmem:[#allocation15 + $0x30] sm:$0xff]
        %v4792 = vld [vmem:[#allocation15 + $0x38] sm:$0xff]
        %v4793 = vld [vmem:[#allocation15 + $0x40] sm:$0xff]
        %v4794 = vld [vmem:[#allocation15 + $0x48] sm:$0xff]
        %v4795 = vld [vmem:[#allocation15 + $0x50] sm:$0xff]
        %v4796 = vld [vmem:[#allocation15 + $0x58] sm:$0xff]
        %v4797 = vld [vmem:[#allocation15 + $0x60] sm:$0xff]
        %v4798 = vld [vmem:[#allocation15 + $0x68] sm:$0xff]
        %v4799 = vld [vmem:[#allocation15 + $0x70] sm:$0xff]
        %v4800 = vld [vmem:[#allocation15 + $0x78] sm:$0xff]
        %v4801 = vld [vmem:[#allocation15 + $0x80] sm:$0xff]
        %v4802 = vld [vmem:[#allocation15 + $0x88] sm:$0xff]
        %v4803 = vld [vmem:[#allocation15 + $0x90] sm:$0xff]
        %v4804 = vld [vmem:[#allocation15 + $0x98] sm:$0xff]
        %v4805 = vld [vmem:[#allocation15 + $0xa0] sm:$0xff]
        %v4806 = vld [vmem:[#allocation15 + $0xa8] sm:$0xff]
        %v4807 = vld [vmem:[#allocation15 + $0xb0] sm:$0xff]
        %v4808 = vld [vmem:[#allocation15 + $0xb8] sm:$0xff]
        %v4809 = vld [vmem:[#allocation15 + $0xc0] sm:$0xff]
        %v4810 = vld [vmem:[#allocation15 + $0xc8] sm:$0xff]
        %v4811 = vld [vmem:[#allocation15 + $0xd0] sm:$0xff]
        %v4812 = vld [vmem:[#allocation15 + $0xd8] sm:$0xff]
        %v4813 = vld [vmem:[#allocation15 + $0xe0] sm:$0xff]
        %v4814 = vld [vmem:[#allocation15 + $0xe8] sm:$0xff]
        %v4815 = vld [vmem:[#allocation15 + $0xf0] sm:$0xff]
        %v4816 = vld [vmem:[#allocation15 + $0xf8] sm:$0xff]
        %s4817 = scalar_lea.vmem [#allocation2], 4
        %v4818 = vld [vmem:[%s4817] ss:$32 sm:$0x1]
        %v4819 = vld [vmem:[%s4817] ss:$32 sm:$0x2]
        %v4820 = vor.u32 %v4818, %v4819
        %v4821 = vld [vmem:[%s4817] ss:$32 sm:$0x4]
        %v4822 = vor.u32 %v4820, %v4821
        %v4823 = vld [vmem:[%s4817] ss:$32 sm:$0x8]
        %v4824 = vor.u32 %v4822, %v4823
        %s4825 = scalar_lea.vmem [#allocation15], 256
        %v4826 = vld [vmem:[%s4825] sm:$0xff]
        %v4827 = vld [vmem:[%s4825 + $0x8] sm:$0xff]
        %v4828 = vld [vmem:[%s4825 + $0x10] sm:$0xff]
        %v4829 = vld [vmem:[%s4825 + $0x18] sm:$0xff]
        %v4830 = vld [vmem:[%s4825 + $0x20] sm:$0xff]
        %v4831 = vld [vmem:[%s4825 + $0x28] sm:$0xff]
        %v4832 = vld [vmem:[%s4825 + $0x30] sm:$0xff]
        %v4833 = vld [vmem:[%s4825 + $0x38] sm:$0xff]
        %v4834 = vld [vmem:[%s4825 + $0x40] sm:$0xff]
        %v4835 = vld [vmem:[%s4825 + $0x48] sm:$0xff]
        %v4836 = vld [vmem:[%s4825 + $0x50] sm:$0xff]
        %v4837 = vld [vmem:[%s4825 + $0x58] sm:$0xff]
        %v4838 = vld [vmem:[%s4825 + $0x60] sm:$0xff]
        %v4839 = vld [vmem:[%s4825 + $0x68] sm:$0xff]
        %v4840 = vld [vmem:[%s4825 + $0x70] sm:$0xff]
        %v4841 = vld [vmem:[%s4825 + $0x78] sm:$0xff]
        %v4842 = vld [vmem:[%s4825 + $0x80] sm:$0xff]
        %v4843 = vld [vmem:[%s4825 + $0x88] sm:$0xff]
        %v4844 = vld [vmem:[%s4825 + $0x90] sm:$0xff]
        %v4845 = vld [vmem:[%s4825 + $0x98] sm:$0xff]
        %v4846 = vld [vmem:[%s4825 + $0xa0] sm:$0xff]
        %v4847 = vld [vmem:[%s4825 + $0xa8] sm:$0xff]
        %v4848 = vld [vmem:[%s4825 + $0xb0] sm:$0xff]
        %v4849 = vld [vmem:[%s4825 + $0xb8] sm:$0xff]
        %v4850 = vld [vmem:[%s4825 + $0xc0] sm:$0xff]
        %v4851 = vld [vmem:[%s4825 + $0xc8] sm:$0xff]
        %v4852 = vld [vmem:[%s4825 + $0xd0] sm:$0xff]
        %v4853 = vld [vmem:[%s4825 + $0xd8] sm:$0xff]
        %v4854 = vld [vmem:[%s4825 + $0xe0] sm:$0xff]
        %v4855 = vld [vmem:[%s4825 + $0xe8] sm:$0xff]
        %v4856 = vld [vmem:[%s4825 + $0xf0] sm:$0xff]
        %v4857 = vld [vmem:[%s4825 + $0xf8] sm:$0xff]
        %4858 = vmatprep.subr.mxu0 %v4827
        %4859 = vmatpush1.msra.mxu0 %v4826
        %4860 = vmatprep.subr.mxu0 %v4829
        %4861 = vmatpush1.msra.mxu0 %v4828
        %4862 = vmatprep.subr.mxu0 %v4831
        %4863 = vmatpush1.msra.mxu0 %v4830
        %4864 = vmatprep.subr.mxu0 %v4833
        %4865 = vmatpush1.msra.mxu0 %v4832
        %4866 = vmatprep.subr.mxu0 %v4835
        %4867 = vmatpush1.msra.mxu0 %v4834
        %4868 = vmatprep.subr.mxu0 %v4837
        %4869 = vmatpush1.msra.mxu0 %v4836
        %4870 = vmatprep.subr.mxu0 %v4839
        %4871 = vmatpush1.msra.mxu0 %v4838
        %4872 = vmatprep.subr.mxu0 %v4841
        %4873 = vmatpush1.msra.mxu0 %v4840
        %4874 = vmatprep.subr.mxu0 %v4843
        %4875 = vmatpush1.msra.mxu0 %v4842
        %4876 = vmatprep.subr.mxu0 %v4845
        %4877 = vmatpush1.msra.mxu0 %v4844
        %4878 = vmatprep.subr.mxu0 %v4847
        %4879 = vmatpush1.msra.mxu0 %v4846
        %4880 = vmatprep.subr.mxu0 %v4849
        %4881 = vmatpush1.msra.mxu0 %v4848
        %4882 = vmatprep.subr.mxu0 %v4851
        %4883 = vmatpush1.msra.mxu0 %v4850
        %4884 = vmatprep.subr.mxu0 %v4853
        %4885 = vmatpush1.msra.mxu0 %v4852
        %4886 = vmatprep.subr.mxu0 %v4855
        %4887 = vmatpush1.msra.mxu0 %v4854
        %4888 = vmatprep.subr.mxu0 %v4857
        %4889 = vmatpush1.msra.mxu0 %v4856
        %4890 = vmatprep.subr.mxu0 0.0
        %4891 = vmatpush1.msra.mxu0 0.0
        %4892 = vmatprep.subr.mxu0 0.0
        %4893 = vmatpush1.msra.mxu0 0.0
        %4894 = vmatprep.subr.mxu0 0.0
        %4895 = vmatpush1.msra.mxu0 0.0
        %4896 = vmatprep.subr.mxu0 0.0
        %4897 = vmatpush1.msra.mxu0 0.0
        %4898 = vmatprep.subr.mxu0 0.0
        %4899 = vmatpush1.msra.mxu0 0.0
        %4900 = vmatprep.subr.mxu0 0.0
        %4901 = vmatpush1.msra.mxu0 0.0
        %4902 = vmatprep.subr.mxu0 0.0
        %4903 = vmatpush1.msra.mxu0 0.0
        %4904 = vmatprep.subr.mxu0 0.0
        %4905 = vmatpush1.msra.mxu0 0.0
        %4906 = vmatprep.subr.mxu0 0.0
        %4907 = vmatpush1.msra.mxu0 0.0
        %4908 = vmatprep.subr.mxu0 0.0
        %4909 = vmatpush1.msra.mxu0 0.0
        %4910 = vmatprep.subr.mxu0 0.0
        %4911 = vmatpush1.msra.mxu0 0.0
        %4912 = vmatprep.subr.mxu0 0.0
        %4913 = vmatpush1.msra.mxu0 0.0
        %4914 = vmatprep.subr.mxu0 0.0
        %4915 = vmatpush1.msra.mxu0 0.0
        %4916 = vmatprep.subr.mxu0 0.0
        %4917 = vmatpush1.msra.mxu0 0.0
        %4918 = vmatprep.subr.mxu0 0.0
        %4919 = vmatpush1.msra.mxu0 0.0
        %4920 = vmatprep.subr.mxu0 0.0
        %4921 = vmatpush1.msra.mxu0 0.0
        %4922 = vmatprep.mubr.f32.mxu0 0.0
        %4923 = vmatmul.mubr.f32.gmra.mrb[0].mxu0 %v4824
        %v4924 = vpop.f32.mrb[0].mxu0
        %v4925 = vadd.f32 0.0, %v4924
        %v4926 = vpop.f32.mrb[0].mxu0
        %v4927 = vadd.f32 0.0, %v4926
        %4928 = vdwg.mxu0
        %4929 = vmatprep.subr.mxu0 %v4786
        %4930 = vmatpush1.msra.mxu0 %v4785
        %4931 = vmatprep.subr.mxu0 %v4788
        %4932 = vmatpush1.msra.mxu0 %v4787
        %4933 = vmatprep.subr.mxu0 %v4790
        %4934 = vmatpush1.msra.mxu0 %v4789
        %4935 = vmatprep.subr.mxu0 %v4792
        %4936 = vmatpush1.msra.mxu0 %v4791
        %4937 = vmatprep.subr.mxu0 %v4794
        %4938 = vmatpush1.msra.mxu0 %v4793
        %4939 = vmatprep.subr.mxu0 %v4796
        %4940 = vmatpush1.msra.mxu0 %v4795
        %4941 = vmatprep.subr.mxu0 %v4798
        %4942 = vmatpush1.msra.mxu0 %v4797
        %4943 = vmatprep.subr.mxu0 %v4800
        %4944 = vmatpush1.msra.mxu0 %v4799
        %4945 = vmatprep.subr.mxu0 %v4802
        %4946 = vmatpush1.msra.mxu0 %v4801
        %4947 = vmatprep.subr.mxu0 %v4804
        %4948 = vmatpush1.msra.mxu0 %v4803
        %4949 = vmatprep.subr.mxu0 %v4806
        %4950 = vmatpush1.msra.mxu0 %v4805
        %4951 = vmatprep.subr.mxu0 %v4808
        %4952 = vmatpush1.msra.mxu0 %v4807
        %4953 = vmatprep.subr.mxu0 %v4810
        %4954 = vmatpush1.msra.mxu0 %v4809
        %4955 = vmatprep.subr.mxu0 %v4812
        %4956 = vmatpush1.msra.mxu0 %v4811
        %4957 = vmatprep.subr.mxu0 %v4814
        %4958 = vmatpush1.msra.mxu0 %v4813
        %4959 = vmatprep.subr.mxu0 %v4816
        %4960 = vmatpush1.msra.mxu0 %v4815
        %4961 = vmatprep.subr.mxu0 0.0
        %4962 = vmatpush1.msra.mxu0 0.0
        %4963 = vmatprep.subr.mxu0 0.0
        %4964 = vmatpush1.msra.mxu0 0.0
        %4965 = vmatprep.subr.mxu0 0.0
        %4966 = vmatpush1.msra.mxu0 0.0
        %4967 = vmatprep.subr.mxu0 0.0
        %4968 = vmatpush1.msra.mxu0 0.0
        %4969 = vmatprep.subr.mxu0 0.0
        %4970 = vmatpush1.msra.mxu0 0.0
        %4971 = vmatprep.subr.mxu0 0.0
        %4972 = vmatpush1.msra.mxu0 0.0
        %4973 = vmatprep.subr.mxu0 0.0
        %4974 = vmatpush1.msra.mxu0 0.0
        %4975 = vmatprep.subr.mxu0 0.0
        %4976 = vmatpush1.msra.mxu0 0.0
        %4977 = vmatprep.subr.mxu0 0.0
        %4978 = vmatpush1.msra.mxu0 0.0
        %4979 = vmatprep.subr.mxu0 0.0
        %4980 = vmatpush1.msra.mxu0 0.0
        %4981 = vmatprep.subr.mxu0 0.0
        %4982 = vmatpush1.msra.mxu0 0.0
        %4983 = vmatprep.subr.mxu0 0.0
        %4984 = vmatpush1.msra.mxu0 0.0
        %4985 = vmatprep.subr.mxu0 0.0
        %4986 = vmatpush1.msra.mxu0 0.0
        %4987 = vmatprep.subr.mxu0 0.0
        %4988 = vmatpush1.msra.mxu0 0.0
        %4989 = vmatprep.subr.mxu0 0.0
        %4990 = vmatpush1.msra.mxu0 0.0
        %4991 = vmatprep.subr.mxu0 0.0
        %4992 = vmatpush1.msra.mxu0 0.0
        %4993 = vmatprep.mubr.f32.mxu0 0.0
        %4994 = vmatmul.mubr.f32.gmra.mrb[0].mxu0 %v4784
        %v4995 = vpop.f32.mrb[0].mxu0
        %v4996 = vadd.f32 %v4925, %v4995
        %v4997 = vpop.f32.mrb[0].mxu0
        %v4998 = vadd.f32 %v4927, %v4997
        %4999 = vdwg.mxu0
        %s5000 = scalar_lea.vmem [#allocation2], 8
        %v5001 = vld [vmem:[%s5000] ss:$32 sm:$0x1]
        %v5002 = vld [vmem:[%s5000] ss:$32 sm:$0x2]
        %v5003 = vor.u32 %v5001, %v5002
        %v5004 = vld [vmem:[%s5000] ss:$32 sm:$0x4]
        %v5005 = vor.u32 %v5003, %v5004
        %v5006 = vld [vmem:[%s5000] ss:$32 sm:$0x8]
        %v5007 = vor.u32 %v5005, %v5006
        %s5008 = scalar_lea.vmem [#allocation15], 512
        %v5009 = vld [vmem:[%s5008] sm:$0xff]
        %v5010 = vld [vmem:[%s5008 + $0x8] sm:$0xff]
        %v5011 = vld [vmem:[%s5008 + $0x10] sm:$0xff]
        %v5012 = vld [vmem:[%s5008 + $0x18] sm:$0xff]
        %v5013 = vld [vmem:[%s5008 + $0x20] sm:$0xff]
        %v5014 = vld [vmem:[%s5008 + $0x28] sm:$0xff]
        %v5015 = vld [vmem:[%s5008 + $0x30] sm:$0xff]
        %v5016 = vld [vmem:[%s5008 + $0x38] sm:$0xff]
        %v5017 = vld [vmem:[%s5008 + $0x40] sm:$0xff]
        %v5018 = vld [vmem:[%s5008 + $0x48] sm:$0xff]
        %v5019 = vld [vmem:[%s5008 + $0x50] sm:$0xff]
        %v5020 = vld [vmem:[%s5008 + $0x58] sm:$0xff]
        %v5021 = vld [vmem:[%s5008 + $0x60] sm:$0xff]
        %v5022 = vld [vmem:[%s5008 + $0x68] sm:$0xff]
        %v5023 = vld [vmem:[%s5008 + $0x70] sm:$0xff]
        %v5024 = vld [vmem:[%s5008 + $0x78] sm:$0xff]
        %v5025 = vld [vmem:[%s5008 + $0x80] sm:$0xff]
        %v5026 = vld [vmem:[%s5008 + $0x88] sm:$0xff]
        %v5027 = vld [vmem:[%s5008 + $0x90] sm:$0xff]
        %v5028 = vld [vmem:[%s5008 + $0x98] sm:$0xff]
        %v5029 = vld [vmem:[%s5008 + $0xa0] sm:$0xff]
        %v5030 = vld [vmem:[%s5008 + $0xa8] sm:$0xff]
        %v5031 = vld [vmem:[%s5008 + $0xb0] sm:$0xff]
        %v5032 = vld [vmem:[%s5008 + $0xb8] sm:$0xff]
        %v5033 = vld [vmem:[%s5008 + $0xc0] sm:$0xff]
        %v5034 = vld [vmem:[%s5008 + $0xc8] sm:$0xff]
        %v5035 = vld [vmem:[%s5008 + $0xd0] sm:$0xff]
        %v5036 = vld [vmem:[%s5008 + $0xd8] sm:$0xff]
        %v5037 = vld [vmem:[%s5008 + $0xe0] sm:$0xff]
        %v5038 = vld [vmem:[%s5008 + $0xe8] sm:$0xff]
        %v5039 = vld [vmem:[%s5008 + $0xf0] sm:$0xff]
        %v5040 = vld [vmem:[%s5008 + $0xf8] sm:$0xff]
        %5041 = vmatprep.subr.mxu0 %v5010
        %5042 = vmatpush1.msra.mxu0 %v5009
        %5043 = vmatprep.subr.mxu0 %v5012
        %5044 = vmatpush1.msra.mxu0 %v5011
        %5045 = vmatprep.subr.mxu0 %v5014
        %5046 = vmatpush1.msra.mxu0 %v5013
        %5047 = vmatprep.subr.mxu0 %v5016
        %5048 = vmatpush1.msra.mxu0 %v5015
        %5049 = vmatprep.subr.mxu0 %v5018
        %5050 = vmatpush1.msra.mxu0 %v5017
        %5051 = vmatprep.subr.mxu0 %v5020
        %5052 = vmatpush1.msra.mxu0 %v5019
        %5053 = vmatprep.subr.mxu0 %v5022
        %5054 = vmatpush1.msra.mxu0 %v5021
        %5055 = vmatprep.subr.mxu0 %v5024
        %5056 = vmatpush1.msra.mxu0 %v5023
        %5057 = vmatprep.subr.mxu0 %v5026
        %5058 = vmatpush1.msra.mxu0 %v5025
        %5059 = vmatprep.subr.mxu0 %v5028
        %5060 = vmatpush1.msra.mxu0 %v5027
        %5061 = vmatprep.subr.mxu0 %v5030
        %5062 = vmatpush1.msra.mxu0 %v5029
        %5063 = vmatprep.subr.mxu0 %v5032
        %5064 = vmatpush1.msra.mxu0 %v5031
        %5065 = vmatprep.subr.mxu0 %v5034
        %5066 = vmatpush1.msra.mxu0 %v5033
        %5067 = vmatprep.subr.mxu0 %v5036
        %5068 = vmatpush1.msra.mxu0 %v5035
        %5069 = vmatprep.subr.mxu0 %v5038
        %5070 = vmatpush1.msra.mxu0 %v5037
        %5071 = vmatprep.subr.mxu0 %v5040
        %5072 = vmatpush1.msra.mxu0 %v5039
        %5073 = vmatprep.subr.mxu0 0.0
        %5074 = vmatpush1.msra.mxu0 0.0
        %5075 = vmatprep.subr.mxu0 0.0
        %5076 = vmatpush1.msra.mxu0 0.0
        %5077 = vmatprep.subr.mxu0 0.0
        %5078 = vmatpush1.msra.mxu0 0.0
        %5079 = vmatprep.subr.mxu0 0.0
        %5080 = vmatpush1.msra.mxu0 0.0
        %5081 = vmatprep.subr.mxu0 0.0
        %5082 = vmatpush1.msra.mxu0 0.0
        %5083 = vmatprep.subr.mxu0 0.0
        %5084 = vmatpush1.msra.mxu0 0.0
        %5085 = vmatprep.subr.mxu0 0.0
        %5086 = vmatpush1.msra.mxu0 0.0
        %5087 = vmatprep.subr.mxu0 0.0
        %5088 = vmatpush1.msra.mxu0 0.0
        %5089 = vmatprep.subr.mxu0 0.0
        %5090 = vmatpush1.msra.mxu0 0.0
        %5091 = vmatprep.subr.mxu0 0.0
        %5092 = vmatpush1.msra.mxu0 0.0
        %5093 = vmatprep.subr.mxu0 0.0
        %5094 = vmatpush1.msra.mxu0 0.0
        %5095 = vmatprep.subr.mxu0 0.0
        %5096 = vmatpush1.msra.mxu0 0.0
        %5097 = vmatprep.subr.mxu0 0.0
        %5098 = vmatpush1.msra.mxu0 0.0
        %5099 = vmatprep.subr.mxu0 0.0
        %5100 = vmatpush1.msra.mxu0 0.0
        %5101 = vmatprep.subr.mxu0 0.0
        %5102 = vmatpush1.msra.mxu0 0.0
        %5103 = vmatprep.subr.mxu0 0.0
        %5104 = vmatpush1.msra.mxu0 0.0
        %5105 = vmatprep.mubr.f32.mxu0 0.0
        %5106 = vmatmul.mubr.f32.gmra.mrb[0].mxu0 %v5007
        %v5107 = vpop.f32.mrb[0].mxu0
        %v5108 = vadd.f32 0.0, %v5107
        %v5109 = vpop.f32.mrb[0].mxu0
        %v5110 = vadd.f32 0.0, %v5109
        %5111 = vdwg.mxu0
        %v5112 = vadd.f32 %v4996, %v5108
        %v5113 = vadd.f32 %v4998, %v5110
        %s5114 = scalar_lea.vmem [#allocation2], 12
        %v5115 = vld [vmem:[%s5114] ss:$32 sm:$0x1]
        %v5116 = vld [vmem:[%s5114] ss:$32 sm:$0x2]
        %v5117 = vor.u32 %v5115, %v5116
        %v5118 = vld [vmem:[%s5114] ss:$32 sm:$0x4]
        %v5119 = vor.u32 %v5117, %v5118
        %v5120 = vld [vmem:[%s5114] ss:$32 sm:$0x8]
        %v5121 = vor.u32 %v5119, %v5120
        %s5122 = scalar_lea.vmem [#allocation15], 768
        %v5123 = vld [vmem:[%s5122] sm:$0xff]
        %v5124 = vld [vmem:[%s5122 + $0x8] sm:$0xff]
        %v5125 = vld [vmem:[%s5122 + $0x10] sm:$0xff]
        %v5126 = vld [vmem:[%s5122 + $0x18] sm:$0xff]
        %v5127 = vld [vmem:[%s5122 + $0x20] sm:$0xff]
        %v5128 = vld [vmem:[%s5122 + $0x28] sm:$0xff]
        %v5129 = vld [vmem:[%s5122 + $0x30] sm:$0xff]
        %v5130 = vld [vmem:[%s5122 + $0x38] sm:$0xff]
        %v5131 = vld [vmem:[%s5122 + $0x40] sm:$0xff]
        %v5132 = vld [vmem:[%s5122 + $0x48] sm:$0xff]
        %v5133 = vld [vmem:[%s5122 + $0x50] sm:$0xff]
        %v5134 = vld [vmem:[%s5122 + $0x58] sm:$0xff]
        %v5135 = vld [vmem:[%s5122 + $0x60] sm:$0xff]
        %v5136 = vld [vmem:[%s5122 + $0x68] sm:$0xff]
        %v5137 = vld [vmem:[%s5122 + $0x70] sm:$0xff]
        %v5138 = vld [vmem:[%s5122 + $0x78] sm:$0xff]
        %v5139 = vld [vmem:[%s5122 + $0x80] sm:$0xff]
        %v5140 = vld [vmem:[%s5122 + $0x88] sm:$0xff]
        %v5141 = vld [vmem:[%s5122 + $0x90] sm:$0xff]
        %v5142 = vld [vmem:[%s5122 + $0x98] sm:$0xff]
        %v5143 = vld [vmem:[%s5122 + $0xa0] sm:$0xff]
        %v5144 = vld [vmem:[%s5122 + $0xa8] sm:$0xff]
        %v5145 = vld [vmem:[%s5122 + $0xb0] sm:$0xff]
        %v5146 = vld [vmem:[%s5122 + $0xb8] sm:$0xff]
        %v5147 = vld [vmem:[%s5122 + $0xc0] sm:$0xff]
        %v5148 = vld [vmem:[%s5122 + $0xc8] sm:$0xff]
        %v5149 = vld [vmem:[%s5122 + $0xd0] sm:$0xff]
        %v5150 = vld [vmem:[%s5122 + $0xd8] sm:$0xff]
        %v5151 = vld [vmem:[%s5122 + $0xe0] sm:$0xff]
        %v5152 = vld [vmem:[%s5122 + $0xe8] sm:$0xff]
        %v5153 = vld [vmem:[%s5122 + $0xf0] sm:$0xff]
        %v5154 = vld [vmem:[%s5122 + $0xf8] sm:$0xff]
        %5155 = vmatprep.subr.mxu0 %v5124
        %5156 = vmatpush1.msra.mxu0 %v5123
        %5157 = vmatprep.subr.mxu0 %v5126
        %5158 = vmatpush1.msra.mxu0 %v5125
        %5159 = vmatprep.subr.mxu0 %v5128
        %5160 = vmatpush1.msra.mxu0 %v5127
        %5161 = vmatprep.subr.mxu0 %v5130
        %5162 = vmatpush1.msra.mxu0 %v5129
        %5163 = vmatprep.subr.mxu0 %v5132
        %5164 = vmatpush1.msra.mxu0 %v5131
        %5165 = vmatprep.subr.mxu0 %v5134
        %5166 = vmatpush1.msra.mxu0 %v5133
        %5167 = vmatprep.subr.mxu0 %v5136
        %5168 = vmatpush1.msra.mxu0 %v5135
        %5169 = vmatprep.subr.mxu0 %v5138
        %5170 = vmatpush1.msra.mxu0 %v5137
        %5171 = vmatprep.subr.mxu0 %v5140
        %5172 = vmatpush1.msra.mxu0 %v5139
        %5173 = vmatprep.subr.mxu0 %v5142
        %5174 = vmatpush1.msra.mxu0 %v5141
        %5175 = vmatprep.subr.mxu0 %v5144
        %5176 = vmatpush1.msra.mxu0 %v5143
        %5177 = vmatprep.subr.mxu0 %v5146
        %5178 = vmatpush1.msra.mxu0 %v5145
        %5179 = vmatprep.subr.mxu0 %v5148
        %5180 = vmatpush1.msra.mxu0 %v5147
        %5181 = vmatprep.subr.mxu0 %v5150
        %5182 = vmatpush1.msra.mxu0 %v5149
        %5183 = vmatprep.subr.mxu0 %v5152
        %5184 = vmatpush1.msra.mxu0 %v5151
        %5185 = vmatprep.subr.mxu0 %v5154
        %5186 = vmatpush1.msra.mxu0 %v5153
        %5187 = vmatprep.subr.mxu0 0.0
        %5188 = vmatpush1.msra.mxu0 0.0
        %5189 = vmatprep.subr.mxu0 0.0
        %5190 = vmatpush1.msra.mxu0 0.0
        %5191 = vmatprep.subr.mxu0 0.0
        %5192 = vmatpush1.msra.mxu0 0.0
        %5193 = vmatprep.subr.mxu0 0.0
        %5194 = vmatpush1.msra.mxu0 0.0
        %5195 = vmatprep.subr.mxu0 0.0
        %5196 = vmatpush1.msra.mxu0 0.0
        %5197 = vmatprep.subr.mxu0 0.0
        %5198 = vmatpush1.msra.mxu0 0.0
        %5199 = vmatprep.subr.mxu0 0.0
        %5200 = vmatpush1.msra.mxu0 0.0
        %5201 = vmatprep.subr.mxu0 0.0
        %5202 = vmatpush1.msra.mxu0 0.0
        %5203 = vmatprep.subr.mxu0 0.0
        %5204 = vmatpush1.msra.mxu0 0.0
        %5205 = vmatprep.subr.mxu0 0.0
        %5206 = vmatpush1.msra.mxu0 0.0
        %5207 = vmatprep.subr.mxu0 0.0
        %5208 = vmatpush1.msra.mxu0 0.0
        %5209 = vmatprep.subr.mxu0 0.0
        %5210 = vmatpush1.msra.mxu0 0.0
        %5211 = vmatprep.subr.mxu0 0.0
        %5212 = vmatpush1.msra.mxu0 0.0
        %5213 = vmatprep.subr.mxu0 0.0
        %5214 = vmatpush1.msra.mxu0 0.0
        %5215 = vmatprep.subr.mxu0 0.0
        %5216 = vmatpush1.msra.mxu0 0.0
        %5217 = vmatprep.subr.mxu0 0.0
        %5218 = vmatpush1.msra.mxu0 0.0
        %5219 = vmatprep.mubr.f32.mxu0 0.0
        %5220 = vmatmul.mubr.f32.gmra.mrb[0].mxu0 %v5121
        %v5221 = vpop.f32.mrb[0].mxu0
        %v5222 = vadd.f32 0.0, %v5221
        %v5223 = vpop.f32.mrb[0].mxu0
        %v5224 = vadd.f32 0.0, %v5223
        %5225 = vdwg.mxu0
        %v5226 = vadd.f32 %v5112, %v5222
        %v5227 = vadd.f32 %v5113, %v5224
        %s5228 = scalar_lea.vmem [#allocation2], 16
        %v5229 = vld [vmem:[%s5228] ss:$32 sm:$0x1]
        %v5230 = vld [vmem:[%s5228] ss:$32 sm:$0x2]
        %v5231 = vor.u32 %v5229, %v5230
        %v5232 = vld [vmem:[%s5228] ss:$32 sm:$0x4]
        %v5233 = vor.u32 %v5231, %v5232
        %v5234 = vld [vmem:[%s5228] ss:$32 sm:$0x8]
        %v5235 = vor.u32 %v5233, %v5234
        %s5236 = scalar_lea.vmem [#allocation15], 1024
        %v5237 = vld [vmem:[%s5236] sm:$0xff]
        %v5238 = vld [vmem:[%s5236 + $0x8] sm:$0xff]
        %v5239 = vld [vmem:[%s5236 + $0x10] sm:$0xff]
        %v5240 = vld [vmem:[%s5236 + $0x18] sm:$0xff]
        %v5241 = vld [vmem:[%s5236 + $0x20] sm:$0xff]
        %v5242 = vld [vmem:[%s5236 + $0x28] sm:$0xff]
        %v5243 = vld [vmem:[%s5236 + $0x30] sm:$0xff]
        %v5244 = vld [vmem:[%s5236 + $0x38] sm:$0xff]
        %v5245 = vld [vmem:[%s5236 + $0x40] sm:$0xff]
        %v5246 = vld [vmem:[%s5236 + $0x48] sm:$0xff]
        %v5247 = vld [vmem:[%s5236 + $0x50] sm:$0xff]
        %v5248 = vld [vmem:[%s5236 + $0x58] sm:$0xff]
        %v5249 = vld [vmem:[%s5236 + $0x60] sm:$0xff]
        %v5250 = vld [vmem:[%s5236 + $0x68] sm:$0xff]
        %v5251 = vld [vmem:[%s5236 + $0x70] sm:$0xff]
        %v5252 = vld [vmem:[%s5236 + $0x78] sm:$0xff]
        %v5253 = vld [vmem:[%s5236 + $0x80] sm:$0xff]
        %v5254 = vld [vmem:[%s5236 + $0x88] sm:$0xff]
        %v5255 = vld [vmem:[%s5236 + $0x90] sm:$0xff]
        %v5256 = vld [vmem:[%s5236 + $0x98] sm:$0xff]
        %v5257 = vld [vmem:[%s5236 + $0xa0] sm:$0xff]
        %v5258 = vld [vmem:[%s5236 + $0xa8] sm:$0xff]
        %v5259 = vld [vmem:[%s5236 + $0xb0] sm:$0xff]
        %v5260 = vld [vmem:[%s5236 + $0xb8] sm:$0xff]
        %v5261 = vld [vmem:[%s5236 + $0xc0] sm:$0xff]
        %v5262 = vld [vmem:[%s5236 + $0xc8] sm:$0xff]
        %v5263 = vld [vmem:[%s5236 + $0xd0] sm:$0xff]
        %v5264 = vld [vmem:[%s5236 + $0xd8] sm:$0xff]
        %v5265 = vld [vmem:[%s5236 + $0xe0] sm:$0xff]
        %v5266 = vld [vmem:[%s5236 + $0xe8] sm:$0xff]
        %v5267 = vld [vmem:[%s5236 + $0xf0] sm:$0xff]
        %v5268 = vld [vmem:[%s5236 + $0xf8] sm:$0xff]
        %5269 = vmatprep.subr.mxu0 %v5238
        %5270 = vmatpush1.msra.mxu0 %v5237
        %5271 = vmatprep.subr.mxu0 %v5240
        %5272 = vmatpush1.msra.mxu0 %v5239
        %5273 = vmatprep.subr.mxu0 %v5242
        %5274 = vmatpush1.msra.mxu0 %v5241
        %5275 = vmatprep.subr.mxu0 %v5244
        %5276 = vmatpush1.msra.mxu0 %v5243
        %5277 = vmatprep.subr.mxu0 %v5246
        %5278 = vmatpush1.msra.mxu0 %v5245
        %5279 = vmatprep.subr.mxu0 %v5248
        %5280 = vmatpush1.msra.mxu0 %v5247
        %5281 = vmatprep.subr.mxu0 %v5250
        %5282 = vmatpush1.msra.mxu0 %v5249
        %5283 = vmatprep.subr.mxu0 %v5252
        %5284 = vmatpush1.msra.mxu0 %v5251
        %5285 = vmatprep.subr.mxu0 %v5254
        %5286 = vmatpush1.msra.mxu0 %v5253
        %5287 = vmatprep.subr.mxu0 %v5256
        %5288 = vmatpush1.msra.mxu0 %v5255
        %5289 = vmatprep.subr.mxu0 %v5258
        %5290 = vmatpush1.msra.mxu0 %v5257
        %5291 = vmatprep.subr.mxu0 %v5260
        %5292 = vmatpush1.msra.mxu0 %v5259
        %5293 = vmatprep.subr.mxu0 %v5262
        %5294 = vmatpush1.msra.mxu0 %v5261
        %5295 = vmatprep.subr.mxu0 %v5264
        %5296 = vmatpush1.msra.mxu0 %v5263
        %5297 = vmatprep.subr.mxu0 %v5266
        %5298 = vmatpush1.msra.mxu0 %v5265
        %5299 = vmatprep.subr.mxu0 %v5268
        %5300 = vmatpush1.msra.mxu0 %v5267
        %5301 = vmatprep.subr.mxu0 0.0
        %5302 = vmatpush1.msra.mxu0 0.0
        %5303 = vmatprep.subr.mxu0 0.0
        %5304 = vmatpush1.msra.mxu0 0.0
        %5305 = vmatprep.subr.mxu0 0.0
        %5306 = vmatpush1.msra.mxu0 0.0
        %5307 = vmatprep.subr.mxu0 0.0
        %5308 = vmatpush1.msra.mxu0 0.0
        %5309 = vmatprep.subr.mxu0 0.0
        %5310 = vmatpush1.msra.mxu0 0.0
        %5311 = vmatprep.subr.mxu0 0.0
        %5312 = vmatpush1.msra.mxu0 0.0
        %5313 = vmatprep.subr.mxu0 0.0
        %5314 = vmatpush1.msra.mxu0 0.0
        %5315 = vmatprep.subr.mxu0 0.0
        %5316 = vmatpush1.msra.mxu0 0.0
        %5317 = vmatprep.subr.mxu0 0.0
        %5318 = vmatpush1.msra.mxu0 0.0
        %5319 = vmatprep.subr.mxu0 0.0
        %5320 = vmatpush1.msra.mxu0 0.0
        %5321 = vmatprep.subr.mxu0 0.0
        %5322 = vmatpush1.msra.mxu0 0.0
        %5323 = vmatprep.subr.mxu0 0.0
        %5324 = vmatpush1.msra.mxu0 0.0
        %5325 = vmatprep.subr.mxu0 0.0
        %5326 = vmatpush1.msra.mxu0 0.0
        %5327 = vmatprep.subr.mxu0 0.0
        %5328 = vmatpush1.msra.mxu0 0.0
        %5329 = vmatprep.subr.mxu0 0.0
        %5330 = vmatpush1.msra.mxu0 0.0
        %5331 = vmatprep.subr.mxu0 0.0
        %5332 = vmatpush1.msra.mxu0 0.0
        %5333 = vmatprep.mubr.f32.mxu0 0.0
        %5334 = vmatmul.mubr.f32.gmra.mrb[0].mxu0 %v5235
        %v5335 = vpop.f32.mrb[0].mxu0
        %v5336 = vadd.f32 0.0, %v5335
        %v5337 = vpop.f32.mrb[0].mxu0
        %v5338 = vadd.f32 0.0, %v5337
        %5339 = vdwg.mxu0
        %v5340 = vadd.f32 %v5226, %v5336
        %v5341 = vadd.f32 %v5227, %v5338
        %s5342 = scalar_lea.vmem [#allocation2], 20
        %v5343 = vld [vmem:[%s5342] ss:$32 sm:$0x1]
        %v5344 = vld [vmem:[%s5342] ss:$32 sm:$0x2]
        %v5345 = vor.u32 %v5343, %v5344
        %v5346 = vld [vmem:[%s5342] ss:$32 sm:$0x4]
        %v5347 = vor.u32 %v5345, %v5346
        %v5348 = vld [vmem:[%s5342] ss:$32 sm:$0x8]
        %v5349 = vor.u32 %v5347, %v5348
        %s5350 = scalar_lea.vmem [#allocation15], 1280
        %v5351 = vld [vmem:[%s5350] sm:$0xff]
        %v5352 = vld [vmem:[%s5350 + $0x8] sm:$0xff]
        %v5353 = vld [vmem:[%s5350 + $0x10] sm:$0xff]
        %v5354 = vld [vmem:[%s5350 + $0x18] sm:$0xff]
        %v5355 = vld [vmem:[%s5350 + $0x20] sm:$0xff]
        %v5356 = vld [vmem:[%s5350 + $0x28] sm:$0xff]
        %v5357 = vld [vmem:[%s5350 + $0x30] sm:$0xff]
        %v5358 = vld [vmem:[%s5350 + $0x38] sm:$0xff]
        %v5359 = vld [vmem:[%s5350 + $0x40] sm:$0xff]
        %v5360 = vld [vmem:[%s5350 + $0x48] sm:$0xff]
        %v5361 = vld [vmem:[%s5350 + $0x50] sm:$0xff]
        %v5362 = vld [vmem:[%s5350 + $0x58] sm:$0xff]
        %v5363 = vld [vmem:[%s5350 + $0x60] sm:$0xff]
        %v5364 = vld [vmem:[%s5350 + $0x68] sm:$0xff]
        %v5365 = vld [vmem:[%s5350 + $0x70] sm:$0xff]
        %v5366 = vld [vmem:[%s5350 + $0x78] sm:$0xff]
        %v5367 = vld [vmem:[%s5350 + $0x80] sm:$0xff]
        %v5368 = vld [vmem:[%s5350 + $0x88] sm:$0xff]
        %v5369 = vld [vmem:[%s5350 + $0x90] sm:$0xff]
        %v5370 = vld [vmem:[%s5350 + $0x98] sm:$0xff]
        %v5371 = vld [vmem:[%s5350 + $0xa0] sm:$0xff]
        %v5372 = vld [vmem:[%s5350 + $0xa8] sm:$0xff]
        %v5373 = vld [vmem:[%s5350 + $0xb0] sm:$0xff]
        %v5374 = vld [vmem:[%s5350 + $0xb8] sm:$0xff]
        %v5375 = vld [vmem:[%s5350 + $0xc0] sm:$0xff]
        %v5376 = vld [vmem:[%s5350 + $0xc8] sm:$0xff]
        %v5377 = vld [vmem:[%s5350 + $0xd0] sm:$0xff]
        %v5378 = vld [vmem:[%s5350 + $0xd8] sm:$0xff]
        %v5379 = vld [vmem:[%s5350 + $0xe0] sm:$0xff]
        %v5380 = vld [vmem:[%s5350 + $0xe8] sm:$0xff]
        %v5381 = vld [vmem:[%s5350 + $0xf0] sm:$0xff]
        %v5382 = vld [vmem:[%s5350 + $0xf8] sm:$0xff]
        %5383 = vmatprep.subr.mxu0 %v5352
        %5384 = vmatpush1.msra.mxu0 %v5351
        %5385 = vmatprep.subr.mxu0 %v5354
        %5386 = vmatpush1.msra.mxu0 %v5353
        %5387 = vmatprep.subr.mxu0 %v5356
        %5388 = vmatpush1.msra.mxu0 %v5355
        %5389 = vmatprep.subr.mxu0 %v5358
        %5390 = vmatpush1.msra.mxu0 %v5357
        %5391 = vmatprep.subr.mxu0 %v5360
        %5392 = vmatpush1.msra.mxu0 %v5359
        %5393 = vmatprep.subr.mxu0 %v5362
        %5394 = vmatpush1.msra.mxu0 %v5361
        %5395 = vmatprep.subr.mxu0 %v5364
        %5396 = vmatpush1.msra.mxu0 %v5363
        %5397 = vmatprep.subr.mxu0 %v5366
        %5398 = vmatpush1.msra.mxu0 %v5365
        %5399 = vmatprep.subr.mxu0 %v5368
        %5400 = vmatpush1.msra.mxu0 %v5367
        %5401 = vmatprep.subr.mxu0 %v5370
        %5402 = vmatpush1.msra.mxu0 %v5369
        %5403 = vmatprep.subr.mxu0 %v5372
        %5404 = vmatpush1.msra.mxu0 %v5371
        %5405 = vmatprep.subr.mxu0 %v5374
        %5406 = vmatpush1.msra.mxu0 %v5373
        %5407 = vmatprep.subr.mxu0 %v5376
        %5408 = vmatpush1.msra.mxu0 %v5375
        %5409 = vmatprep.subr.mxu0 %v5378
        %5410 = vmatpush1.msra.mxu0 %v5377
        %5411 = vmatprep.subr.mxu0 %v5380
        %5412 = vmatpush1.msra.mxu0 %v5379
        %5413 = vmatprep.subr.mxu0 %v5382
        %5414 = vmatpush1.msra.mxu0 %v5381
        %5415 = vmatprep.subr.mxu0 0.0
        %5416 = vmatpush1.msra.mxu0 0.0
        %5417 = vmatprep.subr.mxu0 0.0
        %5418 = vmatpush1.msra.mxu0 0.0
        %5419 = vmatprep.subr.mxu0 0.0
        %5420 = vmatpush1.msra.mxu0 0.0
        %5421 = vmatprep.subr.mxu0 0.0
        %5422 = vmatpush1.msra.mxu0 0.0
        %5423 = vmatprep.subr.mxu0 0.0
        %5424 = vmatpush1.msra.mxu0 0.0
        %5425 = vmatprep.subr.mxu0 0.0
        %5426 = vmatpush1.msra.mxu0 0.0
        %5427 = vmatprep.subr.mxu0 0.0
        %5428 = vmatpush1.msra.mxu0 0.0
        %5429 = vmatprep.subr.mxu0 0.0
        %5430 = vmatpush1.msra.mxu0 0.0
        %5431 = vmatprep.subr.mxu0 0.0
        %5432 = vmatpush1.msra.mxu0 0.0
        %5433 = vmatprep.subr.mxu0 0.0
        %5434 = vmatpush1.msra.mxu0 0.0
        %5435 = vmatprep.subr.mxu0 0.0
        %5436 = vmatpush1.msra.mxu0 0.0
        %5437 = vmatprep.subr.mxu0 0.0
        %5438 = vmatpush1.msra.mxu0 0.0
        %5439 = vmatprep.subr.mxu0 0.0
        %5440 = vmatpush1.msra.mxu0 0.0
        %5441 = vmatprep.subr.mxu0 0.0
        %5442 = vmatpush1.msra.mxu0 0.0
        %5443 = vmatprep.subr.mxu0 0.0
        %5444 = vmatpush1.msra.mxu0 0.0
        %5445 = vmatprep.subr.mxu0 0.0
        %5446 = vmatpush1.msra.mxu0 0.0
        %5447 = vmatprep.mubr.f32.mxu0 0.0
        %5448 = vmatmul.mubr.f32.gmra.mrb[0].mxu0 %v5349
        %v5449 = vpop.f32.mrb[0].mxu0
        %v5450 = vadd.f32 0.0, %v5449
        %v5451 = vpop.f32.mrb[0].mxu0
        %v5452 = vadd.f32 0.0, %v5451
        %5453 = vdwg.mxu0
        %v5454 = vadd.f32 %v5340, %v5450
        %v5455 = vadd.f32 %v5341, %v5452
        %v5456 = vld [vmem:[%s8] sm:$0x3]
        %v5458 = vlaneseq
        %v5459 = vshrl.u32 %v5458, 7
        %v5460 = vsub.s32 0, %v5459
        %v5461 = vrot.slane %v5456, %v5460
        %v5462 = vlaneseq
        %v5463 = vshrl.u32 %v5462, 7
        %v5464 = vsub.s32 1, %v5463
        %v5465 = vrot.slane %v5456, %v5464
        %v5468 = vadd.f32 %v5454, %v5461
        %v5469 = vadd.f32 %v5455, %v5465
        %v5470 = vmax.f32 %v5468, 0.0
        %v5471 = vmax.f32 %v5469, 0.0
        %v5474 = vcombine.low %v5470, %v5471
        %5476 = vst [vmem:[%s451] sm:$0xff] %v5474
        %p5477 = scmp.lt.s32.totalorder %s27, 1
        %s5478 = scalar_select %p5477, %s27, 1
        %s5479 = smul.addr %s5478, 2
        %s5480 = smul.addr %s5479, 4
        %s5481 = scalar_lea.vmem %s9, %s5480
        // Predicated region
        $region96: #{cnn128_forward.1} parent=55 // pred_check
          %p5482 = pneg %p239
        $region97: #{cnn128_forward.1} parent=55 // pred_check_branch
          %5484 = sbr.rel (%p5482) target = $region99
        $region98: #{cnn128_forward.1} parent=55 // pred_region
          _
        $region99: #{cnn128_forward.1} parent=55 // pred_fallthru
          _
      $region56: #{cnn128_forward.1} parent=5 // pred_fallthru
        _
      %p5485 = scmp.le.s32.totalorder 2, %s22
      // Predicated region
      $region100: #{cnn128_forward.1} parent=5 // pred_check
        %p5486 = pneg %p5485
      $region101: #{cnn128_forward.1} parent=5 // pred_check_branch
        %5488 = sbr.rel (%p5486) target = $region103
      $region102: #{cnn128_forward.1} parent=5 // pred_region
        %s5489 = ssub.s32 %s22, 2
        // Predicated region
        $region104: #{cnn128_forward.1} parent=102 // pred_check
          %p5490 = pneg %p245
        $region105: #{cnn128_forward.1} parent=102 // pred_check_branch
          %5492 = sbr.rel (%p5490) target = $region107
        $region106: #{cnn128_forward.1} parent=102 // pred_region
          %p5493 = scmp.lt.s32.totalorder %s28, 1
          %s5494 = scalar_select %p5493, %s28, 1
          %s5495 = smul.addr %s5494, 2
          %s5496 = smul.addr %s5495, 4
          %s5497 = scalar_lea.vmem %s9, %s5496
        $region107: #{cnn128_forward.1} parent=102 // pred_fallthru
          _
      $region103: #{cnn128_forward.1} parent=5 // pred_fallthru
        _
    $region6: #{cnn128_forward.1} parent=1 // loop_footer
      %s26 = sadd.s32 1, %s22
    $region7: #{cnn128_forward.1} parent=1 // loop_footer_branch
      %21 = sbr.rel target = $region3
    $region8: #{cnn128_forward.1} parent=1 // loop_exit
      _
    %5498 = vsyncpa [#allocation4], 1
    %s5499 = scalar_lea.sflag [#allocation4], 1
    %5500 = vsyncpa %s5499, 1
    %5501 = vsyncpa [#allocation7], 1
    %5502 = vsyncpa [#allocation13], 1
    %5503 = vsyncpa [#allocation5], 1
    %s5504 = scalar_lea.sflag [#allocation5], 1
    %5505 = vsyncpa %s5504, 1
    %5506 = vsyncpa [#allocation11], 1

</llo_original>
